<compile_context>
chip_gen: v5e
topology: v5e:2x2
jax: 0.10.0
libtpu: 0.0.40
codegen_flags: <defaults>
</compile_context>

<pallas_src>
import jax
import jax.numpy as jnp
from jax import lax
from jax.experimental import pallas as pl
from jax.experimental.pallas import tpu as pltpu

# ---------------------------------------------------------------------------
# Config (mirrors BiLSTM_CRF.__init__ hyper-params at small sizes)
# ---------------------------------------------------------------------------
B, S = 2, 8                     # batch, sentence length
L_WORD = 12                     # max_len_word
N_CHAR, N_WORD, N_TAG = 30, 50, 7
EC, EW = 16, 32                 # dim_emb_char, dim_emb_word
OC, H = 16, 32                  # dim_out_char, dim_out_word
DIN = EW + 2 * OC               # dim_in_word
C_CHAR = 2 * OC                 # char conv output channels
IDX_PAD_CHAR = N_CHAR           # padding_idx for char embedding (last row, zero)
IDX_PAD_WORD = 0
NT_PAD = 128                    # lane-dense padded tag dimension


# ---------------------------------------------------------------------------
# Fused kernel: char CNN + BiLSTM (interleaved fwd/bwd) + hidden2tag
# ---------------------------------------------------------------------------
def fused_kernel(xc_ref, xw_ref, lens_ref,
                 wconv_ref, bconv_ref,
                 wih_w_ref, wih_c_ref, b8_ref,
                 whh_f_ref, whh_b_ref,
                 wtag_f_ref, wtag_b_ref, btag_ref,
                 out_ref,
                 gx_ref, fh_ref, bh_ref):
    # xc_ref  : (S*Bp, L+4, EC)  char embeddings, time-major flattened rows
    #                            (row = s*Bp + b); window already zero-padded
    #                            via the padding_idx embedding row.
    # xw_ref  : (S, Bp, EW)      word embeddings, time-major.
    # lens_ref: (Bp, 1) int32    sentence lengths (packed-sequence emulation).
    # wconv   : (3*EC, C)  bconv: (1, C)
    # wih_w   : (EW, 8H)   wih_c: (2*OC, 8H)   b8: (1, 8H)   [fwd 4H | bwd 4H]
    # whh_f/b : (H, 4H)    (PyTorch gate order i, f, g, o)
    # wtag_f/b: (H, NT_PAD) btag: (1, NT_PAD)
    # out_ref : (S, Bp, NT_PAD)
    # gx_ref  : (S, Bp, 8H) scratch   fh_ref/bh_ref: (S, Bp, H) scratch
    SB, Lp, Ec = xc_ref.shape
    S_, Bp, Ew = xw_ref.shape
    Hh = whh_f_ref.shape[0]
    C = bconv_ref.shape[1]
    NTp = out_ref.shape[-1]
    L_out = Lp - 2                                   # = L + 2 conv positions

    # --- char CNN: im2col (single MXU matmul) + bias + max-pool over positions
    x = xc_ref[...]
    xcol = jnp.concatenate(
        [x[:, 0:L_out, :], x[:, 1:L_out + 1, :], x[:, 2:L_out + 2, :]], axis=-1)
    conv = (jnp.dot(xcol.reshape(SB * L_out, 3 * Ec), wconv_ref[...],
                    preferred_element_type=jnp.float32) + bconv_ref[...])
    out_char = jnp.max(conv.reshape(SB, L_out, C), axis=1)          # (SB, C)

    # --- hoisted input-to-hidden gates for BOTH directions, biases folded in
    #     (split-row weights avoid the lane concat of [emb_word | out_char])
    xw = xw_ref[...].reshape(SB, Ew)
    gx = (jnp.dot(xw, wih_w_ref[...], preferred_element_type=jnp.float32)
          + jnp.dot(out_char, wih_c_ref[...], preferred_element_type=jnp.float32)
          + b8_ref[...])                                            # (SB, 8H)
    gx_ref[...] = gx.reshape(S_, Bp, 8 * Hh)

    # --- interleaved forward/backward recurrence (fully unrolled, S static)
    lens_bc = jnp.broadcast_to(lens_ref[...], (Bp, Hh))             # hoisted

    def lstm_cell(gates, c):
        i_g = jax.nn.sigmoid(gates[:, 0 * Hh:1 * Hh])
        f_g = jax.nn.sigmoid(gates[:, 1 * Hh:2 * Hh])
        g_g = jnp.tanh(gates[:, 2 * Hh:3 * Hh])
        o_g = jax.nn.sigmoid(gates[:, 3 * Hh:4 * Hh])
        c_new = f_g * c + i_g * g_g
        h_new = o_g * jnp.tanh(c_new)
        return h_new, c_new

    def body(i, carry):
        hf, cf, hb, cb = carry
        tf = i
        tb = S_ - 1 - i
        gf = (jnp.dot(hf, whh_f_ref[...], preferred_element_type=jnp.float32)
              + gx_ref[tf][:, 0:4 * Hh])
        gb = (jnp.dot(hb, whh_b_ref[...], preferred_element_type=jnp.float32)
              + gx_ref[tb][:, 4 * Hh:8 * Hh])
        hf_n, cf_n = lstm_cell(gf, cf)
        hb_n, cb_n = lstm_cell(gb, cb)
        mf = tf < lens_bc                            # (Bp, H) bool
        mb = tb < lens_bc
        fh_ref[tf] = jnp.where(mf, hf_n, 0.0)        # padded outputs -> 0
        bh_ref[tb] = jnp.where(mb, hb_n, 0.0)
        return (jnp.where(mf, hf_n, hf), jnp.where(mf, cf_n, cf),
                jnp.where(mb, hb_n, hb), jnp.where(mb, cb_n, cb))

    z = jnp.zeros((Bp, Hh), jnp.float32)
    lax.fori_loop(0, S_, body, (z, z, z, z), unroll=True)

    # --- hidden2tag (split weights: fh @ Wf + bh @ Wb, no lane concat),
    #     lane-dense NT_PAD output
    logits = (jnp.dot(fh_ref[...].reshape(SB, Hh), wtag_f_ref[...],
                      preferred_element_type=jnp.float32)
              + jnp.dot(bh_ref[...].reshape(SB, Hh), wtag_b_ref[...],
                        preferred_element_type=jnp.float32)
              + btag_ref[...])
    out_ref[...] = logits.reshape(S_, Bp, NTp)


# ---------------------------------------------------------------------------
# Wrapper (embedding gathers + batch/lane padding + one fused pallas_call)
# ---------------------------------------------------------------------------
def bilstm_crf_forward(packed, words_batch, chars_batch, lens_word):
    B_in, S_in = words_batch.shape
    B_pad = max(8, ((B_in + 7) // 8) * 8)            # fill sublanes
    pad_b = B_pad - B_in

    words_p = jnp.pad(words_batch, ((0, pad_b), (0, 0)),
                      constant_values=IDX_PAD_WORD)                   # (Bp, S)
    chars_p = jnp.pad(chars_batch, ((0, pad_b), (0, 0), (0, 0)),
                      constant_values=IDX_PAD_CHAR)                   # (Bp, S, L)
    lens_p = jnp.pad(lens_word.astype(jnp.int32), (0, pad_b))         # (Bp,)

    # Conv zero-padding folded into the gather: emb_char[IDX_PAD_CHAR] == 0.
    chars_win = jnp.pad(chars_p, ((0, 0), (0, 0), (2, 2)),
                        constant_values=IDX_PAD_CHAR)                 # (Bp, S, L+4)

    # Time-major embedding lookups (dropout0/1/2: identity at inference).
    emb_chars = jnp.take(packed['emb_char'], chars_win.transpose(1, 0, 2),
                         axis=0)                                      # (S, Bp, L+4, EC)
    emb_words = jnp.take(packed['emb_word'], words_p.T, axis=0)       # (S, Bp, EW)

    xc = emb_chars.reshape(S_in * B_pad, L_WORD + 4, EC).astype(jnp.float32)
    xw = emb_words.astype(jnp.float32)
    lens2d = lens_p.reshape(B_pad, 1)

    vmem = pl.BlockSpec(memory_space=pltpu.MemorySpace.VMEM)
    out = pl.pallas_call(
        fused_kernel,
        out_shape=jax.ShapeDtypeStruct((S_in, B_pad, NT_PAD), jnp.float32),
        in_specs=[vmem] * 13,
        out_specs=vmem,
        scratch_shapes=[pltpu.VMEM((S_in, B_pad, 8 * H), jnp.float32),
                        pltpu.VMEM((S_in, B_pad, H), jnp.float32),
                        pltpu.VMEM((S_in, B_pad, H), jnp.float32)],
    )(xc, xw, lens2d,
      packed['w_conv'], packed['b_conv'],
      packed['wih_w'], packed['wih_c'], packed['b8'],
      packed['whh_f'], packed['whh_b'],
      packed['wtag_f'], packed['wtag_b'], packed['b_tag_pad'])

    out = out[:, :B_in, :N_TAG]                                       # (S, B, N_TAG)
    return jnp.transpose(out, (1, 0, 2))                              # (B, S, N_TAG)


# ---------------------------------------------------------------------------
# Deterministic parameter init (mirrors init_embedding / init_linear / init_lstm)
# ---------------------------------------------------------------------------
def init_params(key):
    ks = jax.random.split(key, 8)
    bnd_emb_c = (3.0 / EC) ** 0.5
    emb_char = jax.random.uniform(ks[0], (N_CHAR + 1, EC), jnp.float32,
                                  -bnd_emb_c, bnd_emb_c)
    emb_char = emb_char.at[IDX_PAD_CHAR].set(0.0)    # padding_idx row (must be 0)
    emb_word = jax.random.normal(ks[1], (N_WORD, EW), jnp.float32) * 0.1  # "glove"

    bnd_conv = (6.0 / (C_CHAR + 1)) ** 0.5
    w_conv_char = jax.random.uniform(ks[2], (3, EC, C_CHAR), jnp.float32,
                                     -bnd_conv, bnd_conv)   # w[k,e,c] == torch_w[c,0,k,e]
    b_conv_char = jnp.zeros((1, C_CHAR), jnp.float32)       # init_linear zeros bias

    def lstm_dir(k):
        k1, k2 = jax.random.split(k)
        r_ih = (6.0 / (H + DIN)) ** 0.5
        r_hh = (6.0 / (H + H)) ** 0.5
        wih = jax.random.uniform(k1, (DIN, 4 * H), jnp.float32, -r_ih, r_ih)
        whh = jax.random.uniform(k2, (H, 4 * H), jnp.float32, -r_hh, r_hh)
        # bias_ih + bias_hh, forget-gate slice set to 1+1=2 per init_lstm
        b = jnp.zeros((1, 4 * H), jnp.float32).at[:, H:2 * H].set(2.0)
        return wih, whh, b

    wih_f, whh_f, b_f = lstm_dir(ks[3])
    wih_b, whh_b, b_b = lstm_dir(ks[4])

    r_tag = (6.0 / (N_TAG + 2 * H)) ** 0.5
    w_tag = jax.random.uniform(ks[5], (2 * H, N_TAG), jnp.float32, -r_tag, r_tag)
    b_tag = jnp.zeros((1, N_TAG), jnp.float32)

    return dict(emb_char=emb_char, emb_word=emb_word,
                w_conv_char=w_conv_char, b_conv_char=b_conv_char,
                wih_f=wih_f, whh_f=whh_f, b_f=b_f,
                wih_b=wih_b, whh_b=whh_b, b_b=b_b,
                w_tag=w_tag, b_tag=b_tag)


def pack_params(p):
    """One-time repack into the kernel-friendly layouts."""
    wih8 = jnp.concatenate([p['wih_f'], p['wih_b']], axis=1)   # (DIN, 8H)
    b8 = jnp.concatenate([p['b_f'], p['b_b']], axis=1)         # (1, 8H)
    pad_t = NT_PAD - N_TAG
    return dict(
        emb_char=p['emb_char'], emb_word=p['emb_word'],
        w_conv=p['w_conv_char'].reshape(3 * EC, C_CHAR),       # im2col weight
        b_conv=p['b_conv_char'],
        wih_w=wih8[:EW],                                       # word-embedding rows
        wih_c=wih8[EW:],                                       # char-feature rows
        b8=b8,
        whh_f=p['whh_f'], whh_b=p['whh_b'],
        wtag_f=jnp.pad(p['w_tag'][:H], ((0, 0), (0, pad_t))),  # lane-dense tag proj
        wtag_b=jnp.pad(p['w_tag'][H:], ((0, 0), (0, pad_t))),
        b_tag_pad=jnp.pad(p['b_tag'], ((0, 0), (0, pad_t))),
    )


if __name__ == "__main__":
    key = jax.random.PRNGKey(0)
    kp, kw, kc = jax.random.split(key, 3)
    params = init_params(kp)
    packed = pack_params(params)

    words_batch = jax.random.randint(kw, (B, S), 1, N_WORD)
    chars_batch = jax.random.randint(kc, (B, S, L_WORD), 0, N_CHAR)
    # Deterministically pad the tail of each word's chars with idx_pad_char
    char_pos = jnp.arange(L_WORD)[None, None, :]
    n_valid = 1 + (words_batch % (L_WORD - 1))[..., None]
    chars_batch = jnp.where(char_pos < n_valid, chars_batch, IDX_PAD_CHAR)
    lens_word = jnp.array([S, S - 2], dtype=jnp.int32)          # sorted descending

    fwd = jax.jit(bilstm_crf_forward)
    out = fwd(packed, words_batch, chars_batch, lens_word)
    out = jax.block_until_ready(out)
    assert out.shape == (B, S, N_TAG)
    assert bool(jnp.all(jnp.isfinite(out)))
    print("KERNEL_OK")
</pallas_src>

<mosaic_0001>
module attributes {stable_mosaic.version = 11 : i64} {
  func.func @fused_kernel(%arg0: memref<64x16x16xf32, #tpu.memory_space<vmem>>, %arg1: memref<8x8x32xf32, #tpu.memory_space<vmem>>, %arg2: memref<8x1xi32, #tpu.memory_space<vmem>>, %arg3: memref<48x32xf32, #tpu.memory_space<vmem>>, %arg4: memref<1x32xf32, #tpu.memory_space<vmem>>, %arg5: memref<32x256xf32, #tpu.memory_space<vmem>>, %arg6: memref<32x256xf32, #tpu.memory_space<vmem>>, %arg7: memref<1x256xf32, #tpu.memory_space<vmem>>, %arg8: memref<32x128xf32, #tpu.memory_space<vmem>>, %arg9: memref<32x128xf32, #tpu.memory_space<vmem>>, %arg10: memref<32x128xf32, #tpu.memory_space<vmem>>, %arg11: memref<32x128xf32, #tpu.memory_space<vmem>>, %arg12: memref<1x128xf32, #tpu.memory_space<vmem>>, %arg13: memref<8x8x128xf32, #tpu.memory_space<vmem>>, %arg14: memref<8x8x256xf32, #tpu.memory_space<vmem>>, %arg15: memref<8x8x32xf32, #tpu.memory_space<vmem>>, %arg16: memref<8x8x32xf32, #tpu.memory_space<vmem>>) attributes {dimension_semantics = [], scalar_prefetch = 0 : i64, scratch_operands = 3 : i64, tpu.core_type = #tpu.core_type<tc>} {
    %c0 = arith.constant 0 : index
    %c0_0 = arith.constant 0 : index
    %c0_1 = arith.constant 0 : index
    %0 = vector.load %arg0[%c0, %c0_0, %c0_1] : memref<64x16x16xf32, #tpu.memory_space<vmem>>, vector<64x16x16xf32>
    %1 = vector.extract_strided_slice %0 {offsets = [0, 0, 0], sizes = [64, 14, 16], strides = [1, 1, 1]} : vector<64x16x16xf32> to vector<64x14x16xf32>
    %2 = vector.extract_strided_slice %0 {offsets = [0, 1, 0], sizes = [64, 14, 16], strides = [1, 1, 1]} : vector<64x16x16xf32> to vector<64x14x16xf32>
    %3 = vector.extract_strided_slice %0 {offsets = [0, 2, 0], sizes = [64, 14, 16], strides = [1, 1, 1]} : vector<64x16x16xf32> to vector<64x14x16xf32>
    %4 = tpu.concatenate %1, %2, %3 in 2 : vector<64x14x16xf32>, vector<64x14x16xf32>, vector<64x14x16xf32> -> vector<64x14x48xf32>
    %5 = vector.shape_cast %4 : vector<64x14x48xf32> to vector<896x48xf32>
    %c0_2 = arith.constant 0 : index
    %c0_3 = arith.constant 0 : index
    %6 = vector.load %arg3[%c0_2, %c0_3] : memref<48x32xf32, #tpu.memory_space<vmem>>, vector<48x32xf32>
    %cst = arith.constant dense<0.000000e+00> : vector<896x32xf32>
    %7 = tpu.matmul %5, %6, %cst {dimension_numbers = #tpu.dot_dimension_numbers<[1], [0], [0], [1], [0, 0, 1, 1], [], []>} : vector<896x48xf32>, vector<48x32xf32>, vector<896x32xf32> -> vector<896x32xf32>
    %c0_4 = arith.constant 0 : index
    %c0_5 = arith.constant 0 : index
    %8 = vector.load %arg4[%c0_4, %c0_5] : memref<1x32xf32, #tpu.memory_space<vmem>>, vector<1x32xf32>
    %9 = vector.broadcast %8 : vector<1x32xf32> to vector<896x32xf32>
    %10 = arith.addf %7, %9 : vector<896x32xf32>
    %11 = vector.shape_cast %10 : vector<896x32xf32> to vector<64x14x32xf32>
    %cst_6 = arith.constant dense<0xFF800000> : vector<64x32xf32>
    %12 = vector.multi_reduction <maximumf>, %11, %cst_6 [1] : vector<64x14x32xf32> to vector<64x32xf32>
    %c0_7 = arith.constant 0 : index
    %c0_8 = arith.constant 0 : index
    %c0_9 = arith.constant 0 : index
    %13 = vector.load %arg1[%c0_7, %c0_8, %c0_9] : memref<8x8x32xf32, #tpu.memory_space<vmem>>, vector<8x8x32xf32>
    %14 = vector.shape_cast %13 : vector<8x8x32xf32> to vector<64x32xf32>
    %c0_10 = arith.constant 0 : index
    %c0_11 = arith.constant 0 : index
    %15 = vector.load %arg5[%c0_10, %c0_11] : memref<32x256xf32, #tpu.memory_space<vmem>>, vector<32x256xf32>
    %cst_12 = arith.constant dense<0.000000e+00> : vector<64x256xf32>
    %16 = tpu.matmul %14, %15, %cst_12 {dimension_numbers = #tpu.dot_dimension_numbers<[1], [0], [0], [1], [0, 0, 1, 1], [], []>} : vector<64x32xf32>, vector<32x256xf32>, vector<64x256xf32> -> vector<64x256xf32>
    %c0_13 = arith.constant 0 : index
    %c0_14 = arith.constant 0 : index
    %17 = vector.load %arg6[%c0_13, %c0_14] : memref<32x256xf32, #tpu.memory_space<vmem>>, vector<32x256xf32>
    %cst_15 = arith.constant dense<0.000000e+00> : vector<64x256xf32>
    %18 = tpu.matmul %12, %17, %cst_15 {dimension_numbers = #tpu.dot_dimension_numbers<[1], [0], [0], [1], [0, 0, 1, 1], [], []>} : vector<64x32xf32>, vector<32x256xf32>, vector<64x256xf32> -> vector<64x256xf32>
    %19 = arith.addf %16, %18 : vector<64x256xf32>
    %c0_16 = arith.constant 0 : index
    %c0_17 = arith.constant 0 : index
    %20 = vector.load %arg7[%c0_16, %c0_17] : memref<1x256xf32, #tpu.memory_space<vmem>>, vector<1x256xf32>
    %21 = vector.broadcast %20 : vector<1x256xf32> to vector<64x256xf32>
    %22 = arith.addf %19, %21 : vector<64x256xf32>
    %23 = vector.shape_cast %22 : vector<64x256xf32> to vector<8x8x256xf32>
    %c0_18 = arith.constant 0 : index
    %c0_19 = arith.constant 0 : index
    %c0_20 = arith.constant 0 : index
    %24 = vector.load %arg14[%c0_18, %c0_19, %c0_20] : memref<8x8x256xf32, #tpu.memory_space<vmem>>, vector<8x8x256xf32>
    tpu.vector_store %arg14[%c0_18, %c0_19, %c0_20], %23 {strides = array<i32>} : memref<8x8x256xf32, #tpu.memory_space<vmem>>, vector<8x8x256xf32>,
    %c0_21 = arith.constant 0 : index
    %c0_22 = arith.constant 0 : index
    %25 = vector.load %arg2[%c0_21, %c0_22] : memref<8x1xi32, #tpu.memory_space<vmem>>, vector<8x1xi32>
    %26 = vector.shape_cast %25 : vector<8x1xi32> to vector<8x1xi32>
    %27 = vector.broadcast %26 : vector<8x1xi32> to vector<8x32xi32>
    %cst_23 = arith.constant 0.000000e+00 : f32
    %28 = vector.broadcast %cst_23 : f32 to vector<8x32xf32>
    %c0_i32 = arith.constant 0 : i32
    %c7_i32 = arith.constant 7 : i32
    %29 = arith.subi %c7_i32, %c0_i32 : i32
    %c0_24 = arith.constant 0 : index
    %c0_25 = arith.constant 0 : index
    %30 = vector.load %arg8[%c0_24, %c0_25] : memref<32x128xf32, #tpu.memory_space<vmem>>, vector<32x128xf32>
    %cst_26 = arith.constant dense<0.000000e+00> : vector<8x128xf32>
    %31 = tpu.matmul %28, %30, %cst_26 {dimension_numbers = #tpu.dot_dimension_numbers<[1], [0], [0], [1], [0, 0, 1, 1], [], []>} : vector<8x32xf32>, vector<32x128xf32>, vector<8x128xf32> -> vector<8x128xf32>
    %32 = arith.index_cast %c0_i32 : i32 to index
    %c0_27 = arith.constant 0 : index
    %c0_28 = arith.constant 0 : index
    %33 = vector.load %arg14[%32, %c0_27, %c0_28] : memref<8x8x256xf32, #tpu.memory_space<vmem>>, vector<1x8x256xf32>
    %34 = vector.shape_cast %33 : vector<1x8x256xf32> to vector<8x256xf32>
    %35 = vector.extract_strided_slice %34 {offsets = [0, 0], sizes = [8, 128], strides = [1, 1]} : vector<8x256xf32> to vector<8x128xf32>
    %36 = arith.addf %31, %35 : vector<8x128xf32>
    %c0_29 = arith.constant 0 : index
    %c0_30 = arith.constant 0 : index
    %37 = vector.load %arg9[%c0_29, %c0_30] : memref<32x128xf32, #tpu.memory_space<vmem>>, vector<32x128xf32>
    %cst_31 = arith.constant dense<0.000000e+00> : vector<8x128xf32>
    %38 = tpu.matmul %28, %37, %cst_31 {dimension_numbers = #tpu.dot_dimension_numbers<[1], [0], [0], [1], [0, 0, 1, 1], [], []>} : vector<8x32xf32>, vector<32x128xf32>, vector<8x128xf32> -> vector<8x128xf32>
    %39 = arith.index_cast %29 : i32 to index
    %c0_32 = arith.constant 0 : index
    %c0_33 = arith.constant 0 : index
    %40 = vector.load %arg14[%39, %c0_32, %c0_33] : memref<8x8x256xf32, #tpu.memory_space<vmem>>, vector<1x8x256xf32>
    %41 = vector.shape_cast %40 : vector<1x8x256xf32> to vector<8x256xf32>
    %42 = vector.extract_strided_slice %41 {offsets = [0, 128], sizes = [8, 128], strides = [1, 1]} : vector<8x256xf32> to vector<8x128xf32>
    %43 = arith.addf %38, %42 : vector<8x128xf32>
    %44 = vector.extract_strided_slice %36 {offsets = [0, 0], sizes = [8, 32], strides = [1, 1]} : vector<8x128xf32> to vector<8x32xf32>
    %45 = arith.negf %44 : vector<8x32xf32>
    %46 = math.exp %45 : vector<8x32xf32>
    %cst_34 = arith.constant 1.000000e+00 : f32
    %47 = vector.broadcast %cst_34 : f32 to vector<8x32xf32>
    %48 = arith.addf %47, %46 : vector<8x32xf32>
    %49 = arith.divf %47, %48 : vector<8x32xf32>
    %50 = vector.extract_strided_slice %36 {offsets = [0, 32], sizes = [8, 32], strides = [1, 1]} : vector<8x128xf32> to vector<8x32xf32>
    %51 = arith.negf %50 : vector<8x32xf32>
    %52 = math.exp %51 : vector<8x32xf32>
    %cst_35 = arith.constant 1.000000e+00 : f32
    %53 = vector.broadcast %cst_35 : f32 to vector<8x32xf32>
    %54 = arith.addf %53, %52 : vector<8x32xf32>
    %55 = arith.divf %53, %54 : vector<8x32xf32>
    %56 = vector.extract_strided_slice %36 {offsets = [0, 64], sizes = [8, 32], strides = [1, 1]} : vector<8x128xf32> to vector<8x32xf32>
    %57 = math.tanh %56 : vector<8x32xf32>
    %58 = vector.extract_strided_slice %36 {offsets = [0, 96], sizes = [8, 32], strides = [1, 1]} : vector<8x128xf32> to vector<8x32xf32>
    %59 = arith.negf %58 : vector<8x32xf32>
    %60 = math.exp %59 : vector<8x32xf32>
    %cst_36 = arith.constant 1.000000e+00 : f32
    %61 = vector.broadcast %cst_36 : f32 to vector<8x32xf32>
    %62 = arith.addf %61, %60 : vector<8x32xf32>
    %63 = arith.divf %61, %62 : vector<8x32xf32>
    %64 = arith.mulf %55, %28 : vector<8x32xf32>
    %65 = arith.mulf %49, %57 : vector<8x32xf32>
    %66 = arith.addf %64, %65 : vector<8x32xf32>
    %67 = math.tanh %66 : vector<8x32xf32>
    %68 = arith.mulf %63, %67 : vector<8x32xf32>
    %69 = vector.extract_strided_slice %43 {offsets = [0, 0], sizes = [8, 32], strides = [1, 1]} : vector<8x128xf32> to vector<8x32xf32>
    %70 = arith.negf %69 : vector<8x32xf32>
    %71 = math.exp %70 : vector<8x32xf32>
    %cst_37 = arith.constant 1.000000e+00 : f32
    %72 = vector.broadcast %cst_37 : f32 to vector<8x32xf32>
    %73 = arith.addf %72, %71 : vector<8x32xf32>
    %74 = arith.divf %72, %73 : vector<8x32xf32>
    %75 = vector.extract_strided_slice %43 {offsets = [0, 32], sizes = [8, 32], strides = [1, 1]} : vector<8x128xf32> to vector<8x32xf32>
    %76 = arith.negf %75 : vector<8x32xf32>
    %77 = math.exp %76 : vector<8x32xf32>
    %cst_38 = arith.constant 1.000000e+00 : f32
    %78 = vector.broadcast %cst_38 : f32 to vector<8x32xf32>
    %79 = arith.addf %78, %77 : vector<8x32xf32>
    %80 = arith.divf %78, %79 : vector<8x32xf32>
    %81 = vector.extract_strided_slice %43 {offsets = [0, 64], sizes = [8, 32], strides = [1, 1]} : vector<8x128xf32> to vector<8x32xf32>
    %82 = math.tanh %81 : vector<8x32xf32>
    %83 = vector.extract_strided_slice %43 {offsets = [0, 96], sizes = [8, 32], strides = [1, 1]} : vector<8x128xf32> to vector<8x32xf32>
    %84 = arith.negf %83 : vector<8x32xf32>
    %85 = math.exp %84 : vector<8x32xf32>
    %cst_39 = arith.constant 1.000000e+00 : f32
    %86 = vector.broadcast %cst_39 : f32 to vector<8x32xf32>
    %87 = arith.addf %86, %85 : vector<8x32xf32>
    %88 = arith.divf %86, %87 : vector<8x32xf32>
    %89 = arith.mulf %80, %28 : vector<8x32xf32>
    %90 = arith.mulf %74, %82 : vector<8x32xf32>
    %91 = arith.addf %89, %90 : vector<8x32xf32>
    %92 = math.tanh %91 : vector<8x32xf32>
    %93 = arith.mulf %88, %92 : vector<8x32xf32>
    %94 = vector.broadcast %c0_i32 : i32 to vector<8x32xi32>
    %95 = arith.cmpi slt, %94, %27 : vector<8x32xi32>
    %96 = vector.broadcast %29 : i32 to vector<8x32xi32>
    %97 = arith.cmpi slt, %96, %27 : vector<8x32xi32>
    %cst_40 = arith.constant 0.000000e+00 : f32
    %98 = vector.broadcast %cst_40 : f32 to vector<8x32xf32>
    %99 = arith.select %95, %68, %98 : vector<8x32xi1>, vector<8x32xf32>
    %100 = arith.index_cast %c0_i32 : i32 to index
    %c0_41 = arith.constant 0 : index
    %c0_42 = arith.constant 0 : index
    %101 = vector.load %arg15[%100, %c0_41, %c0_42] : memref<8x8x32xf32, #tpu.memory_space<vmem>>, vector<1x8x32xf32>
    %102 = vector.shape_cast %101 : vector<1x8x32xf32> to vector<8x32xf32>
    %103 = vector.shape_cast %99 : vector<8x32xf32> to vector<1x8x32xf32>
    tpu.vector_store %arg15[%100, %c0_41, %c0_42], %103 {strides = array<i32>} : memref<8x8x32xf32, #tpu.memory_space<vmem>>, vector<1x8x32xf32>,
    %cst_43 = arith.constant 0.000000e+00 : f32
    %104 = vector.broadcast %cst_43 : f32 to vector<8x32xf32>
    %105 = arith.select %97, %93, %104 : vector<8x32xi1>, vector<8x32xf32>
    %106 = arith.index_cast %29 : i32 to index
    %c0_44 = arith.constant 0 : index
    %c0_45 = arith.constant 0 : index
    %107 = vector.load %arg16[%106, %c0_44, %c0_45] : memref<8x8x32xf32, #tpu.memory_space<vmem>>, vector<1x8x32xf32>
    %108 = vector.shape_cast %107 : vector<1x8x32xf32> to vector<8x32xf32>
    %109 = vector.shape_cast %105 : vector<8x32xf32> to vector<1x8x32xf32>
    tpu.vector_store %arg16[%106, %c0_44, %c0_45], %109 {strides = array<i32>} : memref<8x8x32xf32, #tpu.memory_space<vmem>>, vector<1x8x32xf32>,
    %110 = arith.select %95, %68, %28 : vector<8x32xi1>, vector<8x32xf32>
    %111 = arith.select %95, %66, %28 : vector<8x32xi1>, vector<8x32xf32>
    %112 = arith.select %97, %93, %28 : vector<8x32xi1>, vector<8x32xf32>
    %113 = arith.select %97, %91, %28 : vector<8x32xi1>, vector<8x32xf32>
    %c1_i32 = arith.constant 1 : i32
    %c7_i32_46 = arith.constant 7 : i32
    %114 = arith.subi %c7_i32_46, %c1_i32 : i32
    %c0_47 = arith.constant 0 : index
    %c0_48 = arith.constant 0 : index
    %115 = vector.load %arg8[%c0_47, %c0_48] : memref<32x128xf32, #tpu.memory_space<vmem>>, vector<32x128xf32>
    %cst_49 = arith.constant dense<0.000000e+00> : vector<8x128xf32>
    %116 = tpu.matmul %110, %115, %cst_49 {dimension_numbers = #tpu.dot_dimension_numbers<[1], [0], [0], [1], [0, 0, 1, 1], [], []>} : vector<8x32xf32>, vector<32x128xf32>, vector<8x128xf32> -> vector<8x128xf32>
    %117 = arith.index_cast %c1_i32 : i32 to index
    %c0_50 = arith.constant 0 : index
    %c0_51 = arith.constant 0 : index
    %118 = vector.load %arg14[%117, %c0_50, %c0_51] : memref<8x8x256xf32, #tpu.memory_space<vmem>>, vector<1x8x256xf32>
    %119 = vector.shape_cast %118 : vector<1x8x256xf32> to vector<8x256xf32>
    %120 = vector.extract_strided_slice %119 {offsets = [0, 0], sizes = [8, 128], strides = [1, 1]} : vector<8x256xf32> to vector<8x128xf32>
    %121 = arith.addf %116, %120 : vector<8x128xf32>
    %c0_52 = arith.constant 0 : index
    %c0_53 = arith.constant 0 : index
    %122 = vector.load %arg9[%c0_52, %c0_53] : memref<32x128xf32, #tpu.memory_space<vmem>>, vector<32x128xf32>
    %cst_54 = arith.constant dense<0.000000e+00> : vector<8x128xf32>
    %123 = tpu.matmul %112, %122, %cst_54 {dimension_numbers = #tpu.dot_dimension_numbers<[1], [0], [0], [1], [0, 0, 1, 1], [], []>} : vector<8x32xf32>, vector<32x128xf32>, vector<8x128xf32> -> vector<8x128xf32>
    %124 = arith.index_cast %114 : i32 to index
    %c0_55 = arith.constant 0 : index
    %c0_56 = arith.constant 0 : index
    %125 = vector.load %arg14[%124, %c0_55, %c0_56] : memref<8x8x256xf32, #tpu.memory_space<vmem>>, vector<1x8x256xf32>
    %126 = vector.shape_cast %125 : vector<1x8x256xf32> to vector<8x256xf32>
    %127 = vector.extract_strided_slice %126 {offsets = [0, 128], sizes = [8, 128], strides = [1, 1]} : vector<8x256xf32> to vector<8x128xf32>
    %128 = arith.addf %123, %127 : vector<8x128xf32>
    %129 = vector.extract_strided_slice %121 {offsets = [0, 0], sizes = [8, 32], strides = [1, 1]} : vector<8x128xf32> to vector<8x32xf32>
    %130 = arith.negf %129 : vector<8x32xf32>
    %131 = math.exp %130 : vector<8x32xf32>
    %cst_57 = arith.constant 1.000000e+00 : f32
    %132 = vector.broadcast %cst_57 : f32 to vector<8x32xf32>
    %133 = arith.addf %132, %131 : vector<8x32xf32>
    %134 = arith.divf %132, %133 : vector<8x32xf32>
    %135 = vector.extract_strided_slice %121 {offsets = [0, 32], sizes = [8, 32], strides = [1, 1]} : vector<8x128xf32> to vector<8x32xf32>
    %136 = arith.negf %135 : vector<8x32xf32>
    %137 = math.exp %136 : vector<8x32xf32>
    %cst_58 = arith.constant 1.000000e+00 : f32
    %138 = vector.broadcast %cst_58 : f32 to vector<8x32xf32>
    %139 = arith.addf %138, %137 : vector<8x32xf32>
    %140 = arith.divf %138, %139 : vector<8x32xf32>
    %141 = vector.extract_strided_slice %121 {offsets = [0, 64], sizes = [8, 32], strides = [1, 1]} : vector<8x128xf32> to vector<8x32xf32>
    %142 = math.tanh %141 : vector<8x32xf32>
    %143 = vector.extract_strided_slice %121 {offsets = [0, 96], sizes = [8, 32], strides = [1, 1]} : vector<8x128xf32> to vector<8x32xf32>
    %144 = arith.negf %143 : vector<8x32xf32>
    %145 = math.exp %144 : vector<8x32xf32>
    %cst_59 = arith.constant 1.000000e+00 : f32
    %146 = vector.broadcast %cst_59 : f32 to vector<8x32xf32>
    %147 = arith.addf %146, %145 : vector<8x32xf32>
    %148 = arith.divf %146, %147 : vector<8x32xf32>
    %149 = arith.mulf %140, %111 : vector<8x32xf32>
    %150 = arith.mulf %134, %142 : vector<8x32xf32>
    %151 = arith.addf %149, %150 : vector<8x32xf32>
    %152 = math.tanh %151 : vector<8x32xf32>
    %153 = arith.mulf %148, %152 : vector<8x32xf32>
    %154 = vector.extract_strided_slice %128 {offsets = [0, 0], sizes = [8, 32], strides = [1, 1]} : vector<8x128xf32> to vector<8x32xf32>
    %155 = arith.negf %154 : vector<8x32xf32>
    %156 = math.exp %155 : vector<8x32xf32>
    %cst_60 = arith.constant 1.000000e+00 : f32
    %157 = vector.broadcast %cst_60 : f32 to vector<8x32xf32>
    %158 = arith.addf %157, %156 : vector<8x32xf32>
    %159 = arith.divf %157, %158 : vector<8x32xf32>
    %160 = vector.extract_strided_slice %128 {offsets = [0, 32], sizes = [8, 32], strides = [1, 1]} : vector<8x128xf32> to vector<8x32xf32>
    %161 = arith.negf %160 : vector<8x32xf32>
    %162 = math.exp %161 : vector<8x32xf32>
    %cst_61 = arith.constant 1.000000e+00 : f32
    %163 = vector.broadcast %cst_61 : f32 to vector<8x32xf32>
    %164 = arith.addf %163, %162 : vector<8x32xf32>
    %165 = arith.divf %163, %164 : vector<8x32xf32>
    %166 = vector.extract_strided_slice %128 {offsets = [0, 64], sizes = [8, 32], strides = [1, 1]} : vector<8x128xf32> to vector<8x32xf32>
    %167 = math.tanh %166 : vector<8x32xf32>
    %168 = vector.extract_strided_slice %128 {offsets = [0, 96], sizes = [8, 32], strides = [1, 1]} : vector<8x128xf32> to vector<8x32xf32>
    %169 = arith.negf %168 : vector<8x32xf32>
    %170 = math.exp %169 : vector<8x32xf32>
    %cst_62 = arith.constant 1.000000e+00 : f32
    %171 = vector.broadcast %cst_62 : f32 to vector<8x32xf32>
    %172 = arith.addf %171, %170 : vector<8x32xf32>
    %173 = arith.divf %171, %172 : vector<8x32xf32>
    %174 = arith.mulf %165, %113 : vector<8x32xf32>
    %175 = arith.mulf %159, %167 : vector<8x32xf32>
    %176 = arith.addf %174, %175 : vector<8x32xf32>
    %177 = math.tanh %176 : vector<8x32xf32>
    %178 = arith.mulf %173, %177 : vector<8x32xf32>
    %179 = vector.broadcast %c1_i32 : i32 to vector<8x32xi32>
    %180 = arith.cmpi slt, %179, %27 : vector<8x32xi32>
    %181 = vector.broadcast %114 : i32 to vector<8x32xi32>
    %182 = arith.cmpi slt, %181, %27 : vector<8x32xi32>
    %cst_63 = arith.constant 0.000000e+00 : f32
    %183 = vector.broadcast %cst_63 : f32 to vector<8x32xf32>
    %184 = arith.select %180, %153, %183 : vector<8x32xi1>, vector<8x32xf32>
    %185 = arith.index_cast %c1_i32 : i32 to index
    %c0_64 = arith.constant 0 : index
    %c0_65 = arith.constant 0 : index
    %186 = vector.load %arg15[%185, %c0_64, %c0_65] : memref<8x8x32xf32, #tpu.memory_space<vmem>>, vector<1x8x32xf32>
    %187 = vector.shape_cast %186 : vector<1x8x32xf32> to vector<8x32xf32>
    %188 = vector.shape_cast %184 : vector<8x32xf32> to vector<1x8x32xf32>
    tpu.vector_store %arg15[%185, %c0_64, %c0_65], %188 {strides = array<i32>} : memref<8x8x32xf32, #tpu.memory_space<vmem>>, vector<1x8x32xf32>,
    %cst_66 = arith.constant 0.000000e+00 : f32
    %189 = vector.broadcast %cst_66 : f32 to vector<8x32xf32>
    %190 = arith.select %182, %178, %189 : vector<8x32xi1>, vector<8x32xf32>
    %191 = arith.index_cast %114 : i32 to index
    %c0_67 = arith.constant 0 : index
    %c0_68 = arith.constant 0 : index
    %192 = vector.load %arg16[%191, %c0_67, %c0_68] : memref<8x8x32xf32, #tpu.memory_space<vmem>>, vector<1x8x32xf32>
    %193 = vector.shape_cast %192 : vector<1x8x32xf32> to vector<8x32xf32>
    %194 = vector.shape_cast %190 : vector<8x32xf32> to vector<1x8x32xf32>
    tpu.vector_store %arg16[%191, %c0_67, %c0_68], %194 {strides = array<i32>} : memref<8x8x32xf32, #tpu.memory_space<vmem>>, vector<1x8x32xf32>,
    %195 = arith.select %180, %153, %110 : vector<8x32xi1>, vector<8x32xf32>
    %196 = arith.select %180, %151, %111 : vector<8x32xi1>, vector<8x32xf32>
    %197 = arith.select %182, %178, %112 : vector<8x32xi1>, vector<8x32xf32>
    %198 = arith.select %182, %176, %113 : vector<8x32xi1>, vector<8x32xf32>
    %c2_i32 = arith.constant 2 : i32
    %c7_i32_69 = arith.constant 7 : i32
    %199 = arith.subi %c7_i32_69, %c2_i32 : i32
    %c0_70 = arith.constant 0 : index
    %c0_71 = arith.constant 0 : index
    %200 = vector.load %arg8[%c0_70, %c0_71] : memref<32x128xf32, #tpu.memory_space<vmem>>, vector<32x128xf32>
    %cst_72 = arith.constant dense<0.000000e+00> : vector<8x128xf32>
    %201 = tpu.matmul %195, %200, %cst_72 {dimension_numbers = #tpu.dot_dimension_numbers<[1], [0], [0], [1], [0, 0, 1, 1], [], []>} : vector<8x32xf32>, vector<32x128xf32>, vector<8x128xf32> -> vector<8x128xf32>
    %202 = arith.index_cast %c2_i32 : i32 to index
    %c0_73 = arith.constant 0 : index
    %c0_74 = arith.constant 0 : index
    %203 = vector.load %arg14[%202, %c0_73, %c0_74] : memref<8x8x256xf32, #tpu.memory_space<vmem>>, vector<1x8x256xf32>
    %204 = vector.shape_cast %203 : vector<1x8x256xf32> to vector<8x256xf32>
    %205 = vector.extract_strided_slice %204 {offsets = [0, 0], sizes = [8, 128], strides = [1, 1]} : vector<8x256xf32> to vector<8x128xf32>
    %206 = arith.addf %201, %205 : vector<8x128xf32>
    %c0_75 = arith.constant 0 : index
    %c0_76 = arith.constant 0 : index
    %207 = vector.load %arg9[%c0_75, %c0_76] : memref<32x128xf32, #tpu.memory_space<vmem>>, vector<32x128xf32>
    %cst_77 = arith.constant dense<0.000000e+00> : vector<8x128xf32>
    %208 = tpu.matmul %197, %207, %cst_77 {dimension_numbers = #tpu.dot_dimension_numbers<[1], [0], [0], [1], [0, 0, 1, 1], [], []>} : vector<8x32xf32>, vector<32x128xf32>, vector<8x128xf32> -> vector<8x128xf32>
    %209 = arith.index_cast %199 : i32 to index
    %c0_78 = arith.constant 0 : index
    %c0_79 = arith.constant 0 : index
    %210 = vector.load %arg14[%209, %c0_78, %c0_79] : memref<8x8x256xf32, #tpu.memory_space<vmem>>, vector<1x8x256xf32>
    %211 = vector.shape_cast %210 : vector<1x8x256xf32> to vector<8x256xf32>
    %212 = vector.extract_strided_slice %211 {offsets = [0, 128], sizes = [8, 128], strides = [1, 1]} : vector<8x256xf32> to vector<8x128xf32>
    %213 = arith.addf %208, %212 : vector<8x128xf32>
    %214 = vector.extract_strided_slice %206 {offsets = [0, 0], sizes = [8, 32], strides = [1, 1]} : vector<8x128xf32> to vector<8x32xf32>
    %215 = arith.negf %214 : vector<8x32xf32>
    %216 = math.exp %215 : vector<8x32xf32>
    %cst_80 = arith.constant 1.000000e+00 : f32
    %217 = vector.broadcast %cst_80 : f32 to vector<8x32xf32>
    %218 = arith.addf %217, %216 : vector<8x32xf32>
    %219 = arith.divf %217, %218 : vector<8x32xf32>
    %220 = vector.extract_strided_slice %206 {offsets = [0, 32], sizes = [8, 32], strides = [1, 1]} : vector<8x128xf32> to vector<8x32xf32>
    %221 = arith.negf %220 : vector<8x32xf32>
    %222 = math.exp %221 : vector<8x32xf32>
    %cst_81 = arith.constant 1.000000e+00 : f32
    %223 = vector.broadcast %cst_81 : f32 to vector<8x32xf32>
    %224 = arith.addf %223, %222 : vector<8x32xf32>
    %225 = arith.divf %223, %224 : vector<8x32xf32>
    %226 = vector.extract_strided_slice %206 {offsets = [0, 64], sizes = [8, 32], strides = [1, 1]} : vector<8x128xf32> to vector<8x32xf32>
    %227 = math.tanh %226 : vector<8x32xf32>
    %228 = vector.extract_strided_slice %206 {offsets = [0, 96], sizes = [8, 32], strides = [1, 1]} : vector<8x128xf32> to vector<8x32xf32>
    %229 = arith.negf %228 : vector<8x32xf32>
    %230 = math.exp %229 : vector<8x32xf32>
    %cst_82 = arith.constant 1.000000e+00 : f32
    %231 = vector.broadcast %cst_82 : f32 to vector<8x32xf32>
    %232 = arith.addf %231, %230 : vector<8x32xf32>
    %233 = arith.divf %231, %232 : vector<8x32xf32>
    %234 = arith.mulf %225, %196 : vector<8x32xf32>
    %235 = arith.mulf %219, %227 : vector<8x32xf32>
    %236 = arith.addf %234, %235 : vector<8x32xf32>
    %237 = math.tanh %236 : vector<8x32xf32>
    %238 = arith.mulf %233, %237 : vector<8x32xf32>
    %239 = vector.extract_strided_slice %213 {offsets = [0, 0], sizes = [8, 32], strides = [1, 1]} : vector<8x128xf32> to vector<8x32xf32>
    %240 = arith.negf %239 : vector<8x32xf32>
    %241 = math.exp %240 : vector<8x32xf32>
    %cst_83 = arith.constant 1.000000e+00 : f32
    %242 = vector.broadcast %cst_83 : f32 to vector<8x32xf32>
    %243 = arith.addf %242, %241 : vector<8x32xf32>
    %244 = arith.divf %242, %243 : vector<8x32xf32>
    %245 = vector.extract_strided_slice %213 {offsets = [0, 32], sizes = [8, 32], strides = [1, 1]} : vector<8x128xf32> to vector<8x32xf32>
    %246 = arith.negf %245 : vector<8x32xf32>
    %247 = math.exp %246 : vector<8x32xf32>
    %cst_84 = arith.constant 1.000000e+00 : f32
    %248 = vector.broadcast %cst_84 : f32 to vector<8x32xf32>
    %249 = arith.addf %248, %247 : vector<8x32xf32>
    %250 = arith.divf %248, %249 : vector<8x32xf32>
    %251 = vector.extract_strided_slice %213 {offsets = [0, 64], sizes = [8, 32], strides = [1, 1]} : vector<8x128xf32> to vector<8x32xf32>
    %252 = math.tanh %251 : vector<8x32xf32>
    %253 = vector.extract_strided_slice %213 {offsets = [0, 96], sizes = [8, 32], strides = [1, 1]} : vector<8x128xf32> to vector<8x32xf32>
    %254 = arith.negf %253 : vector<8x32xf32>
    %255 = math.exp %254 : vector<8x32xf32>
    %cst_85 = arith.constant 1.000000e+00 : f32
    %256 = vector.broadcast %cst_85 : f32 to vector<8x32xf32>
    %257 = arith.addf %256, %255 : vector<8x32xf32>
    %258 = arith.divf %256, %257 : vector<8x32xf32>
    %259 = arith.mulf %250, %198 : vector<8x32xf32>
    %260 = arith.mulf %244, %252 : vector<8x32xf32>
    %261 = arith.addf %259, %260 : vector<8x32xf32>
    %262 = math.tanh %261 : vector<8x32xf32>
    %263 = arith.mulf %258, %262 : vector<8x32xf32>
    %264 = vector.broadcast %c2_i32 : i32 to vector<8x32xi32>
    %265 = arith.cmpi slt, %264, %27 : vector<8x32xi32>
    %266 = vector.broadcast %199 : i32 to vector<8x32xi32>
    %267 = arith.cmpi slt, %266, %27 : vector<8x32xi32>
    %cst_86 = arith.constant 0.000000e+00 : f32
    %268 = vector.broadcast %cst_86 : f32 to vector<8x32xf32>
    %269 = arith.select %265, %238, %268 : vector<8x32xi1>, vector<8x32xf32>
    %270 = arith.index_cast %c2_i32 : i32 to index
    %c0_87 = arith.constant 0 : index
    %c0_88 = arith.constant 0 : index
    %271 = vector.load %arg15[%270, %c0_87, %c0_88] : memref<8x8x32xf32, #tpu.memory_space<vmem>>, vector<1x8x32xf32>
    %272 = vector.shape_cast %271 : vector<1x8x32xf32> to vector<8x32xf32>
    %273 = vector.shape_cast %269 : vector<8x32xf32> to vector<1x8x32xf32>
    tpu.vector_store %arg15[%270, %c0_87, %c0_88], %273 {strides = array<i32>} : memref<8x8x32xf32, #tpu.memory_space<vmem>>, vector<1x8x32xf32>,
    %cst_89 = arith.constant 0.000000e+00 : f32
    %274 = vector.broadcast %cst_89 : f32 to vector<8x32xf32>
    %275 = arith.select %267, %263, %274 : vector<8x32xi1>, vector<8x32xf32>
    %276 = arith.index_cast %199 : i32 to index
    %c0_90 = arith.constant 0 : index
    %c0_91 = arith.constant 0 : index
    %277 = vector.load %arg16[%276, %c0_90, %c0_91] : memref<8x8x32xf32, #tpu.memory_space<vmem>>, vector<1x8x32xf32>
    %278 = vector.shape_cast %277 : vector<1x8x32xf32> to vector<8x32xf32>
    %279 = vector.shape_cast %275 : vector<8x32xf32> to vector<1x8x32xf32>
    tpu.vector_store %arg16[%276, %c0_90, %c0_91], %279 {strides = array<i32>} : memref<8x8x32xf32, #tpu.memory_space<vmem>>, vector<1x8x32xf32>,
    %280 = arith.select %265, %238, %195 : vector<8x32xi1>, vector<8x32xf32>
    %281 = arith.select %265, %236, %196 : vector<8x32xi1>, vector<8x32xf32>
    %282 = arith.select %267, %263, %197 : vector<8x32xi1>, vector<8x32xf32>
    %283 = arith.select %267, %261, %198 : vector<8x32xi1>, vector<8x32xf32>
    %c3_i32 = arith.constant 3 : i32
    %c7_i32_92 = arith.constant 7 : i32
    %284 = arith.subi %c7_i32_92, %c3_i32 : i32
    %c0_93 = arith.constant 0 : index
    %c0_94 = arith.constant 0 : index
    %285 = vector.load %arg8[%c0_93, %c0_94] : memref<32x128xf32, #tpu.memory_space<vmem>>, vector<32x128xf32>
    %cst_95 = arith.constant dense<0.000000e+00> : vector<8x128xf32>
    %286 = tpu.matmul %280, %285, %cst_95 {dimension_numbers = #tpu.dot_dimension_numbers<[1], [0], [0], [1], [0, 0, 1, 1], [], []>} : vector<8x32xf32>, vector<32x128xf32>, vector<8x128xf32> -> vector<8x128xf32>
    %287 = arith.index_cast %c3_i32 : i32 to index
    %c0_96 = arith.constant 0 : index
    %c0_97 = arith.constant 0 : index
    %288 = vector.load %arg14[%287, %c0_96, %c0_97] : memref<8x8x256xf32, #tpu.memory_space<vmem>>, vector<1x8x256xf32>
    %289 = vector.shape_cast %288 : vector<1x8x256xf32> to vector<8x256xf32>
    %290 = vector.extract_strided_slice %289 {offsets = [0, 0], sizes = [8, 128], strides = [1, 1]} : vector<8x256xf32> to vector<8x128xf32>
    %291 = arith.addf %286, %290 : vector<8x128xf32>
    %c0_98 = arith.constant 0 : index
    %c0_99 = arith.constant 0 : index
    %292 = vector.load %arg9[%c0_98, %c0_99] : memref<32x128xf32, #tpu.memory_space<vmem>>, vector<32x128xf32>
    %cst_100 = arith.constant dense<0.000000e+00> : vector<8x128xf32>
    %293 = tpu.matmul %282, %292, %cst_100 {dimension_numbers = #tpu.dot_dimension_numbers<[1], [0], [0], [1], [0, 0, 1, 1], [], []>} : vector<8x32xf32>, vector<32x128xf32>, vector<8x128xf32> -> vector<8x128xf32>
    %294 = arith.index_cast %284 : i32 to index
    %c0_101 = arith.constant 0 : index
    %c0_102 = arith.constant 0 : index
    %295 = vector.load %arg14[%294, %c0_101, %c0_102] : memref<8x8x256xf32, #tpu.memory_space<vmem>>, vector<1x8x256xf32>
    %296 = vector.shape_cast %295 : vector<1x8x256xf32> to vector<8x256xf32>
    %297 = vector.extract_strided_slice %296 {offsets = [0, 128], sizes = [8, 128], strides = [1, 1]} : vector<8x256xf32> to vector<8x128xf32>
    %298 = arith.addf %293, %297 : vector<8x128xf32>
    %299 = vector.extract_strided_slice %291 {offsets = [0, 0], sizes = [8, 32], strides = [1, 1]} : vector<8x128xf32> to vector<8x32xf32>
    %300 = arith.negf %299 : vector<8x32xf32>
    %301 = math.exp %300 : vector<8x32xf32>
    %cst_103 = arith.constant 1.000000e+00 : f32
    %302 = vector.broadcast %cst_103 : f32 to vector<8x32xf32>
    %303 = arith.addf %302, %301 : vector<8x32xf32>
    %304 = arith.divf %302, %303 : vector<8x32xf32>
    %305 = vector.extract_strided_slice %291 {offsets = [0, 32], sizes = [8, 32], strides = [1, 1]} : vector<8x128xf32> to vector<8x32xf32>
    %306 = arith.negf %305 : vector<8x32xf32>
    %307 = math.exp %306 : vector<8x32xf32>
    %cst_104 = arith.constant 1.000000e+00 : f32
    %308 = vector.broadcast %cst_104 : f32 to vector<8x32xf32>
    %309 = arith.addf %308, %307 : vector<8x32xf32>
    %310 = arith.divf %308, %309 : vector<8x32xf32>
    %311 = vector.extract_strided_slice %291 {offsets = [0, 64], sizes = [8, 32], strides = [1, 1]} : vector<8x128xf32> to vector<8x32xf32>
    %312 = math.tanh %311 : vector<8x32xf32>
    %313 = vector.extract_strided_slice %291 {offsets = [0, 96], sizes = [8, 32], strides = [1, 1]} : vector<8x128xf32> to vector<8x32xf32>
    %314 = arith.negf %313 : vector<8x32xf32>
    %315 = math.exp %314 : vector<8x32xf32>
    %cst_105 = arith.constant 1.000000e+00 : f32
    %316 = vector.broadcast %cst_105 : f32 to vector<8x32xf32>
    %317 = arith.addf %316, %315 : vector<8x32xf32>
    %318 = arith.divf %316, %317 : vector<8x32xf32>
    %319 = arith.mulf %310, %281 : vector<8x32xf32>
    %320 = arith.mulf %304, %312 : vector<8x32xf32>
    %321 = arith.addf %319, %320 : vector<8x32xf32>
    %322 = math.tanh %321 : vector<8x32xf32>
    %323 = arith.mulf %318, %322 : vector<8x32xf32>
    %324 = vector.extract_strided_slice %298 {offsets = [0, 0], sizes = [8, 32], strides = [1, 1]} : vector<8x128xf32> to vector<8x32xf32>
    %325 = arith.negf %324 : vector<8x32xf32>
    %326 = math.exp %325 : vector<8x32xf32>
    %cst_106 = arith.constant 1.000000e+00 : f32
    %327 = vector.broadcast %cst_106 : f32 to vector<8x32xf32>
    %328 = arith.addf %327, %326 : vector<8x32xf32>
    %329 = arith.divf %327, %328 : vector<8x32xf32>
    %330 = vector.extract_strided_slice %298 {offsets = [0, 32], sizes = [8, 32], strides = [1, 1]} : vector<8x128xf32> to vector<8x32xf32>
    %331 = arith.negf %330 : vector<8x32xf32>
    %332 = math.exp %331 : vector<8x32xf32>
    %cst_107 = arith.constant 1.000000e+00 : f32
    %333 = vector.broadcast %cst_107 : f32 to vector<8x32xf32>
    %334 = arith.addf %333, %332 : vector<8x32xf32>
    %335 = arith.divf %333, %334 : vector<8x32xf32>
    %336 = vector.extract_strided_slice %298 {offsets = [0, 64], sizes = [8, 32], strides = [1, 1]} : vector<8x128xf32> to vector<8x32xf32>
    %337 = math.tanh %336 : vector<8x32xf32>
    %338 = vector.extract_strided_slice %298 {offsets = [0, 96], sizes = [8, 32], strides = [1, 1]} : vector<8x128xf32> to vector<8x32xf32>
    %339 = arith.negf %338 : vector<8x32xf32>
    %340 = math.exp %339 : vector<8x32xf32>
    %cst_108 = arith.constant 1.000000e+00 : f32
    %341 = vector.broadcast %cst_108 : f32 to vector<8x32xf32>
    %342 = arith.addf %341, %340 : vector<8x32xf32>
    %343 = arith.divf %341, %342 : vector<8x32xf32>
    %344 = arith.mulf %335, %283 : vector<8x32xf32>
    %345 = arith.mulf %329, %337 : vector<8x32xf32>
    %346 = arith.addf %344, %345 : vector<8x32xf32>
    %347 = math.tanh %346 : vector<8x32xf32>
    %348 = arith.mulf %343, %347 : vector<8x32xf32>
    %349 = vector.broadcast %c3_i32 : i32 to vector<8x32xi32>
    %350 = arith.cmpi slt, %349, %27 : vector<8x32xi32>
    %351 = vector.broadcast %284 : i32 to vector<8x32xi32>
    %352 = arith.cmpi slt, %351, %27 : vector<8x32xi32>
    %cst_109 = arith.constant 0.000000e+00 : f32
    %353 = vector.broadcast %cst_109 : f32 to vector<8x32xf32>
    %354 = arith.select %350, %323, %353 : vector<8x32xi1>, vector<8x32xf32>
    %355 = arith.index_cast %c3_i32 : i32 to index
    %c0_110 = arith.constant 0 : index
    %c0_111 = arith.constant 0 : index
    %356 = vector.load %arg15[%355, %c0_110, %c0_111] : memref<8x8x32xf32, #tpu.memory_space<vmem>>, vector<1x8x32xf32>
    %357 = vector.shape_cast %356 : vector<1x8x32xf32> to vector<8x32xf32>
    %358 = vector.shape_cast %354 : vector<8x32xf32> to vector<1x8x32xf32>
    tpu.vector_store %arg15[%355, %c0_110, %c0_111], %358 {strides = array<i32>} : memref<8x8x32xf32, #tpu.memory_space<vmem>>, vector<1x8x32xf32>,
    %cst_112 = arith.constant 0.000000e+00 : f32
    %359 = vector.broadcast %cst_112 : f32 to vector<8x32xf32>
    %360 = arith.select %352, %348, %359 : vector<8x32xi1>, vector<8x32xf32>
    %361 = arith.index_cast %284 : i32 to index
    %c0_113 = arith.constant 0 : index
    %c0_114 = arith.constant 0 : index
    %362 = vector.load %arg16[%361, %c0_113, %c0_114] : memref<8x8x32xf32, #tpu.memory_space<vmem>>, vector<1x8x32xf32>
    %363 = vector.shape_cast %362 : vector<1x8x32xf32> to vector<8x32xf32>
    %364 = vector.shape_cast %360 : vector<8x32xf32> to vector<1x8x32xf32>
    tpu.vector_store %arg16[%361, %c0_113, %c0_114], %364 {strides = array<i32>} : memref<8x8x32xf32, #tpu.memory_space<vmem>>, vector<1x8x32xf32>,
    %365 = arith.select %350, %323, %280 : vector<8x32xi1>, vector<8x32xf32>
    %366 = arith.select %350, %321, %281 : vector<8x32xi1>, vector<8x32xf32>
    %367 = arith.select %352, %348, %282 : vector<8x32xi1>, vector<8x32xf32>
    %368 = arith.select %352, %346, %283 : vector<8x32xi1>, vector<8x32xf32>
    %c4_i32 = arith.constant 4 : i32
    %c7_i32_115 = arith.constant 7 : i32
    %369 = arith.subi %c7_i32_115, %c4_i32 : i32
    %c0_116 = arith.constant 0 : index
    %c0_117 = arith.constant 0 : index
    %370 = vector.load %arg8[%c0_116, %c0_117] : memref<32x128xf32, #tpu.memory_space<vmem>>, vector<32x128xf32>
    %cst_118 = arith.constant dense<0.000000e+00> : vector<8x128xf32>
    %371 = tpu.matmul %365, %370, %cst_118 {dimension_numbers = #tpu.dot_dimension_numbers<[1], [0], [0], [1], [0, 0, 1, 1], [], []>} : vector<8x32xf32>, vector<32x128xf32>, vector<8x128xf32> -> vector<8x128xf32>
    %372 = arith.index_cast %c4_i32 : i32 to index
    %c0_119 = arith.constant 0 : index
    %c0_120 = arith.constant 0 : index
    %373 = vector.load %arg14[%372, %c0_119, %c0_120] : memref<8x8x256xf32, #tpu.memory_space<vmem>>, vector<1x8x256xf32>
    %374 = vector.shape_cast %373 : vector<1x8x256xf32> to vector<8x256xf32>
    %375 = vector.extract_strided_slice %374 {offsets = [0, 0], sizes = [8, 128], strides = [1, 1]} : vector<8x256xf32> to vector<8x128xf32>
    %376 = arith.addf %371, %375 : vector<8x128xf32>
    %c0_121 = arith.constant 0 : index
    %c0_122 = arith.constant 0 : index
    %377 = vector.load %arg9[%c0_121, %c0_122] : memref<32x128xf32, #tpu.memory_space<vmem>>, vector<32x128xf32>
    %cst_123 = arith.constant dense<0.000000e+00> : vector<8x128xf32>
    %378 = tpu.matmul %367, %377, %cst_123 {dimension_numbers = #tpu.dot_dimension_numbers<[1], [0], [0], [1], [0, 0, 1, 1], [], []>} : vector<8x32xf32>, vector<32x128xf32>, vector<8x128xf32> -> vector<8x128xf32>
    %379 = arith.index_cast %369 : i32 to index
    %c0_124 = arith.constant 0 : index
    %c0_125 = arith.constant 0 : index
    %380 = vector.load %arg14[%379, %c0_124, %c0_125] : memref<8x8x256xf32, #tpu.memory_space<vmem>>, vector<1x8x256xf32>
    %381 = vector.shape_cast %380 : vector<1x8x256xf32> to vector<8x256xf32>
    %382 = vector.extract_strided_slice %381 {offsets = [0, 128], sizes = [8, 128], strides = [1, 1]} : vector<8x256xf32> to vector<8x128xf32>
    %383 = arith.addf %378, %382 : vector<8x128xf32>
    %384 = vector.extract_strided_slice %376 {offsets = [0, 0], sizes = [8, 32], strides = [1, 1]} : vector<8x128xf32> to vector<8x32xf32>
    %385 = arith.negf %384 : vector<8x32xf32>
    %386 = math.exp %385 : vector<8x32xf32>
    %cst_126 = arith.constant 1.000000e+00 : f32
    %387 = vector.broadcast %cst_126 : f32 to vector<8x32xf32>
    %388 = arith.addf %387, %386 : vector<8x32xf32>
    %389 = arith.divf %387, %388 : vector<8x32xf32>
    %390 = vector.extract_strided_slice %376 {offsets = [0, 32], sizes = [8, 32], strides = [1, 1]} : vector<8x128xf32> to vector<8x32xf32>
    %391 = arith.negf %390 : vector<8x32xf32>
    %392 = math.exp %391 : vector<8x32xf32>
    %cst_127 = arith.constant 1.000000e+00 : f32
    %393 = vector.broadcast %cst_127 : f32 to vector<8x32xf32>
    %394 = arith.addf %393, %392 : vector<8x32xf32>
    %395 = arith.divf %393, %394 : vector<8x32xf32>
    %396 = vector.extract_strided_slice %376 {offsets = [0, 64], sizes = [8, 32], strides = [1, 1]} : vector<8x128xf32> to vector<8x32xf32>
    %397 = math.tanh %396 : vector<8x32xf32>
    %398 = vector.extract_strided_slice %376 {offsets = [0, 96], sizes = [8, 32], strides = [1, 1]} : vector<8x128xf32> to vector<8x32xf32>
    %399 = arith.negf %398 : vector<8x32xf32>
    %400 = math.exp %399 : vector<8x32xf32>
    %cst_128 = arith.constant 1.000000e+00 : f32
    %401 = vector.broadcast %cst_128 : f32 to vector<8x32xf32>
    %402 = arith.addf %401, %400 : vector<8x32xf32>
    %403 = arith.divf %401, %402 : vector<8x32xf32>
    %404 = arith.mulf %395, %366 : vector<8x32xf32>
    %405 = arith.mulf %389, %397 : vector<8x32xf32>
    %406 = arith.addf %404, %405 : vector<8x32xf32>
    %407 = math.tanh %406 : vector<8x32xf32>
    %408 = arith.mulf %403, %407 : vector<8x32xf32>
    %409 = vector.extract_strided_slice %383 {offsets = [0, 0], sizes = [8, 32], strides = [1, 1]} : vector<8x128xf32> to vector<8x32xf32>
    %410 = arith.negf %409 : vector<8x32xf32>
    %411 = math.exp %410 : vector<8x32xf32>
    %cst_129 = arith.constant 1.000000e+00 : f32
    %412 = vector.broadcast %cst_129 : f32 to vector<8x32xf32>
    %413 = arith.addf %412, %411 : vector<8x32xf32>
    %414 = arith.divf %412, %413 : vector<8x32xf32>
    %415 = vector.extract_strided_slice %383 {offsets = [0, 32], sizes = [8, 32], strides = [1, 1]} : vector<8x128xf32> to vector<8x32xf32>
    %416 = arith.negf %415 : vector<8x32xf32>
    %417 = math.exp %416 : vector<8x32xf32>
    %cst_130 = arith.constant 1.000000e+00 : f32
    %418 = vector.broadcast %cst_130 : f32 to vector<8x32xf32>
    %419 = arith.addf %418, %417 : vector<8x32xf32>
    %420 = arith.divf %418, %419 : vector<8x32xf32>
    %421 = vector.extract_strided_slice %383 {offsets = [0, 64], sizes = [8, 32], strides = [1, 1]} : vector<8x128xf32> to vector<8x32xf32>
    %422 = math.tanh %421 : vector<8x32xf32>
    %423 = vector.extract_strided_slice %383 {offsets = [0, 96], sizes = [8, 32], strides = [1, 1]} : vector<8x128xf32> to vector<8x32xf32>
    %424 = arith.negf %423 : vector<8x32xf32>
    %425 = math.exp %424 : vector<8x32xf32>
    %cst_131 = arith.constant 1.000000e+00 : f32
    %426 = vector.broadcast %cst_131 : f32 to vector<8x32xf32>
    %427 = arith.addf %426, %425 : vector<8x32xf32>
    %428 = arith.divf %426, %427 : vector<8x32xf32>
    %429 = arith.mulf %420, %368 : vector<8x32xf32>
    %430 = arith.mulf %414, %422 : vector<8x32xf32>
    %431 = arith.addf %429, %430 : vector<8x32xf32>
    %432 = math.tanh %431 : vector<8x32xf32>
    %433 = arith.mulf %428, %432 : vector<8x32xf32>
    %434 = vector.broadcast %c4_i32 : i32 to vector<8x32xi32>
    %435 = arith.cmpi slt, %434, %27 : vector<8x32xi32>
    %436 = vector.broadcast %369 : i32 to vector<8x32xi32>
    %437 = arith.cmpi slt, %436, %27 : vector<8x32xi32>
    %cst_132 = arith.constant 0.000000e+00 : f32
    %438 = vector.broadcast %cst_132 : f32 to vector<8x32xf32>
    %439 = arith.select %435, %408, %438 : vector<8x32xi1>, vector<8x32xf32>
    %440 = arith.index_cast %c4_i32 : i32 to index
    %c0_133 = arith.constant 0 : index
    %c0_134 = arith.constant 0 : index
    %441 = vector.load %arg15[%440, %c0_133, %c0_134] : memref<8x8x32xf32, #tpu.memory_space<vmem>>, vector<1x8x32xf32>
    %442 = vector.shape_cast %441 : vector<1x8x32xf32> to vector<8x32xf32>
    %443 = vector.shape_cast %439 : vector<8x32xf32> to vector<1x8x32xf32>
    tpu.vector_store %arg15[%440, %c0_133, %c0_134], %443 {strides = array<i32>} : memref<8x8x32xf32, #tpu.memory_space<vmem>>, vector<1x8x32xf32>,
    %cst_135 = arith.constant 0.000000e+00 : f32
    %444 = vector.broadcast %cst_135 : f32 to vector<8x32xf32>
    %445 = arith.select %437, %433, %444 : vector<8x32xi1>, vector<8x32xf32>
    %446 = arith.index_cast %369 : i32 to index
    %c0_136 = arith.constant 0 : index
    %c0_137 = arith.constant 0 : index
    %447 = vector.load %arg16[%446, %c0_136, %c0_137] : memref<8x8x32xf32, #tpu.memory_space<vmem>>, vector<1x8x32xf32>
    %448 = vector.shape_cast %447 : vector<1x8x32xf32> to vector<8x32xf32>
    %449 = vector.shape_cast %445 : vector<8x32xf32> to vector<1x8x32xf32>
    tpu.vector_store %arg16[%446, %c0_136, %c0_137], %449 {strides = array<i32>} : memref<8x8x32xf32, #tpu.memory_space<vmem>>, vector<1x8x32xf32>,
    %450 = arith.select %435, %408, %365 : vector<8x32xi1>, vector<8x32xf32>
    %451 = arith.select %435, %406, %366 : vector<8x32xi1>, vector<8x32xf32>
    %452 = arith.select %437, %433, %367 : vector<8x32xi1>, vector<8x32xf32>
    %453 = arith.select %437, %431, %368 : vector<8x32xi1>, vector<8x32xf32>
    %c5_i32 = arith.constant 5 : i32
    %c7_i32_138 = arith.constant 7 : i32
    %454 = arith.subi %c7_i32_138, %c5_i32 : i32
    %c0_139 = arith.constant 0 : index
    %c0_140 = arith.constant 0 : index
    %455 = vector.load %arg8[%c0_139, %c0_140] : memref<32x128xf32, #tpu.memory_space<vmem>>, vector<32x128xf32>
    %cst_141 = arith.constant dense<0.000000e+00> : vector<8x128xf32>
    %456 = tpu.matmul %450, %455, %cst_141 {dimension_numbers = #tpu.dot_dimension_numbers<[1], [0], [0], [1], [0, 0, 1, 1], [], []>} : vector<8x32xf32>, vector<32x128xf32>, vector<8x128xf32> -> vector<8x128xf32>
    %457 = arith.index_cast %c5_i32 : i32 to index
    %c0_142 = arith.constant 0 : index
    %c0_143 = arith.constant 0 : index
    %458 = vector.load %arg14[%457, %c0_142, %c0_143] : memref<8x8x256xf32, #tpu.memory_space<vmem>>, vector<1x8x256xf32>
    %459 = vector.shape_cast %458 : vector<1x8x256xf32> to vector<8x256xf32>
    %460 = vector.extract_strided_slice %459 {offsets = [0, 0], sizes = [8, 128], strides = [1, 1]} : vector<8x256xf32> to vector<8x128xf32>
    %461 = arith.addf %456, %460 : vector<8x128xf32>
    %c0_144 = arith.constant 0 : index
    %c0_145 = arith.constant 0 : index
    %462 = vector.load %arg9[%c0_144, %c0_145] : memref<32x128xf32, #tpu.memory_space<vmem>>, vector<32x128xf32>
    %cst_146 = arith.constant dense<0.000000e+00> : vector<8x128xf32>
    %463 = tpu.matmul %452, %462, %cst_146 {dimension_numbers = #tpu.dot_dimension_numbers<[1], [0], [0], [1], [0, 0, 1, 1], [], []>} : vector<8x32xf32>, vector<32x128xf32>, vector<8x128xf32> -> vector<8x128xf32>
    %464 = arith.index_cast %454 : i32 to index
    %c0_147 = arith.constant 0 : index
    %c0_148 = arith.constant 0 : index
    %465 = vector.load %arg14[%464, %c0_147, %c0_148] : memref<8x8x256xf32, #tpu.memory_space<vmem>>, vector<1x8x256xf32>
    %466 = vector.shape_cast %465 : vector<1x8x256xf32> to vector<8x256xf32>
    %467 = vector.extract_strided_slice %466 {offsets = [0, 128], sizes = [8, 128], strides = [1, 1]} : vector<8x256xf32> to vector<8x128xf32>
    %468 = arith.addf %463, %467 : vector<8x128xf32>
    %469 = vector.extract_strided_slice %461 {offsets = [0, 0], sizes = [8, 32], strides = [1, 1]} : vector<8x128xf32> to vector<8x32xf32>
    %470 = arith.negf %469 : vector<8x32xf32>
    %471 = math.exp %470 : vector<8x32xf32>
    %cst_149 = arith.constant 1.000000e+00 : f32
    %472 = vector.broadcast %cst_149 : f32 to vector<8x32xf32>
    %473 = arith.addf %472, %471 : vector<8x32xf32>
    %474 = arith.divf %472, %473 : vector<8x32xf32>
    %475 = vector.extract_strided_slice %461 {offsets = [0, 32], sizes = [8, 32], strides = [1, 1]} : vector<8x128xf32> to vector<8x32xf32>
    %476 = arith.negf %475 : vector<8x32xf32>
    %477 = math.exp %476 : vector<8x32xf32>
    %cst_150 = arith.constant 1.000000e+00 : f32
    %478 = vector.broadcast %cst_150 : f32 to vector<8x32xf32>
    %479 = arith.addf %478, %477 : vector<8x32xf32>
    %480 = arith.divf %478, %479 : vector<8x32xf32>
    %481 = vector.extract_strided_slice %461 {offsets = [0, 64], sizes = [8, 32], strides = [1, 1]} : vector<8x128xf32> to vector<8x32xf32>
    %482 = math.tanh %481 : vector<8x32xf32>
    %483 = vector.extract_strided_slice %461 {offsets = [0, 96], sizes = [8, 32], strides = [1, 1]} : vector<8x128xf32> to vector<8x32xf32>
    %484 = arith.negf %483 : vector<8x32xf32>
    %485 = math.exp %484 : vector<8x32xf32>
    %cst_151 = arith.constant 1.000000e+00 : f32
    %486 = vector.broadcast %cst_151 : f32 to vector<8x32xf32>
    %487 = arith.addf %486, %485 : vector<8x32xf32>
    %488 = arith.divf %486, %487 : vector<8x32xf32>
    %489 = arith.mulf %480, %451 : vector<8x32xf32>
    %490 = arith.mulf %474, %482 : vector<8x32xf32>
    %491 = arith.addf %489, %490 : vector<8x32xf32>
    %492 = math.tanh %491 : vector<8x32xf32>
    %493 = arith.mulf %488, %492 : vector<8x32xf32>
    %494 = vector.extract_strided_slice %468 {offsets = [0, 0], sizes = [8, 32], strides = [1, 1]} : vector<8x128xf32> to vector<8x32xf32>
    %495 = arith.negf %494 : vector<8x32xf32>
    %496 = math.exp %495 : vector<8x32xf32>
    %cst_152 = arith.constant 1.000000e+00 : f32
    %497 = vector.broadcast %cst_152 : f32 to vector<8x32xf32>
    %498 = arith.addf %497, %496 : vector<8x32xf32>
    %499 = arith.divf %497, %498 : vector<8x32xf32>
    %500 = vector.extract_strided_slice %468 {offsets = [0, 32], sizes = [8, 32], strides = [1, 1]} : vector<8x128xf32> to vector<8x32xf32>
    %501 = arith.negf %500 : vector<8x32xf32>
    %502 = math.exp %501 : vector<8x32xf32>
    %cst_153 = arith.constant 1.000000e+00 : f32
    %503 = vector.broadcast %cst_153 : f32 to vector<8x32xf32>
    %504 = arith.addf %503, %502 : vector<8x32xf32>
    %505 = arith.divf %503, %504 : vector<8x32xf32>
    %506 = vector.extract_strided_slice %468 {offsets = [0, 64], sizes = [8, 32], strides = [1, 1]} : vector<8x128xf32> to vector<8x32xf32>
    %507 = math.tanh %506 : vector<8x32xf32>
    %508 = vector.extract_strided_slice %468 {offsets = [0, 96], sizes = [8, 32], strides = [1, 1]} : vector<8x128xf32> to vector<8x32xf32>
    %509 = arith.negf %508 : vector<8x32xf32>
    %510 = math.exp %509 : vector<8x32xf32>
    %cst_154 = arith.constant 1.000000e+00 : f32
    %511 = vector.broadcast %cst_154 : f32 to vector<8x32xf32>
    %512 = arith.addf %511, %510 : vector<8x32xf32>
    %513 = arith.divf %511, %512 : vector<8x32xf32>
    %514 = arith.mulf %505, %453 : vector<8x32xf32>
    %515 = arith.mulf %499, %507 : vector<8x32xf32>
    %516 = arith.addf %514, %515 : vector<8x32xf32>
    %517 = math.tanh %516 : vector<8x32xf32>
    %518 = arith.mulf %513, %517 : vector<8x32xf32>
    %519 = vector.broadcast %c5_i32 : i32 to vector<8x32xi32>
    %520 = arith.cmpi slt, %519, %27 : vector<8x32xi32>
    %521 = vector.broadcast %454 : i32 to vector<8x32xi32>
    %522 = arith.cmpi slt, %521, %27 : vector<8x32xi32>
    %cst_155 = arith.constant 0.000000e+00 : f32
    %523 = vector.broadcast %cst_155 : f32 to vector<8x32xf32>
    %524 = arith.select %520, %493, %523 : vector<8x32xi1>, vector<8x32xf32>
    %525 = arith.index_cast %c5_i32 : i32 to index
    %c0_156 = arith.constant 0 : index
    %c0_157 = arith.constant 0 : index
    %526 = vector.load %arg15[%525, %c0_156, %c0_157] : memref<8x8x32xf32, #tpu.memory_space<vmem>>, vector<1x8x32xf32>
    %527 = vector.shape_cast %526 : vector<1x8x32xf32> to vector<8x32xf32>
    %528 = vector.shape_cast %524 : vector<8x32xf32> to vector<1x8x32xf32>
    tpu.vector_store %arg15[%525, %c0_156, %c0_157], %528 {strides = array<i32>} : memref<8x8x32xf32, #tpu.memory_space<vmem>>, vector<1x8x32xf32>,
    %cst_158 = arith.constant 0.000000e+00 : f32
    %529 = vector.broadcast %cst_158 : f32 to vector<8x32xf32>
    %530 = arith.select %522, %518, %529 : vector<8x32xi1>, vector<8x32xf32>
    %531 = arith.index_cast %454 : i32 to index
    %c0_159 = arith.constant 0 : index
    %c0_160 = arith.constant 0 : index
    %532 = vector.load %arg16[%531, %c0_159, %c0_160] : memref<8x8x32xf32, #tpu.memory_space<vmem>>, vector<1x8x32xf32>
    %533 = vector.shape_cast %532 : vector<1x8x32xf32> to vector<8x32xf32>
    %534 = vector.shape_cast %530 : vector<8x32xf32> to vector<1x8x32xf32>
    tpu.vector_store %arg16[%531, %c0_159, %c0_160], %534 {strides = array<i32>} : memref<8x8x32xf32, #tpu.memory_space<vmem>>, vector<1x8x32xf32>,
    %535 = arith.select %520, %493, %450 : vector<8x32xi1>, vector<8x32xf32>
    %536 = arith.select %520, %491, %451 : vector<8x32xi1>, vector<8x32xf32>
    %537 = arith.select %522, %518, %452 : vector<8x32xi1>, vector<8x32xf32>
    %538 = arith.select %522, %516, %453 : vector<8x32xi1>, vector<8x32xf32>
    %c6_i32 = arith.constant 6 : i32
    %c7_i32_161 = arith.constant 7 : i32
    %539 = arith.subi %c7_i32_161, %c6_i32 : i32
    %c0_162 = arith.constant 0 : index
    %c0_163 = arith.constant 0 : index
    %540 = vector.load %arg8[%c0_162, %c0_163] : memref<32x128xf32, #tpu.memory_space<vmem>>, vector<32x128xf32>
    %cst_164 = arith.constant dense<0.000000e+00> : vector<8x128xf32>
    %541 = tpu.matmul %535, %540, %cst_164 {dimension_numbers = #tpu.dot_dimension_numbers<[1], [0], [0], [1], [0, 0, 1, 1], [], []>} : vector<8x32xf32>, vector<32x128xf32>, vector<8x128xf32> -> vector<8x128xf32>
    %542 = arith.index_cast %c6_i32 : i32 to index
    %c0_165 = arith.constant 0 : index
    %c0_166 = arith.constant 0 : index
    %543 = vector.load %arg14[%542, %c0_165, %c0_166] : memref<8x8x256xf32, #tpu.memory_space<vmem>>, vector<1x8x256xf32>
    %544 = vector.shape_cast %543 : vector<1x8x256xf32> to vector<8x256xf32>
    %545 = vector.extract_strided_slice %544 {offsets = [0, 0], sizes = [8, 128], strides = [1, 1]} : vector<8x256xf32> to vector<8x128xf32>
    %546 = arith.addf %541, %545 : vector<8x128xf32>
    %c0_167 = arith.constant 0 : index
    %c0_168 = arith.constant 0 : index
    %547 = vector.load %arg9[%c0_167, %c0_168] : memref<32x128xf32, #tpu.memory_space<vmem>>, vector<32x128xf32>
    %cst_169 = arith.constant dense<0.000000e+00> : vector<8x128xf32>
    %548 = tpu.matmul %537, %547, %cst_169 {dimension_numbers = #tpu.dot_dimension_numbers<[1], [0], [0], [1], [0, 0, 1, 1], [], []>} : vector<8x32xf32>, vector<32x128xf32>, vector<8x128xf32> -> vector<8x128xf32>
    %549 = arith.index_cast %539 : i32 to index
    %c0_170 = arith.constant 0 : index
    %c0_171 = arith.constant 0 : index
    %550 = vector.load %arg14[%549, %c0_170, %c0_171] : memref<8x8x256xf32, #tpu.memory_space<vmem>>, vector<1x8x256xf32>
    %551 = vector.shape_cast %550 : vector<1x8x256xf32> to vector<8x256xf32>
    %552 = vector.extract_strided_slice %551 {offsets = [0, 128], sizes = [8, 128], strides = [1, 1]} : vector<8x256xf32> to vector<8x128xf32>
    %553 = arith.addf %548, %552 : vector<8x128xf32>
    %554 = vector.extract_strided_slice %546 {offsets = [0, 0], sizes = [8, 32], strides = [1, 1]} : vector<8x128xf32> to vector<8x32xf32>
    %555 = arith.negf %554 : vector<8x32xf32>
    %556 = math.exp %555 : vector<8x32xf32>
    %cst_172 = arith.constant 1.000000e+00 : f32
    %557 = vector.broadcast %cst_172 : f32 to vector<8x32xf32>
    %558 = arith.addf %557, %556 : vector<8x32xf32>
    %559 = arith.divf %557, %558 : vector<8x32xf32>
    %560 = vector.extract_strided_slice %546 {offsets = [0, 32], sizes = [8, 32], strides = [1, 1]} : vector<8x128xf32> to vector<8x32xf32>
    %561 = arith.negf %560 : vector<8x32xf32>
    %562 = math.exp %561 : vector<8x32xf32>
    %cst_173 = arith.constant 1.000000e+00 : f32
    %563 = vector.broadcast %cst_173 : f32 to vector<8x32xf32>
    %564 = arith.addf %563, %562 : vector<8x32xf32>
    %565 = arith.divf %563, %564 : vector<8x32xf32>
    %566 = vector.extract_strided_slice %546 {offsets = [0, 64], sizes = [8, 32], strides = [1, 1]} : vector<8x128xf32> to vector<8x32xf32>
    %567 = math.tanh %566 : vector<8x32xf32>
    %568 = vector.extract_strided_slice %546 {offsets = [0, 96], sizes = [8, 32], strides = [1, 1]} : vector<8x128xf32> to vector<8x32xf32>
    %569 = arith.negf %568 : vector<8x32xf32>
    %570 = math.exp %569 : vector<8x32xf32>
    %cst_174 = arith.constant 1.000000e+00 : f32
    %571 = vector.broadcast %cst_174 : f32 to vector<8x32xf32>
    %572 = arith.addf %571, %570 : vector<8x32xf32>
    %573 = arith.divf %571, %572 : vector<8x32xf32>
    %574 = arith.mulf %565, %536 : vector<8x32xf32>
    %575 = arith.mulf %559, %567 : vector<8x32xf32>
    %576 = arith.addf %574, %575 : vector<8x32xf32>
    %577 = math.tanh %576 : vector<8x32xf32>
    %578 = arith.mulf %573, %577 : vector<8x32xf32>
    %579 = vector.extract_strided_slice %553 {offsets = [0, 0], sizes = [8, 32], strides = [1, 1]} : vector<8x128xf32> to vector<8x32xf32>
    %580 = arith.negf %579 : vector<8x32xf32>
    %581 = math.exp %580 : vector<8x32xf32>
    %cst_175 = arith.constant 1.000000e+00 : f32
    %582 = vector.broadcast %cst_175 : f32 to vector<8x32xf32>
    %583 = arith.addf %582, %581 : vector<8x32xf32>
    %584 = arith.divf %582, %583 : vector<8x32xf32>
    %585 = vector.extract_strided_slice %553 {offsets = [0, 32], sizes = [8, 32], strides = [1, 1]} : vector<8x128xf32> to vector<8x32xf32>
    %586 = arith.negf %585 : vector<8x32xf32>
    %587 = math.exp %586 : vector<8x32xf32>
    %cst_176 = arith.constant 1.000000e+00 : f32
    %588 = vector.broadcast %cst_176 : f32 to vector<8x32xf32>
    %589 = arith.addf %588, %587 : vector<8x32xf32>
    %590 = arith.divf %588, %589 : vector<8x32xf32>
    %591 = vector.extract_strided_slice %553 {offsets = [0, 64], sizes = [8, 32], strides = [1, 1]} : vector<8x128xf32> to vector<8x32xf32>
    %592 = math.tanh %591 : vector<8x32xf32>
    %593 = vector.extract_strided_slice %553 {offsets = [0, 96], sizes = [8, 32], strides = [1, 1]} : vector<8x128xf32> to vector<8x32xf32>
    %594 = arith.negf %593 : vector<8x32xf32>
    %595 = math.exp %594 : vector<8x32xf32>
    %cst_177 = arith.constant 1.000000e+00 : f32
    %596 = vector.broadcast %cst_177 : f32 to vector<8x32xf32>
    %597 = arith.addf %596, %595 : vector<8x32xf32>
    %598 = arith.divf %596, %597 : vector<8x32xf32>
    %599 = arith.mulf %590, %538 : vector<8x32xf32>
    %600 = arith.mulf %584, %592 : vector<8x32xf32>
    %601 = arith.addf %599, %600 : vector<8x32xf32>
    %602 = math.tanh %601 : vector<8x32xf32>
    %603 = arith.mulf %598, %602 : vector<8x32xf32>
    %604 = vector.broadcast %c6_i32 : i32 to vector<8x32xi32>
    %605 = arith.cmpi slt, %604, %27 : vector<8x32xi32>
    %606 = vector.broadcast %539 : i32 to vector<8x32xi32>
    %607 = arith.cmpi slt, %606, %27 : vector<8x32xi32>
    %cst_178 = arith.constant 0.000000e+00 : f32
    %608 = vector.broadcast %cst_178 : f32 to vector<8x32xf32>
    %609 = arith.select %605, %578, %608 : vector<8x32xi1>, vector<8x32xf32>
    %610 = arith.index_cast %c6_i32 : i32 to index
    %c0_179 = arith.constant 0 : index
    %c0_180 = arith.constant 0 : index
    %611 = vector.load %arg15[%610, %c0_179, %c0_180] : memref<8x8x32xf32, #tpu.memory_space<vmem>>, vector<1x8x32xf32>
    %612 = vector.shape_cast %611 : vector<1x8x32xf32> to vector<8x32xf32>
    %613 = vector.shape_cast %609 : vector<8x32xf32> to vector<1x8x32xf32>
    tpu.vector_store %arg15[%610, %c0_179, %c0_180], %613 {strides = array<i32>} : memref<8x8x32xf32, #tpu.memory_space<vmem>>, vector<1x8x32xf32>,
    %cst_181 = arith.constant 0.000000e+00 : f32
    %614 = vector.broadcast %cst_181 : f32 to vector<8x32xf32>
    %615 = arith.select %607, %603, %614 : vector<8x32xi1>, vector<8x32xf32>
    %616 = arith.index_cast %539 : i32 to index
    %c0_182 = arith.constant 0 : index
    %c0_183 = arith.constant 0 : index
    %617 = vector.load %arg16[%616, %c0_182, %c0_183] : memref<8x8x32xf32, #tpu.memory_space<vmem>>, vector<1x8x32xf32>
    %618 = vector.shape_cast %617 : vector<1x8x32xf32> to vector<8x32xf32>
    %619 = vector.shape_cast %615 : vector<8x32xf32> to vector<1x8x32xf32>
    tpu.vector_store %arg16[%616, %c0_182, %c0_183], %619 {strides = array<i32>} : memref<8x8x32xf32, #tpu.memory_space<vmem>>, vector<1x8x32xf32>,
    %620 = arith.select %605, %578, %535 : vector<8x32xi1>, vector<8x32xf32>
    %621 = arith.select %605, %576, %536 : vector<8x32xi1>, vector<8x32xf32>
    %622 = arith.select %607, %603, %537 : vector<8x32xi1>, vector<8x32xf32>
    %623 = arith.select %607, %601, %538 : vector<8x32xi1>, vector<8x32xf32>
    %c7_i32_184 = arith.constant 7 : i32
    %c7_i32_185 = arith.constant 7 : i32
    %624 = arith.subi %c7_i32_185, %c7_i32_184 : i32
    %c0_186 = arith.constant 0 : index
    %c0_187 = arith.constant 0 : index
    %625 = vector.load %arg8[%c0_186, %c0_187] : memref<32x128xf32, #tpu.memory_space<vmem>>, vector<32x128xf32>
    %cst_188 = arith.constant dense<0.000000e+00> : vector<8x128xf32>
    %626 = tpu.matmul %620, %625, %cst_188 {dimension_numbers = #tpu.dot_dimension_numbers<[1], [0], [0], [1], [0, 0, 1, 1], [], []>} : vector<8x32xf32>, vector<32x128xf32>, vector<8x128xf32> -> vector<8x128xf32>
    %627 = arith.index_cast %c7_i32_184 : i32 to index
    %c0_189 = arith.constant 0 : index
    %c0_190 = arith.constant 0 : index
    %628 = vector.load %arg14[%627, %c0_189, %c0_190] : memref<8x8x256xf32, #tpu.memory_space<vmem>>, vector<1x8x256xf32>
    %629 = vector.shape_cast %628 : vector<1x8x256xf32> to vector<8x256xf32>
    %630 = vector.extract_strided_slice %629 {offsets = [0, 0], sizes = [8, 128], strides = [1, 1]} : vector<8x256xf32> to vector<8x128xf32>
    %631 = arith.addf %626, %630 : vector<8x128xf32>
    %c0_191 = arith.constant 0 : index
    %c0_192 = arith.constant 0 : index
    %632 = vector.load %arg9[%c0_191, %c0_192] : memref<32x128xf32, #tpu.memory_space<vmem>>, vector<32x128xf32>
    %cst_193 = arith.constant dense<0.000000e+00> : vector<8x128xf32>
    %633 = tpu.matmul %622, %632, %cst_193 {dimension_numbers = #tpu.dot_dimension_numbers<[1], [0], [0], [1], [0, 0, 1, 1], [], []>} : vector<8x32xf32>, vector<32x128xf32>, vector<8x128xf32> -> vector<8x128xf32>
    %634 = arith.index_cast %624 : i32 to index
    %c0_194 = arith.constant 0 : index
    %c0_195 = arith.constant 0 : index
    %635 = vector.load %arg14[%634, %c0_194, %c0_195] : memref<8x8x256xf32, #tpu.memory_space<vmem>>, vector<1x8x256xf32>
    %636 = vector.shape_cast %635 : vector<1x8x256xf32> to vector<8x256xf32>
    %637 = vector.extract_strided_slice %636 {offsets = [0, 128], sizes = [8, 128], strides = [1, 1]} : vector<8x256xf32> to vector<8x128xf32>
    %638 = arith.addf %633, %637 : vector<8x128xf32>
    %639 = vector.extract_strided_slice %631 {offsets = [0, 0], sizes = [8, 32], strides = [1, 1]} : vector<8x128xf32> to vector<8x32xf32>
    %640 = arith.negf %639 : vector<8x32xf32>
    %641 = math.exp %640 : vector<8x32xf32>
    %cst_196 = arith.constant 1.000000e+00 : f32
    %642 = vector.broadcast %cst_196 : f32 to vector<8x32xf32>
    %643 = arith.addf %642, %641 : vector<8x32xf32>
    %644 = arith.divf %642, %643 : vector<8x32xf32>
    %645 = vector.extract_strided_slice %631 {offsets = [0, 32], sizes = [8, 32], strides = [1, 1]} : vector<8x128xf32> to vector<8x32xf32>
    %646 = arith.negf %645 : vector<8x32xf32>
    %647 = math.exp %646 : vector<8x32xf32>
    %cst_197 = arith.constant 1.000000e+00 : f32
    %648 = vector.broadcast %cst_197 : f32 to vector<8x32xf32>
    %649 = arith.addf %648, %647 : vector<8x32xf32>
    %650 = arith.divf %648, %649 : vector<8x32xf32>
    %651 = vector.extract_strided_slice %631 {offsets = [0, 64], sizes = [8, 32], strides = [1, 1]} : vector<8x128xf32> to vector<8x32xf32>
    %652 = math.tanh %651 : vector<8x32xf32>
    %653 = vector.extract_strided_slice %631 {offsets = [0, 96], sizes = [8, 32], strides = [1, 1]} : vector<8x128xf32> to vector<8x32xf32>
    %654 = arith.negf %653 : vector<8x32xf32>
    %655 = math.exp %654 : vector<8x32xf32>
    %cst_198 = arith.constant 1.000000e+00 : f32
    %656 = vector.broadcast %cst_198 : f32 to vector<8x32xf32>
    %657 = arith.addf %656, %655 : vector<8x32xf32>
    %658 = arith.divf %656, %657 : vector<8x32xf32>
    %659 = arith.mulf %650, %621 : vector<8x32xf32>
    %660 = arith.mulf %644, %652 : vector<8x32xf32>
    %661 = arith.addf %659, %660 : vector<8x32xf32>
    %662 = math.tanh %661 : vector<8x32xf32>
    %663 = arith.mulf %658, %662 : vector<8x32xf32>
    %664 = vector.extract_strided_slice %638 {offsets = [0, 0], sizes = [8, 32], strides = [1, 1]} : vector<8x128xf32> to vector<8x32xf32>
    %665 = arith.negf %664 : vector<8x32xf32>
    %666 = math.exp %665 : vector<8x32xf32>
    %cst_199 = arith.constant 1.000000e+00 : f32
    %667 = vector.broadcast %cst_199 : f32 to vector<8x32xf32>
    %668 = arith.addf %667, %666 : vector<8x32xf32>
    %669 = arith.divf %667, %668 : vector<8x32xf32>
    %670 = vector.extract_strided_slice %638 {offsets = [0, 32], sizes = [8, 32], strides = [1, 1]} : vector<8x128xf32> to vector<8x32xf32>
    %671 = arith.negf %670 : vector<8x32xf32>
    %672 = math.exp %671 : vector<8x32xf32>
    %cst_200 = arith.constant 1.000000e+00 : f32
    %673 = vector.broadcast %cst_200 : f32 to vector<8x32xf32>
    %674 = arith.addf %673, %672 : vector<8x32xf32>
    %675 = arith.divf %673, %674 : vector<8x32xf32>
    %676 = vector.extract_strided_slice %638 {offsets = [0, 64], sizes = [8, 32], strides = [1, 1]} : vector<8x128xf32> to vector<8x32xf32>
    %677 = math.tanh %676 : vector<8x32xf32>
    %678 = vector.extract_strided_slice %638 {offsets = [0, 96], sizes = [8, 32], strides = [1, 1]} : vector<8x128xf32> to vector<8x32xf32>
    %679 = arith.negf %678 : vector<8x32xf32>
    %680 = math.exp %679 : vector<8x32xf32>
    %cst_201 = arith.constant 1.000000e+00 : f32
    %681 = vector.broadcast %cst_201 : f32 to vector<8x32xf32>
    %682 = arith.addf %681, %680 : vector<8x32xf32>
    %683 = arith.divf %681, %682 : vector<8x32xf32>
    %684 = arith.mulf %675, %623 : vector<8x32xf32>
    %685 = arith.mulf %669, %677 : vector<8x32xf32>
    %686 = arith.addf %684, %685 : vector<8x32xf32>
    %687 = math.tanh %686 : vector<8x32xf32>
    %688 = arith.mulf %683, %687 : vector<8x32xf32>
    %689 = vector.broadcast %c7_i32_184 : i32 to vector<8x32xi32>
    %690 = arith.cmpi slt, %689, %27 : vector<8x32xi32>
    %691 = vector.broadcast %624 : i32 to vector<8x32xi32>
    %692 = arith.cmpi slt, %691, %27 : vector<8x32xi32>
    %cst_202 = arith.constant 0.000000e+00 : f32
    %693 = vector.broadcast %cst_202 : f32 to vector<8x32xf32>
    %694 = arith.select %690, %663, %693 : vector<8x32xi1>, vector<8x32xf32>
    %695 = arith.index_cast %c7_i32_184 : i32 to index
    %c0_203 = arith.constant 0 : index
    %c0_204 = arith.constant 0 : index
    %696 = vector.load %arg15[%695, %c0_203, %c0_204] : memref<8x8x32xf32, #tpu.memory_space<vmem>>, vector<1x8x32xf32>
    %697 = vector.shape_cast %696 : vector<1x8x32xf32> to vector<8x32xf32>
    %698 = vector.shape_cast %694 : vector<8x32xf32> to vector<1x8x32xf32>
    tpu.vector_store %arg15[%695, %c0_203, %c0_204], %698 {strides = array<i32>} : memref<8x8x32xf32, #tpu.memory_space<vmem>>, vector<1x8x32xf32>,
    %cst_205 = arith.constant 0.000000e+00 : f32
    %699 = vector.broadcast %cst_205 : f32 to vector<8x32xf32>
    %700 = arith.select %692, %688, %699 : vector<8x32xi1>, vector<8x32xf32>
    %701 = arith.index_cast %624 : i32 to index
    %c0_206 = arith.constant 0 : index
    %c0_207 = arith.constant 0 : index
    %702 = vector.load %arg16[%701, %c0_206, %c0_207] : memref<8x8x32xf32, #tpu.memory_space<vmem>>, vector<1x8x32xf32>
    %703 = vector.shape_cast %702 : vector<1x8x32xf32> to vector<8x32xf32>
    %704 = vector.shape_cast %700 : vector<8x32xf32> to vector<1x8x32xf32>
    tpu.vector_store %arg16[%701, %c0_206, %c0_207], %704 {strides = array<i32>} : memref<8x8x32xf32, #tpu.memory_space<vmem>>, vector<1x8x32xf32>,
    %705 = arith.select %690, %663, %620 : vector<8x32xi1>, vector<8x32xf32>
    %706 = arith.select %690, %661, %621 : vector<8x32xi1>, vector<8x32xf32>
    %707 = arith.select %692, %688, %622 : vector<8x32xi1>, vector<8x32xf32>
    %708 = arith.select %692, %686, %623 : vector<8x32xi1>, vector<8x32xf32>
    %c8_i32 = arith.constant 8 : i32
    %c0_208 = arith.constant 0 : index
    %c0_209 = arith.constant 0 : index
    %c0_210 = arith.constant 0 : index
    %709 = vector.load %arg15[%c0_208, %c0_209, %c0_210] : memref<8x8x32xf32, #tpu.memory_space<vmem>>, vector<8x8x32xf32>
    %710 = vector.shape_cast %709 : vector<8x8x32xf32> to vector<64x32xf32>
    %c0_211 = arith.constant 0 : index
    %c0_212 = arith.constant 0 : index
    %711 = vector.load %arg10[%c0_211, %c0_212] : memref<32x128xf32, #tpu.memory_space<vmem>>, vector<32x128xf32>
    %cst_213 = arith.constant dense<0.000000e+00> : vector<64x128xf32>
    %712 = tpu.matmul %710, %711, %cst_213 {dimension_numbers = #tpu.dot_dimension_numbers<[1], [0], [0], [1], [0, 0, 1, 1], [], []>} : vector<64x32xf32>, vector<32x128xf32>, vector<64x128xf32> -> vector<64x128xf32>
    %c0_214 = arith.constant 0 : index
    %c0_215 = arith.constant 0 : index
    %c0_216 = arith.constant 0 : index
    %713 = vector.load %arg16[%c0_214, %c0_215, %c0_216] : memref<8x8x32xf32, #tpu.memory_space<vmem>>, vector<8x8x32xf32>
    %714 = vector.shape_cast %713 : vector<8x8x32xf32> to vector<64x32xf32>
    %c0_217 = arith.constant 0 : index
    %c0_218 = arith.constant 0 : index
    %715 = vector.load %arg11[%c0_217, %c0_218] : memref<32x128xf32, #tpu.memory_space<vmem>>, vector<32x128xf32>
    %cst_219 = arith.constant dense<0.000000e+00> : vector<64x128xf32>
    %716 = tpu.matmul %714, %715, %cst_219 {dimension_numbers = #tpu.dot_dimension_numbers<[1], [0], [0], [1], [0, 0, 1, 1], [], []>} : vector<64x32xf32>, vector<32x128xf32>, vector<64x128xf32> -> vector<64x128xf32>
    %717 = arith.addf %712, %716 : vector<64x128xf32>
    %c0_220 = arith.constant 0 : index
    %c0_221 = arith.constant 0 : index
    %718 = vector.load %arg12[%c0_220, %c0_221] : memref<1x128xf32, #tpu.memory_space<vmem>>, vector<1x128xf32>
    %719 = vector.broadcast %718 : vector<1x128xf32> to vector<64x128xf32>
    %720 = arith.addf %717, %719 : vector<64x128xf32>
    %721 = vector.shape_cast %720 : vector<64x128xf32> to vector<8x8x128xf32>
    %c0_222 = arith.constant 0 : index
    %c0_223 = arith.constant 0 : index
    %c0_224 = arith.constant 0 : index
    %722 = vector.load %arg13[%c0_222, %c0_223, %c0_224] : memref<8x8x128xf32, #tpu.memory_space<vmem>>, vector<8x8x128xf32>
    tpu.vector_store %arg13[%c0_222, %c0_223, %c0_224], %721 {strides = array<i32>} : memref<8x8x128xf32, #tpu.memory_space<vmem>>, vector<8x8x128xf32>,
    return
  }
}

</mosaic_0001>

<llo_original>
// kernel: bilstm_crf_forward.1
$region0: #{bilstm_crf_forward.1}
  #allocation0 [shape = 'u32[]', space=smem, size = 0x4, offset = 0x4, fixed_abs, tag = 'smem constant byte address 0x4 - core index']
  #allocation1 [shape = 'u32[72,128]{1,0:T(1,128)}', space=vmem, size = 0x9000, scoped, tag = 'internal scratch']
  #allocation2 [shape = 'f32[8,8,256]{2,1,0:T(8,128)}', space=vmem, size = 0x10000, scoped, tag = 'scratch operand']
  #allocation3 [shape = 'f32[8,8,32]{2,1,0:T(8,128)}', space=vmem, size = 0x8000, scoped, tag = 'scratch operand']
  #allocation4 [shape = 'f32[8,8,32]{2,1,0:T(8,128)}', space=vmem, size = 0x8000, scoped, tag = 'scratch operand']
  %s0 = inlined_call_operand.vmem [shape: f32[64,16,16], index: 0, kind: input, shape index: {}]
  %s1 = inlined_call_operand.vmem [shape: f32[8,8,32], index: 1, kind: input, shape index: {}]
  %s2 = inlined_call_operand.vmem [shape: s32[8,1], index: 2, kind: input, shape index: {}]
  %s3 = inlined_call_operand.vmem [shape: f32[48,32], index: 3, kind: input, shape index: {}]
  %s4 = inlined_call_operand.vmem [shape: f32[1,32], index: 4, kind: input, shape index: {}]
  %s5 = inlined_call_operand.vmem [shape: f32[32,256], index: 5, kind: input, shape index: {}]
  %s6 = inlined_call_operand.vmem [shape: f32[32,256], index: 6, kind: input, shape index: {}]
  %s7 = inlined_call_operand.vmem [shape: f32[1,256], index: 7, kind: input, shape index: {}]
  %s8 = inlined_call_operand.vmem [shape: f32[32,128], index: 8, kind: input, shape index: {}]
  %s9 = inlined_call_operand.vmem [shape: f32[32,128], index: 9, kind: input, shape index: {}]
  %s10 = inlined_call_operand.vmem [shape: f32[32,128], index: 10, kind: input, shape index: {}]
  %s11 = inlined_call_operand.vmem [shape: f32[32,128], index: 11, kind: input, shape index: {}]
  %s12 = inlined_call_operand.vmem [shape: f32[1,128], index: 12, kind: input, shape index: {}]
  %s13 = inlined_call_operand.vmem [shape: f32[8,8,128], index: 13, kind: output, shape index: {}]
  %s14 = sld [smem:[#allocation0]]
  $region62: #{bilstm_crf_forward.1} parent=0
    _
  %s16 = ssub.s32 1, %s14
  %s17 = scalar_select 0, %s16, %s14
  // Predicated region
  $region2: #{bilstm_crf_forward.1} parent=0 // pred_check
    _
  $region3: #{bilstm_crf_forward.1} parent=0 // pred_check_branch
    %19 = sbr.rel (0) target = $region5
  $region4: #{bilstm_crf_forward.1} parent=0 // pred_region
    _
  $region5: #{bilstm_crf_forward.1} parent=0 // pred_fallthru
    _
  // Predicated region
  $region6: #{bilstm_crf_forward.1} parent=0 // pred_check
    _
  $region7: #{bilstm_crf_forward.1} parent=0 // pred_check_branch
    %21 = sbr.rel (0) target = $region9
  $region8: #{bilstm_crf_forward.1} parent=0 // pred_region
    _
  $region9: #{bilstm_crf_forward.1} parent=0 // pred_fallthru
    _
  // Predicated region
  $region10: #{bilstm_crf_forward.1} parent=0 // pred_check
    _
  $region11: #{bilstm_crf_forward.1} parent=0 // pred_check_branch
    %23 = sbr.rel (0) target = $region13
  $region12: #{bilstm_crf_forward.1} parent=0 // pred_region
    _
  $region13: #{bilstm_crf_forward.1} parent=0 // pred_fallthru
    _
  // Predicated region
  $region14: #{bilstm_crf_forward.1} parent=0 // pred_check
    _
  $region15: #{bilstm_crf_forward.1} parent=0 // pred_check_branch
    %25 = sbr.rel (0) target = $region17
  $region16: #{bilstm_crf_forward.1} parent=0 // pred_region
    _
  $region17: #{bilstm_crf_forward.1} parent=0 // pred_fallthru
    _
  // Predicated region
  $region18: #{bilstm_crf_forward.1} parent=0 // pred_check
    _
  $region19: #{bilstm_crf_forward.1} parent=0 // pred_check_branch
    %27 = sbr.rel (0) target = $region21
  $region20: #{bilstm_crf_forward.1} parent=0 // pred_region
    _
  $region21: #{bilstm_crf_forward.1} parent=0 // pred_fallthru
    _
  // Predicated region
  $region22: #{bilstm_crf_forward.1} parent=0 // pred_check
    _
  $region23: #{bilstm_crf_forward.1} parent=0 // pred_check_branch
    %29 = sbr.rel (0) target = $region25
  $region24: #{bilstm_crf_forward.1} parent=0 // pred_region
    _
  $region25: #{bilstm_crf_forward.1} parent=0 // pred_fallthru
    _
  // Predicated region
  $region26: #{bilstm_crf_forward.1} parent=0 // pred_check
    _
  $region27: #{bilstm_crf_forward.1} parent=0 // pred_check_branch
    %31 = sbr.rel (0) target = $region29
  $region28: #{bilstm_crf_forward.1} parent=0 // pred_region
    _
  $region29: #{bilstm_crf_forward.1} parent=0 // pred_fallthru
    _
  // Predicated region
  $region30: #{bilstm_crf_forward.1} parent=0 // pred_check
    _
  $region31: #{bilstm_crf_forward.1} parent=0 // pred_check_branch
    %33 = sbr.rel (0) target = $region33
  $region32: #{bilstm_crf_forward.1} parent=0 // pred_region
    _
  $region33: #{bilstm_crf_forward.1} parent=0 // pred_fallthru
    _
  // Predicated region
  $region34: #{bilstm_crf_forward.1} parent=0 // pred_check
    _
  $region35: #{bilstm_crf_forward.1} parent=0 // pred_check_branch
    %35 = sbr.rel (0) target = $region37
  $region36: #{bilstm_crf_forward.1} parent=0 // pred_region
    _
  $region37: #{bilstm_crf_forward.1} parent=0 // pred_fallthru
    _
  // Predicated region
  $region38: #{bilstm_crf_forward.1} parent=0 // pred_check
    _
  $region39: #{bilstm_crf_forward.1} parent=0 // pred_check_branch
    %37 = sbr.rel (0) target = $region41
  $region40: #{bilstm_crf_forward.1} parent=0 // pred_region
    _
  $region41: #{bilstm_crf_forward.1} parent=0 // pred_fallthru
    _
  // Predicated region
  $region42: #{bilstm_crf_forward.1} parent=0 // pred_check
    _
  $region43: #{bilstm_crf_forward.1} parent=0 // pred_check_branch
    %39 = sbr.rel (0) target = $region45
  $region44: #{bilstm_crf_forward.1} parent=0 // pred_region
    _
  $region45: #{bilstm_crf_forward.1} parent=0 // pred_fallthru
    _
  // Predicated region
  $region46: #{bilstm_crf_forward.1} parent=0 // pred_check
    _
  $region47: #{bilstm_crf_forward.1} parent=0 // pred_check_branch
    %41 = sbr.rel (0) target = $region49
  $region48: #{bilstm_crf_forward.1} parent=0 // pred_region
    _
  $region49: #{bilstm_crf_forward.1} parent=0 // pred_fallthru
    _
  // Predicated region
  $region50: #{bilstm_crf_forward.1} parent=0 // pred_check
    _
  $region51: #{bilstm_crf_forward.1} parent=0 // pred_check_branch
    %43 = sbr.rel (0) target = $region53
  $region52: #{bilstm_crf_forward.1} parent=0 // pred_region
    _
  $region53: #{bilstm_crf_forward.1} parent=0 // pred_fallthru
    _
  %v44 = vld [vmem:[%s0] sm:$0xff]
  %v45 = vld [vmem:[%s0 + $0x8] sm:$0xff]
  %v46 = vld [vmem:[%s0 + $0x10] sm:$0xff]
  %v47 = vld [vmem:[%s0 + $0x18] sm:$0xff]
  %v48 = vld [vmem:[%s0 + $0x20] sm:$0xff]
  %v49 = vld [vmem:[%s0 + $0x28] sm:$0xff]
  %v50 = vld [vmem:[%s0 + $0x30] sm:$0xff]
  %v51 = vld [vmem:[%s0 + $0x38] sm:$0xff]
  %v52 = vld [vmem:[%s0 + $0x40] sm:$0xff]
  %v53 = vld [vmem:[%s0 + $0x48] sm:$0xff]
  %v54 = vld [vmem:[%s0 + $0x50] sm:$0xff]
  %v55 = vld [vmem:[%s0 + $0x58] sm:$0xff]
  %v56 = vld [vmem:[%s0 + $0x60] sm:$0xff]
  %v57 = vld [vmem:[%s0 + $0x68] sm:$0xff]
  %v58 = vld [vmem:[%s0 + $0x70] sm:$0xff]
  %v59 = vld [vmem:[%s0 + $0x78] sm:$0xff]
  %v60 = vld [vmem:[%s0 + $0x80] sm:$0xff]
  %v61 = vld [vmem:[%s0 + $0x88] sm:$0xff]
  %v62 = vld [vmem:[%s0 + $0x90] sm:$0xff]
  %v63 = vld [vmem:[%s0 + $0x98] sm:$0xff]
  %v64 = vld [vmem:[%s0 + $0xa0] sm:$0xff]
  %v65 = vld [vmem:[%s0 + $0xa8] sm:$0xff]
  %v66 = vld [vmem:[%s0 + $0xb0] sm:$0xff]
  %v67 = vld [vmem:[%s0 + $0xb8] sm:$0xff]
  %v68 = vld [vmem:[%s0 + $0xc0] sm:$0xff]
  %v69 = vld [vmem:[%s0 + $0xc8] sm:$0xff]
  %v70 = vld [vmem:[%s0 + $0xd0] sm:$0xff]
  %v71 = vld [vmem:[%s0 + $0xd8] sm:$0xff]
  %v72 = vld [vmem:[%s0 + $0xe0] sm:$0xff]
  %v73 = vld [vmem:[%s0 + $0xe8] sm:$0xff]
  %v74 = vld [vmem:[%s0 + $0xf0] sm:$0xff]
  %v75 = vld [vmem:[%s0 + $0xf8] sm:$0xff]
  %v76 = vld [vmem:[%s0 + $0x100] sm:$0xff]
  %v77 = vld [vmem:[%s0 + $0x108] sm:$0xff]
  %v78 = vld [vmem:[%s0 + $0x110] sm:$0xff]
  %v79 = vld [vmem:[%s0 + $0x118] sm:$0xff]
  %v80 = vld [vmem:[%s0 + $0x120] sm:$0xff]
  %v81 = vld [vmem:[%s0 + $0x128] sm:$0xff]
  %v82 = vld [vmem:[%s0 + $0x130] sm:$0xff]
  %v83 = vld [vmem:[%s0 + $0x138] sm:$0xff]
  %v84 = vld [vmem:[%s0 + $0x140] sm:$0xff]
  %v85 = vld [vmem:[%s0 + $0x148] sm:$0xff]
  %v86 = vld [vmem:[%s0 + $0x150] sm:$0xff]
  %v87 = vld [vmem:[%s0 + $0x158] sm:$0xff]
  %v88 = vld [vmem:[%s0 + $0x160] sm:$0xff]
  %v89 = vld [vmem:[%s0 + $0x168] sm:$0xff]
  %v90 = vld [vmem:[%s0 + $0x170] sm:$0xff]
  %v91 = vld [vmem:[%s0 + $0x178] sm:$0xff]
  %v92 = vld [vmem:[%s0 + $0x180] sm:$0xff]
  %v93 = vld [vmem:[%s0 + $0x188] sm:$0xff]
  %v94 = vld [vmem:[%s0 + $0x190] sm:$0xff]
  %v95 = vld [vmem:[%s0 + $0x198] sm:$0xff]
  %v96 = vld [vmem:[%s0 + $0x1a0] sm:$0xff]
  %v97 = vld [vmem:[%s0 + $0x1a8] sm:$0xff]
  %v98 = vld [vmem:[%s0 + $0x1b0] sm:$0xff]
  %v99 = vld [vmem:[%s0 + $0x1b8] sm:$0xff]
  %v100 = vld [vmem:[%s0 + $0x1c0] sm:$0xff]
  %v101 = vld [vmem:[%s0 + $0x1c8] sm:$0xff]
  %v102 = vld [vmem:[%s0 + $0x1d0] sm:$0xff]
  %v103 = vld [vmem:[%s0 + $0x1d8] sm:$0xff]
  %v104 = vld [vmem:[%s0 + $0x1e0] sm:$0xff]
  %v105 = vld [vmem:[%s0 + $0x1e8] sm:$0xff]
  %v106 = vld [vmem:[%s0 + $0x1f0] sm:$0xff]
  %v107 = vld [vmem:[%s0 + $0x1f8] sm:$0xff]
  %v108 = vld [vmem:[%s0 + $0x200] sm:$0xff]
  %v109 = vld [vmem:[%s0 + $0x208] sm:$0xff]
  %v110 = vld [vmem:[%s0 + $0x210] sm:$0xff]
  %v111 = vld [vmem:[%s0 + $0x218] sm:$0xff]
  %v112 = vld [vmem:[%s0 + $0x220] sm:$0xff]
  %v113 = vld [vmem:[%s0 + $0x228] sm:$0xff]
  %v114 = vld [vmem:[%s0 + $0x230] sm:$0xff]
  %v115 = vld [vmem:[%s0 + $0x238] sm:$0xff]
  %v116 = vld [vmem:[%s0 + $0x240] sm:$0xff]
  %v117 = vld [vmem:[%s0 + $0x248] sm:$0xff]
  %v118 = vld [vmem:[%s0 + $0x250] sm:$0xff]
  %v119 = vld [vmem:[%s0 + $0x258] sm:$0xff]
  %v120 = vld [vmem:[%s0 + $0x260] sm:$0xff]
  %v121 = vld [vmem:[%s0 + $0x268] sm:$0xff]
  %v122 = vld [vmem:[%s0 + $0x270] sm:$0xff]
  %v123 = vld [vmem:[%s0 + $0x278] sm:$0xff]
  %v124 = vld [vmem:[%s0 + $0x280] sm:$0xff]
  %v125 = vld [vmem:[%s0 + $0x288] sm:$0xff]
  %v126 = vld [vmem:[%s0 + $0x290] sm:$0xff]
  %v127 = vld [vmem:[%s0 + $0x298] sm:$0xff]
  %v128 = vld [vmem:[%s0 + $0x2a0] sm:$0xff]
  %v129 = vld [vmem:[%s0 + $0x2a8] sm:$0xff]
  %v130 = vld [vmem:[%s0 + $0x2b0] sm:$0xff]
  %v131 = vld [vmem:[%s0 + $0x2b8] sm:$0xff]
  %v132 = vld [vmem:[%s0 + $0x2c0] sm:$0xff]
  %v133 = vld [vmem:[%s0 + $0x2c8] sm:$0xff]
  %v134 = vld [vmem:[%s0 + $0x2d0] sm:$0xff]
  %v135 = vld [vmem:[%s0 + $0x2d8] sm:$0xff]
  %v136 = vld [vmem:[%s0 + $0x2e0] sm:$0xff]
  %v137 = vld [vmem:[%s0 + $0x2e8] sm:$0xff]
  %v138 = vld [vmem:[%s0 + $0x2f0] sm:$0xff]
  %v139 = vld [vmem:[%s0 + $0x2f8] sm:$0xff]
  %v140 = vld [vmem:[%s0 + $0x300] sm:$0xff]
  %v141 = vld [vmem:[%s0 + $0x308] sm:$0xff]
  %v142 = vld [vmem:[%s0 + $0x310] sm:$0xff]
  %v143 = vld [vmem:[%s0 + $0x318] sm:$0xff]
  %v144 = vld [vmem:[%s0 + $0x320] sm:$0xff]
  %v145 = vld [vmem:[%s0 + $0x328] sm:$0xff]
  %v146 = vld [vmem:[%s0 + $0x330] sm:$0xff]
  %v147 = vld [vmem:[%s0 + $0x338] sm:$0xff]
  %v148 = vld [vmem:[%s0 + $0x340] sm:$0xff]
  %v149 = vld [vmem:[%s0 + $0x348] sm:$0xff]
  %v150 = vld [vmem:[%s0 + $0x350] sm:$0xff]
  %v151 = vld [vmem:[%s0 + $0x358] sm:$0xff]
  %v152 = vld [vmem:[%s0 + $0x360] sm:$0xff]
  %v153 = vld [vmem:[%s0 + $0x368] sm:$0xff]
  %v154 = vld [vmem:[%s0 + $0x370] sm:$0xff]
  %v155 = vld [vmem:[%s0 + $0x378] sm:$0xff]
  %v156 = vld [vmem:[%s0 + $0x380] sm:$0xff]
  %v157 = vld [vmem:[%s0 + $0x388] sm:$0xff]
  %v158 = vld [vmem:[%s0 + $0x390] sm:$0xff]
  %v159 = vld [vmem:[%s0 + $0x398] sm:$0xff]
  %v160 = vld [vmem:[%s0 + $0x3a0] sm:$0xff]
  %v161 = vld [vmem:[%s0 + $0x3a8] sm:$0xff]
  %v162 = vld [vmem:[%s0 + $0x3b0] sm:$0xff]
  %v163 = vld [vmem:[%s0 + $0x3b8] sm:$0xff]
  %v164 = vld [vmem:[%s0 + $0x3c0] sm:$0xff]
  %v165 = vld [vmem:[%s0 + $0x3c8] sm:$0xff]
  %v166 = vld [vmem:[%s0 + $0x3d0] sm:$0xff]
  %v167 = vld [vmem:[%s0 + $0x3d8] sm:$0xff]
  %v168 = vld [vmem:[%s0 + $0x3e0] sm:$0xff]
  %v169 = vld [vmem:[%s0 + $0x3e8] sm:$0xff]
  %v170 = vld [vmem:[%s0 + $0x3f0] sm:$0xff]
  %v171 = vld [vmem:[%s0 + $0x3f8] sm:$0xff]
  %vm300 = vcmask 1046528
  %v301 = vrot.slane %v44, 1
  %v302 = vrot.slane %v45, 1
  %v303 = vsel %vm300, %v301, %v302
  %v304 = vrot.slane %v46, 1
  %v305 = vrot.slane %v47, 1
  %v306 = vsel %vm300, %v304, %v305
  %v307 = vrot.slane %v48, 1
  %v308 = vrot.slane %v49, 1
  %v309 = vsel %vm300, %v307, %v308
  %v310 = vrot.slane %v50, 1
  %v311 = vrot.slane %v51, 1
  %v312 = vsel %vm300, %v310, %v311
  %v313 = vrot.slane %v52, 1
  %v314 = vrot.slane %v53, 1
  %v315 = vsel %vm300, %v313, %v314
  %v316 = vrot.slane %v54, 1
  %v317 = vrot.slane %v55, 1
  %v318 = vsel %vm300, %v316, %v317
  %v319 = vrot.slane %v56, 1
  %v320 = vrot.slane %v57, 1
  %v321 = vsel %vm300, %v319, %v320
  %v322 = vrot.slane %v58, 1
  %v323 = vrot.slane %v59, 1
  %v324 = vsel %vm300, %v322, %v323
  %v325 = vrot.slane %v60, 1
  %v326 = vrot.slane %v61, 1
  %v327 = vsel %vm300, %v325, %v326
  %v328 = vrot.slane %v62, 1
  %v329 = vrot.slane %v63, 1
  %v330 = vsel %vm300, %v328, %v329
  %v331 = vrot.slane %v64, 1
  %v332 = vrot.slane %v65, 1
  %v333 = vsel %vm300, %v331, %v332
  %v334 = vrot.slane %v66, 1
  %v335 = vrot.slane %v67, 1
  %v336 = vsel %vm300, %v334, %v335
  %v337 = vrot.slane %v68, 1
  %v338 = vrot.slane %v69, 1
  %v339 = vsel %vm300, %v337, %v338
  %v340 = vrot.slane %v70, 1
  %v341 = vrot.slane %v71, 1
  %v342 = vsel %vm300, %v340, %v341
  %v343 = vrot.slane %v72, 1
  %v344 = vrot.slane %v73, 1
  %v345 = vsel %vm300, %v343, %v344
  %v346 = vrot.slane %v74, 1
  %v347 = vrot.slane %v75, 1
  %v348 = vsel %vm300, %v346, %v347
  %v349 = vrot.slane %v76, 1
  %v350 = vrot.slane %v77, 1
  %v351 = vsel %vm300, %v349, %v350
  %v352 = vrot.slane %v78, 1
  %v353 = vrot.slane %v79, 1
  %v354 = vsel %vm300, %v352, %v353
  %v355 = vrot.slane %v80, 1
  %v356 = vrot.slane %v81, 1
  %v357 = vsel %vm300, %v355, %v356
  %v358 = vrot.slane %v82, 1
  %v359 = vrot.slane %v83, 1
  %v360 = vsel %vm300, %v358, %v359
  %v361 = vrot.slane %v84, 1
  %v362 = vrot.slane %v85, 1
  %v363 = vsel %vm300, %v361, %v362
  %v364 = vrot.slane %v86, 1
  %v365 = vrot.slane %v87, 1
  %v366 = vsel %vm300, %v364, %v365
  %v367 = vrot.slane %v88, 1
  %v368 = vrot.slane %v89, 1
  %v369 = vsel %vm300, %v367, %v368
  %v370 = vrot.slane %v90, 1
  %v371 = vrot.slane %v91, 1
  %v372 = vsel %vm300, %v370, %v371
  %v373 = vrot.slane %v92, 1
  %v374 = vrot.slane %v93, 1
  %v375 = vsel %vm300, %v373, %v374
  %v376 = vrot.slane %v94, 1
  %v377 = vrot.slane %v95, 1
  %v378 = vsel %vm300, %v376, %v377
  %v379 = vrot.slane %v96, 1
  %v380 = vrot.slane %v97, 1
  %v381 = vsel %vm300, %v379, %v380
  %v382 = vrot.slane %v98, 1
  %v383 = vrot.slane %v99, 1
  %v384 = vsel %vm300, %v382, %v383
  %v385 = vrot.slane %v100, 1
  %v386 = vrot.slane %v101, 1
  %v387 = vsel %vm300, %v385, %v386
  %v388 = vrot.slane %v102, 1
  %v389 = vrot.slane %v103, 1
  %v390 = vsel %vm300, %v388, %v389
  %v391 = vrot.slane %v104, 1
  %v392 = vrot.slane %v105, 1
  %v393 = vsel %vm300, %v391, %v392
  %v394 = vrot.slane %v106, 1
  %v395 = vrot.slane %v107, 1
  %v396 = vsel %vm300, %v394, %v395
  %v397 = vrot.slane %v108, 1
  %v398 = vrot.slane %v109, 1
  %v399 = vsel %vm300, %v397, %v398
  %v400 = vrot.slane %v110, 1
  %v401 = vrot.slane %v111, 1
  %v402 = vsel %vm300, %v400, %v401
  %v403 = vrot.slane %v112, 1
  %v404 = vrot.slane %v113, 1
  %v405 = vsel %vm300, %v403, %v404
  %v406 = vrot.slane %v114, 1
  %v407 = vrot.slane %v115, 1
  %v408 = vsel %vm300, %v406, %v407
  %v409 = vrot.slane %v116, 1
  %v410 = vrot.slane %v117, 1
  %v411 = vsel %vm300, %v409, %v410
  %v412 = vrot.slane %v118, 1
  %v413 = vrot.slane %v119, 1
  %v414 = vsel %vm300, %v412, %v413
  %v415 = vrot.slane %v120, 1
  %v416 = vrot.slane %v121, 1
  %v417 = vsel %vm300, %v415, %v416
  %v418 = vrot.slane %v122, 1
  %v419 = vrot.slane %v123, 1
  %v420 = vsel %vm300, %v418, %v419
  %v421 = vrot.slane %v124, 1
  %v422 = vrot.slane %v125, 1
  %v423 = vsel %vm300, %v421, %v422
  %v424 = vrot.slane %v126, 1
  %v425 = vrot.slane %v127, 1
  %v426 = vsel %vm300, %v424, %v425
  %v427 = vrot.slane %v128, 1
  %v428 = vrot.slane %v129, 1
  %v429 = vsel %vm300, %v427, %v428
  %v430 = vrot.slane %v130, 1
  %v431 = vrot.slane %v131, 1
  %v432 = vsel %vm300, %v430, %v431
  %v433 = vrot.slane %v132, 1
  %v434 = vrot.slane %v133, 1
  %v435 = vsel %vm300, %v433, %v434
  %v436 = vrot.slane %v134, 1
  %v437 = vrot.slane %v135, 1
  %v438 = vsel %vm300, %v436, %v437
  %v439 = vrot.slane %v136, 1
  %v440 = vrot.slane %v137, 1
  %v441 = vsel %vm300, %v439, %v440
  %v442 = vrot.slane %v138, 1
  %v443 = vrot.slane %v139, 1
  %v444 = vsel %vm300, %v442, %v443
  %v445 = vrot.slane %v140, 1
  %v446 = vrot.slane %v141, 1
  %v447 = vsel %vm300, %v445, %v446
  %v448 = vrot.slane %v142, 1
  %v449 = vrot.slane %v143, 1
  %v450 = vsel %vm300, %v448, %v449
  %v451 = vrot.slane %v144, 1
  %v452 = vrot.slane %v145, 1
  %v453 = vsel %vm300, %v451, %v452
  %v454 = vrot.slane %v146, 1
  %v455 = vrot.slane %v147, 1
  %v456 = vsel %vm300, %v454, %v455
  %v457 = vrot.slane %v148, 1
  %v458 = vrot.slane %v149, 1
  %v459 = vsel %vm300, %v457, %v458
  %v460 = vrot.slane %v150, 1
  %v461 = vrot.slane %v151, 1
  %v462 = vsel %vm300, %v460, %v461
  %v463 = vrot.slane %v152, 1
  %v464 = vrot.slane %v153, 1
  %v465 = vsel %vm300, %v463, %v464
  %v466 = vrot.slane %v154, 1
  %v467 = vrot.slane %v155, 1
  %v468 = vsel %vm300, %v466, %v467
  %v469 = vrot.slane %v156, 1
  %v470 = vrot.slane %v157, 1
  %v471 = vsel %vm300, %v469, %v470
  %v472 = vrot.slane %v158, 1
  %v473 = vrot.slane %v159, 1
  %v474 = vsel %vm300, %v472, %v473
  %v475 = vrot.slane %v160, 1
  %v476 = vrot.slane %v161, 1
  %v477 = vsel %vm300, %v475, %v476
  %v478 = vrot.slane %v162, 1
  %v479 = vrot.slane %v163, 1
  %v480 = vsel %vm300, %v478, %v479
  %v481 = vrot.slane %v164, 1
  %v482 = vrot.slane %v165, 1
  %v483 = vsel %vm300, %v481, %v482
  %v484 = vrot.slane %v166, 1
  %v485 = vrot.slane %v167, 1
  %v486 = vsel %vm300, %v484, %v485
  %v487 = vrot.slane %v168, 1
  %v488 = vrot.slane %v169, 1
  %v489 = vsel %vm300, %v487, %v488
  %v490 = vrot.slane %v170, 1
  %v491 = vrot.slane %v171, 1
  %v492 = vsel %vm300, %v490, %v491
  %493 = vrot.lane.b32.xlu0 %v303, 16
  %v494 = vpop.permute.xlu0 %493
  %495 = vrot.lane.b32.xlu0 %v302, 16
  %v496 = vpop.permute.xlu0 %495
  %497 = vrot.lane.b32.xlu0 %v306, 16
  %v498 = vpop.permute.xlu0 %497
  %499 = vrot.lane.b32.xlu0 %v305, 16
  %v500 = vpop.permute.xlu0 %499
  %501 = vrot.lane.b32.xlu0 %v309, 16
  %v502 = vpop.permute.xlu0 %501
  %503 = vrot.lane.b32.xlu0 %v308, 16
  %v504 = vpop.permute.xlu0 %503
  %505 = vrot.lane.b32.xlu0 %v312, 16
  %v506 = vpop.permute.xlu0 %505
  %507 = vrot.lane.b32.xlu0 %v311, 16
  %v508 = vpop.permute.xlu0 %507
  %509 = vrot.lane.b32.xlu0 %v315, 16
  %v510 = vpop.permute.xlu0 %509
  %511 = vrot.lane.b32.xlu0 %v314, 16
  %v512 = vpop.permute.xlu0 %511
  %513 = vrot.lane.b32.xlu0 %v318, 16
  %v514 = vpop.permute.xlu0 %513
  %515 = vrot.lane.b32.xlu0 %v317, 16
  %v516 = vpop.permute.xlu0 %515
  %517 = vrot.lane.b32.xlu0 %v321, 16
  %v518 = vpop.permute.xlu0 %517
  %519 = vrot.lane.b32.xlu0 %v320, 16
  %v520 = vpop.permute.xlu0 %519
  %521 = vrot.lane.b32.xlu0 %v324, 16
  %v522 = vpop.permute.xlu0 %521
  %523 = vrot.lane.b32.xlu0 %v323, 16
  %v524 = vpop.permute.xlu0 %523
  %525 = vrot.lane.b32.xlu0 %v327, 16
  %v526 = vpop.permute.xlu0 %525
  %527 = vrot.lane.b32.xlu0 %v326, 16
  %v528 = vpop.permute.xlu0 %527
  %529 = vrot.lane.b32.xlu0 %v330, 16
  %v530 = vpop.permute.xlu0 %529
  %531 = vrot.lane.b32.xlu0 %v329, 16
  %v532 = vpop.permute.xlu0 %531
  %533 = vrot.lane.b32.xlu0 %v333, 16
  %v534 = vpop.permute.xlu0 %533
  %535 = vrot.lane.b32.xlu0 %v332, 16
  %v536 = vpop.permute.xlu0 %535
  %537 = vrot.lane.b32.xlu0 %v336, 16
  %v538 = vpop.permute.xlu0 %537
  %539 = vrot.lane.b32.xlu0 %v335, 16
  %v540 = vpop.permute.xlu0 %539
  %541 = vrot.lane.b32.xlu0 %v339, 16
  %v542 = vpop.permute.xlu0 %541
  %543 = vrot.lane.b32.xlu0 %v338, 16
  %v544 = vpop.permute.xlu0 %543
  %545 = vrot.lane.b32.xlu0 %v342, 16
  %v546 = vpop.permute.xlu0 %545
  %547 = vrot.lane.b32.xlu0 %v341, 16
  %v548 = vpop.permute.xlu0 %547
  %549 = vrot.lane.b32.xlu0 %v345, 16
  %v550 = vpop.permute.xlu0 %549
  %551 = vrot.lane.b32.xlu0 %v344, 16
  %v552 = vpop.permute.xlu0 %551
  %553 = vrot.lane.b32.xlu0 %v348, 16
  %v554 = vpop.permute.xlu0 %553
  %555 = vrot.lane.b32.xlu0 %v347, 16
  %v556 = vpop.permute.xlu0 %555
  %557 = vrot.lane.b32.xlu0 %v351, 16
  %v558 = vpop.permute.xlu0 %557
  %559 = vrot.lane.b32.xlu0 %v350, 16
  %v560 = vpop.permute.xlu0 %559
  %561 = vrot.lane.b32.xlu0 %v354, 16
  %v562 = vpop.permute.xlu0 %561
  %563 = vrot.lane.b32.xlu0 %v353, 16
  %v564 = vpop.permute.xlu0 %563
  %565 = vrot.lane.b32.xlu0 %v357, 16
  %v566 = vpop.permute.xlu0 %565
  %567 = vrot.lane.b32.xlu0 %v356, 16
  %v568 = vpop.permute.xlu0 %567
  %569 = vrot.lane.b32.xlu0 %v360, 16
  %v570 = vpop.permute.xlu0 %569
  %571 = vrot.lane.b32.xlu0 %v359, 16
  %v572 = vpop.permute.xlu0 %571
  %573 = vrot.lane.b32.xlu0 %v363, 16
  %v574 = vpop.permute.xlu0 %573
  %575 = vrot.lane.b32.xlu0 %v362, 16
  %v576 = vpop.permute.xlu0 %575
  %577 = vrot.lane.b32.xlu0 %v366, 16
  %v578 = vpop.permute.xlu0 %577
  %579 = vrot.lane.b32.xlu0 %v365, 16
  %v580 = vpop.permute.xlu0 %579
  %581 = vrot.lane.b32.xlu0 %v369, 16
  %v582 = vpop.permute.xlu0 %581
  %583 = vrot.lane.b32.xlu0 %v368, 16
  %v584 = vpop.permute.xlu0 %583
  %585 = vrot.lane.b32.xlu0 %v372, 16
  %v586 = vpop.permute.xlu0 %585
  %587 = vrot.lane.b32.xlu0 %v371, 16
  %v588 = vpop.permute.xlu0 %587
  %589 = vrot.lane.b32.xlu0 %v375, 16
  %v590 = vpop.permute.xlu0 %589
  %591 = vrot.lane.b32.xlu0 %v374, 16
  %v592 = vpop.permute.xlu0 %591
  %593 = vrot.lane.b32.xlu0 %v378, 16
  %v594 = vpop.permute.xlu0 %593
  %595 = vrot.lane.b32.xlu0 %v377, 16
  %v596 = vpop.permute.xlu0 %595
  %597 = vrot.lane.b32.xlu0 %v381, 16
  %v598 = vpop.permute.xlu0 %597
  %599 = vrot.lane.b32.xlu0 %v380, 16
  %v600 = vpop.permute.xlu0 %599
  %601 = vrot.lane.b32.xlu0 %v384, 16
  %v602 = vpop.permute.xlu0 %601
  %603 = vrot.lane.b32.xlu0 %v383, 16
  %v604 = vpop.permute.xlu0 %603
  %605 = vrot.lane.b32.xlu0 %v387, 16
  %v606 = vpop.permute.xlu0 %605
  %607 = vrot.lane.b32.xlu0 %v386, 16
  %v608 = vpop.permute.xlu0 %607
  %609 = vrot.lane.b32.xlu0 %v390, 16
  %v610 = vpop.permute.xlu0 %609
  %611 = vrot.lane.b32.xlu0 %v389, 16
  %v612 = vpop.permute.xlu0 %611
  %613 = vrot.lane.b32.xlu0 %v393, 16
  %v614 = vpop.permute.xlu0 %613
  %615 = vrot.lane.b32.xlu0 %v392, 16
  %v616 = vpop.permute.xlu0 %615
  %617 = vrot.lane.b32.xlu0 %v396, 16
  %v618 = vpop.permute.xlu0 %617
  %619 = vrot.lane.b32.xlu0 %v395, 16
  %v620 = vpop.permute.xlu0 %619
  %621 = vrot.lane.b32.xlu0 %v399, 16
  %v622 = vpop.permute.xlu0 %621
  %623 = vrot.lane.b32.xlu0 %v398, 16
  %v624 = vpop.permute.xlu0 %623
  %625 = vrot.lane.b32.xlu0 %v402, 16
  %v626 = vpop.permute.xlu0 %625
  %627 = vrot.lane.b32.xlu0 %v401, 16
  %v628 = vpop.permute.xlu0 %627
  %629 = vrot.lane.b32.xlu0 %v405, 16
  %v630 = vpop.permute.xlu0 %629
  %631 = vrot.lane.b32.xlu0 %v404, 16
  %v632 = vpop.permute.xlu0 %631
  %633 = vrot.lane.b32.xlu0 %v408, 16
  %v634 = vpop.permute.xlu0 %633
  %635 = vrot.lane.b32.xlu0 %v407, 16
  %v636 = vpop.permute.xlu0 %635
  %637 = vrot.lane.b32.xlu0 %v411, 16
  %v638 = vpop.permute.xlu0 %637
  %639 = vrot.lane.b32.xlu0 %v410, 16
  %v640 = vpop.permute.xlu0 %639
  %641 = vrot.lane.b32.xlu0 %v414, 16
  %v642 = vpop.permute.xlu0 %641
  %643 = vrot.lane.b32.xlu0 %v413, 16
  %v644 = vpop.permute.xlu0 %643
  %645 = vrot.lane.b32.xlu0 %v417, 16
  %v646 = vpop.permute.xlu0 %645
  %647 = vrot.lane.b32.xlu0 %v416, 16
  %v648 = vpop.permute.xlu0 %647
  %649 = vrot.lane.b32.xlu0 %v420, 16
  %v650 = vpop.permute.xlu0 %649
  %651 = vrot.lane.b32.xlu0 %v419, 16
  %v652 = vpop.permute.xlu0 %651
  %653 = vrot.lane.b32.xlu0 %v423, 16
  %v654 = vpop.permute.xlu0 %653
  %655 = vrot.lane.b32.xlu0 %v422, 16
  %v656 = vpop.permute.xlu0 %655
  %657 = vrot.lane.b32.xlu0 %v426, 16
  %v658 = vpop.permute.xlu0 %657
  %659 = vrot.lane.b32.xlu0 %v425, 16
  %v660 = vpop.permute.xlu0 %659
  %661 = vrot.lane.b32.xlu0 %v429, 16
  %v662 = vpop.permute.xlu0 %661
  %663 = vrot.lane.b32.xlu0 %v428, 16
  %v664 = vpop.permute.xlu0 %663
  %665 = vrot.lane.b32.xlu0 %v432, 16
  %v666 = vpop.permute.xlu0 %665
  %667 = vrot.lane.b32.xlu0 %v431, 16
  %v668 = vpop.permute.xlu0 %667
  %669 = vrot.lane.b32.xlu0 %v435, 16
  %v670 = vpop.permute.xlu0 %669
  %671 = vrot.lane.b32.xlu0 %v434, 16
  %v672 = vpop.permute.xlu0 %671
  %673 = vrot.lane.b32.xlu0 %v438, 16
  %v674 = vpop.permute.xlu0 %673
  %675 = vrot.lane.b32.xlu0 %v437, 16
  %v676 = vpop.permute.xlu0 %675
  %677 = vrot.lane.b32.xlu0 %v441, 16
  %v678 = vpop.permute.xlu0 %677
  %679 = vrot.lane.b32.xlu0 %v440, 16
  %v680 = vpop.permute.xlu0 %679
  %681 = vrot.lane.b32.xlu0 %v444, 16
  %v682 = vpop.permute.xlu0 %681
  %683 = vrot.lane.b32.xlu0 %v443, 16
  %v684 = vpop.permute.xlu0 %683
  %685 = vrot.lane.b32.xlu0 %v447, 16
  %v686 = vpop.permute.xlu0 %685
  %687 = vrot.lane.b32.xlu0 %v446, 16
  %v688 = vpop.permute.xlu0 %687
  %689 = vrot.lane.b32.xlu0 %v450, 16
  %v690 = vpop.permute.xlu0 %689
  %691 = vrot.lane.b32.xlu0 %v449, 16
  %v692 = vpop.permute.xlu0 %691
  %693 = vrot.lane.b32.xlu0 %v453, 16
  %v694 = vpop.permute.xlu0 %693
  %695 = vrot.lane.b32.xlu0 %v452, 16
  %v696 = vpop.permute.xlu0 %695
  %697 = vrot.lane.b32.xlu0 %v456, 16
  %v698 = vpop.permute.xlu0 %697
  %699 = vrot.lane.b32.xlu0 %v455, 16
  %v700 = vpop.permute.xlu0 %699
  %701 = vrot.lane.b32.xlu0 %v459, 16
  %v702 = vpop.permute.xlu0 %701
  %703 = vrot.lane.b32.xlu0 %v458, 16
  %v704 = vpop.permute.xlu0 %703
  %705 = vrot.lane.b32.xlu0 %v462, 16
  %v706 = vpop.permute.xlu0 %705
  %707 = vrot.lane.b32.xlu0 %v461, 16
  %v708 = vpop.permute.xlu0 %707
  %709 = vrot.lane.b32.xlu0 %v465, 16
  %v710 = vpop.permute.xlu0 %709
  %711 = vrot.lane.b32.xlu0 %v464, 16
  %v712 = vpop.permute.xlu0 %711
  %713 = vrot.lane.b32.xlu0 %v468, 16
  %v714 = vpop.permute.xlu0 %713
  %715 = vrot.lane.b32.xlu0 %v467, 16
  %v716 = vpop.permute.xlu0 %715
  %717 = vrot.lane.b32.xlu0 %v471, 16
  %v718 = vpop.permute.xlu0 %717
  %719 = vrot.lane.b32.xlu0 %v470, 16
  %v720 = vpop.permute.xlu0 %719
  %721 = vrot.lane.b32.xlu0 %v474, 16
  %v722 = vpop.permute.xlu0 %721
  %723 = vrot.lane.b32.xlu0 %v473, 16
  %v724 = vpop.permute.xlu0 %723
  %725 = vrot.lane.b32.xlu0 %v477, 16
  %v726 = vpop.permute.xlu0 %725
  %727 = vrot.lane.b32.xlu0 %v476, 16
  %v728 = vpop.permute.xlu0 %727
  %729 = vrot.lane.b32.xlu0 %v480, 16
  %v730 = vpop.permute.xlu0 %729
  %731 = vrot.lane.b32.xlu0 %v479, 16
  %v732 = vpop.permute.xlu0 %731
  %733 = vrot.lane.b32.xlu0 %v483, 16
  %v734 = vpop.permute.xlu0 %733
  %735 = vrot.lane.b32.xlu0 %v482, 16
  %v736 = vpop.permute.xlu0 %735
  %737 = vrot.lane.b32.xlu0 %v486, 16
  %v738 = vpop.permute.xlu0 %737
  %739 = vrot.lane.b32.xlu0 %v485, 16
  %v740 = vpop.permute.xlu0 %739
  %741 = vrot.lane.b32.xlu0 %v489, 16
  %v742 = vpop.permute.xlu0 %741
  %743 = vrot.lane.b32.xlu0 %v488, 16
  %v744 = vpop.permute.xlu0 %743
  %745 = vrot.lane.b32.xlu0 %v492, 16
  %v746 = vpop.permute.xlu0 %745
  %747 = vrot.lane.b32.xlu0 %v491, 16
  %v748 = vpop.permute.xlu0 %747
  %vm877 = vcmask 1045504
  %v878 = vrot.slane %v44, 2
  %v879 = vrot.slane %v45, 2
  %v880 = vsel %vm877, %v878, %v879
  %v881 = vrot.slane %v46, 2
  %v882 = vrot.slane %v47, 2
  %v883 = vsel %vm877, %v881, %v882
  %v884 = vrot.slane %v48, 2
  %v885 = vrot.slane %v49, 2
  %v886 = vsel %vm877, %v884, %v885
  %v887 = vrot.slane %v50, 2
  %v888 = vrot.slane %v51, 2
  %v889 = vsel %vm877, %v887, %v888
  %v890 = vrot.slane %v52, 2
  %v891 = vrot.slane %v53, 2
  %v892 = vsel %vm877, %v890, %v891
  %v893 = vrot.slane %v54, 2
  %v894 = vrot.slane %v55, 2
  %v895 = vsel %vm877, %v893, %v894
  %v896 = vrot.slane %v56, 2
  %v897 = vrot.slane %v57, 2
  %v898 = vsel %vm877, %v896, %v897
  %v899 = vrot.slane %v58, 2
  %v900 = vrot.slane %v59, 2
  %v901 = vsel %vm877, %v899, %v900
  %v902 = vrot.slane %v60, 2
  %v903 = vrot.slane %v61, 2
  %v904 = vsel %vm877, %v902, %v903
  %v905 = vrot.slane %v62, 2
  %v906 = vrot.slane %v63, 2
  %v907 = vsel %vm877, %v905, %v906
  %v908 = vrot.slane %v64, 2
  %v909 = vrot.slane %v65, 2
  %v910 = vsel %vm877, %v908, %v909
  %v911 = vrot.slane %v66, 2
  %v912 = vrot.slane %v67, 2
  %v913 = vsel %vm877, %v911, %v912
  %v914 = vrot.slane %v68, 2
  %v915 = vrot.slane %v69, 2
  %v916 = vsel %vm877, %v914, %v915
  %v917 = vrot.slane %v70, 2
  %v918 = vrot.slane %v71, 2
  %v919 = vsel %vm877, %v917, %v918
  %v920 = vrot.slane %v72, 2
  %v921 = vrot.slane %v73, 2
  %v922 = vsel %vm877, %v920, %v921
  %v923 = vrot.slane %v74, 2
  %v924 = vrot.slane %v75, 2
  %v925 = vsel %vm877, %v923, %v924
  %v926 = vrot.slane %v76, 2
  %v927 = vrot.slane %v77, 2
  %v928 = vsel %vm877, %v926, %v927
  %v929 = vrot.slane %v78, 2
  %v930 = vrot.slane %v79, 2
  %v931 = vsel %vm877, %v929, %v930
  %v932 = vrot.slane %v80, 2
  %v933 = vrot.slane %v81, 2
  %v934 = vsel %vm877, %v932, %v933
  %v935 = vrot.slane %v82, 2
  %v936 = vrot.slane %v83, 2
  %v937 = vsel %vm877, %v935, %v936
  %v938 = vrot.slane %v84, 2
  %v939 = vrot.slane %v85, 2
  %v940 = vsel %vm877, %v938, %v939
  %v941 = vrot.slane %v86, 2
  %v942 = vrot.slane %v87, 2
  %v943 = vsel %vm877, %v941, %v942
  %v944 = vrot.slane %v88, 2
  %v945 = vrot.slane %v89, 2
  %v946 = vsel %vm877, %v944, %v945
  %v947 = vrot.slane %v90, 2
  %v948 = vrot.slane %v91, 2
  %v949 = vsel %vm877, %v947, %v948
  %v950 = vrot.slane %v92, 2
  %v951 = vrot.slane %v93, 2
  %v952 = vsel %vm877, %v950, %v951
  %v953 = vrot.slane %v94, 2
  %v954 = vrot.slane %v95, 2
  %v955 = vsel %vm877, %v953, %v954
  %v956 = vrot.slane %v96, 2
  %v957 = vrot.slane %v97, 2
  %v958 = vsel %vm877, %v956, %v957
  %v959 = vrot.slane %v98, 2
  %v960 = vrot.slane %v99, 2
  %v961 = vsel %vm877, %v959, %v960
  %v962 = vrot.slane %v100, 2
  %v963 = vrot.slane %v101, 2
  %v964 = vsel %vm877, %v962, %v963
  %v965 = vrot.slane %v102, 2
  %v966 = vrot.slane %v103, 2
  %v967 = vsel %vm877, %v965, %v966
  %v968 = vrot.slane %v104, 2
  %v969 = vrot.slane %v105, 2
  %v970 = vsel %vm877, %v968, %v969
  %v971 = vrot.slane %v106, 2
  %v972 = vrot.slane %v107, 2
  %v973 = vsel %vm877, %v971, %v972
  %v974 = vrot.slane %v108, 2
  %v975 = vrot.slane %v109, 2
  %v976 = vsel %vm877, %v974, %v975
  %v977 = vrot.slane %v110, 2
  %v978 = vrot.slane %v111, 2
  %v979 = vsel %vm877, %v977, %v978
  %v980 = vrot.slane %v112, 2
  %v981 = vrot.slane %v113, 2
  %v982 = vsel %vm877, %v980, %v981
  %v983 = vrot.slane %v114, 2
  %v984 = vrot.slane %v115, 2
  %v985 = vsel %vm877, %v983, %v984
  %v986 = vrot.slane %v116, 2
  %v987 = vrot.slane %v117, 2
  %v988 = vsel %vm877, %v986, %v987
  %v989 = vrot.slane %v118, 2
  %v990 = vrot.slane %v119, 2
  %v991 = vsel %vm877, %v989, %v990
  %v992 = vrot.slane %v120, 2
  %v993 = vrot.slane %v121, 2
  %v994 = vsel %vm877, %v992, %v993
  %v995 = vrot.slane %v122, 2
  %v996 = vrot.slane %v123, 2
  %v997 = vsel %vm877, %v995, %v996
  %v998 = vrot.slane %v124, 2
  %v999 = vrot.slane %v125, 2
  %v1000 = vsel %vm877, %v998, %v999
  %v1001 = vrot.slane %v126, 2
  %v1002 = vrot.slane %v127, 2
  %v1003 = vsel %vm877, %v1001, %v1002
  %v1004 = vrot.slane %v128, 2
  %v1005 = vrot.slane %v129, 2
  %v1006 = vsel %vm877, %v1004, %v1005
  %v1007 = vrot.slane %v130, 2
  %v1008 = vrot.slane %v131, 2
  %v1009 = vsel %vm877, %v1007, %v1008
  %v1010 = vrot.slane %v132, 2
  %v1011 = vrot.slane %v133, 2
  %v1012 = vsel %vm877, %v1010, %v1011
  %v1013 = vrot.slane %v134, 2
  %v1014 = vrot.slane %v135, 2
  %v1015 = vsel %vm877, %v1013, %v1014
  %v1016 = vrot.slane %v136, 2
  %v1017 = vrot.slane %v137, 2
  %v1018 = vsel %vm877, %v1016, %v1017
  %v1019 = vrot.slane %v138, 2
  %v1020 = vrot.slane %v139, 2
  %v1021 = vsel %vm877, %v1019, %v1020
  %v1022 = vrot.slane %v140, 2
  %v1023 = vrot.slane %v141, 2
  %v1024 = vsel %vm877, %v1022, %v1023
  %v1025 = vrot.slane %v142, 2
  %v1026 = vrot.slane %v143, 2
  %v1027 = vsel %vm877, %v1025, %v1026
  %v1028 = vrot.slane %v144, 2
  %v1029 = vrot.slane %v145, 2
  %v1030 = vsel %vm877, %v1028, %v1029
  %v1031 = vrot.slane %v146, 2
  %v1032 = vrot.slane %v147, 2
  %v1033 = vsel %vm877, %v1031, %v1032
  %v1034 = vrot.slane %v148, 2
  %v1035 = vrot.slane %v149, 2
  %v1036 = vsel %vm877, %v1034, %v1035
  %v1037 = vrot.slane %v150, 2
  %v1038 = vrot.slane %v151, 2
  %v1039 = vsel %vm877, %v1037, %v1038
  %v1040 = vrot.slane %v152, 2
  %v1041 = vrot.slane %v153, 2
  %v1042 = vsel %vm877, %v1040, %v1041
  %v1043 = vrot.slane %v154, 2
  %v1044 = vrot.slane %v155, 2
  %v1045 = vsel %vm877, %v1043, %v1044
  %v1046 = vrot.slane %v156, 2
  %v1047 = vrot.slane %v157, 2
  %v1048 = vsel %vm877, %v1046, %v1047
  %v1049 = vrot.slane %v158, 2
  %v1050 = vrot.slane %v159, 2
  %v1051 = vsel %vm877, %v1049, %v1050
  %v1052 = vrot.slane %v160, 2
  %v1053 = vrot.slane %v161, 2
  %v1054 = vsel %vm877, %v1052, %v1053
  %v1055 = vrot.slane %v162, 2
  %v1056 = vrot.slane %v163, 2
  %v1057 = vsel %vm877, %v1055, %v1056
  %v1058 = vrot.slane %v164, 2
  %v1059 = vrot.slane %v165, 2
  %v1060 = vsel %vm877, %v1058, %v1059
  %v1061 = vrot.slane %v166, 2
  %v1062 = vrot.slane %v167, 2
  %v1063 = vsel %vm877, %v1061, %v1062
  %v1064 = vrot.slane %v168, 2
  %v1065 = vrot.slane %v169, 2
  %v1066 = vsel %vm877, %v1064, %v1065
  %v1067 = vrot.slane %v170, 2
  %v1068 = vrot.slane %v171, 2
  %v1069 = vsel %vm877, %v1067, %v1068
  %1070 = vrot.lane.b32.xlu0 %v880, 32
  %v1071 = vpop.permute.xlu0 %1070
  %1072 = vrot.lane.b32.xlu0 %v879, 32
  %v1073 = vpop.permute.xlu0 %1072
  %1074 = vrot.lane.b32.xlu0 %v883, 32
  %v1075 = vpop.permute.xlu0 %1074
  %1076 = vrot.lane.b32.xlu0 %v882, 32
  %v1077 = vpop.permute.xlu0 %1076
  %1078 = vrot.lane.b32.xlu0 %v886, 32
  %v1079 = vpop.permute.xlu0 %1078
  %1080 = vrot.lane.b32.xlu0 %v885, 32
  %v1081 = vpop.permute.xlu0 %1080
  %1082 = vrot.lane.b32.xlu0 %v889, 32
  %v1083 = vpop.permute.xlu0 %1082
  %1084 = vrot.lane.b32.xlu0 %v888, 32
  %v1085 = vpop.permute.xlu0 %1084
  %1086 = vrot.lane.b32.xlu0 %v892, 32
  %v1087 = vpop.permute.xlu0 %1086
  %1088 = vrot.lane.b32.xlu0 %v891, 32
  %v1089 = vpop.permute.xlu0 %1088
  %1090 = vrot.lane.b32.xlu0 %v895, 32
  %v1091 = vpop.permute.xlu0 %1090
  %1092 = vrot.lane.b32.xlu0 %v894, 32
  %v1093 = vpop.permute.xlu0 %1092
  %1094 = vrot.lane.b32.xlu0 %v898, 32
  %v1095 = vpop.permute.xlu0 %1094
  %1096 = vrot.lane.b32.xlu0 %v897, 32
  %v1097 = vpop.permute.xlu0 %1096
  %1098 = vrot.lane.b32.xlu0 %v901, 32
  %v1099 = vpop.permute.xlu0 %1098
  %1100 = vrot.lane.b32.xlu0 %v900, 32
  %v1101 = vpop.permute.xlu0 %1100
  %1102 = vrot.lane.b32.xlu0 %v904, 32
  %v1103 = vpop.permute.xlu0 %1102
  %1104 = vrot.lane.b32.xlu0 %v903, 32
  %v1105 = vpop.permute.xlu0 %1104
  %1106 = vrot.lane.b32.xlu0 %v907, 32
  %v1107 = vpop.permute.xlu0 %1106
  %1108 = vrot.lane.b32.xlu0 %v906, 32
  %v1109 = vpop.permute.xlu0 %1108
  %1110 = vrot.lane.b32.xlu0 %v910, 32
  %v1111 = vpop.permute.xlu0 %1110
  %1112 = vrot.lane.b32.xlu0 %v909, 32
  %v1113 = vpop.permute.xlu0 %1112
  %1114 = vrot.lane.b32.xlu0 %v913, 32
  %v1115 = vpop.permute.xlu0 %1114
  %1116 = vrot.lane.b32.xlu0 %v912, 32
  %v1117 = vpop.permute.xlu0 %1116
  %1118 = vrot.lane.b32.xlu0 %v916, 32
  %v1119 = vpop.permute.xlu0 %1118
  %1120 = vrot.lane.b32.xlu0 %v915, 32
  %v1121 = vpop.permute.xlu0 %1120
  %1122 = vrot.lane.b32.xlu0 %v919, 32
  %v1123 = vpop.permute.xlu0 %1122
  %1124 = vrot.lane.b32.xlu0 %v918, 32
  %v1125 = vpop.permute.xlu0 %1124
  %1126 = vrot.lane.b32.xlu0 %v922, 32
  %v1127 = vpop.permute.xlu0 %1126
  %1128 = vrot.lane.b32.xlu0 %v921, 32
  %v1129 = vpop.permute.xlu0 %1128
  %1130 = vrot.lane.b32.xlu0 %v925, 32
  %v1131 = vpop.permute.xlu0 %1130
  %1132 = vrot.lane.b32.xlu0 %v924, 32
  %v1133 = vpop.permute.xlu0 %1132
  %1134 = vrot.lane.b32.xlu0 %v928, 32
  %v1135 = vpop.permute.xlu0 %1134
  %1136 = vrot.lane.b32.xlu0 %v927, 32
  %v1137 = vpop.permute.xlu0 %1136
  %1138 = vrot.lane.b32.xlu0 %v931, 32
  %v1139 = vpop.permute.xlu0 %1138
  %1140 = vrot.lane.b32.xlu0 %v930, 32
  %v1141 = vpop.permute.xlu0 %1140
  %1142 = vrot.lane.b32.xlu0 %v934, 32
  %v1143 = vpop.permute.xlu0 %1142
  %1144 = vrot.lane.b32.xlu0 %v933, 32
  %v1145 = vpop.permute.xlu0 %1144
  %1146 = vrot.lane.b32.xlu0 %v937, 32
  %v1147 = vpop.permute.xlu0 %1146
  %1148 = vrot.lane.b32.xlu0 %v936, 32
  %v1149 = vpop.permute.xlu0 %1148
  %1150 = vrot.lane.b32.xlu0 %v940, 32
  %v1151 = vpop.permute.xlu0 %1150
  %1152 = vrot.lane.b32.xlu0 %v939, 32
  %v1153 = vpop.permute.xlu0 %1152
  %1154 = vrot.lane.b32.xlu0 %v943, 32
  %v1155 = vpop.permute.xlu0 %1154
  %1156 = vrot.lane.b32.xlu0 %v942, 32
  %v1157 = vpop.permute.xlu0 %1156
  %1158 = vrot.lane.b32.xlu0 %v946, 32
  %v1159 = vpop.permute.xlu0 %1158
  %1160 = vrot.lane.b32.xlu0 %v945, 32
  %v1161 = vpop.permute.xlu0 %1160
  %1162 = vrot.lane.b32.xlu0 %v949, 32
  %v1163 = vpop.permute.xlu0 %1162
  %1164 = vrot.lane.b32.xlu0 %v948, 32
  %v1165 = vpop.permute.xlu0 %1164
  %1166 = vrot.lane.b32.xlu0 %v952, 32
  %v1167 = vpop.permute.xlu0 %1166
  %1168 = vrot.lane.b32.xlu0 %v951, 32
  %v1169 = vpop.permute.xlu0 %1168
  %1170 = vrot.lane.b32.xlu0 %v955, 32
  %v1171 = vpop.permute.xlu0 %1170
  %1172 = vrot.lane.b32.xlu0 %v954, 32
  %v1173 = vpop.permute.xlu0 %1172
  %1174 = vrot.lane.b32.xlu0 %v958, 32
  %v1175 = vpop.permute.xlu0 %1174
  %1176 = vrot.lane.b32.xlu0 %v957, 32
  %v1177 = vpop.permute.xlu0 %1176
  %1178 = vrot.lane.b32.xlu0 %v961, 32
  %v1179 = vpop.permute.xlu0 %1178
  %1180 = vrot.lane.b32.xlu0 %v960, 32
  %v1181 = vpop.permute.xlu0 %1180
  %1182 = vrot.lane.b32.xlu0 %v964, 32
  %v1183 = vpop.permute.xlu0 %1182
  %1184 = vrot.lane.b32.xlu0 %v963, 32
  %v1185 = vpop.permute.xlu0 %1184
  %1186 = vrot.lane.b32.xlu0 %v967, 32
  %v1187 = vpop.permute.xlu0 %1186
  %1188 = vrot.lane.b32.xlu0 %v966, 32
  %v1189 = vpop.permute.xlu0 %1188
  %1190 = vrot.lane.b32.xlu0 %v970, 32
  %v1191 = vpop.permute.xlu0 %1190
  %1192 = vrot.lane.b32.xlu0 %v969, 32
  %v1193 = vpop.permute.xlu0 %1192
  %1194 = vrot.lane.b32.xlu0 %v973, 32
  %v1195 = vpop.permute.xlu0 %1194
  %1196 = vrot.lane.b32.xlu0 %v972, 32
  %v1197 = vpop.permute.xlu0 %1196
  %1198 = vrot.lane.b32.xlu0 %v976, 32
  %v1199 = vpop.permute.xlu0 %1198
  %1200 = vrot.lane.b32.xlu0 %v975, 32
  %v1201 = vpop.permute.xlu0 %1200
  %1202 = vrot.lane.b32.xlu0 %v979, 32
  %v1203 = vpop.permute.xlu0 %1202
  %1204 = vrot.lane.b32.xlu0 %v978, 32
  %v1205 = vpop.permute.xlu0 %1204
  %1206 = vrot.lane.b32.xlu0 %v982, 32
  %v1207 = vpop.permute.xlu0 %1206
  %1208 = vrot.lane.b32.xlu0 %v981, 32
  %v1209 = vpop.permute.xlu0 %1208
  %1210 = vrot.lane.b32.xlu0 %v985, 32
  %v1211 = vpop.permute.xlu0 %1210
  %1212 = vrot.lane.b32.xlu0 %v984, 32
  %v1213 = vpop.permute.xlu0 %1212
  %1214 = vrot.lane.b32.xlu0 %v988, 32
  %v1215 = vpop.permute.xlu0 %1214
  %1216 = vrot.lane.b32.xlu0 %v987, 32
  %v1217 = vpop.permute.xlu0 %1216
  %1218 = vrot.lane.b32.xlu0 %v991, 32
  %v1219 = vpop.permute.xlu0 %1218
  %1220 = vrot.lane.b32.xlu0 %v990, 32
  %v1221 = vpop.permute.xlu0 %1220
  %1222 = vrot.lane.b32.xlu0 %v994, 32
  %v1223 = vpop.permute.xlu0 %1222
  %1224 = vrot.lane.b32.xlu0 %v993, 32
  %v1225 = vpop.permute.xlu0 %1224
  %1226 = vrot.lane.b32.xlu0 %v997, 32
  %v1227 = vpop.permute.xlu0 %1226
  %1228 = vrot.lane.b32.xlu0 %v996, 32
  %v1229 = vpop.permute.xlu0 %1228
  %1230 = vrot.lane.b32.xlu0 %v1000, 32
  %v1231 = vpop.permute.xlu0 %1230
  %1232 = vrot.lane.b32.xlu0 %v999, 32
  %v1233 = vpop.permute.xlu0 %1232
  %1234 = vrot.lane.b32.xlu0 %v1003, 32
  %v1235 = vpop.permute.xlu0 %1234
  %1236 = vrot.lane.b32.xlu0 %v1002, 32
  %v1237 = vpop.permute.xlu0 %1236
  %1238 = vrot.lane.b32.xlu0 %v1006, 32
  %v1239 = vpop.permute.xlu0 %1238
  %1240 = vrot.lane.b32.xlu0 %v1005, 32
  %v1241 = vpop.permute.xlu0 %1240
  %1242 = vrot.lane.b32.xlu0 %v1009, 32
  %v1243 = vpop.permute.xlu0 %1242
  %1244 = vrot.lane.b32.xlu0 %v1008, 32
  %v1245 = vpop.permute.xlu0 %1244
  %1246 = vrot.lane.b32.xlu0 %v1012, 32
  %v1247 = vpop.permute.xlu0 %1246
  %1248 = vrot.lane.b32.xlu0 %v1011, 32
  %v1249 = vpop.permute.xlu0 %1248
  %1250 = vrot.lane.b32.xlu0 %v1015, 32
  %v1251 = vpop.permute.xlu0 %1250
  %1252 = vrot.lane.b32.xlu0 %v1014, 32
  %v1253 = vpop.permute.xlu0 %1252
  %1254 = vrot.lane.b32.xlu0 %v1018, 32
  %v1255 = vpop.permute.xlu0 %1254
  %1256 = vrot.lane.b32.xlu0 %v1017, 32
  %v1257 = vpop.permute.xlu0 %1256
  %1258 = vrot.lane.b32.xlu0 %v1021, 32
  %v1259 = vpop.permute.xlu0 %1258
  %1260 = vrot.lane.b32.xlu0 %v1020, 32
  %v1261 = vpop.permute.xlu0 %1260
  %1262 = vrot.lane.b32.xlu0 %v1024, 32
  %v1263 = vpop.permute.xlu0 %1262
  %1264 = vrot.lane.b32.xlu0 %v1023, 32
  %v1265 = vpop.permute.xlu0 %1264
  %1266 = vrot.lane.b32.xlu0 %v1027, 32
  %v1267 = vpop.permute.xlu0 %1266
  %1268 = vrot.lane.b32.xlu0 %v1026, 32
  %v1269 = vpop.permute.xlu0 %1268
  %1270 = vrot.lane.b32.xlu0 %v1030, 32
  %v1271 = vpop.permute.xlu0 %1270
  %1272 = vrot.lane.b32.xlu0 %v1029, 32
  %v1273 = vpop.permute.xlu0 %1272
  %1274 = vrot.lane.b32.xlu0 %v1033, 32
  %v1275 = vpop.permute.xlu0 %1274
  %1276 = vrot.lane.b32.xlu0 %v1032, 32
  %v1277 = vpop.permute.xlu0 %1276
  %1278 = vrot.lane.b32.xlu0 %v1036, 32
  %v1279 = vpop.permute.xlu0 %1278
  %1280 = vrot.lane.b32.xlu0 %v1035, 32
  %v1281 = vpop.permute.xlu0 %1280
  %1282 = vrot.lane.b32.xlu0 %v1039, 32
  %v1283 = vpop.permute.xlu0 %1282
  %1284 = vrot.lane.b32.xlu0 %v1038, 32
  %v1285 = vpop.permute.xlu0 %1284
  %1286 = vrot.lane.b32.xlu0 %v1042, 32
  %v1287 = vpop.permute.xlu0 %1286
  %1288 = vrot.lane.b32.xlu0 %v1041, 32
  %v1289 = vpop.permute.xlu0 %1288
  %1290 = vrot.lane.b32.xlu0 %v1045, 32
  %v1291 = vpop.permute.xlu0 %1290
  %1292 = vrot.lane.b32.xlu0 %v1044, 32
  %v1293 = vpop.permute.xlu0 %1292
  %1294 = vrot.lane.b32.xlu0 %v1048, 32
  %v1295 = vpop.permute.xlu0 %1294
  %1296 = vrot.lane.b32.xlu0 %v1047, 32
  %v1297 = vpop.permute.xlu0 %1296
  %1298 = vrot.lane.b32.xlu0 %v1051, 32
  %v1299 = vpop.permute.xlu0 %1298
  %1300 = vrot.lane.b32.xlu0 %v1050, 32
  %v1301 = vpop.permute.xlu0 %1300
  %1302 = vrot.lane.b32.xlu0 %v1054, 32
  %v1303 = vpop.permute.xlu0 %1302
  %1304 = vrot.lane.b32.xlu0 %v1053, 32
  %v1305 = vpop.permute.xlu0 %1304
  %1306 = vrot.lane.b32.xlu0 %v1057, 32
  %v1307 = vpop.permute.xlu0 %1306
  %1308 = vrot.lane.b32.xlu0 %v1056, 32
  %v1309 = vpop.permute.xlu0 %1308
  %1310 = vrot.lane.b32.xlu0 %v1060, 32
  %v1311 = vpop.permute.xlu0 %1310
  %1312 = vrot.lane.b32.xlu0 %v1059, 32
  %v1313 = vpop.permute.xlu0 %1312
  %1314 = vrot.lane.b32.xlu0 %v1063, 32
  %v1315 = vpop.permute.xlu0 %1314
  %1316 = vrot.lane.b32.xlu0 %v1062, 32
  %v1317 = vpop.permute.xlu0 %1316
  %1318 = vrot.lane.b32.xlu0 %v1066, 32
  %v1319 = vpop.permute.xlu0 %1318
  %1320 = vrot.lane.b32.xlu0 %v1065, 32
  %v1321 = vpop.permute.xlu0 %1320
  %1322 = vrot.lane.b32.xlu0 %v1069, 32
  %v1323 = vpop.permute.xlu0 %1322
  %1324 = vrot.lane.b32.xlu0 %v1068, 32
  %v1325 = vpop.permute.xlu0 %1324
  %vm1454 = vcmask 130048
  %v1455 = vsel %vm1454, %v44, %v494
  %v1456 = vsel %vm1454, %v45, %v496
  %v1457 = vsel %vm1454, %v46, %v498
  %v1458 = vsel %vm1454, %v47, %v500
  %v1459 = vsel %vm1454, %v48, %v502
  %v1460 = vsel %vm1454, %v49, %v504
  %v1461 = vsel %vm1454, %v50, %v506
  %v1462 = vsel %vm1454, %v51, %v508
  %v1463 = vsel %vm1454, %v52, %v510
  %v1464 = vsel %vm1454, %v53, %v512
  %v1465 = vsel %vm1454, %v54, %v514
  %v1466 = vsel %vm1454, %v55, %v516
  %v1467 = vsel %vm1454, %v56, %v518
  %v1468 = vsel %vm1454, %v57, %v520
  %v1469 = vsel %vm1454, %v58, %v522
  %v1470 = vsel %vm1454, %v59, %v524
  %v1471 = vsel %vm1454, %v60, %v526
  %v1472 = vsel %vm1454, %v61, %v528
  %v1473 = vsel %vm1454, %v62, %v530
  %v1474 = vsel %vm1454, %v63, %v532
  %v1475 = vsel %vm1454, %v64, %v534
  %v1476 = vsel %vm1454, %v65, %v536
  %v1477 = vsel %vm1454, %v66, %v538
  %v1478 = vsel %vm1454, %v67, %v540
  %v1479 = vsel %vm1454, %v68, %v542
  %v1480 = vsel %vm1454, %v69, %v544
  %v1481 = vsel %vm1454, %v70, %v546
  %v1482 = vsel %vm1454, %v71, %v548
  %v1483 = vsel %vm1454, %v72, %v550
  %v1484 = vsel %vm1454, %v73, %v552
  %v1485 = vsel %vm1454, %v74, %v554
  %v1486 = vsel %vm1454, %v75, %v556
  %v1487 = vsel %vm1454, %v76, %v558
  %v1488 = vsel %vm1454, %v77, %v560
  %v1489 = vsel %vm1454, %v78, %v562
  %v1490 = vsel %vm1454, %v79, %v564
  %v1491 = vsel %vm1454, %v80, %v566
  %v1492 = vsel %vm1454, %v81, %v568
  %v1493 = vsel %vm1454, %v82, %v570
  %v1494 = vsel %vm1454, %v83, %v572
  %v1495 = vsel %vm1454, %v84, %v574
  %v1496 = vsel %vm1454, %v85, %v576
  %v1497 = vsel %vm1454, %v86, %v578
  %v1498 = vsel %vm1454, %v87, %v580
  %v1499 = vsel %vm1454, %v88, %v582
  %v1500 = vsel %vm1454, %v89, %v584
  %v1501 = vsel %vm1454, %v90, %v586
  %v1502 = vsel %vm1454, %v91, %v588
  %v1503 = vsel %vm1454, %v92, %v590
  %v1504 = vsel %vm1454, %v93, %v592
  %v1505 = vsel %vm1454, %v94, %v594
  %v1506 = vsel %vm1454, %v95, %v596
  %v1507 = vsel %vm1454, %v96, %v598
  %v1508 = vsel %vm1454, %v97, %v600
  %v1509 = vsel %vm1454, %v98, %v602
  %v1510 = vsel %vm1454, %v99, %v604
  %v1511 = vsel %vm1454, %v100, %v606
  %v1512 = vsel %vm1454, %v101, %v608
  %v1513 = vsel %vm1454, %v102, %v610
  %v1514 = vsel %vm1454, %v103, %v612
  %v1515 = vsel %vm1454, %v104, %v614
  %v1516 = vsel %vm1454, %v105, %v616
  %v1517 = vsel %vm1454, %v106, %v618
  %v1518 = vsel %vm1454, %v107, %v620
  %v1519 = vsel %vm1454, %v108, %v622
  %v1520 = vsel %vm1454, %v109, %v624
  %v1521 = vsel %vm1454, %v110, %v626
  %v1522 = vsel %vm1454, %v111, %v628
  %v1523 = vsel %vm1454, %v112, %v630
  %v1524 = vsel %vm1454, %v113, %v632
  %v1525 = vsel %vm1454, %v114, %v634
  %v1526 = vsel %vm1454, %v115, %v636
  %v1527 = vsel %vm1454, %v116, %v638
  %v1528 = vsel %vm1454, %v117, %v640
  %v1529 = vsel %vm1454, %v118, %v642
  %v1530 = vsel %vm1454, %v119, %v644
  %v1531 = vsel %vm1454, %v120, %v646
  %v1532 = vsel %vm1454, %v121, %v648
  %v1533 = vsel %vm1454, %v122, %v650
  %v1534 = vsel %vm1454, %v123, %v652
  %v1535 = vsel %vm1454, %v124, %v654
  %v1536 = vsel %vm1454, %v125, %v656
  %v1537 = vsel %vm1454, %v126, %v658
  %v1538 = vsel %vm1454, %v127, %v660
  %v1539 = vsel %vm1454, %v128, %v662
  %v1540 = vsel %vm1454, %v129, %v664
  %v1541 = vsel %vm1454, %v130, %v666
  %v1542 = vsel %vm1454, %v131, %v668
  %v1543 = vsel %vm1454, %v132, %v670
  %v1544 = vsel %vm1454, %v133, %v672
  %v1545 = vsel %vm1454, %v134, %v674
  %v1546 = vsel %vm1454, %v135, %v676
  %v1547 = vsel %vm1454, %v136, %v678
  %v1548 = vsel %vm1454, %v137, %v680
  %v1549 = vsel %vm1454, %v138, %v682
  %v1550 = vsel %vm1454, %v139, %v684
  %v1551 = vsel %vm1454, %v140, %v686
  %v1552 = vsel %vm1454, %v141, %v688
  %v1553 = vsel %vm1454, %v142, %v690
  %v1554 = vsel %vm1454, %v143, %v692
  %v1555 = vsel %vm1454, %v144, %v694
  %v1556 = vsel %vm1454, %v145, %v696
  %v1557 = vsel %vm1454, %v146, %v698
  %v1558 = vsel %vm1454, %v147, %v700
  %v1559 = vsel %vm1454, %v148, %v702
  %v1560 = vsel %vm1454, %v149, %v704
  %v1561 = vsel %vm1454, %v150, %v706
  %v1562 = vsel %vm1454, %v151, %v708
  %v1563 = vsel %vm1454, %v152, %v710
  %v1564 = vsel %vm1454, %v153, %v712
  %v1565 = vsel %vm1454, %v154, %v714
  %v1566 = vsel %vm1454, %v155, %v716
  %v1567 = vsel %vm1454, %v156, %v718
  %v1568 = vsel %vm1454, %v157, %v720
  %v1569 = vsel %vm1454, %v158, %v722
  %v1570 = vsel %vm1454, %v159, %v724
  %v1571 = vsel %vm1454, %v160, %v726
  %v1572 = vsel %vm1454, %v161, %v728
  %v1573 = vsel %vm1454, %v162, %v730
  %v1574 = vsel %vm1454, %v163, %v732
  %v1575 = vsel %vm1454, %v164, %v734
  %v1576 = vsel %vm1454, %v165, %v736
  %v1577 = vsel %vm1454, %v166, %v738
  %v1578 = vsel %vm1454, %v167, %v740
  %v1579 = vsel %vm1454, %v168, %v742
  %v1580 = vsel %vm1454, %v169, %v744
  %v1581 = vsel %vm1454, %v170, %v746
  %v1582 = vsel %vm1454, %v171, %v748
  %vm1583 = vcmask 261120
  %v1584 = vsel %vm1583, %v1455, %v1071
  %v1585 = vsel %vm1583, %v1456, %v1073
  %v1586 = vsel %vm1583, %v1457, %v1075
  %v1587 = vsel %vm1583, %v1458, %v1077
  %v1588 = vsel %vm1583, %v1459, %v1079
  %v1589 = vsel %vm1583, %v1460, %v1081
  %v1590 = vsel %vm1583, %v1461, %v1083
  %v1591 = vsel %vm1583, %v1462, %v1085
  %v1592 = vsel %vm1583, %v1463, %v1087
  %v1593 = vsel %vm1583, %v1464, %v1089
  %v1594 = vsel %vm1583, %v1465, %v1091
  %v1595 = vsel %vm1583, %v1466, %v1093
  %v1596 = vsel %vm1583, %v1467, %v1095
  %v1597 = vsel %vm1583, %v1468, %v1097
  %v1598 = vsel %vm1583, %v1469, %v1099
  %v1599 = vsel %vm1583, %v1470, %v1101
  %v1600 = vsel %vm1583, %v1471, %v1103
  %v1601 = vsel %vm1583, %v1472, %v1105
  %v1602 = vsel %vm1583, %v1473, %v1107
  %v1603 = vsel %vm1583, %v1474, %v1109
  %v1604 = vsel %vm1583, %v1475, %v1111
  %v1605 = vsel %vm1583, %v1476, %v1113
  %v1606 = vsel %vm1583, %v1477, %v1115
  %v1607 = vsel %vm1583, %v1478, %v1117
  %v1608 = vsel %vm1583, %v1479, %v1119
  %v1609 = vsel %vm1583, %v1480, %v1121
  %v1610 = vsel %vm1583, %v1481, %v1123
  %v1611 = vsel %vm1583, %v1482, %v1125
  %v1612 = vsel %vm1583, %v1483, %v1127
  %v1613 = vsel %vm1583, %v1484, %v1129
  %v1614 = vsel %vm1583, %v1485, %v1131
  %v1615 = vsel %vm1583, %v1486, %v1133
  %v1616 = vsel %vm1583, %v1487, %v1135
  %v1617 = vsel %vm1583, %v1488, %v1137
  %v1618 = vsel %vm1583, %v1489, %v1139
  %v1619 = vsel %vm1583, %v1490, %v1141
  %v1620 = vsel %vm1583, %v1491, %v1143
  %v1621 = vsel %vm1583, %v1492, %v1145
  %v1622 = vsel %vm1583, %v1493, %v1147
  %v1623 = vsel %vm1583, %v1494, %v1149
  %v1624 = vsel %vm1583, %v1495, %v1151
  %v1625 = vsel %vm1583, %v1496, %v1153
  %v1626 = vsel %vm1583, %v1497, %v1155
  %v1627 = vsel %vm1583, %v1498, %v1157
  %v1628 = vsel %vm1583, %v1499, %v1159
  %v1629 = vsel %vm1583, %v1500, %v1161
  %v1630 = vsel %vm1583, %v1501, %v1163
  %v1631 = vsel %vm1583, %v1502, %v1165
  %v1632 = vsel %vm1583, %v1503, %v1167
  %v1633 = vsel %vm1583, %v1504, %v1169
  %v1634 = vsel %vm1583, %v1505, %v1171
  %v1635 = vsel %vm1583, %v1506, %v1173
  %v1636 = vsel %vm1583, %v1507, %v1175
  %v1637 = vsel %vm1583, %v1508, %v1177
  %v1638 = vsel %vm1583, %v1509, %v1179
  %v1639 = vsel %vm1583, %v1510, %v1181
  %v1640 = vsel %vm1583, %v1511, %v1183
  %v1641 = vsel %vm1583, %v1512, %v1185
  %v1642 = vsel %vm1583, %v1513, %v1187
  %v1643 = vsel %vm1583, %v1514, %v1189
  %v1644 = vsel %vm1583, %v1515, %v1191
  %v1645 = vsel %vm1583, %v1516, %v1193
  %v1646 = vsel %vm1583, %v1517, %v1195
  %v1647 = vsel %vm1583, %v1518, %v1197
  %v1648 = vsel %vm1583, %v1519, %v1199
  %v1649 = vsel %vm1583, %v1520, %v1201
  %v1650 = vsel %vm1583, %v1521, %v1203
  %v1651 = vsel %vm1583, %v1522, %v1205
  %v1652 = vsel %vm1583, %v1523, %v1207
  %v1653 = vsel %vm1583, %v1524, %v1209
  %v1654 = vsel %vm1583, %v1525, %v1211
  %v1655 = vsel %vm1583, %v1526, %v1213
  %v1656 = vsel %vm1583, %v1527, %v1215
  %v1657 = vsel %vm1583, %v1528, %v1217
  %v1658 = vsel %vm1583, %v1529, %v1219
  %v1659 = vsel %vm1583, %v1530, %v1221
  %v1660 = vsel %vm1583, %v1531, %v1223
  %v1661 = vsel %vm1583, %v1532, %v1225
  %v1662 = vsel %vm1583, %v1533, %v1227
  %v1663 = vsel %vm1583, %v1534, %v1229
  %v1664 = vsel %vm1583, %v1535, %v1231
  %v1665 = vsel %vm1583, %v1536, %v1233
  %v1666 = vsel %vm1583, %v1537, %v1235
  %v1667 = vsel %vm1583, %v1538, %v1237
  %v1668 = vsel %vm1583, %v1539, %v1239
  %v1669 = vsel %vm1583, %v1540, %v1241
  %v1670 = vsel %vm1583, %v1541, %v1243
  %v1671 = vsel %vm1583, %v1542, %v1245
  %v1672 = vsel %vm1583, %v1543, %v1247
  %v1673 = vsel %vm1583, %v1544, %v1249
  %v1674 = vsel %vm1583, %v1545, %v1251
  %v1675 = vsel %vm1583, %v1546, %v1253
  %v1676 = vsel %vm1583, %v1547, %v1255
  %v1677 = vsel %vm1583, %v1548, %v1257
  %v1678 = vsel %vm1583, %v1549, %v1259
  %v1679 = vsel %vm1583, %v1550, %v1261
  %v1680 = vsel %vm1583, %v1551, %v1263
  %v1681 = vsel %vm1583, %v1552, %v1265
  %v1682 = vsel %vm1583, %v1553, %v1267
  %v1683 = vsel %vm1583, %v1554, %v1269
  %v1684 = vsel %vm1583, %v1555, %v1271
  %v1685 = vsel %vm1583, %v1556, %v1273
  %v1686 = vsel %vm1583, %v1557, %v1275
  %v1687 = vsel %vm1583, %v1558, %v1277
  %v1688 = vsel %vm1583, %v1559, %v1279
  %v1689 = vsel %vm1583, %v1560, %v1281
  %v1690 = vsel %vm1583, %v1561, %v1283
  %v1691 = vsel %vm1583, %v1562, %v1285
  %v1692 = vsel %vm1583, %v1563, %v1287
  %v1693 = vsel %vm1583, %v1564, %v1289
  %v1694 = vsel %vm1583, %v1565, %v1291
  %v1695 = vsel %vm1583, %v1566, %v1293
  %v1696 = vsel %vm1583, %v1567, %v1295
  %v1697 = vsel %vm1583, %v1568, %v1297
  %v1698 = vsel %vm1583, %v1569, %v1299
  %v1699 = vsel %vm1583, %v1570, %v1301
  %v1700 = vsel %vm1583, %v1571, %v1303
  %v1701 = vsel %vm1583, %v1572, %v1305
  %v1702 = vsel %vm1583, %v1573, %v1307
  %v1703 = vsel %vm1583, %v1574, %v1309
  %v1704 = vsel %vm1583, %v1575, %v1311
  %v1705 = vsel %vm1583, %v1576, %v1313
  %v1706 = vsel %vm1583, %v1577, %v1315
  %v1707 = vsel %vm1583, %v1578, %v1317
  %v1708 = vsel %vm1583, %v1579, %v1319
  %v1709 = vsel %vm1583, %v1580, %v1321
  %v1710 = vsel %vm1583, %v1581, %v1323
  %v1711 = vsel %vm1583, %v1582, %v1325
  %v1840 = vrot.slane %v1584, 2
  %v1841 = vrot.slane %v1584, 4
  %v1842 = vrot.slane %v1584, 6
  %v1843 = vrot.slane %v1585, 2
  %v1844 = vrot.slane %v1585, 4
  %v1845 = vrot.slane %v1586, 2
  %v1846 = vrot.slane %v1586, 4
  %v1847 = vrot.slane %v1586, 6
  %v1848 = vrot.slane %v1587, 2
  %v1849 = vrot.slane %v1587, 4
  %v1850 = vrot.slane %v1588, 2
  %v1851 = vrot.slane %v1588, 4
  %v1852 = vrot.slane %v1588, 6
  %v1853 = vrot.slane %v1589, 2
  %v1854 = vrot.slane %v1589, 4
  %v1855 = vrot.slane %v1590, 2
  %v1856 = vrot.slane %v1590, 4
  %v1857 = vrot.slane %v1590, 6
  %v1858 = vrot.slane %v1591, 2
  %v1859 = vrot.slane %v1591, 4
  %v1860 = vrot.slane %v1592, 2
  %v1861 = vrot.slane %v1592, 4
  %v1862 = vrot.slane %v1592, 6
  %v1863 = vrot.slane %v1593, 2
  %v1864 = vrot.slane %v1593, 4
  %v1865 = vrot.slane %v1594, 2
  %v1866 = vrot.slane %v1594, 4
  %v1867 = vrot.slane %v1594, 6
  %v1868 = vrot.slane %v1595, 2
  %v1869 = vrot.slane %v1595, 4
  %v1870 = vrot.slane %v1596, 2
  %v1871 = vrot.slane %v1596, 4
  %v1872 = vrot.slane %v1596, 6
  %v1873 = vrot.slane %v1597, 2
  %v1874 = vrot.slane %v1597, 4
  %v1875 = vrot.slane %v1598, 2
  %v1876 = vrot.slane %v1598, 4
  %v1877 = vrot.slane %v1598, 6
  %v1878 = vrot.slane %v1599, 2
  %v1879 = vrot.slane %v1599, 4
  %v1880 = vrot.slane %v1600, 2
  %v1881 = vrot.slane %v1600, 4
  %v1882 = vrot.slane %v1600, 6
  %v1883 = vrot.slane %v1601, 2
  %v1884 = vrot.slane %v1601, 4
  %v1885 = vrot.slane %v1602, 2
  %v1886 = vrot.slane %v1602, 4
  %v1887 = vrot.slane %v1602, 6
  %v1888 = vrot.slane %v1603, 2
  %v1889 = vrot.slane %v1603, 4
  %v1890 = vrot.slane %v1604, 2
  %v1891 = vrot.slane %v1604, 4
  %v1892 = vrot.slane %v1604, 6
  %v1893 = vrot.slane %v1605, 2
  %v1894 = vrot.slane %v1605, 4
  %v1895 = vrot.slane %v1606, 2
  %v1896 = vrot.slane %v1606, 4
  %v1897 = vrot.slane %v1606, 6
  %v1898 = vrot.slane %v1607, 2
  %v1899 = vrot.slane %v1607, 4
  %v1900 = vrot.slane %v1608, 2
  %v1901 = vrot.slane %v1608, 4
  %v1902 = vrot.slane %v1608, 6
  %v1903 = vrot.slane %v1609, 2
  %v1904 = vrot.slane %v1609, 4
  %v1905 = vrot.slane %v1610, 2
  %v1906 = vrot.slane %v1610, 4
  %v1907 = vrot.slane %v1610, 6
  %v1908 = vrot.slane %v1611, 2
  %v1909 = vrot.slane %v1611, 4
  %v1910 = vrot.slane %v1612, 2
  %v1911 = vrot.slane %v1612, 4
  %v1912 = vrot.slane %v1612, 6
  %v1913 = vrot.slane %v1613, 2
  %v1914 = vrot.slane %v1613, 4
  %v1915 = vrot.slane %v1614, 2
  %v1916 = vrot.slane %v1614, 4
  %v1917 = vrot.slane %v1614, 6
  %v1918 = vrot.slane %v1615, 2
  %v1919 = vrot.slane %v1615, 4
  %v1920 = vrot.slane %v1616, 2
  %v1921 = vrot.slane %v1616, 4
  %v1922 = vrot.slane %v1616, 6
  %v1923 = vrot.slane %v1617, 2
  %v1924 = vrot.slane %v1617, 4
  %v1925 = vrot.slane %v1618, 2
  %v1926 = vrot.slane %v1618, 4
  %v1927 = vrot.slane %v1618, 6
  %v1928 = vrot.slane %v1619, 2
  %v1929 = vrot.slane %v1619, 4
  %v1930 = vrot.slane %v1620, 2
  %v1931 = vrot.slane %v1620, 4
  %v1932 = vrot.slane %v1620, 6
  %v1933 = vrot.slane %v1621, 2
  %v1934 = vrot.slane %v1621, 4
  %v1935 = vrot.slane %v1622, 2
  %v1936 = vrot.slane %v1622, 4
  %v1937 = vrot.slane %v1622, 6
  %v1938 = vrot.slane %v1623, 2
  %v1939 = vrot.slane %v1623, 4
  %v1940 = vrot.slane %v1624, 2
  %v1941 = vrot.slane %v1624, 4
  %v1942 = vrot.slane %v1624, 6
  %v1943 = vrot.slane %v1625, 2
  %v1944 = vrot.slane %v1625, 4
  %v1945 = vrot.slane %v1626, 2
  %v1946 = vrot.slane %v1626, 4
  %v1947 = vrot.slane %v1626, 6
  %v1948 = vrot.slane %v1627, 2
  %v1949 = vrot.slane %v1627, 4
  %v1950 = vrot.slane %v1628, 2
  %v1951 = vrot.slane %v1628, 4
  %v1952 = vrot.slane %v1628, 6
  %v1953 = vrot.slane %v1629, 2
  %v1954 = vrot.slane %v1629, 4
  %v1955 = vrot.slane %v1630, 2
  %v1956 = vrot.slane %v1630, 4
  %v1957 = vrot.slane %v1630, 6
  %v1958 = vrot.slane %v1631, 2
  %v1959 = vrot.slane %v1631, 4
  %v1960 = vrot.slane %v1632, 2
  %v1961 = vrot.slane %v1632, 4
  %v1962 = vrot.slane %v1632, 6
  %v1963 = vrot.slane %v1633, 2
  %v1964 = vrot.slane %v1633, 4
  %v1965 = vrot.slane %v1634, 2
  %v1966 = vrot.slane %v1634, 4
  %v1967 = vrot.slane %v1634, 6
  %v1968 = vrot.slane %v1635, 2
  %v1969 = vrot.slane %v1635, 4
  %v1970 = vrot.slane %v1636, 2
  %v1971 = vrot.slane %v1636, 4
  %v1972 = vrot.slane %v1636, 6
  %v1973 = vrot.slane %v1637, 2
  %v1974 = vrot.slane %v1637, 4
  %v1975 = vrot.slane %v1638, 2
  %v1976 = vrot.slane %v1638, 4
  %v1977 = vrot.slane %v1638, 6
  %v1978 = vrot.slane %v1639, 2
  %v1979 = vrot.slane %v1639, 4
  %v1980 = vrot.slane %v1640, 2
  %v1981 = vrot.slane %v1640, 4
  %v1982 = vrot.slane %v1640, 6
  %v1983 = vrot.slane %v1641, 2
  %v1984 = vrot.slane %v1641, 4
  %v1985 = vrot.slane %v1642, 2
  %v1986 = vrot.slane %v1642, 4
  %v1987 = vrot.slane %v1642, 6
  %v1988 = vrot.slane %v1643, 2
  %v1989 = vrot.slane %v1643, 4
  %v1990 = vrot.slane %v1644, 2
  %v1991 = vrot.slane %v1644, 4
  %v1992 = vrot.slane %v1644, 6
  %v1993 = vrot.slane %v1645, 2
  %v1994 = vrot.slane %v1645, 4
  %v1995 = vrot.slane %v1646, 2
  %v1996 = vrot.slane %v1646, 4
  %v1997 = vrot.slane %v1646, 6
  %v1998 = vrot.slane %v1647, 2
  %v1999 = vrot.slane %v1647, 4
  %v2000 = vrot.slane %v1648, 2
  %v2001 = vrot.slane %v1648, 4
  %v2002 = vrot.slane %v1648, 6
  %v2003 = vrot.slane %v1649, 2
  %v2004 = vrot.slane %v1649, 4
  %v2005 = vrot.slane %v1650, 2
  %v2006 = vrot.slane %v1650, 4
  %v2007 = vrot.slane %v1650, 6
  %v2008 = vrot.slane %v1651, 2
  %v2009 = vrot.slane %v1651, 4
  %v2010 = vrot.slane %v1652, 2
  %v2011 = vrot.slane %v1652, 4
  %v2012 = vrot.slane %v1652, 6
  %v2013 = vrot.slane %v1653, 2
  %v2014 = vrot.slane %v1653, 4
  %v2015 = vrot.slane %v1654, 2
  %v2016 = vrot.slane %v1654, 4
  %v2017 = vrot.slane %v1654, 6
  %v2018 = vrot.slane %v1655, 2
  %v2019 = vrot.slane %v1655, 4
  %v2020 = vrot.slane %v1656, 2
  %v2021 = vrot.slane %v1656, 4
  %v2022 = vrot.slane %v1656, 6
  %v2023 = vrot.slane %v1657, 2
  %v2024 = vrot.slane %v1657, 4
  %v2025 = vrot.slane %v1658, 2
  %v2026 = vrot.slane %v1658, 4
  %v2027 = vrot.slane %v1658, 6
  %v2028 = vrot.slane %v1659, 2
  %v2029 = vrot.slane %v1659, 4
  %v2030 = vrot.slane %v1660, 2
  %v2031 = vrot.slane %v1660, 4
  %v2032 = vrot.slane %v1660, 6
  %v2033 = vrot.slane %v1661, 2
  %v2034 = vrot.slane %v1661, 4
  %v2035 = vrot.slane %v1662, 2
  %v2036 = vrot.slane %v1662, 4
  %v2037 = vrot.slane %v1662, 6
  %v2038 = vrot.slane %v1663, 2
  %v2039 = vrot.slane %v1663, 4
  %v2040 = vrot.slane %v1664, 2
  %v2041 = vrot.slane %v1664, 4
  %v2042 = vrot.slane %v1664, 6
  %v2043 = vrot.slane %v1665, 2
  %v2044 = vrot.slane %v1665, 4
  %v2045 = vrot.slane %v1666, 2
  %v2046 = vrot.slane %v1666, 4
  %v2047 = vrot.slane %v1666, 6
  %v2048 = vrot.slane %v1667, 2
  %v2049 = vrot.slane %v1667, 4
  %v2050 = vrot.slane %v1668, 2
  %v2051 = vrot.slane %v1668, 4
  %v2052 = vrot.slane %v1668, 6
  %v2053 = vrot.slane %v1669, 2
  %v2054 = vrot.slane %v1669, 4
  %v2055 = vrot.slane %v1670, 2
  %v2056 = vrot.slane %v1670, 4
  %v2057 = vrot.slane %v1670, 6
  %v2058 = vrot.slane %v1671, 2
  %v2059 = vrot.slane %v1671, 4
  %v2060 = vrot.slane %v1672, 2
  %v2061 = vrot.slane %v1672, 4
  %v2062 = vrot.slane %v1672, 6
  %v2063 = vrot.slane %v1673, 2
  %v2064 = vrot.slane %v1673, 4
  %v2065 = vrot.slane %v1674, 2
  %v2066 = vrot.slane %v1674, 4
  %v2067 = vrot.slane %v1674, 6
  %v2068 = vrot.slane %v1675, 2
  %v2069 = vrot.slane %v1675, 4
  %v2070 = vrot.slane %v1676, 2
  %v2071 = vrot.slane %v1676, 4
  %v2072 = vrot.slane %v1676, 6
  %v2073 = vrot.slane %v1677, 2
  %v2074 = vrot.slane %v1677, 4
  %v2075 = vrot.slane %v1678, 2
  %v2076 = vrot.slane %v1678, 4
  %v2077 = vrot.slane %v1678, 6
  %v2078 = vrot.slane %v1679, 2
  %v2079 = vrot.slane %v1679, 4
  %v2080 = vrot.slane %v1680, 2
  %v2081 = vrot.slane %v1680, 4
  %v2082 = vrot.slane %v1680, 6
  %v2083 = vrot.slane %v1681, 2
  %v2084 = vrot.slane %v1681, 4
  %v2085 = vrot.slane %v1682, 2
  %v2086 = vrot.slane %v1682, 4
  %v2087 = vrot.slane %v1682, 6
  %v2088 = vrot.slane %v1683, 2
  %v2089 = vrot.slane %v1683, 4
  %v2090 = vrot.slane %v1684, 2
  %v2091 = vrot.slane %v1684, 4
  %v2092 = vrot.slane %v1684, 6
  %v2093 = vrot.slane %v1685, 2
  %v2094 = vrot.slane %v1685, 4
  %v2095 = vrot.slane %v1686, 2
  %v2096 = vrot.slane %v1686, 4
  %v2097 = vrot.slane %v1686, 6
  %v2098 = vrot.slane %v1687, 2
  %v2099 = vrot.slane %v1687, 4
  %v2100 = vrot.slane %v1688, 2
  %v2101 = vrot.slane %v1688, 4
  %v2102 = vrot.slane %v1688, 6
  %v2103 = vrot.slane %v1689, 2
  %v2104 = vrot.slane %v1689, 4
  %v2105 = vrot.slane %v1690, 2
  %v2106 = vrot.slane %v1690, 4
  %v2107 = vrot.slane %v1690, 6
  %v2108 = vrot.slane %v1691, 2
  %v2109 = vrot.slane %v1691, 4
  %v2110 = vrot.slane %v1692, 2
  %v2111 = vrot.slane %v1692, 4
  %v2112 = vrot.slane %v1692, 6
  %v2113 = vrot.slane %v1693, 2
  %v2114 = vrot.slane %v1693, 4
  %v2115 = vrot.slane %v1694, 2
  %v2116 = vrot.slane %v1694, 4
  %v2117 = vrot.slane %v1694, 6
  %v2118 = vrot.slane %v1695, 2
  %v2119 = vrot.slane %v1695, 4
  %v2120 = vrot.slane %v1696, 2
  %v2121 = vrot.slane %v1696, 4
  %v2122 = vrot.slane %v1696, 6
  %v2123 = vrot.slane %v1697, 2
  %v2124 = vrot.slane %v1697, 4
  %v2125 = vrot.slane %v1698, 2
  %v2126 = vrot.slane %v1698, 4
  %v2127 = vrot.slane %v1698, 6
  %v2128 = vrot.slane %v1699, 2
  %v2129 = vrot.slane %v1699, 4
  %v2130 = vrot.slane %v1700, 2
  %v2131 = vrot.slane %v1700, 4
  %v2132 = vrot.slane %v1700, 6
  %v2133 = vrot.slane %v1701, 2
  %v2134 = vrot.slane %v1701, 4
  %v2135 = vrot.slane %v1702, 2
  %v2136 = vrot.slane %v1702, 4
  %v2137 = vrot.slane %v1702, 6
  %v2138 = vrot.slane %v1703, 2
  %v2139 = vrot.slane %v1703, 4
  %v2140 = vrot.slane %v1704, 2
  %v2141 = vrot.slane %v1704, 4
  %v2142 = vrot.slane %v1704, 6
  %v2143 = vrot.slane %v1705, 2
  %v2144 = vrot.slane %v1705, 4
  %v2145 = vrot.slane %v1706, 2
  %v2146 = vrot.slane %v1706, 4
  %v2147 = vrot.slane %v1706, 6
  %v2148 = vrot.slane %v1707, 2
  %v2149 = vrot.slane %v1707, 4
  %v2150 = vrot.slane %v1708, 2
  %v2151 = vrot.slane %v1708, 4
  %v2152 = vrot.slane %v1708, 6
  %v2153 = vrot.slane %v1709, 2
  %v2154 = vrot.slane %v1709, 4
  %v2155 = vrot.slane %v1710, 2
  %v2156 = vrot.slane %v1710, 4
  %v2157 = vrot.slane %v1710, 6
  %v2158 = vrot.slane %v1711, 2
  %v2159 = vrot.slane %v1711, 4
  %v2160 = vld [vmem:[%s3] sm:$0xff]
  %v2161 = vld [vmem:[%s3 + $0x8] sm:$0xff]
  %v2162 = vld [vmem:[%s3 + $0x10] sm:$0xff]
  %v2163 = vld [vmem:[%s3 + $0x18] sm:$0xff]
  %v2164 = vld [vmem:[%s3 + $0x20] sm:$0xff]
  %v2165 = vld [vmem:[%s3 + $0x28] sm:$0xff]
  %v2166 = vld [vmem:[%s4] sm:$0x1]
  %v2168 = vperm.slane %v2166, 0
  %2170 = vst [vmem:[#allocation1] ss:$4 sm:$0xff] %v1584
  %s2171 = scalar_lea.vmem [#allocation1], 1
  %2172 = vst [vmem:[%s2171] ss:$4 sm:$0xff] %v1840
  %s2173 = scalar_lea.vmem [#allocation1], 2
  %2174 = vst [vmem:[%s2173] ss:$4 sm:$0xff] %v1841
  %s2175 = scalar_lea.vmem [#allocation1], 3
  %2176 = vst [vmem:[%s2175] ss:$4 sm:$0xff] %v1842
  %s2177 = scalar_lea.vmem [#allocation1], 32
  %2178 = vst [vmem:[%s2177] ss:$4 sm:$0xff] %v1585
  %s2179 = scalar_lea.vmem [#allocation1], 33
  %2180 = vst [vmem:[%s2179] ss:$4 sm:$0xff] %v1843
  %s2181 = scalar_lea.vmem [#allocation1], 34
  %2182 = vst [vmem:[%s2181] ss:$4 sm:$0xff] %v1844
  %s2183 = scalar_lea.vmem [#allocation1], 35
  %2184 = vst [vmem:[%s2183] ss:$4 sm:$0xff] %v1586
  %v2185 = vld.sshfl [vmem:[#allocation1] sm:$0xff pattern:$0x73625140]
  %v2186 = vld.sshfl [vmem:[#allocation1 + $0x20] sm:$0xff pattern:$0x73625140]
  %2187 = vst [vmem:[#allocation1] ss:$4 sm:$0xff] %v1845
  %2188 = vst [vmem:[%s2171] ss:$4 sm:$0xff] %v1846
  %2189 = vst [vmem:[%s2173] ss:$4 sm:$0xff] %v1847
  %2190 = vst [vmem:[%s2175] ss:$4 sm:$0xff] %v1587
  %2191 = vst [vmem:[%s2177] ss:$4 sm:$0xff] %v1848
  %2192 = vst [vmem:[%s2179] ss:$4 sm:$0xff] %v1849
  %2193 = vst [vmem:[%s2181] ss:$4 sm:$0xff] %v1588
  %2194 = vst [vmem:[%s2183] ss:$4 sm:$0xff] %v1850
  %v2195 = vld.sshfl [vmem:[#allocation1] sm:$0xff pattern:$0x73625140]
  %v2196 = vld.sshfl [vmem:[#allocation1 + $0x20] sm:$0xff pattern:$0x73625140]
  %2197 = vst [vmem:[#allocation1] ss:$4 sm:$0xff] %v1851
  %2198 = vst [vmem:[%s2171] ss:$4 sm:$0xff] %v1852
  %2199 = vst [vmem:[%s2173] ss:$4 sm:$0xff] %v1589
  %2200 = vst [vmem:[%s2175] ss:$4 sm:$0xff] %v1853
  %2201 = vst [vmem:[%s2177] ss:$4 sm:$0xff] %v1854
  %2202 = vst [vmem:[%s2179] ss:$4 sm:$0xff] %v1590
  %2203 = vst [vmem:[%s2181] ss:$4 sm:$0xff] %v1855
  %2204 = vst [vmem:[%s2183] ss:$4 sm:$0xff] %v1856
  %v2205 = vld.sshfl [vmem:[#allocation1] sm:$0xff pattern:$0x73625140]
  %v2206 = vld.sshfl [vmem:[#allocation1 + $0x20] sm:$0xff pattern:$0x73625140]
  %2207 = vst [vmem:[#allocation1] ss:$4 sm:$0xff] %v1857
  %2208 = vst [vmem:[%s2171] ss:$4 sm:$0xff] %v1591
  %2209 = vst [vmem:[%s2173] ss:$4 sm:$0xff] %v1858
  %2210 = vst [vmem:[%s2175] ss:$4 sm:$0xff] %v1859
  %2211 = vst [vmem:[%s2177] ss:$4 sm:$0xff] %v1592
  %2212 = vst [vmem:[%s2179] ss:$4 sm:$0xff] %v1860
  %2213 = vst [vmem:[%s2181] ss:$4 sm:$0xff] %v1861
  %2214 = vst [vmem:[%s2183] ss:$4 sm:$0xff] %v1862
  %v2215 = vld.sshfl [vmem:[#allocation1] sm:$0xff pattern:$0x73625140]
  %v2216 = vld.sshfl [vmem:[#allocation1 + $0x20] sm:$0xff pattern:$0x73625140]
  %2217 = vst [vmem:[#allocation1] ss:$4 sm:$0xff] %v1593
  %2218 = vst [vmem:[%s2171] ss:$4 sm:$0xff] %v1863
  %2219 = vst [vmem:[%s2173] ss:$4 sm:$0xff] %v1864
  %2220 = vst [vmem:[%s2175] ss:$4 sm:$0xff] %v1594
  %2221 = vst [vmem:[%s2177] ss:$4 sm:$0xff] %v1865
  %2222 = vst [vmem:[%s2179] ss:$4 sm:$0xff] %v1866
  %2223 = vst [vmem:[%s2181] ss:$4 sm:$0xff] %v1867
  %2224 = vst [vmem:[%s2183] ss:$4 sm:$0xff] %v1595
  %v2225 = vld.sshfl [vmem:[#allocation1] sm:$0xff pattern:$0x73625140]
  %v2226 = vld.sshfl [vmem:[#allocation1 + $0x20] sm:$0xff pattern:$0x73625140]
  %2227 = vst [vmem:[#allocation1] ss:$4 sm:$0xff] %v1868
  %2228 = vst [vmem:[%s2171] ss:$4 sm:$0xff] %v1869
  %2229 = vst [vmem:[%s2173] ss:$4 sm:$0xff] %v1596
  %2230 = vst [vmem:[%s2175] ss:$4 sm:$0xff] %v1870
  %2231 = vst [vmem:[%s2177] ss:$4 sm:$0xff] %v1871
  %2232 = vst [vmem:[%s2179] ss:$4 sm:$0xff] %v1872
  %2233 = vst [vmem:[%s2181] ss:$4 sm:$0xff] %v1597
  %2234 = vst [vmem:[%s2183] ss:$4 sm:$0xff] %v1873
  %v2235 = vld.sshfl [vmem:[#allocation1] sm:$0xff pattern:$0x73625140]
  %v2236 = vld.sshfl [vmem:[#allocation1 + $0x20] sm:$0xff pattern:$0x73625140]
  %2237 = vst [vmem:[#allocation1] ss:$4 sm:$0xff] %v1874
  %2238 = vst [vmem:[%s2171] ss:$4 sm:$0xff] %v1598
  %2239 = vst [vmem:[%s2173] ss:$4 sm:$0xff] %v1875
  %2240 = vst [vmem:[%s2175] ss:$4 sm:$0xff] %v1876
  %2241 = vst [vmem:[%s2177] ss:$4 sm:$0xff] %v1877
  %2242 = vst [vmem:[%s2179] ss:$4 sm:$0xff] %v1599
  %2243 = vst [vmem:[%s2181] ss:$4 sm:$0xff] %v1878
  %2244 = vst [vmem:[%s2183] ss:$4 sm:$0xff] %v1879
  %v2245 = vld.sshfl [vmem:[#allocation1] sm:$0xff pattern:$0x73625140]
  %v2246 = vld.sshfl [vmem:[#allocation1 + $0x20] sm:$0xff pattern:$0x73625140]
  %2247 = vst [vmem:[#allocation1] ss:$4 sm:$0xff] %v1600
  %2248 = vst [vmem:[%s2171] ss:$4 sm:$0xff] %v1880
  %2249 = vst [vmem:[%s2173] ss:$4 sm:$0xff] %v1881
  %2250 = vst [vmem:[%s2175] ss:$4 sm:$0xff] %v1882
  %2251 = vst [vmem:[%s2177] ss:$4 sm:$0xff] %v1601
  %2252 = vst [vmem:[%s2179] ss:$4 sm:$0xff] %v1883
  %2253 = vst [vmem:[%s2181] ss:$4 sm:$0xff] %v1884
  %2254 = vst [vmem:[%s2183] ss:$4 sm:$0xff] %v1602
  %v2255 = vld.sshfl [vmem:[#allocation1] sm:$0xff pattern:$0x73625140]
  %v2256 = vld.sshfl [vmem:[#allocation1 + $0x20] sm:$0xff pattern:$0x73625140]
  %2257 = vst [vmem:[#allocation1] ss:$4 sm:$0xff] %v1885
  %2258 = vst [vmem:[%s2171] ss:$4 sm:$0xff] %v1886
  %2259 = vst [vmem:[%s2173] ss:$4 sm:$0xff] %v1887
  %2260 = vst [vmem:[%s2175] ss:$4 sm:$0xff] %v1603
  %2261 = vst [vmem:[%s2177] ss:$4 sm:$0xff] %v1888
  %2262 = vst [vmem:[%s2179] ss:$4 sm:$0xff] %v1889
  %2263 = vst [vmem:[%s2181] ss:$4 sm:$0xff] %v1604
  %2264 = vst [vmem:[%s2183] ss:$4 sm:$0xff] %v1890
  %v2265 = vld.sshfl [vmem:[#allocation1] sm:$0xff pattern:$0x73625140]
  %v2266 = vld.sshfl [vmem:[#allocation1 + $0x20] sm:$0xff pattern:$0x73625140]
  %2267 = vst [vmem:[#allocation1] ss:$4 sm:$0xff] %v1891
  %2268 = vst [vmem:[%s2171] ss:$4 sm:$0xff] %v1892
  %2269 = vst [vmem:[%s2173] ss:$4 sm:$0xff] %v1605
  %2270 = vst [vmem:[%s2175] ss:$4 sm:$0xff] %v1893
  %2271 = vst [vmem:[%s2177] ss:$4 sm:$0xff] %v1894
  %2272 = vst [vmem:[%s2179] ss:$4 sm:$0xff] %v1606
  %2273 = vst [vmem:[%s2181] ss:$4 sm:$0xff] %v1895
  %2274 = vst [vmem:[%s2183] ss:$4 sm:$0xff] %v1896
  %v2275 = vld.sshfl [vmem:[#allocation1] sm:$0xff pattern:$0x73625140]
  %v2276 = vld.sshfl [vmem:[#allocation1 + $0x20] sm:$0xff pattern:$0x73625140]
  %2277 = vst [vmem:[#allocation1] ss:$4 sm:$0xff] %v1897
  %2278 = vst [vmem:[%s2171] ss:$4 sm:$0xff] %v1607
  %2279 = vst [vmem:[%s2173] ss:$4 sm:$0xff] %v1898
  %2280 = vst [vmem:[%s2175] ss:$4 sm:$0xff] %v1899
  %2281 = vst [vmem:[%s2177] ss:$4 sm:$0xff] %v1608
  %2282 = vst [vmem:[%s2179] ss:$4 sm:$0xff] %v1900
  %2283 = vst [vmem:[%s2181] ss:$4 sm:$0xff] %v1901
  %2284 = vst [vmem:[%s2183] ss:$4 sm:$0xff] %v1902
  %v2285 = vld.sshfl [vmem:[#allocation1] sm:$0xff pattern:$0x73625140]
  %v2286 = vld.sshfl [vmem:[#allocation1 + $0x20] sm:$0xff pattern:$0x73625140]
  %2287 = vst [vmem:[#allocation1] ss:$4 sm:$0xff] %v1609
  %2288 = vst [vmem:[%s2171] ss:$4 sm:$0xff] %v1903
  %2289 = vst [vmem:[%s2173] ss:$4 sm:$0xff] %v1904
  %2290 = vst [vmem:[%s2175] ss:$4 sm:$0xff] %v1610
  %2291 = vst [vmem:[%s2177] ss:$4 sm:$0xff] %v1905
  %2292 = vst [vmem:[%s2179] ss:$4 sm:$0xff] %v1906
  %2293 = vst [vmem:[%s2181] ss:$4 sm:$0xff] %v1907
  %2294 = vst [vmem:[%s2183] ss:$4 sm:$0xff] %v1611
  %v2295 = vld.sshfl [vmem:[#allocation1] sm:$0xff pattern:$0x73625140]
  %v2296 = vld.sshfl [vmem:[#allocation1 + $0x20] sm:$0xff pattern:$0x73625140]
  %2297 = vst [vmem:[#allocation1] ss:$4 sm:$0xff] %v1908
  %2298 = vst [vmem:[%s2171] ss:$4 sm:$0xff] %v1909
  %2299 = vst [vmem:[%s2173] ss:$4 sm:$0xff] %v1612
  %2300 = vst [vmem:[%s2175] ss:$4 sm:$0xff] %v1910
  %2301 = vst [vmem:[%s2177] ss:$4 sm:$0xff] %v1911
  %2302 = vst [vmem:[%s2179] ss:$4 sm:$0xff] %v1912
  %2303 = vst [vmem:[%s2181] ss:$4 sm:$0xff] %v1613
  %2304 = vst [vmem:[%s2183] ss:$4 sm:$0xff] %v1913
  %v2305 = vld.sshfl [vmem:[#allocation1] sm:$0xff pattern:$0x73625140]
  %v2306 = vld.sshfl [vmem:[#allocation1 + $0x20] sm:$0xff pattern:$0x73625140]
  %2307 = vst [vmem:[#allocation1] ss:$4 sm:$0xff] %v1914
  %2308 = vst [vmem:[%s2171] ss:$4 sm:$0xff] %v1614
  %2309 = vst [vmem:[%s2173] ss:$4 sm:$0xff] %v1915
  %2310 = vst [vmem:[%s2175] ss:$4 sm:$0xff] %v1916
  %2311 = vst [vmem:[%s2177] ss:$4 sm:$0xff] %v1917
  %2312 = vst [vmem:[%s2179] ss:$4 sm:$0xff] %v1615
  %2313 = vst [vmem:[%s2181] ss:$4 sm:$0xff] %v1918
  %2314 = vst [vmem:[%s2183] ss:$4 sm:$0xff] %v1919
  %v2315 = vld.sshfl [vmem:[#allocation1] sm:$0xff pattern:$0x73625140]
  %v2316 = vld.sshfl [vmem:[#allocation1 + $0x20] sm:$0xff pattern:$0x73625140]
  %2317 = vst [vmem:[#allocation1] ss:$4 sm:$0xff] %v1616
  %2318 = vst [vmem:[%s2171] ss:$4 sm:$0xff] %v1920
  %2319 = vst [vmem:[%s2173] ss:$4 sm:$0xff] %v1921
  %2320 = vst [vmem:[%s2175] ss:$4 sm:$0xff] %v1922
  %2321 = vst [vmem:[%s2177] ss:$4 sm:$0xff] %v1617
  %2322 = vst [vmem:[%s2179] ss:$4 sm:$0xff] %v1923
  %2323 = vst [vmem:[%s2181] ss:$4 sm:$0xff] %v1924
  %2324 = vst [vmem:[%s2183] ss:$4 sm:$0xff] %v1618
  %v2325 = vld.sshfl [vmem:[#allocation1] sm:$0xff pattern:$0x73625140]
  %v2326 = vld.sshfl [vmem:[#allocation1 + $0x20] sm:$0xff pattern:$0x73625140]
  %2327 = vst [vmem:[#allocation1] ss:$4 sm:$0xff] %v1925
  %2328 = vst [vmem:[%s2171] ss:$4 sm:$0xff] %v1926
  %2329 = vst [vmem:[%s2173] ss:$4 sm:$0xff] %v1927
  %2330 = vst [vmem:[%s2175] ss:$4 sm:$0xff] %v1619
  %2331 = vst [vmem:[%s2177] ss:$4 sm:$0xff] %v1928
  %2332 = vst [vmem:[%s2179] ss:$4 sm:$0xff] %v1929
  %2333 = vst [vmem:[%s2181] ss:$4 sm:$0xff] %v1620
  %2334 = vst [vmem:[%s2183] ss:$4 sm:$0xff] %v1930
  %v2335 = vld.sshfl [vmem:[#allocation1] sm:$0xff pattern:$0x73625140]
  %v2336 = vld.sshfl [vmem:[#allocation1 + $0x20] sm:$0xff pattern:$0x73625140]
  %2337 = vst [vmem:[#allocation1] ss:$4 sm:$0xff] %v1931
  %2338 = vst [vmem:[%s2171] ss:$4 sm:$0xff] %v1932
  %2339 = vst [vmem:[%s2173] ss:$4 sm:$0xff] %v1621
  %2340 = vst [vmem:[%s2175] ss:$4 sm:$0xff] %v1933
  %2341 = vst [vmem:[%s2177] ss:$4 sm:$0xff] %v1934
  %2342 = vst [vmem:[%s2179] ss:$4 sm:$0xff] %v1622
  %2343 = vst [vmem:[%s2181] ss:$4 sm:$0xff] %v1935
  %2344 = vst [vmem:[%s2183] ss:$4 sm:$0xff] %v1936
  %v2345 = vld.sshfl [vmem:[#allocation1] sm:$0xff pattern:$0x73625140]
  %v2346 = vld.sshfl [vmem:[#allocation1 + $0x20] sm:$0xff pattern:$0x73625140]
  %2347 = vst [vmem:[#allocation1] ss:$4 sm:$0xff] %v1937
  %2348 = vst [vmem:[%s2171] ss:$4 sm:$0xff] %v1623
  %2349 = vst [vmem:[%s2173] ss:$4 sm:$0xff] %v1938
  %2350 = vst [vmem:[%s2175] ss:$4 sm:$0xff] %v1939
  %2351 = vst [vmem:[%s2177] ss:$4 sm:$0xff] %v1624
  %2352 = vst [vmem:[%s2179] ss:$4 sm:$0xff] %v1940
  %2353 = vst [vmem:[%s2181] ss:$4 sm:$0xff] %v1941
  %2354 = vst [vmem:[%s2183] ss:$4 sm:$0xff] %v1942
  %v2355 = vld.sshfl [vmem:[#allocation1] sm:$0xff pattern:$0x73625140]
  %v2356 = vld.sshfl [vmem:[#allocation1 + $0x20] sm:$0xff pattern:$0x73625140]
  %2357 = vst [vmem:[#allocation1] ss:$4 sm:$0xff] %v1625
  %2358 = vst [vmem:[%s2171] ss:$4 sm:$0xff] %v1943
  %2359 = vst [vmem:[%s2173] ss:$4 sm:$0xff] %v1944
  %2360 = vst [vmem:[%s2175] ss:$4 sm:$0xff] %v1626
  %2361 = vst [vmem:[%s2177] ss:$4 sm:$0xff] %v1945
  %2362 = vst [vmem:[%s2179] ss:$4 sm:$0xff] %v1946
  %2363 = vst [vmem:[%s2181] ss:$4 sm:$0xff] %v1947
  %2364 = vst [vmem:[%s2183] ss:$4 sm:$0xff] %v1627
  %v2365 = vld.sshfl [vmem:[#allocation1] sm:$0xff pattern:$0x73625140]
  %v2366 = vld.sshfl [vmem:[#allocation1 + $0x20] sm:$0xff pattern:$0x73625140]
  %2367 = vst [vmem:[#allocation1] ss:$4 sm:$0xff] %v1948
  %2368 = vst [vmem:[%s2171] ss:$4 sm:$0xff] %v1949
  %2369 = vst [vmem:[%s2173] ss:$4 sm:$0xff] %v1628
  %2370 = vst [vmem:[%s2175] ss:$4 sm:$0xff] %v1950
  %2371 = vst [vmem:[%s2177] ss:$4 sm:$0xff] %v1951
  %2372 = vst [vmem:[%s2179] ss:$4 sm:$0xff] %v1952
  %2373 = vst [vmem:[%s2181] ss:$4 sm:$0xff] %v1629
  %2374 = vst [vmem:[%s2183] ss:$4 sm:$0xff] %v1953
  %v2375 = vld.sshfl [vmem:[#allocation1] sm:$0xff pattern:$0x73625140]
  %v2376 = vld.sshfl [vmem:[#allocation1 + $0x20] sm:$0xff pattern:$0x73625140]
  %2377 = vst [vmem:[#allocation1] ss:$4 sm:$0xff] %v1954
  %2378 = vst [vmem:[%s2171] ss:$4 sm:$0xff] %v1630
  %2379 = vst [vmem:[%s2173] ss:$4 sm:$0xff] %v1955
  %2380 = vst [vmem:[%s2175] ss:$4 sm:$0xff] %v1956
  %2381 = vst [vmem:[%s2177] ss:$4 sm:$0xff] %v1957
  %2382 = vst [vmem:[%s2179] ss:$4 sm:$0xff] %v1631
  %2383 = vst [vmem:[%s2181] ss:$4 sm:$0xff] %v1958
  %2384 = vst [vmem:[%s2183] ss:$4 sm:$0xff] %v1959
  %v2385 = vld.sshfl [vmem:[#allocation1] sm:$0xff pattern:$0x73625140]
  %v2386 = vld.sshfl [vmem:[#allocation1 + $0x20] sm:$0xff pattern:$0x73625140]
  %2387 = vst [vmem:[#allocation1] ss:$4 sm:$0xff] %v1632
  %2388 = vst [vmem:[%s2171] ss:$4 sm:$0xff] %v1960
  %2389 = vst [vmem:[%s2173] ss:$4 sm:$0xff] %v1961
  %2390 = vst [vmem:[%s2175] ss:$4 sm:$0xff] %v1962
  %2391 = vst [vmem:[%s2177] ss:$4 sm:$0xff] %v1633
  %2392 = vst [vmem:[%s2179] ss:$4 sm:$0xff] %v1963
  %2393 = vst [vmem:[%s2181] ss:$4 sm:$0xff] %v1964
  %2394 = vst [vmem:[%s2183] ss:$4 sm:$0xff] %v1634
  %v2395 = vld.sshfl [vmem:[#allocation1] sm:$0xff pattern:$0x73625140]
  %v2396 = vld.sshfl [vmem:[#allocation1 + $0x20] sm:$0xff pattern:$0x73625140]
  %2397 = vst [vmem:[#allocation1] ss:$4 sm:$0xff] %v1965
  %2398 = vst [vmem:[%s2171] ss:$4 sm:$0xff] %v1966
  %2399 = vst [vmem:[%s2173] ss:$4 sm:$0xff] %v1967
  %2400 = vst [vmem:[%s2175] ss:$4 sm:$0xff] %v1635
  %2401 = vst [vmem:[%s2177] ss:$4 sm:$0xff] %v1968
  %2402 = vst [vmem:[%s2179] ss:$4 sm:$0xff] %v1969
  %2403 = vst [vmem:[%s2181] ss:$4 sm:$0xff] %v1636
  %2404 = vst [vmem:[%s2183] ss:$4 sm:$0xff] %v1970
  %v2405 = vld.sshfl [vmem:[#allocation1] sm:$0xff pattern:$0x73625140]
  %v2406 = vld.sshfl [vmem:[#allocation1 + $0x20] sm:$0xff pattern:$0x73625140]
  %2407 = vst [vmem:[#allocation1] ss:$4 sm:$0xff] %v1971
  %2408 = vst [vmem:[%s2171] ss:$4 sm:$0xff] %v1972
  %2409 = vst [vmem:[%s2173] ss:$4 sm:$0xff] %v1637
  %2410 = vst [vmem:[%s2175] ss:$4 sm:$0xff] %v1973
  %2411 = vst [vmem:[%s2177] ss:$4 sm:$0xff] %v1974
  %2412 = vst [vmem:[%s2179] ss:$4 sm:$0xff] %v1638
  %2413 = vst [vmem:[%s2181] ss:$4 sm:$0xff] %v1975
  %2414 = vst [vmem:[%s2183] ss:$4 sm:$0xff] %v1976
  %v2415 = vld.sshfl [vmem:[#allocation1] sm:$0xff pattern:$0x73625140]
  %v2416 = vld.sshfl [vmem:[#allocation1 + $0x20] sm:$0xff pattern:$0x73625140]
  %2417 = vst [vmem:[#allocation1] ss:$4 sm:$0xff] %v1977
  %2418 = vst [vmem:[%s2171] ss:$4 sm:$0xff] %v1639
  %2419 = vst [vmem:[%s2173] ss:$4 sm:$0xff] %v1978
  %2420 = vst [vmem:[%s2175] ss:$4 sm:$0xff] %v1979
  %2421 = vst [vmem:[%s2177] ss:$4 sm:$0xff] %v1640
  %2422 = vst [vmem:[%s2179] ss:$4 sm:$0xff] %v1980
  %2423 = vst [vmem:[%s2181] ss:$4 sm:$0xff] %v1981
  %2424 = vst [vmem:[%s2183] ss:$4 sm:$0xff] %v1982
  %v2425 = vld.sshfl [vmem:[#allocation1] sm:$0xff pattern:$0x73625140]
  %v2426 = vld.sshfl [vmem:[#allocation1 + $0x20] sm:$0xff pattern:$0x73625140]
  %2427 = vst [vmem:[#allocation1] ss:$4 sm:$0xff] %v1641
  %2428 = vst [vmem:[%s2171] ss:$4 sm:$0xff] %v1983
  %2429 = vst [vmem:[%s2173] ss:$4 sm:$0xff] %v1984
  %2430 = vst [vmem:[%s2175] ss:$4 sm:$0xff] %v1642
  %2431 = vst [vmem:[%s2177] ss:$4 sm:$0xff] %v1985
  %2432 = vst [vmem:[%s2179] ss:$4 sm:$0xff] %v1986
  %2433 = vst [vmem:[%s2181] ss:$4 sm:$0xff] %v1987
  %2434 = vst [vmem:[%s2183] ss:$4 sm:$0xff] %v1643
  %v2435 = vld.sshfl [vmem:[#allocation1] sm:$0xff pattern:$0x73625140]
  %v2436 = vld.sshfl [vmem:[#allocation1 + $0x20] sm:$0xff pattern:$0x73625140]
  %2437 = vst [vmem:[#allocation1] ss:$4 sm:$0xff] %v1988
  %2438 = vst [vmem:[%s2171] ss:$4 sm:$0xff] %v1989
  %2439 = vst [vmem:[%s2173] ss:$4 sm:$0xff] %v1644
  %2440 = vst [vmem:[%s2175] ss:$4 sm:$0xff] %v1990
  %2441 = vst [vmem:[%s2177] ss:$4 sm:$0xff] %v1991
  %2442 = vst [vmem:[%s2179] ss:$4 sm:$0xff] %v1992
  %2443 = vst [vmem:[%s2181] ss:$4 sm:$0xff] %v1645
  %2444 = vst [vmem:[%s2183] ss:$4 sm:$0xff] %v1993
  %v2445 = vld.sshfl [vmem:[#allocation1] sm:$0xff pattern:$0x73625140]
  %v2446 = vld.sshfl [vmem:[#allocation1 + $0x20] sm:$0xff pattern:$0x73625140]
  %2447 = vst [vmem:[#allocation1] ss:$4 sm:$0xff] %v1994
  %2448 = vst [vmem:[%s2171] ss:$4 sm:$0xff] %v1646
  %2449 = vst [vmem:[%s2173] ss:$4 sm:$0xff] %v1995
  %2450 = vst [vmem:[%s2175] ss:$4 sm:$0xff] %v1996
  %2451 = vst [vmem:[%s2177] ss:$4 sm:$0xff] %v1997
  %2452 = vst [vmem:[%s2179] ss:$4 sm:$0xff] %v1647
  %2453 = vst [vmem:[%s2181] ss:$4 sm:$0xff] %v1998
  %2454 = vst [vmem:[%s2183] ss:$4 sm:$0xff] %v1999
  %v2455 = vld.sshfl [vmem:[#allocation1] sm:$0xff pattern:$0x73625140]
  %v2456 = vld.sshfl [vmem:[#allocation1 + $0x20] sm:$0xff pattern:$0x73625140]
  %2457 = vst [vmem:[#allocation1] ss:$4 sm:$0xff] %v1648
  %2458 = vst [vmem:[%s2171] ss:$4 sm:$0xff] %v2000
  %2459 = vst [vmem:[%s2173] ss:$4 sm:$0xff] %v2001
  %2460 = vst [vmem:[%s2175] ss:$4 sm:$0xff] %v2002
  %2461 = vst [vmem:[%s2177] ss:$4 sm:$0xff] %v1649
  %2462 = vst [vmem:[%s2179] ss:$4 sm:$0xff] %v2003
  %2463 = vst [vmem:[%s2181] ss:$4 sm:$0xff] %v2004
  %2464 = vst [vmem:[%s2183] ss:$4 sm:$0xff] %v1650
  %v2465 = vld.sshfl [vmem:[#allocation1] sm:$0xff pattern:$0x73625140]
  %v2466 = vld.sshfl [vmem:[#allocation1 + $0x20] sm:$0xff pattern:$0x73625140]
  %2467 = vst [vmem:[#allocation1] ss:$4 sm:$0xff] %v2005
  %2468 = vst [vmem:[%s2171] ss:$4 sm:$0xff] %v2006
  %2469 = vst [vmem:[%s2173] ss:$4 sm:$0xff] %v2007
  %2470 = vst [vmem:[%s2175] ss:$4 sm:$0xff] %v1651
  %2471 = vst [vmem:[%s2177] ss:$4 sm:$0xff] %v2008
  %2472 = vst [vmem:[%s2179] ss:$4 sm:$0xff] %v2009
  %2473 = vst [vmem:[%s2181] ss:$4 sm:$0xff] %v1652
  %2474 = vst [vmem:[%s2183] ss:$4 sm:$0xff] %v2010
  %v2475 = vld.sshfl [vmem:[#allocation1] sm:$0xff pattern:$0x73625140]
  %v2476 = vld.sshfl [vmem:[#allocation1 + $0x20] sm:$0xff pattern:$0x73625140]
  %2477 = vst [vmem:[#allocation1] ss:$4 sm:$0xff] %v2011
  %2478 = vst [vmem:[%s2171] ss:$4 sm:$0xff] %v2012
  %2479 = vst [vmem:[%s2173] ss:$4 sm:$0xff] %v1653
  %2480 = vst [vmem:[%s2175] ss:$4 sm:$0xff] %v2013
  %2481 = vst [vmem:[%s2177] ss:$4 sm:$0xff] %v2014
  %2482 = vst [vmem:[%s2179] ss:$4 sm:$0xff] %v1654
  %2483 = vst [vmem:[%s2181] ss:$4 sm:$0xff] %v2015
  %2484 = vst [vmem:[%s2183] ss:$4 sm:$0xff] %v2016
  %v2485 = vld.sshfl [vmem:[#allocation1] sm:$0xff pattern:$0x73625140]
  %v2486 = vld.sshfl [vmem:[#allocation1 + $0x20] sm:$0xff pattern:$0x73625140]
  %2487 = vst [vmem:[#allocation1] ss:$4 sm:$0xff] %v2017
  %2488 = vst [vmem:[%s2171] ss:$4 sm:$0xff] %v1655
  %2489 = vst [vmem:[%s2173] ss:$4 sm:$0xff] %v2018
  %2490 = vst [vmem:[%s2175] ss:$4 sm:$0xff] %v2019
  %2491 = vst [vmem:[%s2177] ss:$4 sm:$0xff] %v1656
  %2492 = vst [vmem:[%s2179] ss:$4 sm:$0xff] %v2020
  %2493 = vst [vmem:[%s2181] ss:$4 sm:$0xff] %v2021
  %2494 = vst [vmem:[%s2183] ss:$4 sm:$0xff] %v2022
  %v2495 = vld.sshfl [vmem:[#allocation1] sm:$0xff pattern:$0x73625140]
  %v2496 = vld.sshfl [vmem:[#allocation1 + $0x20] sm:$0xff pattern:$0x73625140]
  %2497 = vst [vmem:[#allocation1] ss:$4 sm:$0xff] %v1657
  %2498 = vst [vmem:[%s2171] ss:$4 sm:$0xff] %v2023
  %2499 = vst [vmem:[%s2173] ss:$4 sm:$0xff] %v2024
  %2500 = vst [vmem:[%s2175] ss:$4 sm:$0xff] %v1658
  %2501 = vst [vmem:[%s2177] ss:$4 sm:$0xff] %v2025
  %2502 = vst [vmem:[%s2179] ss:$4 sm:$0xff] %v2026
  %2503 = vst [vmem:[%s2181] ss:$4 sm:$0xff] %v2027
  %2504 = vst [vmem:[%s2183] ss:$4 sm:$0xff] %v1659
  %v2505 = vld.sshfl [vmem:[#allocation1] sm:$0xff pattern:$0x73625140]
  %v2506 = vld.sshfl [vmem:[#allocation1 + $0x20] sm:$0xff pattern:$0x73625140]
  %2507 = vst [vmem:[#allocation1] ss:$4 sm:$0xff] %v2028
  %2508 = vst [vmem:[%s2171] ss:$4 sm:$0xff] %v2029
  %2509 = vst [vmem:[%s2173] ss:$4 sm:$0xff] %v1660
  %2510 = vst [vmem:[%s2175] ss:$4 sm:$0xff] %v2030
  %2511 = vst [vmem:[%s2177] ss:$4 sm:$0xff] %v2031
  %2512 = vst [vmem:[%s2179] ss:$4 sm:$0xff] %v2032
  %2513 = vst [vmem:[%s2181] ss:$4 sm:$0xff] %v1661
  %2514 = vst [vmem:[%s2183] ss:$4 sm:$0xff] %v2033
  %v2515 = vld.sshfl [vmem:[#allocation1] sm:$0xff pattern:$0x73625140]
  %v2516 = vld.sshfl [vmem:[#allocation1 + $0x20] sm:$0xff pattern:$0x73625140]
  %2517 = vst [vmem:[#allocation1] ss:$4 sm:$0xff] %v2034
  %2518 = vst [vmem:[%s2171] ss:$4 sm:$0xff] %v1662
  %2519 = vst [vmem:[%s2173] ss:$4 sm:$0xff] %v2035
  %2520 = vst [vmem:[%s2175] ss:$4 sm:$0xff] %v2036
  %2521 = vst [vmem:[%s2177] ss:$4 sm:$0xff] %v2037
  %2522 = vst [vmem:[%s2179] ss:$4 sm:$0xff] %v1663
  %2523 = vst [vmem:[%s2181] ss:$4 sm:$0xff] %v2038
  %2524 = vst [vmem:[%s2183] ss:$4 sm:$0xff] %v2039
  %v2525 = vld.sshfl [vmem:[#allocation1] sm:$0xff pattern:$0x73625140]
  %v2526 = vld.sshfl [vmem:[#allocation1 + $0x20] sm:$0xff pattern:$0x73625140]
  %2527 = vst [vmem:[#allocation1] ss:$4 sm:$0xff] %v1664
  %2528 = vst [vmem:[%s2171] ss:$4 sm:$0xff] %v2040
  %2529 = vst [vmem:[%s2173] ss:$4 sm:$0xff] %v2041
  %2530 = vst [vmem:[%s2175] ss:$4 sm:$0xff] %v2042
  %2531 = vst [vmem:[%s2177] ss:$4 sm:$0xff] %v1665
  %2532 = vst [vmem:[%s2179] ss:$4 sm:$0xff] %v2043
  %2533 = vst [vmem:[%s2181] ss:$4 sm:$0xff] %v2044
  %2534 = vst [vmem:[%s2183] ss:$4 sm:$0xff] %v1666
  %v2535 = vld.sshfl [vmem:[#allocation1] sm:$0xff pattern:$0x73625140]
  %v2536 = vld.sshfl [vmem:[#allocation1 + $0x20] sm:$0xff pattern:$0x73625140]
  %2537 = vst [vmem:[#allocation1] ss:$4 sm:$0xff] %v2045
  %2538 = vst [vmem:[%s2171] ss:$4 sm:$0xff] %v2046
  %2539 = vst [vmem:[%s2173] ss:$4 sm:$0xff] %v2047
  %2540 = vst [vmem:[%s2175] ss:$4 sm:$0xff] %v1667
  %2541 = vst [vmem:[%s2177] ss:$4 sm:$0xff] %v2048
  %2542 = vst [vmem:[%s2179] ss:$4 sm:$0xff] %v2049
  %2543 = vst [vmem:[%s2181] ss:$4 sm:$0xff] %v1668
  %2544 = vst [vmem:[%s2183] ss:$4 sm:$0xff] %v2050
  %v2545 = vld.sshfl [vmem:[#allocation1] sm:$0xff pattern:$0x73625140]
  %v2546 = vld.sshfl [vmem:[#allocation1 + $0x20] sm:$0xff pattern:$0x73625140]
  %2547 = vst [vmem:[#allocation1] ss:$4 sm:$0xff] %v2051
  %2548 = vst [vmem:[%s2171] ss:$4 sm:$0xff] %v2052
  %2549 = vst [vmem:[%s2173] ss:$4 sm:$0xff] %v1669
  %2550 = vst [vmem:[%s2175] ss:$4 sm:$0xff] %v2053
  %2551 = vst [vmem:[%s2177] ss:$4 sm:$0xff] %v2054
  %2552 = vst [vmem:[%s2179] ss:$4 sm:$0xff] %v1670
  %2553 = vst [vmem:[%s2181] ss:$4 sm:$0xff] %v2055
  %2554 = vst [vmem:[%s2183] ss:$4 sm:$0xff] %v2056
  %v2555 = vld.sshfl [vmem:[#allocation1] sm:$0xff pattern:$0x73625140]
  %v2556 = vld.sshfl [vmem:[#allocation1 + $0x20] sm:$0xff pattern:$0x73625140]
  %2557 = vst [vmem:[#allocation1] ss:$4 sm:$0xff] %v2057
  %2558 = vst [vmem:[%s2171] ss:$4 sm:$0xff] %v1671
  %2559 = vst [vmem:[%s2173] ss:$4 sm:$0xff] %v2058
  %2560 = vst [vmem:[%s2175] ss:$4 sm:$0xff] %v2059
  %2561 = vst [vmem:[%s2177] ss:$4 sm:$0xff] %v1672
  %2562 = vst [vmem:[%s2179] ss:$4 sm:$0xff] %v2060
  %2563 = vst [vmem:[%s2181] ss:$4 sm:$0xff] %v2061
  %2564 = vst [vmem:[%s2183] ss:$4 sm:$0xff] %v2062
  %v2565 = vld.sshfl [vmem:[#allocation1] sm:$0xff pattern:$0x73625140]
  %v2566 = vld.sshfl [vmem:[#allocation1 + $0x20] sm:$0xff pattern:$0x73625140]
  %2567 = vst [vmem:[#allocation1] ss:$4 sm:$0xff] %v1673
  %2568 = vst [vmem:[%s2171] ss:$4 sm:$0xff] %v2063
  %2569 = vst [vmem:[%s2173] ss:$4 sm:$0xff] %v2064
  %2570 = vst [vmem:[%s2175] ss:$4 sm:$0xff] %v1674
  %2571 = vst [vmem:[%s2177] ss:$4 sm:$0xff] %v2065
  %2572 = vst [vmem:[%s2179] ss:$4 sm:$0xff] %v2066
  %2573 = vst [vmem:[%s2181] ss:$4 sm:$0xff] %v2067
  %2574 = vst [vmem:[%s2183] ss:$4 sm:$0xff] %v1675
  %v2575 = vld.sshfl [vmem:[#allocation1] sm:$0xff pattern:$0x73625140]
  %v2576 = vld.sshfl [vmem:[#allocation1 + $0x20] sm:$0xff pattern:$0x73625140]
  %2577 = vst [vmem:[#allocation1] ss:$4 sm:$0xff] %v2068
  %2578 = vst [vmem:[%s2171] ss:$4 sm:$0xff] %v2069
  %2579 = vst [vmem:[%s2173] ss:$4 sm:$0xff] %v1676
  %2580 = vst [vmem:[%s2175] ss:$4 sm:$0xff] %v2070
  %2581 = vst [vmem:[%s2177] ss:$4 sm:$0xff] %v2071
  %2582 = vst [vmem:[%s2179] ss:$4 sm:$0xff] %v2072
  %2583 = vst [vmem:[%s2181] ss:$4 sm:$0xff] %v1677
  %2584 = vst [vmem:[%s2183] ss:$4 sm:$0xff] %v2073
  %v2585 = vld.sshfl [vmem:[#allocation1] sm:$0xff pattern:$0x73625140]
  %v2586 = vld.sshfl [vmem:[#allocation1 + $0x20] sm:$0xff pattern:$0x73625140]
  %2587 = vst [vmem:[#allocation1] ss:$4 sm:$0xff] %v2074
  %2588 = vst [vmem:[%s2171] ss:$4 sm:$0xff] %v1678
  %2589 = vst [vmem:[%s2173] ss:$4 sm:$0xff] %v2075
  %2590 = vst [vmem:[%s2175] ss:$4 sm:$0xff] %v2076
  %2591 = vst [vmem:[%s2177] ss:$4 sm:$0xff] %v2077
  %2592 = vst [vmem:[%s2179] ss:$4 sm:$0xff] %v1679
  %2593 = vst [vmem:[%s2181] ss:$4 sm:$0xff] %v2078
  %2594 = vst [vmem:[%s2183] ss:$4 sm:$0xff] %v2079
  %v2595 = vld.sshfl [vmem:[#allocation1] sm:$0xff pattern:$0x73625140]
  %v2596 = vld.sshfl [vmem:[#allocation1 + $0x20] sm:$0xff pattern:$0x73625140]
  %2597 = vst [vmem:[#allocation1] ss:$4 sm:$0xff] %v1680
  %2598 = vst [vmem:[%s2171] ss:$4 sm:$0xff] %v2080
  %2599 = vst [vmem:[%s2173] ss:$4 sm:$0xff] %v2081
  %2600 = vst [vmem:[%s2175] ss:$4 sm:$0xff] %v2082
  %2601 = vst [vmem:[%s2177] ss:$4 sm:$0xff] %v1681
  %2602 = vst [vmem:[%s2179] ss:$4 sm:$0xff] %v2083
  %2603 = vst [vmem:[%s2181] ss:$4 sm:$0xff] %v2084
  %2604 = vst [vmem:[%s2183] ss:$4 sm:$0xff] %v1682
  %v2605 = vld.sshfl [vmem:[#allocation1] sm:$0xff pattern:$0x73625140]
  %v2606 = vld.sshfl [vmem:[#allocation1 + $0x20] sm:$0xff pattern:$0x73625140]
  %2607 = vst [vmem:[#allocation1] ss:$4 sm:$0xff] %v2085
  %2608 = vst [vmem:[%s2171] ss:$4 sm:$0xff] %v2086
  %2609 = vst [vmem:[%s2173] ss:$4 sm:$0xff] %v2087
  %2610 = vst [vmem:[%s2175] ss:$4 sm:$0xff] %v1683
  %2611 = vst [vmem:[%s2177] ss:$4 sm:$0xff] %v2088
  %2612 = vst [vmem:[%s2179] ss:$4 sm:$0xff] %v2089
  %2613 = vst [vmem:[%s2181] ss:$4 sm:$0xff] %v1684
  %2614 = vst [vmem:[%s2183] ss:$4 sm:$0xff] %v2090
  %v2615 = vld.sshfl [vmem:[#allocation1] sm:$0xff pattern:$0x73625140]
  %v2616 = vld.sshfl [vmem:[#allocation1 + $0x20] sm:$0xff pattern:$0x73625140]
  %2617 = vst [vmem:[#allocation1] ss:$4 sm:$0xff] %v2091
  %2618 = vst [vmem:[%s2171] ss:$4 sm:$0xff] %v2092
  %2619 = vst [vmem:[%s2173] ss:$4 sm:$0xff] %v1685
  %2620 = vst [vmem:[%s2175] ss:$4 sm:$0xff] %v2093
  %2621 = vst [vmem:[%s2177] ss:$4 sm:$0xff] %v2094
  %2622 = vst [vmem:[%s2179] ss:$4 sm:$0xff] %v1686
  %2623 = vst [vmem:[%s2181] ss:$4 sm:$0xff] %v2095
  %2624 = vst [vmem:[%s2183] ss:$4 sm:$0xff] %v2096
  %v2625 = vld.sshfl [vmem:[#allocation1] sm:$0xff pattern:$0x73625140]
  %v2626 = vld.sshfl [vmem:[#allocation1 + $0x20] sm:$0xff pattern:$0x73625140]
  %2627 = vst [vmem:[#allocation1] ss:$4 sm:$0xff] %v2097
  %2628 = vst [vmem:[%s2171] ss:$4 sm:$0xff] %v1687
  %2629 = vst [vmem:[%s2173] ss:$4 sm:$0xff] %v2098
  %2630 = vst [vmem:[%s2175] ss:$4 sm:$0xff] %v2099
  %2631 = vst [vmem:[%s2177] ss:$4 sm:$0xff] %v1688
  %2632 = vst [vmem:[%s2179] ss:$4 sm:$0xff] %v2100
  %2633 = vst [vmem:[%s2181] ss:$4 sm:$0xff] %v2101
  %2634 = vst [vmem:[%s2183] ss:$4 sm:$0xff] %v2102
  %v2635 = vld.sshfl [vmem:[#allocation1] sm:$0xff pattern:$0x73625140]
  %v2636 = vld.sshfl [vmem:[#allocation1 + $0x20] sm:$0xff pattern:$0x73625140]
  %2637 = vst [vmem:[#allocation1] ss:$4 sm:$0xff] %v1689
  %2638 = vst [vmem:[%s2171] ss:$4 sm:$0xff] %v2103
  %2639 = vst [vmem:[%s2173] ss:$4 sm:$0xff] %v2104
  %2640 = vst [vmem:[%s2175] ss:$4 sm:$0xff] %v1690
  %2641 = vst [vmem:[%s2177] ss:$4 sm:$0xff] %v2105
  %2642 = vst [vmem:[%s2179] ss:$4 sm:$0xff] %v2106
  %2643 = vst [vmem:[%s2181] ss:$4 sm:$0xff] %v2107
  %2644 = vst [vmem:[%s2183] ss:$4 sm:$0xff] %v1691
  %v2645 = vld.sshfl [vmem:[#allocation1] sm:$0xff pattern:$0x73625140]
  %v2646 = vld.sshfl [vmem:[#allocation1 + $0x20] sm:$0xff pattern:$0x73625140]
  %2647 = vst [vmem:[#allocation1] ss:$4 sm:$0xff] %v2108
  %2648 = vst [vmem:[%s2171] ss:$4 sm:$0xff] %v2109
  %2649 = vst [vmem:[%s2173] ss:$4 sm:$0xff] %v1692
  %2650 = vst [vmem:[%s2175] ss:$4 sm:$0xff] %v2110
  %2651 = vst [vmem:[%s2177] ss:$4 sm:$0xff] %v2111
  %2652 = vst [vmem:[%s2179] ss:$4 sm:$0xff] %v2112
  %2653 = vst [vmem:[%s2181] ss:$4 sm:$0xff] %v1693
  %2654 = vst [vmem:[%s2183] ss:$4 sm:$0xff] %v2113
  %v2655 = vld.sshfl [vmem:[#allocation1] sm:$0xff pattern:$0x73625140]
  %v2656 = vld.sshfl [vmem:[#allocation1 + $0x20] sm:$0xff pattern:$0x73625140]
  %2657 = vst [vmem:[#allocation1] ss:$4 sm:$0xff] %v2114
  %2658 = vst [vmem:[%s2171] ss:$4 sm:$0xff] %v1694
  %2659 = vst [vmem:[%s2173] ss:$4 sm:$0xff] %v2115
  %2660 = vst [vmem:[%s2175] ss:$4 sm:$0xff] %v2116
  %2661 = vst [vmem:[%s2177] ss:$4 sm:$0xff] %v2117
  %2662 = vst [vmem:[%s2179] ss:$4 sm:$0xff] %v1695
  %2663 = vst [vmem:[%s2181] ss:$4 sm:$0xff] %v2118
  %2664 = vst [vmem:[%s2183] ss:$4 sm:$0xff] %v2119
  %v2665 = vld.sshfl [vmem:[#allocation1] sm:$0xff pattern:$0x73625140]
  %v2666 = vld.sshfl [vmem:[#allocation1 + $0x20] sm:$0xff pattern:$0x73625140]
  %2667 = vst [vmem:[#allocation1] ss:$4 sm:$0xff] %v1696
  %2668 = vst [vmem:[%s2171] ss:$4 sm:$0xff] %v2120
  %2669 = vst [vmem:[%s2173] ss:$4 sm:$0xff] %v2121
  %2670 = vst [vmem:[%s2175] ss:$4 sm:$0xff] %v2122
  %2671 = vst [vmem:[%s2177] ss:$4 sm:$0xff] %v1697
  %2672 = vst [vmem:[%s2179] ss:$4 sm:$0xff] %v2123
  %2673 = vst [vmem:[%s2181] ss:$4 sm:$0xff] %v2124
  %2674 = vst [vmem:[%s2183] ss:$4 sm:$0xff] %v1698
  %v2675 = vld.sshfl [vmem:[#allocation1] sm:$0xff pattern:$0x73625140]
  %v2676 = vld.sshfl [vmem:[#allocation1 + $0x20] sm:$0xff pattern:$0x73625140]
  %2677 = vst [vmem:[#allocation1] ss:$4 sm:$0xff] %v2125
  %2678 = vst [vmem:[%s2171] ss:$4 sm:$0xff] %v2126
  %2679 = vst [vmem:[%s2173] ss:$4 sm:$0xff] %v2127
  %2680 = vst [vmem:[%s2175] ss:$4 sm:$0xff] %v1699
  %2681 = vst [vmem:[%s2177] ss:$4 sm:$0xff] %v2128
  %2682 = vst [vmem:[%s2179] ss:$4 sm:$0xff] %v2129
  %2683 = vst [vmem:[%s2181] ss:$4 sm:$0xff] %v1700
  %2684 = vst [vmem:[%s2183] ss:$4 sm:$0xff] %v2130
  %v2685 = vld.sshfl [vmem:[#allocation1] sm:$0xff pattern:$0x73625140]
  %v2686 = vld.sshfl [vmem:[#allocation1 + $0x20] sm:$0xff pattern:$0x73625140]
  %2687 = vst [vmem:[#allocation1] ss:$4 sm:$0xff] %v2131
  %2688 = vst [vmem:[%s2171] ss:$4 sm:$0xff] %v2132
  %2689 = vst [vmem:[%s2173] ss:$4 sm:$0xff] %v1701
  %2690 = vst [vmem:[%s2175] ss:$4 sm:$0xff] %v2133
  %2691 = vst [vmem:[%s2177] ss:$4 sm:$0xff] %v2134
  %2692 = vst [vmem:[%s2179] ss:$4 sm:$0xff] %v1702
  %2693 = vst [vmem:[%s2181] ss:$4 sm:$0xff] %v2135
  %2694 = vst [vmem:[%s2183] ss:$4 sm:$0xff] %v2136
  %v2695 = vld.sshfl [vmem:[#allocation1] sm:$0xff pattern:$0x73625140]
  %v2696 = vld.sshfl [vmem:[#allocation1 + $0x20] sm:$0xff pattern:$0x73625140]
  %2697 = vst [vmem:[#allocation1] ss:$4 sm:$0xff] %v2137
  %2698 = vst [vmem:[%s2171] ss:$4 sm:$0xff] %v1703
  %2699 = vst [vmem:[%s2173] ss:$4 sm:$0xff] %v2138
  %2700 = vst [vmem:[%s2175] ss:$4 sm:$0xff] %v2139
  %2701 = vst [vmem:[%s2177] ss:$4 sm:$0xff] %v1704
  %2702 = vst [vmem:[%s2179] ss:$4 sm:$0xff] %v2140
  %2703 = vst [vmem:[%s2181] ss:$4 sm:$0xff] %v2141
  %2704 = vst [vmem:[%s2183] ss:$4 sm:$0xff] %v2142
  %v2705 = vld.sshfl [vmem:[#allocation1] sm:$0xff pattern:$0x73625140]
  %v2706 = vld.sshfl [vmem:[#allocation1 + $0x20] sm:$0xff pattern:$0x73625140]
  %2707 = vst [vmem:[#allocation1] ss:$4 sm:$0xff] %v1705
  %2708 = vst [vmem:[%s2171] ss:$4 sm:$0xff] %v2143
  %2709 = vst [vmem:[%s2173] ss:$4 sm:$0xff] %v2144
  %2710 = vst [vmem:[%s2175] ss:$4 sm:$0xff] %v1706
  %2711 = vst [vmem:[%s2177] ss:$4 sm:$0xff] %v2145
  %2712 = vst [vmem:[%s2179] ss:$4 sm:$0xff] %v2146
  %2713 = vst [vmem:[%s2181] ss:$4 sm:$0xff] %v2147
  %2714 = vst [vmem:[%s2183] ss:$4 sm:$0xff] %v1707
  %v2715 = vld.sshfl [vmem:[#allocation1] sm:$0xff pattern:$0x73625140]
  %v2716 = vld.sshfl [vmem:[#allocation1 + $0x20] sm:$0xff pattern:$0x73625140]
  %2717 = vst [vmem:[#allocation1] ss:$4 sm:$0xff] %v2148
  %2718 = vst [vmem:[%s2171] ss:$4 sm:$0xff] %v2149
  %2719 = vst [vmem:[%s2173] ss:$4 sm:$0xff] %v1708
  %2720 = vst [vmem:[%s2175] ss:$4 sm:$0xff] %v2150
  %2721 = vst [vmem:[%s2177] ss:$4 sm:$0xff] %v2151
  %2722 = vst [vmem:[%s2179] ss:$4 sm:$0xff] %v2152
  %2723 = vst [vmem:[%s2181] ss:$4 sm:$0xff] %v1709
  %2724 = vst [vmem:[%s2183] ss:$4 sm:$0xff] %v2153
  %v2725 = vld.sshfl [vmem:[#allocation1] sm:$0xff pattern:$0x73625140]
  %v2726 = vld.sshfl [vmem:[#allocation1 + $0x20] sm:$0xff pattern:$0x73625140]
  %2727 = vst [vmem:[#allocation1] ss:$4 sm:$0xff] %v2154
  %2728 = vst [vmem:[%s2171] ss:$4 sm:$0xff] %v1710
  %2729 = vst [vmem:[%s2173] ss:$4 sm:$0xff] %v2155
  %2730 = vst [vmem:[%s2175] ss:$4 sm:$0xff] %v2156
  %2731 = vst [vmem:[%s2177] ss:$4 sm:$0xff] %v2157
  %2732 = vst [vmem:[%s2179] ss:$4 sm:$0xff] %v1711
  %2733 = vst [vmem:[%s2181] ss:$4 sm:$0xff] %v2158
  %2734 = vst [vmem:[%s2183] ss:$4 sm:$0xff] %v2159
  %v2735 = vld.sshfl [vmem:[#allocation1] sm:$0xff pattern:$0x73625140]
  %v2736 = vld.sshfl [vmem:[#allocation1 + $0x20] sm:$0xff pattern:$0x73625140]
  %vm2737 = vcmask 392192
  %v2738 = vsel %vm2737, %v2185, 0
  %v2740 = vsel %vm2737, %v2186, 0
  %v2742 = vsel %vm2737, %v2195, 0
  %v2744 = vsel %vm2737, %v2196, 0
  %v2746 = vsel %vm2737, %v2205, 0
  %v2748 = vsel %vm2737, %v2206, 0
  %v2750 = vsel %vm2737, %v2215, 0
  %v2752 = vsel %vm2737, %v2216, 0
  %v2754 = vsel %vm2737, %v2225, 0
  %v2756 = vsel %vm2737, %v2226, 0
  %v2758 = vsel %vm2737, %v2235, 0
  %v2760 = vsel %vm2737, %v2236, 0
  %v2762 = vsel %vm2737, %v2245, 0
  %v2764 = vsel %vm2737, %v2246, 0
  %v2766 = vsel %vm2737, %v2255, 0
  %v2768 = vsel %vm2737, %v2256, 0
  %v2770 = vsel %vm2737, %v2265, 0
  %v2772 = vsel %vm2737, %v2266, 0
  %v2774 = vsel %vm2737, %v2275, 0
  %v2776 = vsel %vm2737, %v2276, 0
  %v2778 = vsel %vm2737, %v2285, 0
  %v2780 = vsel %vm2737, %v2286, 0
  %v2782 = vsel %vm2737, %v2295, 0
  %v2784 = vsel %vm2737, %v2296, 0
  %v2786 = vsel %vm2737, %v2305, 0
  %v2788 = vsel %vm2737, %v2306, 0
  %v2790 = vsel %vm2737, %v2315, 0
  %v2792 = vsel %vm2737, %v2316, 0
  %v2794 = vsel %vm2737, %v2325, 0
  %v2796 = vsel %vm2737, %v2326, 0
  %v2798 = vsel %vm2737, %v2335, 0
  %v2800 = vsel %vm2737, %v2336, 0
  %v2802 = vsel %vm2737, %v2345, 0
  %v2804 = vsel %vm2737, %v2346, 0
  %v2806 = vsel %vm2737, %v2355, 0
  %v2808 = vsel %vm2737, %v2356, 0
  %v2810 = vsel %vm2737, %v2365, 0
  %v2812 = vsel %vm2737, %v2366, 0
  %v2814 = vsel %vm2737, %v2375, 0
  %v2816 = vsel %vm2737, %v2376, 0
  %v2818 = vsel %vm2737, %v2385, 0
  %v2820 = vsel %vm2737, %v2386, 0
  %v2822 = vsel %vm2737, %v2395, 0
  %v2824 = vsel %vm2737, %v2396, 0
  %v2826 = vsel %vm2737, %v2405, 0
  %v2828 = vsel %vm2737, %v2406, 0
  %v2830 = vsel %vm2737, %v2415, 0
  %v2832 = vsel %vm2737, %v2416, 0
  %v2834 = vsel %vm2737, %v2425, 0
  %v2836 = vsel %vm2737, %v2426, 0
  %v2838 = vsel %vm2737, %v2435, 0
  %v2840 = vsel %vm2737, %v2436, 0
  %v2842 = vsel %vm2737, %v2445, 0
  %v2844 = vsel %vm2737, %v2446, 0
  %v2846 = vsel %vm2737, %v2455, 0
  %v2848 = vsel %vm2737, %v2456, 0
  %v2850 = vsel %vm2737, %v2465, 0
  %v2852 = vsel %vm2737, %v2466, 0
  %v2854 = vsel %vm2737, %v2475, 0
  %v2856 = vsel %vm2737, %v2476, 0
  %v2858 = vsel %vm2737, %v2485, 0
  %v2860 = vsel %vm2737, %v2486, 0
  %v2862 = vsel %vm2737, %v2495, 0
  %v2864 = vsel %vm2737, %v2496, 0
  %v2866 = vsel %vm2737, %v2505, 0
  %v2868 = vsel %vm2737, %v2506, 0
  %v2870 = vsel %vm2737, %v2515, 0
  %v2872 = vsel %vm2737, %v2516, 0
  %v2874 = vsel %vm2737, %v2525, 0
  %v2876 = vsel %vm2737, %v2526, 0
  %v2878 = vsel %vm2737, %v2535, 0
  %v2880 = vsel %vm2737, %v2536, 0
  %v2882 = vsel %vm2737, %v2545, 0
  %v2884 = vsel %vm2737, %v2546, 0
  %v2886 = vsel %vm2737, %v2555, 0
  %v2888 = vsel %vm2737, %v2556, 0
  %v2890 = vsel %vm2737, %v2565, 0
  %v2892 = vsel %vm2737, %v2566, 0
  %v2894 = vsel %vm2737, %v2575, 0
  %v2896 = vsel %vm2737, %v2576, 0
  %v2898 = vsel %vm2737, %v2585, 0
  %v2900 = vsel %vm2737, %v2586, 0
  %v2902 = vsel %vm2737, %v2595, 0
  %v2904 = vsel %vm2737, %v2596, 0
  %v2906 = vsel %vm2737, %v2605, 0
  %v2908 = vsel %vm2737, %v2606, 0
  %v2910 = vsel %vm2737, %v2615, 0
  %v2912 = vsel %vm2737, %v2616, 0
  %v2914 = vsel %vm2737, %v2625, 0
  %v2916 = vsel %vm2737, %v2626, 0
  %v2918 = vsel %vm2737, %v2635, 0
  %v2920 = vsel %vm2737, %v2636, 0
  %v2922 = vsel %vm2737, %v2645, 0
  %v2924 = vsel %vm2737, %v2646, 0
  %v2926 = vsel %vm2737, %v2655, 0
  %v2928 = vsel %vm2737, %v2656, 0
  %v2930 = vsel %vm2737, %v2665, 0
  %v2932 = vsel %vm2737, %v2666, 0
  %v2934 = vsel %vm2737, %v2675, 0
  %v2936 = vsel %vm2737, %v2676, 0
  %v2938 = vsel %vm2737, %v2685, 0
  %v2940 = vsel %vm2737, %v2686, 0
  %v2942 = vsel %vm2737, %v2695, 0
  %v2944 = vsel %vm2737, %v2696, 0
  %v2946 = vsel %vm2737, %v2705, 0
  %v2948 = vsel %vm2737, %v2706, 0
  %v2950 = vsel %vm2737, %v2715, 0
  %v2952 = vsel %vm2737, %v2716, 0
  %v2954 = vsel %vm2737, %v2725, 0
  %v2956 = vsel %vm2737, %v2726, 0
  %v2958 = vsel %vm2737, %v2735, 0
  %v2960 = vsel %vm2737, %v2736, 0
  %2962 = vmatpush.msra.mxu0 0.0
  %2963 = vmatpush.msra.mxu0 0.0
  %2964 = vmatpush.msra.mxu0 0.0
  %2965 = vmatpush.msra.mxu0 0.0
  %2966 = vmatpush.msra.mxu0 0.0
  %2967 = vmatpush.msra.mxu0 0.0
  %2968 = vmatpush.msra.mxu0 0.0
  %2969 = vmatpush.msra.mxu0 0.0
  %2970 = vmatpush.msra.mxu0 0.0
  %2971 = vmatpush.msra.mxu0 0.0
  %2972 = vmatpush.msra.mxu0 %v2165
  %2973 = vmatpush.msra.mxu0 %v2164
  %2974 = vmatpush.msra.mxu0 %v2163
  %2975 = vmatpush.msra.mxu0 %v2162
  %2976 = vmatpush.msra.mxu0 %v2161
  %2977 = vmatpush.msra.mxu0 %v2160
  %2978 = vmatmul.f32.gmra.mxu0 %v2738
  %v2979 = vpop.f32.mrf.mxu0
  %v2980 = vadd.f32 %v2168, %v2979
  %2981 = vmatmul.f32.gmra.mxu0 %v2740
  %v2982 = vpop.f32.mrf.mxu0
  %v2983 = vadd.f32 %v2168, %v2982
  %2984 = vmatmul.f32.gmra.mxu0 %v2742
  %v2985 = vpop.f32.mrf.mxu0
  %v2986 = vadd.f32 %v2168, %v2985
  %2987 = vmatmul.f32.gmra.mxu0 %v2744
  %v2988 = vpop.f32.mrf.mxu0
  %v2989 = vadd.f32 %v2168, %v2988
  %2990 = vmatmul.f32.gmra.mxu0 %v2746
  %v2991 = vpop.f32.mrf.mxu0
  %v2992 = vadd.f32 %v2168, %v2991
  %2993 = vmatmul.f32.gmra.mxu0 %v2748
  %v2994 = vpop.f32.mrf.mxu0
  %v2995 = vadd.f32 %v2168, %v2994
  %2996 = vmatmul.f32.gmra.mxu0 %v2750
  %v2997 = vpop.f32.mrf.mxu0
  %v2998 = vadd.f32 %v2168, %v2997
  %2999 = vmatmul.f32.gmra.mxu0 %v2752
  %v3000 = vpop.f32.mrf.mxu0
  %v3001 = vadd.f32 %v2168, %v3000
  %3002 = vmatmul.f32.gmra.mxu0 %v2754
  %v3003 = vpop.f32.mrf.mxu0
  %v3004 = vadd.f32 %v2168, %v3003
  %3005 = vmatmul.f32.gmra.mxu0 %v2756
  %v3006 = vpop.f32.mrf.mxu0
  %v3007 = vadd.f32 %v2168, %v3006
  %3008 = vmatmul.f32.gmra.mxu0 %v2758
  %v3009 = vpop.f32.mrf.mxu0
  %v3010 = vadd.f32 %v2168, %v3009
  %3011 = vmatmul.f32.gmra.mxu0 %v2760
  %v3012 = vpop.f32.mrf.mxu0
  %v3013 = vadd.f32 %v2168, %v3012
  %3014 = vmatmul.f32.gmra.mxu0 %v2762
  %v3015 = vpop.f32.mrf.mxu0
  %v3016 = vadd.f32 %v2168, %v3015
  %3017 = vmatmul.f32.gmra.mxu0 %v2764
  %v3018 = vpop.f32.mrf.mxu0
  %v3019 = vadd.f32 %v2168, %v3018
  %3020 = vmatmul.f32.gmra.mxu0 %v2766
  %v3021 = vpop.f32.mrf.mxu0
  %v3022 = vadd.f32 %v2168, %v3021
  %3023 = vmatmul.f32.gmra.mxu0 %v2768
  %v3024 = vpop.f32.mrf.mxu0
  %v3025 = vadd.f32 %v2168, %v3024
  %3026 = vmatmul.f32.gmra.mxu0 %v2770
  %v3027 = vpop.f32.mrf.mxu0
  %v3028 = vadd.f32 %v2168, %v3027
  %3029 = vmatmul.f32.gmra.mxu0 %v2772
  %v3030 = vpop.f32.mrf.mxu0
  %v3031 = vadd.f32 %v2168, %v3030
  %3032 = vmatmul.f32.gmra.mxu0 %v2774
  %v3033 = vpop.f32.mrf.mxu0
  %v3034 = vadd.f32 %v2168, %v3033
  %3035 = vmatmul.f32.gmra.mxu0 %v2776
  %v3036 = vpop.f32.mrf.mxu0
  %v3037 = vadd.f32 %v2168, %v3036
  %3038 = vmatmul.f32.gmra.mxu0 %v2778
  %v3039 = vpop.f32.mrf.mxu0
  %v3040 = vadd.f32 %v2168, %v3039
  %3041 = vmatmul.f32.gmra.mxu0 %v2780
  %v3042 = vpop.f32.mrf.mxu0
  %v3043 = vadd.f32 %v2168, %v3042
  %3044 = vmatmul.f32.gmra.mxu0 %v2782
  %v3045 = vpop.f32.mrf.mxu0
  %v3046 = vadd.f32 %v2168, %v3045
  %3047 = vmatmul.f32.gmra.mxu0 %v2784
  %v3048 = vpop.f32.mrf.mxu0
  %v3049 = vadd.f32 %v2168, %v3048
  %3050 = vmatmul.f32.gmra.mxu0 %v2786
  %v3051 = vpop.f32.mrf.mxu0
  %v3052 = vadd.f32 %v2168, %v3051
  %3053 = vmatmul.f32.gmra.mxu0 %v2788
  %v3054 = vpop.f32.mrf.mxu0
  %v3055 = vadd.f32 %v2168, %v3054
  %3056 = vmatmul.f32.gmra.mxu0 %v2790
  %v3057 = vpop.f32.mrf.mxu0
  %v3058 = vadd.f32 %v2168, %v3057
  %3059 = vmatmul.f32.gmra.mxu0 %v2792
  %v3060 = vpop.f32.mrf.mxu0
  %v3061 = vadd.f32 %v2168, %v3060
  %3062 = vmatmul.f32.gmra.mxu0 %v2794
  %v3063 = vpop.f32.mrf.mxu0
  %v3064 = vadd.f32 %v2168, %v3063
  %3065 = vmatmul.f32.gmra.mxu0 %v2796
  %v3066 = vpop.f32.mrf.mxu0
  %v3067 = vadd.f32 %v2168, %v3066
  %3068 = vmatmul.f32.gmra.mxu0 %v2798
  %v3069 = vpop.f32.mrf.mxu0
  %v3070 = vadd.f32 %v2168, %v3069
  %3071 = vmatmul.f32.gmra.mxu0 %v2800
  %v3072 = vpop.f32.mrf.mxu0
  %v3073 = vadd.f32 %v2168, %v3072
  %3074 = vmatmul.f32.gmra.mxu0 %v2802
  %v3075 = vpop.f32.mrf.mxu0
  %v3076 = vadd.f32 %v2168, %v3075
  %3077 = vmatmul.f32.gmra.mxu0 %v2804
  %v3078 = vpop.f32.mrf.mxu0
  %v3079 = vadd.f32 %v2168, %v3078
  %3080 = vmatmul.f32.gmra.mxu0 %v2806
  %v3081 = vpop.f32.mrf.mxu0
  %v3082 = vadd.f32 %v2168, %v3081
  %3083 = vmatmul.f32.gmra.mxu0 %v2808
  %v3084 = vpop.f32.mrf.mxu0
  %v3085 = vadd.f32 %v2168, %v3084
  %3086 = vmatmul.f32.gmra.mxu0 %v2810
  %v3087 = vpop.f32.mrf.mxu0
  %v3088 = vadd.f32 %v2168, %v3087
  %3089 = vmatmul.f32.gmra.mxu0 %v2812
  %v3090 = vpop.f32.mrf.mxu0
  %v3091 = vadd.f32 %v2168, %v3090
  %3092 = vmatmul.f32.gmra.mxu0 %v2814
  %v3093 = vpop.f32.mrf.mxu0
  %v3094 = vadd.f32 %v2168, %v3093
  %3095 = vmatmul.f32.gmra.mxu0 %v2816
  %v3096 = vpop.f32.mrf.mxu0
  %v3097 = vadd.f32 %v2168, %v3096
  %3098 = vmatmul.f32.gmra.mxu0 %v2818
  %v3099 = vpop.f32.mrf.mxu0
  %v3100 = vadd.f32 %v2168, %v3099
  %3101 = vmatmul.f32.gmra.mxu0 %v2820
  %v3102 = vpop.f32.mrf.mxu0
  %v3103 = vadd.f32 %v2168, %v3102
  %3104 = vmatmul.f32.gmra.mxu0 %v2822
  %v3105 = vpop.f32.mrf.mxu0
  %v3106 = vadd.f32 %v2168, %v3105
  %3107 = vmatmul.f32.gmra.mxu0 %v2824
  %v3108 = vpop.f32.mrf.mxu0
  %v3109 = vadd.f32 %v2168, %v3108
  %3110 = vmatmul.f32.gmra.mxu0 %v2826
  %v3111 = vpop.f32.mrf.mxu0
  %v3112 = vadd.f32 %v2168, %v3111
  %3113 = vmatmul.f32.gmra.mxu0 %v2828
  %v3114 = vpop.f32.mrf.mxu0
  %v3115 = vadd.f32 %v2168, %v3114
  %3116 = vmatmul.f32.gmra.mxu0 %v2830
  %v3117 = vpop.f32.mrf.mxu0
  %v3118 = vadd.f32 %v2168, %v3117
  %3119 = vmatmul.f32.gmra.mxu0 %v2832
  %v3120 = vpop.f32.mrf.mxu0
  %v3121 = vadd.f32 %v2168, %v3120
  %3122 = vmatmul.f32.gmra.mxu0 %v2834
  %v3123 = vpop.f32.mrf.mxu0
  %v3124 = vadd.f32 %v2168, %v3123
  %3125 = vmatmul.f32.gmra.mxu0 %v2836
  %v3126 = vpop.f32.mrf.mxu0
  %v3127 = vadd.f32 %v2168, %v3126
  %3128 = vmatmul.f32.gmra.mxu0 %v2838
  %v3129 = vpop.f32.mrf.mxu0
  %v3130 = vadd.f32 %v2168, %v3129
  %3131 = vmatmul.f32.gmra.mxu0 %v2840
  %v3132 = vpop.f32.mrf.mxu0
  %v3133 = vadd.f32 %v2168, %v3132
  %3134 = vmatmul.f32.gmra.mxu0 %v2842
  %v3135 = vpop.f32.mrf.mxu0
  %v3136 = vadd.f32 %v2168, %v3135
  %3137 = vmatmul.f32.gmra.mxu0 %v2844
  %v3138 = vpop.f32.mrf.mxu0
  %v3139 = vadd.f32 %v2168, %v3138
  %3140 = vmatmul.f32.gmra.mxu0 %v2846
  %v3141 = vpop.f32.mrf.mxu0
  %v3142 = vadd.f32 %v2168, %v3141
  %3143 = vmatmul.f32.gmra.mxu0 %v2848
  %v3144 = vpop.f32.mrf.mxu0
  %v3145 = vadd.f32 %v2168, %v3144
  %3146 = vmatmul.f32.gmra.mxu0 %v2850
  %v3147 = vpop.f32.mrf.mxu0
  %v3148 = vadd.f32 %v2168, %v3147
  %3149 = vmatmul.f32.gmra.mxu0 %v2852
  %v3150 = vpop.f32.mrf.mxu0
  %v3151 = vadd.f32 %v2168, %v3150
  %3152 = vmatmul.f32.gmra.mxu0 %v2854
  %v3153 = vpop.f32.mrf.mxu0
  %v3154 = vadd.f32 %v2168, %v3153
  %3155 = vmatmul.f32.gmra.mxu0 %v2856
  %v3156 = vpop.f32.mrf.mxu0
  %v3157 = vadd.f32 %v2168, %v3156
  %3158 = vmatmul.f32.gmra.mxu0 %v2858
  %v3159 = vpop.f32.mrf.mxu0
  %v3160 = vadd.f32 %v2168, %v3159
  %3161 = vmatmul.f32.gmra.mxu0 %v2860
  %v3162 = vpop.f32.mrf.mxu0
  %v3163 = vadd.f32 %v2168, %v3162
  %3164 = vmatmul.f32.gmra.mxu0 %v2862
  %v3165 = vpop.f32.mrf.mxu0
  %v3166 = vadd.f32 %v2168, %v3165
  %3167 = vmatmul.f32.gmra.mxu0 %v2864
  %v3168 = vpop.f32.mrf.mxu0
  %v3169 = vadd.f32 %v2168, %v3168
  %3170 = vmatmul.f32.gmra.mxu0 %v2866
  %v3171 = vpop.f32.mrf.mxu0
  %v3172 = vadd.f32 %v2168, %v3171
  %3173 = vmatmul.f32.gmra.mxu0 %v2868
  %v3174 = vpop.f32.mrf.mxu0
  %v3175 = vadd.f32 %v2168, %v3174
  %3176 = vmatmul.f32.gmra.mxu0 %v2870
  %v3177 = vpop.f32.mrf.mxu0
  %v3178 = vadd.f32 %v2168, %v3177
  %3179 = vmatmul.f32.gmra.mxu0 %v2872
  %v3180 = vpop.f32.mrf.mxu0
  %v3181 = vadd.f32 %v2168, %v3180
  %3182 = vmatmul.f32.gmra.mxu0 %v2874
  %v3183 = vpop.f32.mrf.mxu0
  %v3184 = vadd.f32 %v2168, %v3183
  %3185 = vmatmul.f32.gmra.mxu0 %v2876
  %v3186 = vpop.f32.mrf.mxu0
  %v3187 = vadd.f32 %v2168, %v3186
  %3188 = vmatmul.f32.gmra.mxu0 %v2878
  %v3189 = vpop.f32.mrf.mxu0
  %v3190 = vadd.f32 %v2168, %v3189
  %3191 = vmatmul.f32.gmra.mxu0 %v2880
  %v3192 = vpop.f32.mrf.mxu0
  %v3193 = vadd.f32 %v2168, %v3192
  %3194 = vmatmul.f32.gmra.mxu0 %v2882
  %v3195 = vpop.f32.mrf.mxu0
  %v3196 = vadd.f32 %v2168, %v3195
  %3197 = vmatmul.f32.gmra.mxu0 %v2884
  %v3198 = vpop.f32.mrf.mxu0
  %v3199 = vadd.f32 %v2168, %v3198
  %3200 = vmatmul.f32.gmra.mxu0 %v2886
  %v3201 = vpop.f32.mrf.mxu0
  %v3202 = vadd.f32 %v2168, %v3201
  %3203 = vmatmul.f32.gmra.mxu0 %v2888
  %v3204 = vpop.f32.mrf.mxu0
  %v3205 = vadd.f32 %v2168, %v3204
  %3206 = vmatmul.f32.gmra.mxu0 %v2890
  %v3207 = vpop.f32.mrf.mxu0
  %v3208 = vadd.f32 %v2168, %v3207
  %3209 = vmatmul.f32.gmra.mxu0 %v2892
  %v3210 = vpop.f32.mrf.mxu0
  %v3211 = vadd.f32 %v2168, %v3210
  %3212 = vmatmul.f32.gmra.mxu0 %v2894
  %v3213 = vpop.f32.mrf.mxu0
  %v3214 = vadd.f32 %v2168, %v3213
  %3215 = vmatmul.f32.gmra.mxu0 %v2896
  %v3216 = vpop.f32.mrf.mxu0
  %v3217 = vadd.f32 %v2168, %v3216
  %3218 = vmatmul.f32.gmra.mxu0 %v2898
  %v3219 = vpop.f32.mrf.mxu0
  %v3220 = vadd.f32 %v2168, %v3219
  %3221 = vmatmul.f32.gmra.mxu0 %v2900
  %v3222 = vpop.f32.mrf.mxu0
  %v3223 = vadd.f32 %v2168, %v3222
  %3224 = vmatmul.f32.gmra.mxu0 %v2902
  %v3225 = vpop.f32.mrf.mxu0
  %v3226 = vadd.f32 %v2168, %v3225
  %3227 = vmatmul.f32.gmra.mxu0 %v2904
  %v3228 = vpop.f32.mrf.mxu0
  %v3229 = vadd.f32 %v2168, %v3228
  %3230 = vmatmul.f32.gmra.mxu0 %v2906
  %v3231 = vpop.f32.mrf.mxu0
  %v3232 = vadd.f32 %v2168, %v3231
  %3233 = vmatmul.f32.gmra.mxu0 %v2908
  %v3234 = vpop.f32.mrf.mxu0
  %v3235 = vadd.f32 %v2168, %v3234
  %3236 = vmatmul.f32.gmra.mxu0 %v2910
  %v3237 = vpop.f32.mrf.mxu0
  %v3238 = vadd.f32 %v2168, %v3237
  %3239 = vmatmul.f32.gmra.mxu0 %v2912
  %v3240 = vpop.f32.mrf.mxu0
  %v3241 = vadd.f32 %v2168, %v3240
  %3242 = vmatmul.f32.gmra.mxu0 %v2914
  %v3243 = vpop.f32.mrf.mxu0
  %v3244 = vadd.f32 %v2168, %v3243
  %3245 = vmatmul.f32.gmra.mxu0 %v2916
  %v3246 = vpop.f32.mrf.mxu0
  %v3247 = vadd.f32 %v2168, %v3246
  %3248 = vmatmul.f32.gmra.mxu0 %v2918
  %v3249 = vpop.f32.mrf.mxu0
  %v3250 = vadd.f32 %v2168, %v3249
  %3251 = vmatmul.f32.gmra.mxu0 %v2920
  %v3252 = vpop.f32.mrf.mxu0
  %v3253 = vadd.f32 %v2168, %v3252
  %3254 = vmatmul.f32.gmra.mxu0 %v2922
  %v3255 = vpop.f32.mrf.mxu0
  %v3256 = vadd.f32 %v2168, %v3255
  %3257 = vmatmul.f32.gmra.mxu0 %v2924
  %v3258 = vpop.f32.mrf.mxu0
  %v3259 = vadd.f32 %v2168, %v3258
  %3260 = vmatmul.f32.gmra.mxu0 %v2926
  %v3261 = vpop.f32.mrf.mxu0
  %v3262 = vadd.f32 %v2168, %v3261
  %3263 = vmatmul.f32.gmra.mxu0 %v2928
  %v3264 = vpop.f32.mrf.mxu0
  %v3265 = vadd.f32 %v2168, %v3264
  %3266 = vmatmul.f32.gmra.mxu0 %v2930
  %v3267 = vpop.f32.mrf.mxu0
  %v3268 = vadd.f32 %v2168, %v3267
  %3269 = vmatmul.f32.gmra.mxu0 %v2932
  %v3270 = vpop.f32.mrf.mxu0
  %v3271 = vadd.f32 %v2168, %v3270
  %3272 = vmatmul.f32.gmra.mxu0 %v2934
  %v3273 = vpop.f32.mrf.mxu0
  %v3274 = vadd.f32 %v2168, %v3273
  %3275 = vmatmul.f32.gmra.mxu0 %v2936
  %v3276 = vpop.f32.mrf.mxu0
  %v3277 = vadd.f32 %v2168, %v3276
  %3278 = vmatmul.f32.gmra.mxu0 %v2938
  %v3279 = vpop.f32.mrf.mxu0
  %v3280 = vadd.f32 %v2168, %v3279
  %3281 = vmatmul.f32.gmra.mxu0 %v2940
  %v3282 = vpop.f32.mrf.mxu0
  %v3283 = vadd.f32 %v2168, %v3282
  %3284 = vmatmul.f32.gmra.mxu0 %v2942
  %v3285 = vpop.f32.mrf.mxu0
  %v3286 = vadd.f32 %v2168, %v3285
  %3287 = vmatmul.f32.gmra.mxu0 %v2944
  %v3288 = vpop.f32.mrf.mxu0
  %v3289 = vadd.f32 %v2168, %v3288
  %3290 = vmatmul.f32.gmra.mxu0 %v2946
  %v3291 = vpop.f32.mrf.mxu0
  %v3292 = vadd.f32 %v2168, %v3291
  %3293 = vmatmul.f32.gmra.mxu0 %v2948
  %v3294 = vpop.f32.mrf.mxu0
  %v3295 = vadd.f32 %v2168, %v3294
  %3296 = vmatmul.f32.gmra.mxu0 %v2950
  %v3297 = vpop.f32.mrf.mxu0
  %v3298 = vadd.f32 %v2168, %v3297
  %3299 = vmatmul.f32.gmra.mxu0 %v2952
  %v3300 = vpop.f32.mrf.mxu0
  %v3301 = vadd.f32 %v2168, %v3300
  %3302 = vmatmul.f32.gmra.mxu0 %v2954
  %v3303 = vpop.f32.mrf.mxu0
  %v3304 = vadd.f32 %v2168, %v3303
  %3305 = vmatmul.f32.gmra.mxu0 %v2956
  %v3306 = vpop.f32.mrf.mxu0
  %v3307 = vadd.f32 %v2168, %v3306
  %3308 = vmatmul.f32.gmra.mxu0 %v2958
  %v3309 = vpop.f32.mrf.mxu0
  %v3310 = vadd.f32 %v2168, %v3309
  %3311 = vmatmul.f32.gmra.mxu0 %v2960
  %v3312 = vpop.f32.mrf.mxu0
  %v3313 = vadd.f32 %v2168, %v3312
  %3314 = vdwg.mxu0
  %v3427 = vrot.slane %v2980, 2
  %v3428 = vrot.slane %v2980, 4
  %v3429 = vrot.slane %v2980, 6
  %v3430 = vrot.slane %v2983, 2
  %v3431 = vrot.slane %v2983, 4
  %v3432 = vrot.slane %v2983, 6
  %v3433 = vrot.slane %v2986, 2
  %v3434 = vrot.slane %v2986, 4
  %v3435 = vrot.slane %v2986, 6
  %v3436 = vrot.slane %v2989, 2
  %v3437 = vrot.slane %v2989, 4
  %v3438 = vrot.slane %v2989, 6
  %v3439 = vrot.slane %v2992, 2
  %v3440 = vrot.slane %v2992, 4
  %v3441 = vrot.slane %v2992, 6
  %v3442 = vrot.slane %v2995, 2
  %v3443 = vrot.slane %v2995, 4
  %v3444 = vrot.slane %v2995, 6
  %v3445 = vrot.slane %v2998, 2
  %v3446 = vrot.slane %v2998, 4
  %v3447 = vrot.slane %v2998, 6
  %v3448 = vrot.slane %v3001, 2
  %v3449 = vrot.slane %v3001, 4
  %v3450 = vrot.slane %v3001, 6
  %v3451 = vrot.slane %v3004, 2
  %v3452 = vrot.slane %v3004, 4
  %v3453 = vrot.slane %v3004, 6
  %v3454 = vrot.slane %v3007, 2
  %v3455 = vrot.slane %v3007, 4
  %v3456 = vrot.slane %v3007, 6
  %v3457 = vrot.slane %v3010, 2
  %v3458 = vrot.slane %v3010, 4
  %v3459 = vrot.slane %v3010, 6
  %v3460 = vrot.slane %v3013, 2
  %v3461 = vrot.slane %v3013, 4
  %v3462 = vrot.slane %v3013, 6
  %v3463 = vrot.slane %v3016, 2
  %v3464 = vrot.slane %v3016, 4
  %v3465 = vrot.slane %v3016, 6
  %v3466 = vrot.slane %v3019, 2
  %v3467 = vrot.slane %v3019, 4
  %v3468 = vrot.slane %v3019, 6
  %v3469 = vrot.slane %v3022, 2
  %v3470 = vrot.slane %v3022, 4
  %v3471 = vrot.slane %v3022, 6
  %v3472 = vrot.slane %v3025, 2
  %v3473 = vrot.slane %v3025, 4
  %v3474 = vrot.slane %v3025, 6
  %v3475 = vrot.slane %v3028, 2
  %v3476 = vrot.slane %v3028, 4
  %v3477 = vrot.slane %v3028, 6
  %v3478 = vrot.slane %v3031, 2
  %v3479 = vrot.slane %v3031, 4
  %v3480 = vrot.slane %v3031, 6
  %v3481 = vrot.slane %v3034, 2
  %v3482 = vrot.slane %v3034, 4
  %v3483 = vrot.slane %v3034, 6
  %v3484 = vrot.slane %v3037, 2
  %v3485 = vrot.slane %v3037, 4
  %v3486 = vrot.slane %v3037, 6
  %v3487 = vrot.slane %v3040, 2
  %v3488 = vrot.slane %v3040, 4
  %v3489 = vrot.slane %v3040, 6
  %v3490 = vrot.slane %v3043, 2
  %v3491 = vrot.slane %v3043, 4
  %v3492 = vrot.slane %v3043, 6
  %v3493 = vrot.slane %v3046, 2
  %v3494 = vrot.slane %v3046, 4
  %v3495 = vrot.slane %v3046, 6
  %v3496 = vrot.slane %v3049, 2
  %v3497 = vrot.slane %v3049, 4
  %v3498 = vrot.slane %v3049, 6
  %v3499 = vrot.slane %v3052, 2
  %v3500 = vrot.slane %v3052, 4
  %v3501 = vrot.slane %v3052, 6
  %v3502 = vrot.slane %v3055, 2
  %v3503 = vrot.slane %v3055, 4
  %v3504 = vrot.slane %v3055, 6
  %v3505 = vrot.slane %v3058, 2
  %v3506 = vrot.slane %v3058, 4
  %v3507 = vrot.slane %v3058, 6
  %v3508 = vrot.slane %v3061, 2
  %v3509 = vrot.slane %v3061, 4
  %v3510 = vrot.slane %v3061, 6
  %v3511 = vrot.slane %v3064, 2
  %v3512 = vrot.slane %v3064, 4
  %v3513 = vrot.slane %v3064, 6
  %v3514 = vrot.slane %v3067, 2
  %v3515 = vrot.slane %v3067, 4
  %v3516 = vrot.slane %v3067, 6
  %v3517 = vrot.slane %v3070, 2
  %v3518 = vrot.slane %v3070, 4
  %v3519 = vrot.slane %v3070, 6
  %v3520 = vrot.slane %v3073, 2
  %v3521 = vrot.slane %v3073, 4
  %v3522 = vrot.slane %v3073, 6
  %v3523 = vrot.slane %v3076, 2
  %v3524 = vrot.slane %v3076, 4
  %v3525 = vrot.slane %v3076, 6
  %v3526 = vrot.slane %v3079, 2
  %v3527 = vrot.slane %v3079, 4
  %v3528 = vrot.slane %v3079, 6
  %v3529 = vrot.slane %v3082, 2
  %v3530 = vrot.slane %v3082, 4
  %v3531 = vrot.slane %v3082, 6
  %v3532 = vrot.slane %v3085, 2
  %v3533 = vrot.slane %v3085, 4
  %v3534 = vrot.slane %v3085, 6
  %v3535 = vrot.slane %v3088, 2
  %v3536 = vrot.slane %v3088, 4
  %v3537 = vrot.slane %v3088, 6
  %v3538 = vrot.slane %v3091, 2
  %v3539 = vrot.slane %v3091, 4
  %v3540 = vrot.slane %v3091, 6
  %v3541 = vrot.slane %v3094, 2
  %v3542 = vrot.slane %v3094, 4
  %v3543 = vrot.slane %v3094, 6
  %v3544 = vrot.slane %v3097, 2
  %v3545 = vrot.slane %v3097, 4
  %v3546 = vrot.slane %v3097, 6
  %v3547 = vrot.slane %v3100, 2
  %v3548 = vrot.slane %v3100, 4
  %v3549 = vrot.slane %v3100, 6
  %v3550 = vrot.slane %v3103, 2
  %v3551 = vrot.slane %v3103, 4
  %v3552 = vrot.slane %v3103, 6
  %v3553 = vrot.slane %v3106, 2
  %v3554 = vrot.slane %v3106, 4
  %v3555 = vrot.slane %v3106, 6
  %v3556 = vrot.slane %v3109, 2
  %v3557 = vrot.slane %v3109, 4
  %v3558 = vrot.slane %v3109, 6
  %v3559 = vrot.slane %v3112, 2
  %v3560 = vrot.slane %v3112, 4
  %v3561 = vrot.slane %v3112, 6
  %v3562 = vrot.slane %v3115, 2
  %v3563 = vrot.slane %v3115, 4
  %v3564 = vrot.slane %v3115, 6
  %v3565 = vrot.slane %v3118, 2
  %v3566 = vrot.slane %v3118, 4
  %v3567 = vrot.slane %v3118, 6
  %v3568 = vrot.slane %v3121, 2
  %v3569 = vrot.slane %v3121, 4
  %v3570 = vrot.slane %v3121, 6
  %v3571 = vrot.slane %v3124, 2
  %v3572 = vrot.slane %v3124, 4
  %v3573 = vrot.slane %v3124, 6
  %v3574 = vrot.slane %v3127, 2
  %v3575 = vrot.slane %v3127, 4
  %v3576 = vrot.slane %v3127, 6
  %v3577 = vrot.slane %v3130, 2
  %v3578 = vrot.slane %v3130, 4
  %v3579 = vrot.slane %v3130, 6
  %v3580 = vrot.slane %v3133, 2
  %v3581 = vrot.slane %v3133, 4
  %v3582 = vrot.slane %v3133, 6
  %v3583 = vrot.slane %v3136, 2
  %v3584 = vrot.slane %v3136, 4
  %v3585 = vrot.slane %v3136, 6
  %v3586 = vrot.slane %v3139, 2
  %v3587 = vrot.slane %v3139, 4
  %v3588 = vrot.slane %v3139, 6
  %v3589 = vrot.slane %v3142, 2
  %v3590 = vrot.slane %v3142, 4
  %v3591 = vrot.slane %v3142, 6
  %v3592 = vrot.slane %v3145, 2
  %v3593 = vrot.slane %v3145, 4
  %v3594 = vrot.slane %v3145, 6
  %v3595 = vrot.slane %v3148, 2
  %v3596 = vrot.slane %v3148, 4
  %v3597 = vrot.slane %v3148, 6
  %v3598 = vrot.slane %v3151, 2
  %v3599 = vrot.slane %v3151, 4
  %v3600 = vrot.slane %v3151, 6
  %v3601 = vrot.slane %v3154, 2
  %v3602 = vrot.slane %v3154, 4
  %v3603 = vrot.slane %v3154, 6
  %v3604 = vrot.slane %v3157, 2
  %v3605 = vrot.slane %v3157, 4
  %v3606 = vrot.slane %v3157, 6
  %v3607 = vrot.slane %v3160, 2
  %v3608 = vrot.slane %v3160, 4
  %v3609 = vrot.slane %v3160, 6
  %v3610 = vrot.slane %v3163, 2
  %v3611 = vrot.slane %v3163, 4
  %v3612 = vrot.slane %v3163, 6
  %v3613 = vrot.slane %v3166, 2
  %v3614 = vrot.slane %v3166, 4
  %v3615 = vrot.slane %v3166, 6
  %v3616 = vrot.slane %v3169, 2
  %v3617 = vrot.slane %v3169, 4
  %v3618 = vrot.slane %v3169, 6
  %v3619 = vrot.slane %v3172, 2
  %v3620 = vrot.slane %v3172, 4
  %v3621 = vrot.slane %v3172, 6
  %v3622 = vrot.slane %v3175, 2
  %v3623 = vrot.slane %v3175, 4
  %v3624 = vrot.slane %v3175, 6
  %v3625 = vrot.slane %v3178, 2
  %v3626 = vrot.slane %v3178, 4
  %v3627 = vrot.slane %v3178, 6
  %v3628 = vrot.slane %v3181, 2
  %v3629 = vrot.slane %v3181, 4
  %v3630 = vrot.slane %v3181, 6
  %v3631 = vrot.slane %v3184, 2
  %v3632 = vrot.slane %v3184, 4
  %v3633 = vrot.slane %v3184, 6
  %v3634 = vrot.slane %v3187, 2
  %v3635 = vrot.slane %v3187, 4
  %v3636 = vrot.slane %v3187, 6
  %v3637 = vrot.slane %v3190, 2
  %v3638 = vrot.slane %v3190, 4
  %v3639 = vrot.slane %v3190, 6
  %v3640 = vrot.slane %v3193, 2
  %v3641 = vrot.slane %v3193, 4
  %v3642 = vrot.slane %v3193, 6
  %v3643 = vrot.slane %v3196, 2
  %v3644 = vrot.slane %v3196, 4
  %v3645 = vrot.slane %v3196, 6
  %v3646 = vrot.slane %v3199, 2
  %v3647 = vrot.slane %v3199, 4
  %v3648 = vrot.slane %v3199, 6
  %v3649 = vrot.slane %v3202, 2
  %v3650 = vrot.slane %v3202, 4
  %v3651 = vrot.slane %v3202, 6
  %v3652 = vrot.slane %v3205, 2
  %v3653 = vrot.slane %v3205, 4
  %v3654 = vrot.slane %v3205, 6
  %v3655 = vrot.slane %v3208, 2
  %v3656 = vrot.slane %v3208, 4
  %v3657 = vrot.slane %v3208, 6
  %v3658 = vrot.slane %v3211, 2
  %v3659 = vrot.slane %v3211, 4
  %v3660 = vrot.slane %v3211, 6
  %v3661 = vrot.slane %v3214, 2
  %v3662 = vrot.slane %v3214, 4
  %v3663 = vrot.slane %v3214, 6
  %v3664 = vrot.slane %v3217, 2
  %v3665 = vrot.slane %v3217, 4
  %v3666 = vrot.slane %v3217, 6
  %v3667 = vrot.slane %v3220, 2
  %v3668 = vrot.slane %v3220, 4
  %v3669 = vrot.slane %v3220, 6
  %v3670 = vrot.slane %v3223, 2
  %v3671 = vrot.slane %v3223, 4
  %v3672 = vrot.slane %v3223, 6
  %v3673 = vrot.slane %v3226, 2
  %v3674 = vrot.slane %v3226, 4
  %v3675 = vrot.slane %v3226, 6
  %v3676 = vrot.slane %v3229, 2
  %v3677 = vrot.slane %v3229, 4
  %v3678 = vrot.slane %v3229, 6
  %v3679 = vrot.slane %v3232, 2
  %v3680 = vrot.slane %v3232, 4
  %v3681 = vrot.slane %v3232, 6
  %v3682 = vrot.slane %v3235, 2
  %v3683 = vrot.slane %v3235, 4
  %v3684 = vrot.slane %v3235, 6
  %v3685 = vrot.slane %v3238, 2
  %v3686 = vrot.slane %v3238, 4
  %v3687 = vrot.slane %v3238, 6
  %v3688 = vrot.slane %v3241, 2
  %v3689 = vrot.slane %v3241, 4
  %v3690 = vrot.slane %v3241, 6
  %v3691 = vrot.slane %v3244, 2
  %v3692 = vrot.slane %v3244, 4
  %v3693 = vrot.slane %v3244, 6
  %v3694 = vrot.slane %v3247, 2
  %v3695 = vrot.slane %v3247, 4
  %v3696 = vrot.slane %v3247, 6
  %v3697 = vrot.slane %v3250, 2
  %v3698 = vrot.slane %v3250, 4
  %v3699 = vrot.slane %v3250, 6
  %v3700 = vrot.slane %v3253, 2
  %v3701 = vrot.slane %v3253, 4
  %v3702 = vrot.slane %v3253, 6
  %v3703 = vrot.slane %v3256, 2
  %v3704 = vrot.slane %v3256, 4
  %v3705 = vrot.slane %v3256, 6
  %v3706 = vrot.slane %v3259, 2
  %v3707 = vrot.slane %v3259, 4
  %v3708 = vrot.slane %v3259, 6
  %v3709 = vrot.slane %v3262, 2
  %v3710 = vrot.slane %v3262, 4
  %v3711 = vrot.slane %v3262, 6
  %v3712 = vrot.slane %v3265, 2
  %v3713 = vrot.slane %v3265, 4
  %v3714 = vrot.slane %v3265, 6
  %v3715 = vrot.slane %v3268, 2
  %v3716 = vrot.slane %v3268, 4
  %v3717 = vrot.slane %v3268, 6
  %v3718 = vrot.slane %v3271, 2
  %v3719 = vrot.slane %v3271, 4
  %v3720 = vrot.slane %v3271, 6
  %v3721 = vrot.slane %v3274, 2
  %v3722 = vrot.slane %v3274, 4
  %v3723 = vrot.slane %v3274, 6
  %v3724 = vrot.slane %v3277, 2
  %v3725 = vrot.slane %v3277, 4
  %v3726 = vrot.slane %v3277, 6
  %v3727 = vrot.slane %v3280, 2
  %v3728 = vrot.slane %v3280, 4
  %v3729 = vrot.slane %v3280, 6
  %v3730 = vrot.slane %v3283, 2
  %v3731 = vrot.slane %v3283, 4
  %v3732 = vrot.slane %v3283, 6
  %v3733 = vrot.slane %v3286, 2
  %v3734 = vrot.slane %v3286, 4
  %v3735 = vrot.slane %v3286, 6
  %v3736 = vrot.slane %v3289, 2
  %v3737 = vrot.slane %v3289, 4
  %v3738 = vrot.slane %v3289, 6
  %v3739 = vrot.slane %v3292, 2
  %v3740 = vrot.slane %v3292, 4
  %v3741 = vrot.slane %v3292, 6
  %v3742 = vrot.slane %v3295, 2
  %v3743 = vrot.slane %v3295, 4
  %v3744 = vrot.slane %v3295, 6
  %v3745 = vrot.slane %v3298, 2
  %v3746 = vrot.slane %v3298, 4
  %v3747 = vrot.slane %v3298, 6
  %v3748 = vrot.slane %v3301, 2
  %v3749 = vrot.slane %v3301, 4
  %v3750 = vrot.slane %v3301, 6
  %v3751 = vrot.slane %v3304, 2
  %v3752 = vrot.slane %v3304, 4
  %v3753 = vrot.slane %v3304, 6
  %v3754 = vrot.slane %v3307, 2
  %v3755 = vrot.slane %v3307, 4
  %v3756 = vrot.slane %v3307, 6
  %v3757 = vrot.slane %v3310, 2
  %v3758 = vrot.slane %v3310, 4
  %v3759 = vrot.slane %v3310, 6
  %v3760 = vrot.slane %v3313, 2
  %v3761 = vrot.slane %v3313, 4
  %v3762 = vrot.slane %v3313, 6
  %3763 = vst [vmem:[#allocation1] ss:$4 sm:$0xff] %v2980
  %s3764 = scalar_lea.vmem [#allocation1], 1
  %3765 = vst [vmem:[%s3764] ss:$4 sm:$0xff] %v3427
  %s3766 = scalar_lea.vmem [#allocation1], 2
  %3767 = vst [vmem:[%s3766] ss:$4 sm:$0xff] %v3428
  %s3768 = scalar_lea.vmem [#allocation1], 3
  %3769 = vst [vmem:[%s3768] ss:$4 sm:$0xff] %v3429
  %s3770 = scalar_lea.vmem [#allocation1], 32
  %3771 = vst [vmem:[%s3770] ss:$4 sm:$0xff] %v2983
  %s3772 = scalar_lea.vmem [#allocation1], 33
  %3773 = vst [vmem:[%s3772] ss:$4 sm:$0xff] %v3430
  %s3774 = scalar_lea.vmem [#allocation1], 34
  %3775 = vst [vmem:[%s3774] ss:$4 sm:$0xff] %v3431
  %v3776 = vld.sshfl [vmem:[#allocation1] sm:$0xff pattern:$0x73625140]
  %v3777 = vld.sshfl [vmem:[#allocation1 + $0x20] sm:$0xff pattern:$0x73625140]
  %3778 = vst [vmem:[#allocation1] ss:$4 sm:$0xff] %v3432
  %3779 = vst [vmem:[%s3764] ss:$4 sm:$0xff] %v2986
  %3780 = vst [vmem:[%s3766] ss:$4 sm:$0xff] %v3433
  %3781 = vst [vmem:[%s3768] ss:$4 sm:$0xff] %v3434
  %3782 = vst [vmem:[%s3770] ss:$4 sm:$0xff] %v3435
  %3783 = vst [vmem:[%s3772] ss:$4 sm:$0xff] %v2989
  %3784 = vst [vmem:[%s3774] ss:$4 sm:$0xff] %v3436
  %v3785 = vld.sshfl [vmem:[#allocation1] sm:$0xff pattern:$0x73625140]
  %v3786 = vld.sshfl [vmem:[#allocation1 + $0x20] sm:$0xff pattern:$0x73625140]
  %3787 = vst [vmem:[#allocation1] ss:$4 sm:$0xff] %v3437
  %3788 = vst [vmem:[%s3764] ss:$4 sm:$0xff] %v3438
  %3789 = vst [vmem:[%s3766] ss:$4 sm:$0xff] %v2992
  %3790 = vst [vmem:[%s3768] ss:$4 sm:$0xff] %v3439
  %3791 = vst [vmem:[%s3770] ss:$4 sm:$0xff] %v3440
  %3792 = vst [vmem:[%s3772] ss:$4 sm:$0xff] %v3441
  %3793 = vst [vmem:[%s3774] ss:$4 sm:$0xff] %v2995
  %v3794 = vld.sshfl [vmem:[#allocation1] sm:$0xff pattern:$0x73625140]
  %v3795 = vld.sshfl [vmem:[#allocation1 + $0x20] sm:$0xff pattern:$0x73625140]
  %3796 = vst [vmem:[#allocation1] ss:$4 sm:$0xff] %v3442
  %3797 = vst [vmem:[%s3764] ss:$4 sm:$0xff] %v3443
  %3798 = vst [vmem:[%s3766] ss:$4 sm:$0xff] %v3444
  %3799 = vst [vmem:[%s3768] ss:$4 sm:$0xff] %v2998
  %3800 = vst [vmem:[%s3770] ss:$4 sm:$0xff] %v3445
  %3801 = vst [vmem:[%s3772] ss:$4 sm:$0xff] %v3446
  %3802 = vst [vmem:[%s3774] ss:$4 sm:$0xff] %v3447
  %v3803 = vld.sshfl [vmem:[#allocation1] sm:$0xff pattern:$0x73625140]
  %v3804 = vld.sshfl [vmem:[#allocation1 + $0x20] sm:$0xff pattern:$0x73625140]
  %3805 = vst [vmem:[#allocation1] ss:$4 sm:$0xff] %v3001
  %3806 = vst [vmem:[%s3764] ss:$4 sm:$0xff] %v3448
  %3807 = vst [vmem:[%s3766] ss:$4 sm:$0xff] %v3449
  %3808 = vst [vmem:[%s3768] ss:$4 sm:$0xff] %v3450
  %3809 = vst [vmem:[%s3770] ss:$4 sm:$0xff] %v3004
  %3810 = vst [vmem:[%s3772] ss:$4 sm:$0xff] %v3451
  %3811 = vst [vmem:[%s3774] ss:$4 sm:$0xff] %v3452
  %v3812 = vld.sshfl [vmem:[#allocation1] sm:$0xff pattern:$0x73625140]
  %v3813 = vld.sshfl [vmem:[#allocation1 + $0x20] sm:$0xff pattern:$0x73625140]
  %3814 = vst [vmem:[#allocation1] ss:$4 sm:$0xff] %v3453
  %3815 = vst [vmem:[%s3764] ss:$4 sm:$0xff] %v3007
  %3816 = vst [vmem:[%s3766] ss:$4 sm:$0xff] %v3454
  %3817 = vst [vmem:[%s3768] ss:$4 sm:$0xff] %v3455
  %3818 = vst [vmem:[%s3770] ss:$4 sm:$0xff] %v3456
  %3819 = vst [vmem:[%s3772] ss:$4 sm:$0xff] %v3010
  %3820 = vst [vmem:[%s3774] ss:$4 sm:$0xff] %v3457
  %v3821 = vld.sshfl [vmem:[#allocation1] sm:$0xff pattern:$0x73625140]
  %v3822 = vld.sshfl [vmem:[#allocation1 + $0x20] sm:$0xff pattern:$0x73625140]
  %3823 = vst [vmem:[#allocation1] ss:$4 sm:$0xff] %v3458
  %3824 = vst [vmem:[%s3764] ss:$4 sm:$0xff] %v3459
  %3825 = vst [vmem:[%s3766] ss:$4 sm:$0xff] %v3013
  %3826 = vst [vmem:[%s3768] ss:$4 sm:$0xff] %v3460
  %3827 = vst [vmem:[%s3770] ss:$4 sm:$0xff] %v3461
  %3828 = vst [vmem:[%s3772] ss:$4 sm:$0xff] %v3462
  %3829 = vst [vmem:[%s3774] ss:$4 sm:$0xff] %v3016
  %v3830 = vld.sshfl [vmem:[#allocation1] sm:$0xff pattern:$0x73625140]
  %v3831 = vld.sshfl [vmem:[#allocation1 + $0x20] sm:$0xff pattern:$0x73625140]
  %3832 = vst [vmem:[#allocation1] ss:$4 sm:$0xff] %v3463
  %3833 = vst [vmem:[%s3764] ss:$4 sm:$0xff] %v3464
  %3834 = vst [vmem:[%s3766] ss:$4 sm:$0xff] %v3465
  %3835 = vst [vmem:[%s3768] ss:$4 sm:$0xff] %v3019
  %3836 = vst [vmem:[%s3770] ss:$4 sm:$0xff] %v3466
  %3837 = vst [vmem:[%s3772] ss:$4 sm:$0xff] %v3467
  %3838 = vst [vmem:[%s3774] ss:$4 sm:$0xff] %v3468
  %v3839 = vld.sshfl [vmem:[#allocation1] sm:$0xff pattern:$0x73625140]
  %v3840 = vld.sshfl [vmem:[#allocation1 + $0x20] sm:$0xff pattern:$0x73625140]
  %3841 = vst [vmem:[#allocation1] ss:$4 sm:$0xff] %v3022
  %3842 = vst [vmem:[%s3764] ss:$4 sm:$0xff] %v3469
  %3843 = vst [vmem:[%s3766] ss:$4 sm:$0xff] %v3470
  %3844 = vst [vmem:[%s3768] ss:$4 sm:$0xff] %v3471
  %3845 = vst [vmem:[%s3770] ss:$4 sm:$0xff] %v3025
  %3846 = vst [vmem:[%s3772] ss:$4 sm:$0xff] %v3472
  %3847 = vst [vmem:[%s3774] ss:$4 sm:$0xff] %v3473
  %v3848 = vld.sshfl [vmem:[#allocation1] sm:$0xff pattern:$0x73625140]
  %v3849 = vld.sshfl [vmem:[#allocation1 + $0x20] sm:$0xff pattern:$0x73625140]
  %3850 = vst [vmem:[#allocation1] ss:$4 sm:$0xff] %v3474
  %3851 = vst [vmem:[%s3764] ss:$4 sm:$0xff] %v3028
  %3852 = vst [vmem:[%s3766] ss:$4 sm:$0xff] %v3475
  %3853 = vst [vmem:[%s3768] ss:$4 sm:$0xff] %v3476
  %3854 = vst [vmem:[%s3770] ss:$4 sm:$0xff] %v3477
  %3855 = vst [vmem:[%s3772] ss:$4 sm:$0xff] %v3031
  %3856 = vst [vmem:[%s3774] ss:$4 sm:$0xff] %v3478
  %v3857 = vld.sshfl [vmem:[#allocation1] sm:$0xff pattern:$0x73625140]
  %v3858 = vld.sshfl [vmem:[#allocation1 + $0x20] sm:$0xff pattern:$0x73625140]
  %3859 = vst [vmem:[#allocation1] ss:$4 sm:$0xff] %v3479
  %3860 = vst [vmem:[%s3764] ss:$4 sm:$0xff] %v3480
  %3861 = vst [vmem:[%s3766] ss:$4 sm:$0xff] %v3034
  %3862 = vst [vmem:[%s3768] ss:$4 sm:$0xff] %v3481
  %3863 = vst [vmem:[%s3770] ss:$4 sm:$0xff] %v3482
  %3864 = vst [vmem:[%s3772] ss:$4 sm:$0xff] %v3483
  %3865 = vst [vmem:[%s3774] ss:$4 sm:$0xff] %v3037
  %v3866 = vld.sshfl [vmem:[#allocation1] sm:$0xff pattern:$0x73625140]
  %v3867 = vld.sshfl [vmem:[#allocation1 + $0x20] sm:$0xff pattern:$0x73625140]
  %3868 = vst [vmem:[#allocation1] ss:$4 sm:$0xff] %v3484
  %3869 = vst [vmem:[%s3764] ss:$4 sm:$0xff] %v3485
  %3870 = vst [vmem:[%s3766] ss:$4 sm:$0xff] %v3486
  %3871 = vst [vmem:[%s3768] ss:$4 sm:$0xff] %v3040
  %3872 = vst [vmem:[%s3770] ss:$4 sm:$0xff] %v3487
  %3873 = vst [vmem:[%s3772] ss:$4 sm:$0xff] %v3488
  %3874 = vst [vmem:[%s3774] ss:$4 sm:$0xff] %v3489
  %v3875 = vld.sshfl [vmem:[#allocation1] sm:$0xff pattern:$0x73625140]
  %v3876 = vld.sshfl [vmem:[#allocation1 + $0x20] sm:$0xff pattern:$0x73625140]
  %3877 = vst [vmem:[#allocation1] ss:$4 sm:$0xff] %v3043
  %3878 = vst [vmem:[%s3764] ss:$4 sm:$0xff] %v3490
  %3879 = vst [vmem:[%s3766] ss:$4 sm:$0xff] %v3491
  %3880 = vst [vmem:[%s3768] ss:$4 sm:$0xff] %v3492
  %3881 = vst [vmem:[%s3770] ss:$4 sm:$0xff] %v3046
  %3882 = vst [vmem:[%s3772] ss:$4 sm:$0xff] %v3493
  %3883 = vst [vmem:[%s3774] ss:$4 sm:$0xff] %v3494
  %v3884 = vld.sshfl [vmem:[#allocation1] sm:$0xff pattern:$0x73625140]
  %v3885 = vld.sshfl [vmem:[#allocation1 + $0x20] sm:$0xff pattern:$0x73625140]
  %3886 = vst [vmem:[#allocation1] ss:$4 sm:$0xff] %v3495
  %3887 = vst [vmem:[%s3764] ss:$4 sm:$0xff] %v3049
  %3888 = vst [vmem:[%s3766] ss:$4 sm:$0xff] %v3496
  %3889 = vst [vmem:[%s3768] ss:$4 sm:$0xff] %v3497
  %3890 = vst [vmem:[%s3770] ss:$4 sm:$0xff] %v3498
  %3891 = vst [vmem:[%s3772] ss:$4 sm:$0xff] %v3052
  %3892 = vst [vmem:[%s3774] ss:$4 sm:$0xff] %v3499
  %v3893 = vld.sshfl [vmem:[#allocation1] sm:$0xff pattern:$0x73625140]
  %v3894 = vld.sshfl [vmem:[#allocation1 + $0x20] sm:$0xff pattern:$0x73625140]
  %3895 = vst [vmem:[#allocation1] ss:$4 sm:$0xff] %v3500
  %3896 = vst [vmem:[%s3764] ss:$4 sm:$0xff] %v3501
  %3897 = vst [vmem:[%s3766] ss:$4 sm:$0xff] %v3055
  %3898 = vst [vmem:[%s3768] ss:$4 sm:$0xff] %v3502
  %3899 = vst [vmem:[%s3770] ss:$4 sm:$0xff] %v3503
  %3900 = vst [vmem:[%s3772] ss:$4 sm:$0xff] %v3504
  %3901 = vst [vmem:[%s3774] ss:$4 sm:$0xff] %v3058
  %v3902 = vld.sshfl [vmem:[#allocation1] sm:$0xff pattern:$0x73625140]
  %v3903 = vld.sshfl [vmem:[#allocation1 + $0x20] sm:$0xff pattern:$0x73625140]
  %3904 = vst [vmem:[#allocation1] ss:$4 sm:$0xff] %v3505
  %3905 = vst [vmem:[%s3764] ss:$4 sm:$0xff] %v3506
  %3906 = vst [vmem:[%s3766] ss:$4 sm:$0xff] %v3507
  %3907 = vst [vmem:[%s3768] ss:$4 sm:$0xff] %v3061
  %3908 = vst [vmem:[%s3770] ss:$4 sm:$0xff] %v3508
  %3909 = vst [vmem:[%s3772] ss:$4 sm:$0xff] %v3509
  %3910 = vst [vmem:[%s3774] ss:$4 sm:$0xff] %v3510
  %v3911 = vld.sshfl [vmem:[#allocation1] sm:$0xff pattern:$0x73625140]
  %v3912 = vld.sshfl [vmem:[#allocation1 + $0x20] sm:$0xff pattern:$0x73625140]
  %3913 = vst [vmem:[#allocation1] ss:$4 sm:$0xff] %v3064
  %3914 = vst [vmem:[%s3764] ss:$4 sm:$0xff] %v3511
  %3915 = vst [vmem:[%s3766] ss:$4 sm:$0xff] %v3512
  %3916 = vst [vmem:[%s3768] ss:$4 sm:$0xff] %v3513
  %3917 = vst [vmem:[%s3770] ss:$4 sm:$0xff] %v3067
  %3918 = vst [vmem:[%s3772] ss:$4 sm:$0xff] %v3514
  %3919 = vst [vmem:[%s3774] ss:$4 sm:$0xff] %v3515
  %v3920 = vld.sshfl [vmem:[#allocation1] sm:$0xff pattern:$0x73625140]
  %v3921 = vld.sshfl [vmem:[#allocation1 + $0x20] sm:$0xff pattern:$0x73625140]
  %3922 = vst [vmem:[#allocation1] ss:$4 sm:$0xff] %v3516
  %3923 = vst [vmem:[%s3764] ss:$4 sm:$0xff] %v3070
  %3924 = vst [vmem:[%s3766] ss:$4 sm:$0xff] %v3517
  %3925 = vst [vmem:[%s3768] ss:$4 sm:$0xff] %v3518
  %3926 = vst [vmem:[%s3770] ss:$4 sm:$0xff] %v3519
  %3927 = vst [vmem:[%s3772] ss:$4 sm:$0xff] %v3073
  %3928 = vst [vmem:[%s3774] ss:$4 sm:$0xff] %v3520
  %v3929 = vld.sshfl [vmem:[#allocation1] sm:$0xff pattern:$0x73625140]
  %v3930 = vld.sshfl [vmem:[#allocation1 + $0x20] sm:$0xff pattern:$0x73625140]
  %3931 = vst [vmem:[#allocation1] ss:$4 sm:$0xff] %v3521
  %3932 = vst [vmem:[%s3764] ss:$4 sm:$0xff] %v3522
  %3933 = vst [vmem:[%s3766] ss:$4 sm:$0xff] %v3076
  %3934 = vst [vmem:[%s3768] ss:$4 sm:$0xff] %v3523
  %3935 = vst [vmem:[%s3770] ss:$4 sm:$0xff] %v3524
  %3936 = vst [vmem:[%s3772] ss:$4 sm:$0xff] %v3525
  %3937 = vst [vmem:[%s3774] ss:$4 sm:$0xff] %v3079
  %v3938 = vld.sshfl [vmem:[#allocation1] sm:$0xff pattern:$0x73625140]
  %v3939 = vld.sshfl [vmem:[#allocation1 + $0x20] sm:$0xff pattern:$0x73625140]
  %3940 = vst [vmem:[#allocation1] ss:$4 sm:$0xff] %v3526
  %3941 = vst [vmem:[%s3764] ss:$4 sm:$0xff] %v3527
  %3942 = vst [vmem:[%s3766] ss:$4 sm:$0xff] %v3528
  %3943 = vst [vmem:[%s3768] ss:$4 sm:$0xff] %v3082
  %3944 = vst [vmem:[%s3770] ss:$4 sm:$0xff] %v3529
  %3945 = vst [vmem:[%s3772] ss:$4 sm:$0xff] %v3530
  %3946 = vst [vmem:[%s3774] ss:$4 sm:$0xff] %v3531
  %v3947 = vld.sshfl [vmem:[#allocation1] sm:$0xff pattern:$0x73625140]
  %v3948 = vld.sshfl [vmem:[#allocation1 + $0x20] sm:$0xff pattern:$0x73625140]
  %3949 = vst [vmem:[#allocation1] ss:$4 sm:$0xff] %v3085
  %3950 = vst [vmem:[%s3764] ss:$4 sm:$0xff] %v3532
  %3951 = vst [vmem:[%s3766] ss:$4 sm:$0xff] %v3533
  %3952 = vst [vmem:[%s3768] ss:$4 sm:$0xff] %v3534
  %3953 = vst [vmem:[%s3770] ss:$4 sm:$0xff] %v3088
  %3954 = vst [vmem:[%s3772] ss:$4 sm:$0xff] %v3535
  %3955 = vst [vmem:[%s3774] ss:$4 sm:$0xff] %v3536
  %v3956 = vld.sshfl [vmem:[#allocation1] sm:$0xff pattern:$0x73625140]
  %v3957 = vld.sshfl [vmem:[#allocation1 + $0x20] sm:$0xff pattern:$0x73625140]
  %3958 = vst [vmem:[#allocation1] ss:$4 sm:$0xff] %v3537
  %3959 = vst [vmem:[%s3764] ss:$4 sm:$0xff] %v3091
  %3960 = vst [vmem:[%s3766] ss:$4 sm:$0xff] %v3538
  %3961 = vst [vmem:[%s3768] ss:$4 sm:$0xff] %v3539
  %3962 = vst [vmem:[%s3770] ss:$4 sm:$0xff] %v3540
  %3963 = vst [vmem:[%s3772] ss:$4 sm:$0xff] %v3094
  %3964 = vst [vmem:[%s3774] ss:$4 sm:$0xff] %v3541
  %v3965 = vld.sshfl [vmem:[#allocation1] sm:$0xff pattern:$0x73625140]
  %v3966 = vld.sshfl [vmem:[#allocation1 + $0x20] sm:$0xff pattern:$0x73625140]
  %3967 = vst [vmem:[#allocation1] ss:$4 sm:$0xff] %v3542
  %3968 = vst [vmem:[%s3764] ss:$4 sm:$0xff] %v3543
  %3969 = vst [vmem:[%s3766] ss:$4 sm:$0xff] %v3097
  %3970 = vst [vmem:[%s3768] ss:$4 sm:$0xff] %v3544
  %3971 = vst [vmem:[%s3770] ss:$4 sm:$0xff] %v3545
  %3972 = vst [vmem:[%s3772] ss:$4 sm:$0xff] %v3546
  %3973 = vst [vmem:[%s3774] ss:$4 sm:$0xff] %v3100
  %v3974 = vld.sshfl [vmem:[#allocation1] sm:$0xff pattern:$0x73625140]
  %v3975 = vld.sshfl [vmem:[#allocation1 + $0x20] sm:$0xff pattern:$0x73625140]
  %3976 = vst [vmem:[#allocation1] ss:$4 sm:$0xff] %v3547
  %3977 = vst [vmem:[%s3764] ss:$4 sm:$0xff] %v3548
  %3978 = vst [vmem:[%s3766] ss:$4 sm:$0xff] %v3549
  %3979 = vst [vmem:[%s3768] ss:$4 sm:$0xff] %v3103
  %3980 = vst [vmem:[%s3770] ss:$4 sm:$0xff] %v3550
  %3981 = vst [vmem:[%s3772] ss:$4 sm:$0xff] %v3551
  %3982 = vst [vmem:[%s3774] ss:$4 sm:$0xff] %v3552
  %v3983 = vld.sshfl [vmem:[#allocation1] sm:$0xff pattern:$0x73625140]
  %v3984 = vld.sshfl [vmem:[#allocation1 + $0x20] sm:$0xff pattern:$0x73625140]
  %3985 = vst [vmem:[#allocation1] ss:$4 sm:$0xff] %v3106
  %3986 = vst [vmem:[%s3764] ss:$4 sm:$0xff] %v3553
  %3987 = vst [vmem:[%s3766] ss:$4 sm:$0xff] %v3554
  %3988 = vst [vmem:[%s3768] ss:$4 sm:$0xff] %v3555
  %3989 = vst [vmem:[%s3770] ss:$4 sm:$0xff] %v3109
  %3990 = vst [vmem:[%s3772] ss:$4 sm:$0xff] %v3556
  %3991 = vst [vmem:[%s3774] ss:$4 sm:$0xff] %v3557
  %v3992 = vld.sshfl [vmem:[#allocation1] sm:$0xff pattern:$0x73625140]
  %v3993 = vld.sshfl [vmem:[#allocation1 + $0x20] sm:$0xff pattern:$0x73625140]
  %3994 = vst [vmem:[#allocation1] ss:$4 sm:$0xff] %v3558
  %3995 = vst [vmem:[%s3764] ss:$4 sm:$0xff] %v3112
  %3996 = vst [vmem:[%s3766] ss:$4 sm:$0xff] %v3559
  %3997 = vst [vmem:[%s3768] ss:$4 sm:$0xff] %v3560
  %3998 = vst [vmem:[%s3770] ss:$4 sm:$0xff] %v3561
  %3999 = vst [vmem:[%s3772] ss:$4 sm:$0xff] %v3115
  %4000 = vst [vmem:[%s3774] ss:$4 sm:$0xff] %v3562
  %v4001 = vld.sshfl [vmem:[#allocation1] sm:$0xff pattern:$0x73625140]
  %v4002 = vld.sshfl [vmem:[#allocation1 + $0x20] sm:$0xff pattern:$0x73625140]
  %4003 = vst [vmem:[#allocation1] ss:$4 sm:$0xff] %v3563
  %4004 = vst [vmem:[%s3764] ss:$4 sm:$0xff] %v3564
  %4005 = vst [vmem:[%s3766] ss:$4 sm:$0xff] %v3118
  %4006 = vst [vmem:[%s3768] ss:$4 sm:$0xff] %v3565
  %4007 = vst [vmem:[%s3770] ss:$4 sm:$0xff] %v3566
  %4008 = vst [vmem:[%s3772] ss:$4 sm:$0xff] %v3567
  %4009 = vst [vmem:[%s3774] ss:$4 sm:$0xff] %v3121
  %v4010 = vld.sshfl [vmem:[#allocation1] sm:$0xff pattern:$0x73625140]
  %v4011 = vld.sshfl [vmem:[#allocation1 + $0x20] sm:$0xff pattern:$0x73625140]
  %4012 = vst [vmem:[#allocation1] ss:$4 sm:$0xff] %v3568
  %4013 = vst [vmem:[%s3764] ss:$4 sm:$0xff] %v3569
  %4014 = vst [vmem:[%s3766] ss:$4 sm:$0xff] %v3570
  %4015 = vst [vmem:[%s3768] ss:$4 sm:$0xff] %v3124
  %4016 = vst [vmem:[%s3770] ss:$4 sm:$0xff] %v3571
  %4017 = vst [vmem:[%s3772] ss:$4 sm:$0xff] %v3572
  %4018 = vst [vmem:[%s3774] ss:$4 sm:$0xff] %v3573
  %v4019 = vld.sshfl [vmem:[#allocation1] sm:$0xff pattern:$0x73625140]
  %v4020 = vld.sshfl [vmem:[#allocation1 + $0x20] sm:$0xff pattern:$0x73625140]
  %4021 = vst [vmem:[#allocation1] ss:$4 sm:$0xff] %v3127
  %4022 = vst [vmem:[%s3764] ss:$4 sm:$0xff] %v3574
  %4023 = vst [vmem:[%s3766] ss:$4 sm:$0xff] %v3575
  %4024 = vst [vmem:[%s3768] ss:$4 sm:$0xff] %v3576
  %4025 = vst [vmem:[%s3770] ss:$4 sm:$0xff] %v3130
  %4026 = vst [vmem:[%s3772] ss:$4 sm:$0xff] %v3577
  %4027 = vst [vmem:[%s3774] ss:$4 sm:$0xff] %v3578
  %v4028 = vld.sshfl [vmem:[#allocation1] sm:$0xff pattern:$0x73625140]
  %v4029 = vld.sshfl [vmem:[#allocation1 + $0x20] sm:$0xff pattern:$0x73625140]
  %4030 = vst [vmem:[#allocation1] ss:$4 sm:$0xff] %v3579
  %4031 = vst [vmem:[%s3764] ss:$4 sm:$0xff] %v3133
  %4032 = vst [vmem:[%s3766] ss:$4 sm:$0xff] %v3580
  %4033 = vst [vmem:[%s3768] ss:$4 sm:$0xff] %v3581
  %4034 = vst [vmem:[%s3770] ss:$4 sm:$0xff] %v3582
  %4035 = vst [vmem:[%s3772] ss:$4 sm:$0xff] %v3136
  %4036 = vst [vmem:[%s3774] ss:$4 sm:$0xff] %v3583
  %v4037 = vld.sshfl [vmem:[#allocation1] sm:$0xff pattern:$0x73625140]
  %v4038 = vld.sshfl [vmem:[#allocation1 + $0x20] sm:$0xff pattern:$0x73625140]
  %4039 = vst [vmem:[#allocation1] ss:$4 sm:$0xff] %v3584
  %4040 = vst [vmem:[%s3764] ss:$4 sm:$0xff] %v3585
  %4041 = vst [vmem:[%s3766] ss:$4 sm:$0xff] %v3139
  %4042 = vst [vmem:[%s3768] ss:$4 sm:$0xff] %v3586
  %4043 = vst [vmem:[%s3770] ss:$4 sm:$0xff] %v3587
  %4044 = vst [vmem:[%s3772] ss:$4 sm:$0xff] %v3588
  %4045 = vst [vmem:[%s3774] ss:$4 sm:$0xff] %v3142
  %v4046 = vld.sshfl [vmem:[#allocation1] sm:$0xff pattern:$0x73625140]
  %v4047 = vld.sshfl [vmem:[#allocation1 + $0x20] sm:$0xff pattern:$0x73625140]
  %4048 = vst [vmem:[#allocation1] ss:$4 sm:$0xff] %v3589
  %4049 = vst [vmem:[%s3764] ss:$4 sm:$0xff] %v3590
  %4050 = vst [vmem:[%s3766] ss:$4 sm:$0xff] %v3591
  %4051 = vst [vmem:[%s3768] ss:$4 sm:$0xff] %v3145
  %4052 = vst [vmem:[%s3770] ss:$4 sm:$0xff] %v3592
  %4053 = vst [vmem:[%s3772] ss:$4 sm:$0xff] %v3593
  %4054 = vst [vmem:[%s3774] ss:$4 sm:$0xff] %v3594
  %v4055 = vld.sshfl [vmem:[#allocation1] sm:$0xff pattern:$0x73625140]
  %v4056 = vld.sshfl [vmem:[#allocation1 + $0x20] sm:$0xff pattern:$0x73625140]
  %4057 = vst [vmem:[#allocation1] ss:$4 sm:$0xff] %v3148
  %4058 = vst [vmem:[%s3764] ss:$4 sm:$0xff] %v3595
  %4059 = vst [vmem:[%s3766] ss:$4 sm:$0xff] %v3596
  %4060 = vst [vmem:[%s3768] ss:$4 sm:$0xff] %v3597
  %4061 = vst [vmem:[%s3770] ss:$4 sm:$0xff] %v3151
  %4062 = vst [vmem:[%s3772] ss:$4 sm:$0xff] %v3598
  %4063 = vst [vmem:[%s3774] ss:$4 sm:$0xff] %v3599
  %v4064 = vld.sshfl [vmem:[#allocation1] sm:$0xff pattern:$0x73625140]
  %v4065 = vld.sshfl [vmem:[#allocation1 + $0x20] sm:$0xff pattern:$0x73625140]
  %4066 = vst [vmem:[#allocation1] ss:$4 sm:$0xff] %v3600
  %4067 = vst [vmem:[%s3764] ss:$4 sm:$0xff] %v3154
  %4068 = vst [vmem:[%s3766] ss:$4 sm:$0xff] %v3601
  %4069 = vst [vmem:[%s3768] ss:$4 sm:$0xff] %v3602
  %4070 = vst [vmem:[%s3770] ss:$4 sm:$0xff] %v3603
  %4071 = vst [vmem:[%s3772] ss:$4 sm:$0xff] %v3157
  %4072 = vst [vmem:[%s3774] ss:$4 sm:$0xff] %v3604
  %v4073 = vld.sshfl [vmem:[#allocation1] sm:$0xff pattern:$0x73625140]
  %v4074 = vld.sshfl [vmem:[#allocation1 + $0x20] sm:$0xff pattern:$0x73625140]
  %4075 = vst [vmem:[#allocation1] ss:$4 sm:$0xff] %v3605
  %4076 = vst [vmem:[%s3764] ss:$4 sm:$0xff] %v3606
  %4077 = vst [vmem:[%s3766] ss:$4 sm:$0xff] %v3160
  %4078 = vst [vmem:[%s3768] ss:$4 sm:$0xff] %v3607
  %4079 = vst [vmem:[%s3770] ss:$4 sm:$0xff] %v3608
  %4080 = vst [vmem:[%s3772] ss:$4 sm:$0xff] %v3609
  %4081 = vst [vmem:[%s3774] ss:$4 sm:$0xff] %v3163
  %v4082 = vld.sshfl [vmem:[#allocation1] sm:$0xff pattern:$0x73625140]
  %v4083 = vld.sshfl [vmem:[#allocation1 + $0x20] sm:$0xff pattern:$0x73625140]
  %4084 = vst [vmem:[#allocation1] ss:$4 sm:$0xff] %v3610
  %4085 = vst [vmem:[%s3764] ss:$4 sm:$0xff] %v3611
  %4086 = vst [vmem:[%s3766] ss:$4 sm:$0xff] %v3612
  %4087 = vst [vmem:[%s3768] ss:$4 sm:$0xff] %v3166
  %4088 = vst [vmem:[%s3770] ss:$4 sm:$0xff] %v3613
  %4089 = vst [vmem:[%s3772] ss:$4 sm:$0xff] %v3614
  %4090 = vst [vmem:[%s3774] ss:$4 sm:$0xff] %v3615
  %v4091 = vld.sshfl [vmem:[#allocation1] sm:$0xff pattern:$0x73625140]
  %v4092 = vld.sshfl [vmem:[#allocation1 + $0x20] sm:$0xff pattern:$0x73625140]
  %4093 = vst [vmem:[#allocation1] ss:$4 sm:$0xff] %v3169
  %4094 = vst [vmem:[%s3764] ss:$4 sm:$0xff] %v3616
  %4095 = vst [vmem:[%s3766] ss:$4 sm:$0xff] %v3617
  %4096 = vst [vmem:[%s3768] ss:$4 sm:$0xff] %v3618
  %4097 = vst [vmem:[%s3770] ss:$4 sm:$0xff] %v3172
  %4098 = vst [vmem:[%s3772] ss:$4 sm:$0xff] %v3619
  %4099 = vst [vmem:[%s3774] ss:$4 sm:$0xff] %v3620
  %v4100 = vld.sshfl [vmem:[#allocation1] sm:$0xff pattern:$0x73625140]
  %v4101 = vld.sshfl [vmem:[#allocation1 + $0x20] sm:$0xff pattern:$0x73625140]
  %4102 = vst [vmem:[#allocation1] ss:$4 sm:$0xff] %v3621
  %4103 = vst [vmem:[%s3764] ss:$4 sm:$0xff] %v3175
  %4104 = vst [vmem:[%s3766] ss:$4 sm:$0xff] %v3622
  %4105 = vst [vmem:[%s3768] ss:$4 sm:$0xff] %v3623
  %4106 = vst [vmem:[%s3770] ss:$4 sm:$0xff] %v3624
  %4107 = vst [vmem:[%s3772] ss:$4 sm:$0xff] %v3178
  %4108 = vst [vmem:[%s3774] ss:$4 sm:$0xff] %v3625
  %v4109 = vld.sshfl [vmem:[#allocation1] sm:$0xff pattern:$0x73625140]
  %v4110 = vld.sshfl [vmem:[#allocation1 + $0x20] sm:$0xff pattern:$0x73625140]
  %4111 = vst [vmem:[#allocation1] ss:$4 sm:$0xff] %v3626
  %4112 = vst [vmem:[%s3764] ss:$4 sm:$0xff] %v3627
  %4113 = vst [vmem:[%s3766] ss:$4 sm:$0xff] %v3181
  %4114 = vst [vmem:[%s3768] ss:$4 sm:$0xff] %v3628
  %4115 = vst [vmem:[%s3770] ss:$4 sm:$0xff] %v3629
  %4116 = vst [vmem:[%s3772] ss:$4 sm:$0xff] %v3630
  %4117 = vst [vmem:[%s3774] ss:$4 sm:$0xff] %v3184
  %v4118 = vld.sshfl [vmem:[#allocation1] sm:$0xff pattern:$0x73625140]
  %v4119 = vld.sshfl [vmem:[#allocation1 + $0x20] sm:$0xff pattern:$0x73625140]
  %4120 = vst [vmem:[#allocation1] ss:$4 sm:$0xff] %v3631
  %4121 = vst [vmem:[%s3764] ss:$4 sm:$0xff] %v3632
  %4122 = vst [vmem:[%s3766] ss:$4 sm:$0xff] %v3633
  %4123 = vst [vmem:[%s3768] ss:$4 sm:$0xff] %v3187
  %4124 = vst [vmem:[%s3770] ss:$4 sm:$0xff] %v3634
  %4125 = vst [vmem:[%s3772] ss:$4 sm:$0xff] %v3635
  %4126 = vst [vmem:[%s3774] ss:$4 sm:$0xff] %v3636
  %v4127 = vld.sshfl [vmem:[#allocation1] sm:$0xff pattern:$0x73625140]
  %v4128 = vld.sshfl [vmem:[#allocation1 + $0x20] sm:$0xff pattern:$0x73625140]
  %4129 = vst [vmem:[#allocation1] ss:$4 sm:$0xff] %v3190
  %4130 = vst [vmem:[%s3764] ss:$4 sm:$0xff] %v3637
  %4131 = vst [vmem:[%s3766] ss:$4 sm:$0xff] %v3638
  %4132 = vst [vmem:[%s3768] ss:$4 sm:$0xff] %v3639
  %4133 = vst [vmem:[%s3770] ss:$4 sm:$0xff] %v3193
  %4134 = vst [vmem:[%s3772] ss:$4 sm:$0xff] %v3640
  %4135 = vst [vmem:[%s3774] ss:$4 sm:$0xff] %v3641
  %v4136 = vld.sshfl [vmem:[#allocation1] sm:$0xff pattern:$0x73625140]
  %v4137 = vld.sshfl [vmem:[#allocation1 + $0x20] sm:$0xff pattern:$0x73625140]
  %4138 = vst [vmem:[#allocation1] ss:$4 sm:$0xff] %v3642
  %4139 = vst [vmem:[%s3764] ss:$4 sm:$0xff] %v3196
  %4140 = vst [vmem:[%s3766] ss:$4 sm:$0xff] %v3643
  %4141 = vst [vmem:[%s3768] ss:$4 sm:$0xff] %v3644
  %4142 = vst [vmem:[%s3770] ss:$4 sm:$0xff] %v3645
  %4143 = vst [vmem:[%s3772] ss:$4 sm:$0xff] %v3199
  %4144 = vst [vmem:[%s3774] ss:$4 sm:$0xff] %v3646
  %v4145 = vld.sshfl [vmem:[#allocation1] sm:$0xff pattern:$0x73625140]
  %v4146 = vld.sshfl [vmem:[#allocation1 + $0x20] sm:$0xff pattern:$0x73625140]
  %4147 = vst [vmem:[#allocation1] ss:$4 sm:$0xff] %v3647
  %4148 = vst [vmem:[%s3764] ss:$4 sm:$0xff] %v3648
  %4149 = vst [vmem:[%s3766] ss:$4 sm:$0xff] %v3202
  %4150 = vst [vmem:[%s3768] ss:$4 sm:$0xff] %v3649
  %4151 = vst [vmem:[%s3770] ss:$4 sm:$0xff] %v3650
  %4152 = vst [vmem:[%s3772] ss:$4 sm:$0xff] %v3651
  %4153 = vst [vmem:[%s3774] ss:$4 sm:$0xff] %v3205
  %v4154 = vld.sshfl [vmem:[#allocation1] sm:$0xff pattern:$0x73625140]
  %v4155 = vld.sshfl [vmem:[#allocation1 + $0x20] sm:$0xff pattern:$0x73625140]
  %4156 = vst [vmem:[#allocation1] ss:$4 sm:$0xff] %v3652
  %4157 = vst [vmem:[%s3764] ss:$4 sm:$0xff] %v3653
  %4158 = vst [vmem:[%s3766] ss:$4 sm:$0xff] %v3654
  %4159 = vst [vmem:[%s3768] ss:$4 sm:$0xff] %v3208
  %4160 = vst [vmem:[%s3770] ss:$4 sm:$0xff] %v3655
  %4161 = vst [vmem:[%s3772] ss:$4 sm:$0xff] %v3656
  %4162 = vst [vmem:[%s3774] ss:$4 sm:$0xff] %v3657
  %v4163 = vld.sshfl [vmem:[#allocation1] sm:$0xff pattern:$0x73625140]
  %v4164 = vld.sshfl [vmem:[#allocation1 + $0x20] sm:$0xff pattern:$0x73625140]
  %4165 = vst [vmem:[#allocation1] ss:$4 sm:$0xff] %v3211
  %4166 = vst [vmem:[%s3764] ss:$4 sm:$0xff] %v3658
  %4167 = vst [vmem:[%s3766] ss:$4 sm:$0xff] %v3659
  %4168 = vst [vmem:[%s3768] ss:$4 sm:$0xff] %v3660
  %4169 = vst [vmem:[%s3770] ss:$4 sm:$0xff] %v3214
  %4170 = vst [vmem:[%s3772] ss:$4 sm:$0xff] %v3661
  %4171 = vst [vmem:[%s3774] ss:$4 sm:$0xff] %v3662
  %v4172 = vld.sshfl [vmem:[#allocation1] sm:$0xff pattern:$0x73625140]
  %v4173 = vld.sshfl [vmem:[#allocation1 + $0x20] sm:$0xff pattern:$0x73625140]
  %4174 = vst [vmem:[#allocation1] ss:$4 sm:$0xff] %v3663
  %4175 = vst [vmem:[%s3764] ss:$4 sm:$0xff] %v3217
  %4176 = vst [vmem:[%s3766] ss:$4 sm:$0xff] %v3664
  %4177 = vst [vmem:[%s3768] ss:$4 sm:$0xff] %v3665
  %4178 = vst [vmem:[%s3770] ss:$4 sm:$0xff] %v3666
  %4179 = vst [vmem:[%s3772] ss:$4 sm:$0xff] %v3220
  %4180 = vst [vmem:[%s3774] ss:$4 sm:$0xff] %v3667
  %v4181 = vld.sshfl [vmem:[#allocation1] sm:$0xff pattern:$0x73625140]
  %v4182 = vld.sshfl [vmem:[#allocation1 + $0x20] sm:$0xff pattern:$0x73625140]
  %4183 = vst [vmem:[#allocation1] ss:$4 sm:$0xff] %v3668
  %4184 = vst [vmem:[%s3764] ss:$4 sm:$0xff] %v3669
  %4185 = vst [vmem:[%s3766] ss:$4 sm:$0xff] %v3223
  %4186 = vst [vmem:[%s3768] ss:$4 sm:$0xff] %v3670
  %4187 = vst [vmem:[%s3770] ss:$4 sm:$0xff] %v3671
  %4188 = vst [vmem:[%s3772] ss:$4 sm:$0xff] %v3672
  %4189 = vst [vmem:[%s3774] ss:$4 sm:$0xff] %v3226
  %v4190 = vld.sshfl [vmem:[#allocation1] sm:$0xff pattern:$0x73625140]
  %v4191 = vld.sshfl [vmem:[#allocation1 + $0x20] sm:$0xff pattern:$0x73625140]
  %4192 = vst [vmem:[#allocation1] ss:$4 sm:$0xff] %v3673
  %4193 = vst [vmem:[%s3764] ss:$4 sm:$0xff] %v3674
  %4194 = vst [vmem:[%s3766] ss:$4 sm:$0xff] %v3675
  %4195 = vst [vmem:[%s3768] ss:$4 sm:$0xff] %v3229
  %4196 = vst [vmem:[%s3770] ss:$4 sm:$0xff] %v3676
  %4197 = vst [vmem:[%s3772] ss:$4 sm:$0xff] %v3677
  %4198 = vst [vmem:[%s3774] ss:$4 sm:$0xff] %v3678
  %v4199 = vld.sshfl [vmem:[#allocation1] sm:$0xff pattern:$0x73625140]
  %v4200 = vld.sshfl [vmem:[#allocation1 + $0x20] sm:$0xff pattern:$0x73625140]
  %4201 = vst [vmem:[#allocation1] ss:$4 sm:$0xff] %v3232
  %4202 = vst [vmem:[%s3764] ss:$4 sm:$0xff] %v3679
  %4203 = vst [vmem:[%s3766] ss:$4 sm:$0xff] %v3680
  %4204 = vst [vmem:[%s3768] ss:$4 sm:$0xff] %v3681
  %4205 = vst [vmem:[%s3770] ss:$4 sm:$0xff] %v3235
  %4206 = vst [vmem:[%s3772] ss:$4 sm:$0xff] %v3682
  %4207 = vst [vmem:[%s3774] ss:$4 sm:$0xff] %v3683
  %v4208 = vld.sshfl [vmem:[#allocation1] sm:$0xff pattern:$0x73625140]
  %v4209 = vld.sshfl [vmem:[#allocation1 + $0x20] sm:$0xff pattern:$0x73625140]
  %4210 = vst [vmem:[#allocation1] ss:$4 sm:$0xff] %v3684
  %4211 = vst [vmem:[%s3764] ss:$4 sm:$0xff] %v3238
  %4212 = vst [vmem:[%s3766] ss:$4 sm:$0xff] %v3685
  %4213 = vst [vmem:[%s3768] ss:$4 sm:$0xff] %v3686
  %4214 = vst [vmem:[%s3770] ss:$4 sm:$0xff] %v3687
  %4215 = vst [vmem:[%s3772] ss:$4 sm:$0xff] %v3241
  %4216 = vst [vmem:[%s3774] ss:$4 sm:$0xff] %v3688
  %v4217 = vld.sshfl [vmem:[#allocation1] sm:$0xff pattern:$0x73625140]
  %v4218 = vld.sshfl [vmem:[#allocation1 + $0x20] sm:$0xff pattern:$0x73625140]
  %4219 = vst [vmem:[#allocation1] ss:$4 sm:$0xff] %v3689
  %4220 = vst [vmem:[%s3764] ss:$4 sm:$0xff] %v3690
  %4221 = vst [vmem:[%s3766] ss:$4 sm:$0xff] %v3244
  %4222 = vst [vmem:[%s3768] ss:$4 sm:$0xff] %v3691
  %4223 = vst [vmem:[%s3770] ss:$4 sm:$0xff] %v3692
  %4224 = vst [vmem:[%s3772] ss:$4 sm:$0xff] %v3693
  %4225 = vst [vmem:[%s3774] ss:$4 sm:$0xff] %v3247
  %v4226 = vld.sshfl [vmem:[#allocation1] sm:$0xff pattern:$0x73625140]
  %v4227 = vld.sshfl [vmem:[#allocation1 + $0x20] sm:$0xff pattern:$0x73625140]
  %4228 = vst [vmem:[#allocation1] ss:$4 sm:$0xff] %v3694
  %4229 = vst [vmem:[%s3764] ss:$4 sm:$0xff] %v3695
  %4230 = vst [vmem:[%s3766] ss:$4 sm:$0xff] %v3696
  %4231 = vst [vmem:[%s3768] ss:$4 sm:$0xff] %v3250
  %4232 = vst [vmem:[%s3770] ss:$4 sm:$0xff] %v3697
  %4233 = vst [vmem:[%s3772] ss:$4 sm:$0xff] %v3698
  %4234 = vst [vmem:[%s3774] ss:$4 sm:$0xff] %v3699
  %v4235 = vld.sshfl [vmem:[#allocation1] sm:$0xff pattern:$0x73625140]
  %v4236 = vld.sshfl [vmem:[#allocation1 + $0x20] sm:$0xff pattern:$0x73625140]
  %4237 = vst [vmem:[#allocation1] ss:$4 sm:$0xff] %v3253
  %4238 = vst [vmem:[%s3764] ss:$4 sm:$0xff] %v3700
  %4239 = vst [vmem:[%s3766] ss:$4 sm:$0xff] %v3701
  %4240 = vst [vmem:[%s3768] ss:$4 sm:$0xff] %v3702
  %4241 = vst [vmem:[%s3770] ss:$4 sm:$0xff] %v3256
  %4242 = vst [vmem:[%s3772] ss:$4 sm:$0xff] %v3703
  %4243 = vst [vmem:[%s3774] ss:$4 sm:$0xff] %v3704
  %v4244 = vld.sshfl [vmem:[#allocation1] sm:$0xff pattern:$0x73625140]
  %v4245 = vld.sshfl [vmem:[#allocation1 + $0x20] sm:$0xff pattern:$0x73625140]
  %4246 = vst [vmem:[#allocation1] ss:$4 sm:$0xff] %v3705
  %4247 = vst [vmem:[%s3764] ss:$4 sm:$0xff] %v3259
  %4248 = vst [vmem:[%s3766] ss:$4 sm:$0xff] %v3706
  %4249 = vst [vmem:[%s3768] ss:$4 sm:$0xff] %v3707
  %4250 = vst [vmem:[%s3770] ss:$4 sm:$0xff] %v3708
  %4251 = vst [vmem:[%s3772] ss:$4 sm:$0xff] %v3262
  %4252 = vst [vmem:[%s3774] ss:$4 sm:$0xff] %v3709
  %v4253 = vld.sshfl [vmem:[#allocation1] sm:$0xff pattern:$0x73625140]
  %v4254 = vld.sshfl [vmem:[#allocation1 + $0x20] sm:$0xff pattern:$0x73625140]
  %4255 = vst [vmem:[#allocation1] ss:$4 sm:$0xff] %v3710
  %4256 = vst [vmem:[%s3764] ss:$4 sm:$0xff] %v3711
  %4257 = vst [vmem:[%s3766] ss:$4 sm:$0xff] %v3265
  %4258 = vst [vmem:[%s3768] ss:$4 sm:$0xff] %v3712
  %4259 = vst [vmem:[%s3770] ss:$4 sm:$0xff] %v3713
  %4260 = vst [vmem:[%s3772] ss:$4 sm:$0xff] %v3714
  %4261 = vst [vmem:[%s3774] ss:$4 sm:$0xff] %v3268
  %v4262 = vld.sshfl [vmem:[#allocation1] sm:$0xff pattern:$0x73625140]
  %v4263 = vld.sshfl [vmem:[#allocation1 + $0x20] sm:$0xff pattern:$0x73625140]
  %4264 = vst [vmem:[#allocation1] ss:$4 sm:$0xff] %v3715
  %4265 = vst [vmem:[%s3764] ss:$4 sm:$0xff] %v3716
  %4266 = vst [vmem:[%s3766] ss:$4 sm:$0xff] %v3717
  %4267 = vst [vmem:[%s3768] ss:$4 sm:$0xff] %v3271
  %4268 = vst [vmem:[%s3770] ss:$4 sm:$0xff] %v3718
  %4269 = vst [vmem:[%s3772] ss:$4 sm:$0xff] %v3719
  %4270 = vst [vmem:[%s3774] ss:$4 sm:$0xff] %v3720
  %v4271 = vld.sshfl [vmem:[#allocation1] sm:$0xff pattern:$0x73625140]
  %v4272 = vld.sshfl [vmem:[#allocation1 + $0x20] sm:$0xff pattern:$0x73625140]
  %4273 = vst [vmem:[#allocation1] ss:$4 sm:$0xff] %v3274
  %4274 = vst [vmem:[%s3764] ss:$4 sm:$0xff] %v3721
  %4275 = vst [vmem:[%s3766] ss:$4 sm:$0xff] %v3722
  %4276 = vst [vmem:[%s3768] ss:$4 sm:$0xff] %v3723
  %4277 = vst [vmem:[%s3770] ss:$4 sm:$0xff] %v3277
  %4278 = vst [vmem:[%s3772] ss:$4 sm:$0xff] %v3724
  %4279 = vst [vmem:[%s3774] ss:$4 sm:$0xff] %v3725
  %v4280 = vld.sshfl [vmem:[#allocation1] sm:$0xff pattern:$0x73625140]
  %v4281 = vld.sshfl [vmem:[#allocation1 + $0x20] sm:$0xff pattern:$0x73625140]
  %4282 = vst [vmem:[#allocation1] ss:$4 sm:$0xff] %v3726
  %4283 = vst [vmem:[%s3764] ss:$4 sm:$0xff] %v3280
  %4284 = vst [vmem:[%s3766] ss:$4 sm:$0xff] %v3727
  %4285 = vst [vmem:[%s3768] ss:$4 sm:$0xff] %v3728
  %4286 = vst [vmem:[%s3770] ss:$4 sm:$0xff] %v3729
  %4287 = vst [vmem:[%s3772] ss:$4 sm:$0xff] %v3283
  %4288 = vst [vmem:[%s3774] ss:$4 sm:$0xff] %v3730
  %v4289 = vld.sshfl [vmem:[#allocation1] sm:$0xff pattern:$0x73625140]
  %v4290 = vld.sshfl [vmem:[#allocation1 + $0x20] sm:$0xff pattern:$0x73625140]
  %4291 = vst [vmem:[#allocation1] ss:$4 sm:$0xff] %v3731
  %4292 = vst [vmem:[%s3764] ss:$4 sm:$0xff] %v3732
  %4293 = vst [vmem:[%s3766] ss:$4 sm:$0xff] %v3286
  %4294 = vst [vmem:[%s3768] ss:$4 sm:$0xff] %v3733
  %4295 = vst [vmem:[%s3770] ss:$4 sm:$0xff] %v3734
  %4296 = vst [vmem:[%s3772] ss:$4 sm:$0xff] %v3735
  %4297 = vst [vmem:[%s3774] ss:$4 sm:$0xff] %v3289
  %v4298 = vld.sshfl [vmem:[#allocation1] sm:$0xff pattern:$0x73625140]
  %v4299 = vld.sshfl [vmem:[#allocation1 + $0x20] sm:$0xff pattern:$0x73625140]
  %4300 = vst [vmem:[#allocation1] ss:$4 sm:$0xff] %v3736
  %4301 = vst [vmem:[%s3764] ss:$4 sm:$0xff] %v3737
  %4302 = vst [vmem:[%s3766] ss:$4 sm:$0xff] %v3738
  %4303 = vst [vmem:[%s3768] ss:$4 sm:$0xff] %v3292
  %4304 = vst [vmem:[%s3770] ss:$4 sm:$0xff] %v3739
  %4305 = vst [vmem:[%s3772] ss:$4 sm:$0xff] %v3740
  %4306 = vst [vmem:[%s3774] ss:$4 sm:$0xff] %v3741
  %v4307 = vld.sshfl [vmem:[#allocation1] sm:$0xff pattern:$0x73625140]
  %v4308 = vld.sshfl [vmem:[#allocation1 + $0x20] sm:$0xff pattern:$0x73625140]
  %4309 = vst [vmem:[#allocation1] ss:$4 sm:$0xff] %v3295
  %4310 = vst [vmem:[%s3764] ss:$4 sm:$0xff] %v3742
  %4311 = vst [vmem:[%s3766] ss:$4 sm:$0xff] %v3743
  %4312 = vst [vmem:[%s3768] ss:$4 sm:$0xff] %v3744
  %4313 = vst [vmem:[%s3770] ss:$4 sm:$0xff] %v3298
  %4314 = vst [vmem:[%s3772] ss:$4 sm:$0xff] %v3745
  %4315 = vst [vmem:[%s3774] ss:$4 sm:$0xff] %v3746
  %v4316 = vld.sshfl [vmem:[#allocation1] sm:$0xff pattern:$0x73625140]
  %v4317 = vld.sshfl [vmem:[#allocation1 + $0x20] sm:$0xff pattern:$0x73625140]
  %4318 = vst [vmem:[#allocation1] ss:$4 sm:$0xff] %v3747
  %4319 = vst [vmem:[%s3764] ss:$4 sm:$0xff] %v3301
  %4320 = vst [vmem:[%s3766] ss:$4 sm:$0xff] %v3748
  %4321 = vst [vmem:[%s3768] ss:$4 sm:$0xff] %v3749
  %4322 = vst [vmem:[%s3770] ss:$4 sm:$0xff] %v3750
  %4323 = vst [vmem:[%s3772] ss:$4 sm:$0xff] %v3304
  %4324 = vst [vmem:[%s3774] ss:$4 sm:$0xff] %v3751
  %v4325 = vld.sshfl [vmem:[#allocation1] sm:$0xff pattern:$0x73625140]
  %v4326 = vld.sshfl [vmem:[#allocation1 + $0x20] sm:$0xff pattern:$0x73625140]
  %4327 = vst [vmem:[#allocation1] ss:$4 sm:$0xff] %v3752
  %4328 = vst [vmem:[%s3764] ss:$4 sm:$0xff] %v3753
  %4329 = vst [vmem:[%s3766] ss:$4 sm:$0xff] %v3307
  %4330 = vst [vmem:[%s3768] ss:$4 sm:$0xff] %v3754
  %4331 = vst [vmem:[%s3770] ss:$4 sm:$0xff] %v3755
  %4332 = vst [vmem:[%s3772] ss:$4 sm:$0xff] %v3756
  %4333 = vst [vmem:[%s3774] ss:$4 sm:$0xff] %v3310
  %v4334 = vld.sshfl [vmem:[#allocation1] sm:$0xff pattern:$0x73625140]
  %v4335 = vld.sshfl [vmem:[#allocation1 + $0x20] sm:$0xff pattern:$0x73625140]
  %4336 = vst [vmem:[#allocation1] ss:$4 sm:$0xff] %v3757
  %4337 = vst [vmem:[%s3764] ss:$4 sm:$0xff] %v3758
  %4338 = vst [vmem:[%s3766] ss:$4 sm:$0xff] %v3759
  %4339 = vst [vmem:[%s3768] ss:$4 sm:$0xff] %v3313
  %4340 = vst [vmem:[%s3770] ss:$4 sm:$0xff] %v3760
  %4341 = vst [vmem:[%s3772] ss:$4 sm:$0xff] %v3761
  %4342 = vst [vmem:[%s3774] ss:$4 sm:$0xff] %v3762
  %v4343 = vld.sshfl [vmem:[#allocation1] sm:$0xff pattern:$0x73625140]
  %v4344 = vld.sshfl [vmem:[#allocation1 + $0x20] sm:$0xff pattern:$0x73625140]
  %v4473 = vsel %vm1583, %v3776, -inf
  %vm4474 = vcmask 259072
  %v4475 = vsel %vm4474, %v3777, -inf
  %v4476 = vmax.f32 %v4473, %v4475
  %v4477 = vrot.slane %v4476, 4
  %v4478 = vmax.f32 %v4476, %v4477
  %v4479 = vrot.slane %v4478, 2
  %v4480 = vmax.f32 %v4478, %v4479
  %v4481 = vrot.slane %v4480, 1
  %v4482 = vmax.f32 %v4480, %v4481
  %v4483 = vsel %vm1583, %v3785, -inf
  %v4484 = vsel %vm4474, %v3786, -inf
  %v4485 = vmax.f32 %v4483, %v4484
  %v4486 = vrot.slane %v4485, 4
  %v4487 = vmax.f32 %v4485, %v4486
  %v4488 = vrot.slane %v4487, 2
  %v4489 = vmax.f32 %v4487, %v4488
  %v4490 = vrot.slane %v4489, 1
  %v4491 = vmax.f32 %v4489, %v4490
  %v4492 = vsel %vm1583, %v3794, -inf
  %v4493 = vsel %vm4474, %v3795, -inf
  %v4494 = vmax.f32 %v4492, %v4493
  %v4495 = vrot.slane %v4494, 4
  %v4496 = vmax.f32 %v4494, %v4495
  %v4497 = vrot.slane %v4496, 2
  %v4498 = vmax.f32 %v4496, %v4497
  %v4499 = vrot.slane %v4498, 1
  %v4500 = vmax.f32 %v4498, %v4499
  %v4501 = vsel %vm1583, %v3803, -inf
  %v4502 = vsel %vm4474, %v3804, -inf
  %v4503 = vmax.f32 %v4501, %v4502
  %v4504 = vrot.slane %v4503, 4
  %v4505 = vmax.f32 %v4503, %v4504
  %v4506 = vrot.slane %v4505, 2
  %v4507 = vmax.f32 %v4505, %v4506
  %v4508 = vrot.slane %v4507, 1
  %v4509 = vmax.f32 %v4507, %v4508
  %v4510 = vsel %vm1583, %v3812, -inf
  %v4511 = vsel %vm4474, %v3813, -inf
  %v4512 = vmax.f32 %v4510, %v4511
  %v4513 = vrot.slane %v4512, 4
  %v4514 = vmax.f32 %v4512, %v4513
  %v4515 = vrot.slane %v4514, 2
  %v4516 = vmax.f32 %v4514, %v4515
  %v4517 = vrot.slane %v4516, 1
  %v4518 = vmax.f32 %v4516, %v4517
  %v4519 = vsel %vm1583, %v3821, -inf
  %v4520 = vsel %vm4474, %v3822, -inf
  %v4521 = vmax.f32 %v4519, %v4520
  %v4522 = vrot.slane %v4521, 4
  %v4523 = vmax.f32 %v4521, %v4522
  %v4524 = vrot.slane %v4523, 2
  %v4525 = vmax.f32 %v4523, %v4524
  %v4526 = vrot.slane %v4525, 1
  %v4527 = vmax.f32 %v4525, %v4526
  %v4528 = vsel %vm1583, %v3830, -inf
  %v4529 = vsel %vm4474, %v3831, -inf
  %v4530 = vmax.f32 %v4528, %v4529
  %v4531 = vrot.slane %v4530, 4
  %v4532 = vmax.f32 %v4530, %v4531
  %v4533 = vrot.slane %v4532, 2
  %v4534 = vmax.f32 %v4532, %v4533
  %v4535 = vrot.slane %v4534, 1
  %v4536 = vmax.f32 %v4534, %v4535
  %v4537 = vsel %vm1583, %v3839, -inf
  %v4538 = vsel %vm4474, %v3840, -inf
  %v4539 = vmax.f32 %v4537, %v4538
  %v4540 = vrot.slane %v4539, 4
  %v4541 = vmax.f32 %v4539, %v4540
  %v4542 = vrot.slane %v4541, 2
  %v4543 = vmax.f32 %v4541, %v4542
  %v4544 = vrot.slane %v4543, 1
  %v4545 = vmax.f32 %v4543, %v4544
  %v4546 = vsel %vm1583, %v3848, -inf
  %v4547 = vsel %vm4474, %v3849, -inf
  %v4548 = vmax.f32 %v4546, %v4547
  %v4549 = vrot.slane %v4548, 4
  %v4550 = vmax.f32 %v4548, %v4549
  %v4551 = vrot.slane %v4550, 2
  %v4552 = vmax.f32 %v4550, %v4551
  %v4553 = vrot.slane %v4552, 1
  %v4554 = vmax.f32 %v4552, %v4553
  %v4555 = vsel %vm1583, %v3857, -inf
  %v4556 = vsel %vm4474, %v3858, -inf
  %v4557 = vmax.f32 %v4555, %v4556
  %v4558 = vrot.slane %v4557, 4
  %v4559 = vmax.f32 %v4557, %v4558
  %v4560 = vrot.slane %v4559, 2
  %v4561 = vmax.f32 %v4559, %v4560
  %v4562 = vrot.slane %v4561, 1
  %v4563 = vmax.f32 %v4561, %v4562
  %v4564 = vsel %vm1583, %v3866, -inf
  %v4565 = vsel %vm4474, %v3867, -inf
  %v4566 = vmax.f32 %v4564, %v4565
  %v4567 = vrot.slane %v4566, 4
  %v4568 = vmax.f32 %v4566, %v4567
  %v4569 = vrot.slane %v4568, 2
  %v4570 = vmax.f32 %v4568, %v4569
  %v4571 = vrot.slane %v4570, 1
  %v4572 = vmax.f32 %v4570, %v4571
  %v4573 = vsel %vm1583, %v3875, -inf
  %v4574 = vsel %vm4474, %v3876, -inf
  %v4575 = vmax.f32 %v4573, %v4574
  %v4576 = vrot.slane %v4575, 4
  %v4577 = vmax.f32 %v4575, %v4576
  %v4578 = vrot.slane %v4577, 2
  %v4579 = vmax.f32 %v4577, %v4578
  %v4580 = vrot.slane %v4579, 1
  %v4581 = vmax.f32 %v4579, %v4580
  %v4582 = vsel %vm1583, %v3884, -inf
  %v4583 = vsel %vm4474, %v3885, -inf
  %v4584 = vmax.f32 %v4582, %v4583
  %v4585 = vrot.slane %v4584, 4
  %v4586 = vmax.f32 %v4584, %v4585
  %v4587 = vrot.slane %v4586, 2
  %v4588 = vmax.f32 %v4586, %v4587
  %v4589 = vrot.slane %v4588, 1
  %v4590 = vmax.f32 %v4588, %v4589
  %v4591 = vsel %vm1583, %v3893, -inf
  %v4592 = vsel %vm4474, %v3894, -inf
  %v4593 = vmax.f32 %v4591, %v4592
  %v4594 = vrot.slane %v4593, 4
  %v4595 = vmax.f32 %v4593, %v4594
  %v4596 = vrot.slane %v4595, 2
  %v4597 = vmax.f32 %v4595, %v4596
  %v4598 = vrot.slane %v4597, 1
  %v4599 = vmax.f32 %v4597, %v4598
  %v4600 = vsel %vm1583, %v3902, -inf
  %v4601 = vsel %vm4474, %v3903, -inf
  %v4602 = vmax.f32 %v4600, %v4601
  %v4603 = vrot.slane %v4602, 4
  %v4604 = vmax.f32 %v4602, %v4603
  %v4605 = vrot.slane %v4604, 2
  %v4606 = vmax.f32 %v4604, %v4605
  %v4607 = vrot.slane %v4606, 1
  %v4608 = vmax.f32 %v4606, %v4607
  %v4609 = vsel %vm1583, %v3911, -inf
  %v4610 = vsel %vm4474, %v3912, -inf
  %v4611 = vmax.f32 %v4609, %v4610
  %v4612 = vrot.slane %v4611, 4
  %v4613 = vmax.f32 %v4611, %v4612
  %v4614 = vrot.slane %v4613, 2
  %v4615 = vmax.f32 %v4613, %v4614
  %v4616 = vrot.slane %v4615, 1
  %v4617 = vmax.f32 %v4615, %v4616
  %v4618 = vsel %vm1583, %v3920, -inf
  %v4619 = vsel %vm4474, %v3921, -inf
  %v4620 = vmax.f32 %v4618, %v4619
  %v4621 = vrot.slane %v4620, 4
  %v4622 = vmax.f32 %v4620, %v4621
  %v4623 = vrot.slane %v4622, 2
  %v4624 = vmax.f32 %v4622, %v4623
  %v4625 = vrot.slane %v4624, 1
  %v4626 = vmax.f32 %v4624, %v4625
  %v4627 = vsel %vm1583, %v3929, -inf
  %v4628 = vsel %vm4474, %v3930, -inf
  %v4629 = vmax.f32 %v4627, %v4628
  %v4630 = vrot.slane %v4629, 4
  %v4631 = vmax.f32 %v4629, %v4630
  %v4632 = vrot.slane %v4631, 2
  %v4633 = vmax.f32 %v4631, %v4632
  %v4634 = vrot.slane %v4633, 1
  %v4635 = vmax.f32 %v4633, %v4634
  %v4636 = vsel %vm1583, %v3938, -inf
  %v4637 = vsel %vm4474, %v3939, -inf
  %v4638 = vmax.f32 %v4636, %v4637
  %v4639 = vrot.slane %v4638, 4
  %v4640 = vmax.f32 %v4638, %v4639
  %v4641 = vrot.slane %v4640, 2
  %v4642 = vmax.f32 %v4640, %v4641
  %v4643 = vrot.slane %v4642, 1
  %v4644 = vmax.f32 %v4642, %v4643
  %v4645 = vsel %vm1583, %v3947, -inf
  %v4646 = vsel %vm4474, %v3948, -inf
  %v4647 = vmax.f32 %v4645, %v4646
  %v4648 = vrot.slane %v4647, 4
  %v4649 = vmax.f32 %v4647, %v4648
  %v4650 = vrot.slane %v4649, 2
  %v4651 = vmax.f32 %v4649, %v4650
  %v4652 = vrot.slane %v4651, 1
  %v4653 = vmax.f32 %v4651, %v4652
  %v4654 = vsel %vm1583, %v3956, -inf
  %v4655 = vsel %vm4474, %v3957, -inf
  %v4656 = vmax.f32 %v4654, %v4655
  %v4657 = vrot.slane %v4656, 4
  %v4658 = vmax.f32 %v4656, %v4657
  %v4659 = vrot.slane %v4658, 2
  %v4660 = vmax.f32 %v4658, %v4659
  %v4661 = vrot.slane %v4660, 1
  %v4662 = vmax.f32 %v4660, %v4661
  %v4663 = vsel %vm1583, %v3965, -inf
  %v4664 = vsel %vm4474, %v3966, -inf
  %v4665 = vmax.f32 %v4663, %v4664
  %v4666 = vrot.slane %v4665, 4
  %v4667 = vmax.f32 %v4665, %v4666
  %v4668 = vrot.slane %v4667, 2
  %v4669 = vmax.f32 %v4667, %v4668
  %v4670 = vrot.slane %v4669, 1
  %v4671 = vmax.f32 %v4669, %v4670
  %v4672 = vsel %vm1583, %v3974, -inf
  %v4673 = vsel %vm4474, %v3975, -inf
  %v4674 = vmax.f32 %v4672, %v4673
  %v4675 = vrot.slane %v4674, 4
  %v4676 = vmax.f32 %v4674, %v4675
  %v4677 = vrot.slane %v4676, 2
  %v4678 = vmax.f32 %v4676, %v4677
  %v4679 = vrot.slane %v4678, 1
  %v4680 = vmax.f32 %v4678, %v4679
  %v4681 = vsel %vm1583, %v3983, -inf
  %v4682 = vsel %vm4474, %v3984, -inf
  %v4683 = vmax.f32 %v4681, %v4682
  %v4684 = vrot.slane %v4683, 4
  %v4685 = vmax.f32 %v4683, %v4684
  %v4686 = vrot.slane %v4685, 2
  %v4687 = vmax.f32 %v4685, %v4686
  %v4688 = vrot.slane %v4687, 1
  %v4689 = vmax.f32 %v4687, %v4688
  %v4690 = vsel %vm1583, %v3992, -inf
  %v4691 = vsel %vm4474, %v3993, -inf
  %v4692 = vmax.f32 %v4690, %v4691
  %v4693 = vrot.slane %v4692, 4
  %v4694 = vmax.f32 %v4692, %v4693
  %v4695 = vrot.slane %v4694, 2
  %v4696 = vmax.f32 %v4694, %v4695
  %v4697 = vrot.slane %v4696, 1
  %v4698 = vmax.f32 %v4696, %v4697
  %v4699 = vsel %vm1583, %v4001, -inf
  %v4700 = vsel %vm4474, %v4002, -inf
  %v4701 = vmax.f32 %v4699, %v4700
  %v4702 = vrot.slane %v4701, 4
  %v4703 = vmax.f32 %v4701, %v4702
  %v4704 = vrot.slane %v4703, 2
  %v4705 = vmax.f32 %v4703, %v4704
  %v4706 = vrot.slane %v4705, 1
  %v4707 = vmax.f32 %v4705, %v4706
  %v4708 = vsel %vm1583, %v4010, -inf
  %v4709 = vsel %vm4474, %v4011, -inf
  %v4710 = vmax.f32 %v4708, %v4709
  %v4711 = vrot.slane %v4710, 4
  %v4712 = vmax.f32 %v4710, %v4711
  %v4713 = vrot.slane %v4712, 2
  %v4714 = vmax.f32 %v4712, %v4713
  %v4715 = vrot.slane %v4714, 1
  %v4716 = vmax.f32 %v4714, %v4715
  %v4717 = vsel %vm1583, %v4019, -inf
  %v4718 = vsel %vm4474, %v4020, -inf
  %v4719 = vmax.f32 %v4717, %v4718
  %v4720 = vrot.slane %v4719, 4
  %v4721 = vmax.f32 %v4719, %v4720
  %v4722 = vrot.slane %v4721, 2
  %v4723 = vmax.f32 %v4721, %v4722
  %v4724 = vrot.slane %v4723, 1
  %v4725 = vmax.f32 %v4723, %v4724
  %v4726 = vsel %vm1583, %v4028, -inf
  %v4727 = vsel %vm4474, %v4029, -inf
  %v4728 = vmax.f32 %v4726, %v4727
  %v4729 = vrot.slane %v4728, 4
  %v4730 = vmax.f32 %v4728, %v4729
  %v4731 = vrot.slane %v4730, 2
  %v4732 = vmax.f32 %v4730, %v4731
  %v4733 = vrot.slane %v4732, 1
  %v4734 = vmax.f32 %v4732, %v4733
  %v4735 = vsel %vm1583, %v4037, -inf
  %v4736 = vsel %vm4474, %v4038, -inf
  %v4737 = vmax.f32 %v4735, %v4736
  %v4738 = vrot.slane %v4737, 4
  %v4739 = vmax.f32 %v4737, %v4738
  %v4740 = vrot.slane %v4739, 2
  %v4741 = vmax.f32 %v4739, %v4740
  %v4742 = vrot.slane %v4741, 1
  %v4743 = vmax.f32 %v4741, %v4742
  %v4744 = vsel %vm1583, %v4046, -inf
  %v4745 = vsel %vm4474, %v4047, -inf
  %v4746 = vmax.f32 %v4744, %v4745
  %v4747 = vrot.slane %v4746, 4
  %v4748 = vmax.f32 %v4746, %v4747
  %v4749 = vrot.slane %v4748, 2
  %v4750 = vmax.f32 %v4748, %v4749
  %v4751 = vrot.slane %v4750, 1
  %v4752 = vmax.f32 %v4750, %v4751
  %v4753 = vsel %vm1583, %v4055, -inf
  %v4754 = vsel %vm4474, %v4056, -inf
  %v4755 = vmax.f32 %v4753, %v4754
  %v4756 = vrot.slane %v4755, 4
  %v4757 = vmax.f32 %v4755, %v4756
  %v4758 = vrot.slane %v4757, 2
  %v4759 = vmax.f32 %v4757, %v4758
  %v4760 = vrot.slane %v4759, 1
  %v4761 = vmax.f32 %v4759, %v4760
  %v4762 = vsel %vm1583, %v4064, -inf
  %v4763 = vsel %vm4474, %v4065, -inf
  %v4764 = vmax.f32 %v4762, %v4763
  %v4765 = vrot.slane %v4764, 4
  %v4766 = vmax.f32 %v4764, %v4765
  %v4767 = vrot.slane %v4766, 2
  %v4768 = vmax.f32 %v4766, %v4767
  %v4769 = vrot.slane %v4768, 1
  %v4770 = vmax.f32 %v4768, %v4769
  %v4771 = vsel %vm1583, %v4073, -inf
  %v4772 = vsel %vm4474, %v4074, -inf
  %v4773 = vmax.f32 %v4771, %v4772
  %v4774 = vrot.slane %v4773, 4
  %v4775 = vmax.f32 %v4773, %v4774
  %v4776 = vrot.slane %v4775, 2
  %v4777 = vmax.f32 %v4775, %v4776
  %v4778 = vrot.slane %v4777, 1
  %v4779 = vmax.f32 %v4777, %v4778
  %v4780 = vsel %vm1583, %v4082, -inf
  %v4781 = vsel %vm4474, %v4083, -inf
  %v4782 = vmax.f32 %v4780, %v4781
  %v4783 = vrot.slane %v4782, 4
  %v4784 = vmax.f32 %v4782, %v4783
  %v4785 = vrot.slane %v4784, 2
  %v4786 = vmax.f32 %v4784, %v4785
  %v4787 = vrot.slane %v4786, 1
  %v4788 = vmax.f32 %v4786, %v4787
  %v4789 = vsel %vm1583, %v4091, -inf
  %v4790 = vsel %vm4474, %v4092, -inf
  %v4791 = vmax.f32 %v4789, %v4790
  %v4792 = vrot.slane %v4791, 4
  %v4793 = vmax.f32 %v4791, %v4792
  %v4794 = vrot.slane %v4793, 2
  %v4795 = vmax.f32 %v4793, %v4794
  %v4796 = vrot.slane %v4795, 1
  %v4797 = vmax.f32 %v4795, %v4796
  %v4798 = vsel %vm1583, %v4100, -inf
  %v4799 = vsel %vm4474, %v4101, -inf
  %v4800 = vmax.f32 %v4798, %v4799
  %v4801 = vrot.slane %v4800, 4
  %v4802 = vmax.f32 %v4800, %v4801
  %v4803 = vrot.slane %v4802, 2
  %v4804 = vmax.f32 %v4802, %v4803
  %v4805 = vrot.slane %v4804, 1
  %v4806 = vmax.f32 %v4804, %v4805
  %v4807 = vsel %vm1583, %v4109, -inf
  %v4808 = vsel %vm4474, %v4110, -inf
  %v4809 = vmax.f32 %v4807, %v4808
  %v4810 = vrot.slane %v4809, 4
  %v4811 = vmax.f32 %v4809, %v4810
  %v4812 = vrot.slane %v4811, 2
  %v4813 = vmax.f32 %v4811, %v4812
  %v4814 = vrot.slane %v4813, 1
  %v4815 = vmax.f32 %v4813, %v4814
  %v4816 = vsel %vm1583, %v4118, -inf
  %v4817 = vsel %vm4474, %v4119, -inf
  %v4818 = vmax.f32 %v4816, %v4817
  %v4819 = vrot.slane %v4818, 4
  %v4820 = vmax.f32 %v4818, %v4819
  %v4821 = vrot.slane %v4820, 2
  %v4822 = vmax.f32 %v4820, %v4821
  %v4823 = vrot.slane %v4822, 1
  %v4824 = vmax.f32 %v4822, %v4823
  %v4825 = vsel %vm1583, %v4127, -inf
  %v4826 = vsel %vm4474, %v4128, -inf
  %v4827 = vmax.f32 %v4825, %v4826
  %v4828 = vrot.slane %v4827, 4
  %v4829 = vmax.f32 %v4827, %v4828
  %v4830 = vrot.slane %v4829, 2
  %v4831 = vmax.f32 %v4829, %v4830
  %v4832 = vrot.slane %v4831, 1
  %v4833 = vmax.f32 %v4831, %v4832
  %v4834 = vsel %vm1583, %v4136, -inf
  %v4835 = vsel %vm4474, %v4137, -inf
  %v4836 = vmax.f32 %v4834, %v4835
  %v4837 = vrot.slane %v4836, 4
  %v4838 = vmax.f32 %v4836, %v4837
  %v4839 = vrot.slane %v4838, 2
  %v4840 = vmax.f32 %v4838, %v4839
  %v4841 = vrot.slane %v4840, 1
  %v4842 = vmax.f32 %v4840, %v4841
  %v4843 = vsel %vm1583, %v4145, -inf
  %v4844 = vsel %vm4474, %v4146, -inf
  %v4845 = vmax.f32 %v4843, %v4844
  %v4846 = vrot.slane %v4845, 4
  %v4847 = vmax.f32 %v4845, %v4846
  %v4848 = vrot.slane %v4847, 2
  %v4849 = vmax.f32 %v4847, %v4848
  %v4850 = vrot.slane %v4849, 1
  %v4851 = vmax.f32 %v4849, %v4850
  %v4852 = vsel %vm1583, %v4154, -inf
  %v4853 = vsel %vm4474, %v4155, -inf
  %v4854 = vmax.f32 %v4852, %v4853
  %v4855 = vrot.slane %v4854, 4
  %v4856 = vmax.f32 %v4854, %v4855
  %v4857 = vrot.slane %v4856, 2
  %v4858 = vmax.f32 %v4856, %v4857
  %v4859 = vrot.slane %v4858, 1
  %v4860 = vmax.f32 %v4858, %v4859
  %v4861 = vsel %vm1583, %v4163, -inf
  %v4862 = vsel %vm4474, %v4164, -inf
  %v4863 = vmax.f32 %v4861, %v4862
  %v4864 = vrot.slane %v4863, 4
  %v4865 = vmax.f32 %v4863, %v4864
  %v4866 = vrot.slane %v4865, 2
  %v4867 = vmax.f32 %v4865, %v4866
  %v4868 = vrot.slane %v4867, 1
  %v4869 = vmax.f32 %v4867, %v4868
  %v4870 = vsel %vm1583, %v4172, -inf
  %v4871 = vsel %vm4474, %v4173, -inf
  %v4872 = vmax.f32 %v4870, %v4871
  %v4873 = vrot.slane %v4872, 4
  %v4874 = vmax.f32 %v4872, %v4873
  %v4875 = vrot.slane %v4874, 2
  %v4876 = vmax.f32 %v4874, %v4875
  %v4877 = vrot.slane %v4876, 1
  %v4878 = vmax.f32 %v4876, %v4877
  %v4879 = vsel %vm1583, %v4181, -inf
  %v4880 = vsel %vm4474, %v4182, -inf
  %v4881 = vmax.f32 %v4879, %v4880
  %v4882 = vrot.slane %v4881, 4
  %v4883 = vmax.f32 %v4881, %v4882
  %v4884 = vrot.slane %v4883, 2
  %v4885 = vmax.f32 %v4883, %v4884
  %v4886 = vrot.slane %v4885, 1
  %v4887 = vmax.f32 %v4885, %v4886
  %v4888 = vsel %vm1583, %v4190, -inf
  %v4889 = vsel %vm4474, %v4191, -inf
  %v4890 = vmax.f32 %v4888, %v4889
  %v4891 = vrot.slane %v4890, 4
  %v4892 = vmax.f32 %v4890, %v4891
  %v4893 = vrot.slane %v4892, 2
  %v4894 = vmax.f32 %v4892, %v4893
  %v4895 = vrot.slane %v4894, 1
  %v4896 = vmax.f32 %v4894, %v4895
  %v4897 = vsel %vm1583, %v4199, -inf
  %v4898 = vsel %vm4474, %v4200, -inf
  %v4899 = vmax.f32 %v4897, %v4898
  %v4900 = vrot.slane %v4899, 4
  %v4901 = vmax.f32 %v4899, %v4900
  %v4902 = vrot.slane %v4901, 2
  %v4903 = vmax.f32 %v4901, %v4902
  %v4904 = vrot.slane %v4903, 1
  %v4905 = vmax.f32 %v4903, %v4904
  %v4906 = vsel %vm1583, %v4208, -inf
  %v4907 = vsel %vm4474, %v4209, -inf
  %v4908 = vmax.f32 %v4906, %v4907
  %v4909 = vrot.slane %v4908, 4
  %v4910 = vmax.f32 %v4908, %v4909
  %v4911 = vrot.slane %v4910, 2
  %v4912 = vmax.f32 %v4910, %v4911
  %v4913 = vrot.slane %v4912, 1
  %v4914 = vmax.f32 %v4912, %v4913
  %v4915 = vsel %vm1583, %v4217, -inf
  %v4916 = vsel %vm4474, %v4218, -inf
  %v4917 = vmax.f32 %v4915, %v4916
  %v4918 = vrot.slane %v4917, 4
  %v4919 = vmax.f32 %v4917, %v4918
  %v4920 = vrot.slane %v4919, 2
  %v4921 = vmax.f32 %v4919, %v4920
  %v4922 = vrot.slane %v4921, 1
  %v4923 = vmax.f32 %v4921, %v4922
  %v4924 = vsel %vm1583, %v4226, -inf
  %v4925 = vsel %vm4474, %v4227, -inf
  %v4926 = vmax.f32 %v4924, %v4925
  %v4927 = vrot.slane %v4926, 4
  %v4928 = vmax.f32 %v4926, %v4927
  %v4929 = vrot.slane %v4928, 2
  %v4930 = vmax.f32 %v4928, %v4929
  %v4931 = vrot.slane %v4930, 1
  %v4932 = vmax.f32 %v4930, %v4931
  %v4933 = vsel %vm1583, %v4235, -inf
  %v4934 = vsel %vm4474, %v4236, -inf
  %v4935 = vmax.f32 %v4933, %v4934
  %v4936 = vrot.slane %v4935, 4
  %v4937 = vmax.f32 %v4935, %v4936
  %v4938 = vrot.slane %v4937, 2
  %v4939 = vmax.f32 %v4937, %v4938
  %v4940 = vrot.slane %v4939, 1
  %v4941 = vmax.f32 %v4939, %v4940
  %v4942 = vsel %vm1583, %v4244, -inf
  %v4943 = vsel %vm4474, %v4245, -inf
  %v4944 = vmax.f32 %v4942, %v4943
  %v4945 = vrot.slane %v4944, 4
  %v4946 = vmax.f32 %v4944, %v4945
  %v4947 = vrot.slane %v4946, 2
  %v4948 = vmax.f32 %v4946, %v4947
  %v4949 = vrot.slane %v4948, 1
  %v4950 = vmax.f32 %v4948, %v4949
  %v4951 = vsel %vm1583, %v4253, -inf
  %v4952 = vsel %vm4474, %v4254, -inf
  %v4953 = vmax.f32 %v4951, %v4952
  %v4954 = vrot.slane %v4953, 4
  %v4955 = vmax.f32 %v4953, %v4954
  %v4956 = vrot.slane %v4955, 2
  %v4957 = vmax.f32 %v4955, %v4956
  %v4958 = vrot.slane %v4957, 1
  %v4959 = vmax.f32 %v4957, %v4958
  %v4960 = vsel %vm1583, %v4262, -inf
  %v4961 = vsel %vm4474, %v4263, -inf
  %v4962 = vmax.f32 %v4960, %v4961
  %v4963 = vrot.slane %v4962, 4
  %v4964 = vmax.f32 %v4962, %v4963
  %v4965 = vrot.slane %v4964, 2
  %v4966 = vmax.f32 %v4964, %v4965
  %v4967 = vrot.slane %v4966, 1
  %v4968 = vmax.f32 %v4966, %v4967
  %v4969 = vsel %vm1583, %v4271, -inf
  %v4970 = vsel %vm4474, %v4272, -inf
  %v4971 = vmax.f32 %v4969, %v4970
  %v4972 = vrot.slane %v4971, 4
  %v4973 = vmax.f32 %v4971, %v4972
  %v4974 = vrot.slane %v4973, 2
  %v4975 = vmax.f32 %v4973, %v4974
  %v4976 = vrot.slane %v4975, 1
  %v4977 = vmax.f32 %v4975, %v4976
  %v4978 = vsel %vm1583, %v4280, -inf
  %v4979 = vsel %vm4474, %v4281, -inf
  %v4980 = vmax.f32 %v4978, %v4979
  %v4981 = vrot.slane %v4980, 4
  %v4982 = vmax.f32 %v4980, %v4981
  %v4983 = vrot.slane %v4982, 2
  %v4984 = vmax.f32 %v4982, %v4983
  %v4985 = vrot.slane %v4984, 1
  %v4986 = vmax.f32 %v4984, %v4985
  %v4987 = vsel %vm1583, %v4289, -inf
  %v4988 = vsel %vm4474, %v4290, -inf
  %v4989 = vmax.f32 %v4987, %v4988
  %v4990 = vrot.slane %v4989, 4
  %v4991 = vmax.f32 %v4989, %v4990
  %v4992 = vrot.slane %v4991, 2
  %v4993 = vmax.f32 %v4991, %v4992
  %v4994 = vrot.slane %v4993, 1
  %v4995 = vmax.f32 %v4993, %v4994
  %v4996 = vsel %vm1583, %v4298, -inf
  %v4997 = vsel %vm4474, %v4299, -inf
  %v4998 = vmax.f32 %v4996, %v4997
  %v4999 = vrot.slane %v4998, 4
  %v5000 = vmax.f32 %v4998, %v4999
  %v5001 = vrot.slane %v5000, 2
  %v5002 = vmax.f32 %v5000, %v5001
  %v5003 = vrot.slane %v5002, 1
  %v5004 = vmax.f32 %v5002, %v5003
  %v5005 = vsel %vm1583, %v4307, -inf
  %v5006 = vsel %vm4474, %v4308, -inf
  %v5007 = vmax.f32 %v5005, %v5006
  %v5008 = vrot.slane %v5007, 4
  %v5009 = vmax.f32 %v5007, %v5008
  %v5010 = vrot.slane %v5009, 2
  %v5011 = vmax.f32 %v5009, %v5010
  %v5012 = vrot.slane %v5011, 1
  %v5013 = vmax.f32 %v5011, %v5012
  %v5014 = vsel %vm1583, %v4316, -inf
  %v5015 = vsel %vm4474, %v4317, -inf
  %v5016 = vmax.f32 %v5014, %v5015
  %v5017 = vrot.slane %v5016, 4
  %v5018 = vmax.f32 %v5016, %v5017
  %v5019 = vrot.slane %v5018, 2
  %v5020 = vmax.f32 %v5018, %v5019
  %v5021 = vrot.slane %v5020, 1
  %v5022 = vmax.f32 %v5020, %v5021
  %v5023 = vsel %vm1583, %v4325, -inf
  %v5024 = vsel %vm4474, %v4326, -inf
  %v5025 = vmax.f32 %v5023, %v5024
  %v5026 = vrot.slane %v5025, 4
  %v5027 = vmax.f32 %v5025, %v5026
  %v5028 = vrot.slane %v5027, 2
  %v5029 = vmax.f32 %v5027, %v5028
  %v5030 = vrot.slane %v5029, 1
  %v5031 = vmax.f32 %v5029, %v5030
  %v5032 = vsel %vm1583, %v4334, -inf
  %v5033 = vsel %vm4474, %v4335, -inf
  %v5034 = vmax.f32 %v5032, %v5033
  %v5035 = vrot.slane %v5034, 4
  %v5036 = vmax.f32 %v5034, %v5035
  %v5037 = vrot.slane %v5036, 2
  %v5038 = vmax.f32 %v5036, %v5037
  %v5039 = vrot.slane %v5038, 1
  %v5040 = vmax.f32 %v5038, %v5039
  %v5041 = vsel %vm1583, %v4343, -inf
  %v5042 = vsel %vm4474, %v4344, -inf
  %v5043 = vmax.f32 %v5041, %v5042
  %v5044 = vrot.slane %v5043, 4
  %v5045 = vmax.f32 %v5043, %v5044
  %v5046 = vrot.slane %v5045, 2
  %v5047 = vmax.f32 %v5045, %v5046
  %v5048 = vrot.slane %v5047, 1
  %v5049 = vmax.f32 %v5047, %v5048
  %v5050 = vld [vmem:[%s1] sm:$0xff]
  %v5051 = vld [vmem:[%s1 + $0x8] sm:$0xff]
  %v5052 = vld [vmem:[%s1 + $0x10] sm:$0xff]
  %v5053 = vld [vmem:[%s1 + $0x18] sm:$0xff]
  %v5054 = vld [vmem:[%s1 + $0x20] sm:$0xff]
  %v5055 = vld [vmem:[%s1 + $0x28] sm:$0xff]
  %v5056 = vld [vmem:[%s1 + $0x30] sm:$0xff]
  %v5057 = vld [vmem:[%s1 + $0x38] sm:$0xff]
  %v5058 = vld [vmem:[%s5] sm:$0xff]
  %v5059 = vld [vmem:[%s5 + $0x8] sm:$0xff]
  %v5060 = vld [vmem:[%s5 + $0x10] sm:$0xff]
  %v5061 = vld [vmem:[%s5 + $0x18] sm:$0xff]
  %v5062 = vld [vmem:[%s5 + $0x20] sm:$0xff]
  %v5063 = vld [vmem:[%s5 + $0x28] sm:$0xff]
  %v5064 = vld [vmem:[%s5 + $0x30] sm:$0xff]
  %v5065 = vld [vmem:[%s5 + $0x38] sm:$0xff]
  %v5066 = vld [vmem:[%s6] sm:$0xff]
  %v5067 = vld [vmem:[%s6 + $0x8] sm:$0xff]
  %v5068 = vld [vmem:[%s6 + $0x10] sm:$0xff]
  %v5069 = vld [vmem:[%s6 + $0x18] sm:$0xff]
  %v5070 = vld [vmem:[%s6 + $0x20] sm:$0xff]
  %v5071 = vld [vmem:[%s6 + $0x28] sm:$0xff]
  %v5072 = vld [vmem:[%s6 + $0x30] sm:$0xff]
  %v5073 = vld [vmem:[%s6 + $0x38] sm:$0xff]
  %vm5138 = vcmask 1041409
  %v5139 = vsel %vm5138, %v4491, %v4482
  %vm5140 = vcmask 1042434
  %v5141 = vsel %vm5140, %v4500, %v5139
  %vm5142 = vcmask 1043459
  %v5143 = vsel %vm5142, %v4509, %v5141
  %vm5144 = vcmask 1044484
  %v5145 = vsel %vm5144, %v4518, %v5143
  %vm5146 = vcmask 1045509
  %v5147 = vsel %vm5146, %v4527, %v5145
  %vm5148 = vcmask 1046534
  %v5149 = vsel %vm5148, %v4536, %v5147
  %vm5150 = vcmask 1047559
  %v5151 = vsel %vm5150, %v4545, %v5149
  %v5152 = vsel %vm5138, %v4563, %v4554
  %v5153 = vsel %vm5140, %v4572, %v5152
  %v5154 = vsel %vm5142, %v4581, %v5153
  %v5155 = vsel %vm5144, %v4590, %v5154
  %v5156 = vsel %vm5146, %v4599, %v5155
  %v5157 = vsel %vm5148, %v4608, %v5156
  %v5158 = vsel %vm5150, %v4617, %v5157
  %v5159 = vsel %vm5138, %v4635, %v4626
  %v5160 = vsel %vm5140, %v4644, %v5159
  %v5161 = vsel %vm5142, %v4653, %v5160
  %v5162 = vsel %vm5144, %v4662, %v5161
  %v5163 = vsel %vm5146, %v4671, %v5162
  %v5164 = vsel %vm5148, %v4680, %v5163
  %v5165 = vsel %vm5150, %v4689, %v5164
  %v5166 = vsel %vm5138, %v4707, %v4698
  %v5167 = vsel %vm5140, %v4716, %v5166
  %v5168 = vsel %vm5142, %v4725, %v5167
  %v5169 = vsel %vm5144, %v4734, %v5168
  %v5170 = vsel %vm5146, %v4743, %v5169
  %v5171 = vsel %vm5148, %v4752, %v5170
  %v5172 = vsel %vm5150, %v4761, %v5171
  %v5173 = vsel %vm5138, %v4779, %v4770
  %v5174 = vsel %vm5140, %v4788, %v5173
  %v5175 = vsel %vm5142, %v4797, %v5174
  %v5176 = vsel %vm5144, %v4806, %v5175
  %v5177 = vsel %vm5146, %v4815, %v5176
  %v5178 = vsel %vm5148, %v4824, %v5177
  %v5179 = vsel %vm5150, %v4833, %v5178
  %v5180 = vsel %vm5138, %v4851, %v4842
  %v5181 = vsel %vm5140, %v4860, %v5180
  %v5182 = vsel %vm5142, %v4869, %v5181
  %v5183 = vsel %vm5144, %v4878, %v5182
  %v5184 = vsel %vm5146, %v4887, %v5183
  %v5185 = vsel %vm5148, %v4896, %v5184
  %v5186 = vsel %vm5150, %v4905, %v5185
  %v5187 = vsel %vm5138, %v4923, %v4914
  %v5188 = vsel %vm5140, %v4932, %v5187
  %v5189 = vsel %vm5142, %v4941, %v5188
  %v5190 = vsel %vm5144, %v4950, %v5189
  %v5191 = vsel %vm5146, %v4959, %v5190
  %v5192 = vsel %vm5148, %v4968, %v5191
  %v5193 = vsel %vm5150, %v4977, %v5192
  %v5194 = vsel %vm5138, %v4995, %v4986
  %v5195 = vsel %vm5140, %v5004, %v5194
  %v5196 = vsel %vm5142, %v5013, %v5195
  %v5197 = vsel %vm5144, %v5022, %v5196
  %v5198 = vsel %vm5146, %v5031, %v5197
  %v5199 = vsel %vm5148, %v5040, %v5198
  %v5200 = vsel %vm5150, %v5049, %v5199
  %v5201 = vsel %vm1583, %v5151, 0
  %v5203 = vsel %vm1583, %v5158, 0
  %v5205 = vsel %vm1583, %v5165, 0
  %v5207 = vsel %vm1583, %v5172, 0
  %v5209 = vsel %vm1583, %v5179, 0
  %v5211 = vsel %vm1583, %v5186, 0
  %v5213 = vsel %vm1583, %v5193, 0
  %v5215 = vsel %vm1583, %v5200, 0
  %5217 = vmatpush.msra.mxu0 0.0
  %5218 = vmatpush.msra.mxu0 0.0
  %5219 = vmatpush.msra.mxu0 0.0
  %5220 = vmatpush.msra.mxu0 0.0
  %5221 = vmatpush.msra.mxu0 0.0
  %5222 = vmatpush.msra.mxu0 0.0
  %5223 = vmatpush.msra.mxu0 0.0
  %5224 = vmatpush.msra.mxu0 0.0
  %5225 = vmatpush.msra.mxu0 0.0
  %5226 = vmatpush.msra.mxu0 0.0
  %5227 = vmatpush.msra.mxu0 0.0
  %5228 = vmatpush.msra.mxu0 0.0
  %5229 = vmatpush.msra.mxu0 %v5072
  %5230 = vmatpush.msra.mxu0 %v5070
  %5231 = vmatpush.msra.mxu0 %v5068
  %5232 = vmatpush.msra.mxu0 %v5066
  %5233 = vmatmul.f32.gmra.mxu0 %v5201
  %v5234 = vpop.f32.mrf.mxu0
  %v5235 = vadd.f32 0.0, %v5234
  %5236 = vmatmul.f32.gmra.mxu0 %v5203
  %v5237 = vpop.f32.mrf.mxu0
  %v5238 = vadd.f32 0.0, %v5237
  %5239 = vmatmul.f32.gmra.mxu0 %v5205
  %v5240 = vpop.f32.mrf.mxu0
  %v5241 = vadd.f32 0.0, %v5240
  %5242 = vmatmul.f32.gmra.mxu0 %v5207
  %v5243 = vpop.f32.mrf.mxu0
  %v5244 = vadd.f32 0.0, %v5243
  %5245 = vmatmul.f32.gmra.mxu0 %v5209
  %v5246 = vpop.f32.mrf.mxu0
  %v5247 = vadd.f32 0.0, %v5246
  %5248 = vmatmul.f32.gmra.mxu0 %v5211
  %v5249 = vpop.f32.mrf.mxu0
  %v5250 = vadd.f32 0.0, %v5249
  %5251 = vmatmul.f32.gmra.mxu0 %v5213
  %v5252 = vpop.f32.mrf.mxu0
  %v5253 = vadd.f32 0.0, %v5252
  %5254 = vmatmul.f32.gmra.mxu0 %v5215
  %v5255 = vpop.f32.mrf.mxu0
  %v5256 = vadd.f32 0.0, %v5255
  %5257 = vdwg.mxu0
  %5258 = vmatpush.msra.mxu0 0.0
  %5259 = vmatpush.msra.mxu0 0.0
  %5260 = vmatpush.msra.mxu0 0.0
  %5261 = vmatpush.msra.mxu0 0.0
  %5262 = vmatpush.msra.mxu0 0.0
  %5263 = vmatpush.msra.mxu0 0.0
  %5264 = vmatpush.msra.mxu0 0.0
  %5265 = vmatpush.msra.mxu0 0.0
  %5266 = vmatpush.msra.mxu0 0.0
  %5267 = vmatpush.msra.mxu0 0.0
  %5268 = vmatpush.msra.mxu0 0.0
  %5269 = vmatpush.msra.mxu0 0.0
  %5270 = vmatpush.msra.mxu0 %v5073
  %5271 = vmatpush.msra.mxu0 %v5071
  %5272 = vmatpush.msra.mxu0 %v5069
  %5273 = vmatpush.msra.mxu0 %v5067
  %5274 = vmatmul.f32.gmra.mxu0 %v5201
  %v5275 = vpop.f32.mrf.mxu0
  %v5276 = vadd.f32 0.0, %v5275
  %5277 = vmatmul.f32.gmra.mxu0 %v5203
  %v5278 = vpop.f32.mrf.mxu0
  %v5279 = vadd.f32 0.0, %v5278
  %5280 = vmatmul.f32.gmra.mxu0 %v5205
  %v5281 = vpop.f32.mrf.mxu0
  %v5282 = vadd.f32 0.0, %v5281
  %5283 = vmatmul.f32.gmra.mxu0 %v5207
  %v5284 = vpop.f32.mrf.mxu0
  %v5285 = vadd.f32 0.0, %v5284
  %5286 = vmatmul.f32.gmra.mxu0 %v5209
  %v5287 = vpop.f32.mrf.mxu0
  %v5288 = vadd.f32 0.0, %v5287
  %5289 = vmatmul.f32.gmra.mxu0 %v5211
  %v5290 = vpop.f32.mrf.mxu0
  %v5291 = vadd.f32 0.0, %v5290
  %5292 = vmatmul.f32.gmra.mxu0 %v5213
  %v5293 = vpop.f32.mrf.mxu0
  %v5294 = vadd.f32 0.0, %v5293
  %5295 = vmatmul.f32.gmra.mxu0 %v5215
  %v5296 = vpop.f32.mrf.mxu0
  %v5297 = vadd.f32 0.0, %v5296
  %5298 = vdwg.mxu0
  %v5300 = vsel %vm1583, %v5050, 0
  %v5303 = vsel %vm1583, %v5051, 0
  %v5306 = vsel %vm1583, %v5052, 0
  %v5309 = vsel %vm1583, %v5053, 0
  %v5312 = vsel %vm1583, %v5054, 0
  %v5315 = vsel %vm1583, %v5055, 0
  %v5318 = vsel %vm1583, %v5056, 0
  %v5321 = vsel %vm1583, %v5057, 0
  %5323 = vmatpush.msra.mxu0 0.0
  %5324 = vmatpush.msra.mxu0 0.0
  %5325 = vmatpush.msra.mxu0 0.0
  %5326 = vmatpush.msra.mxu0 0.0
  %5327 = vmatpush.msra.mxu0 0.0
  %5328 = vmatpush.msra.mxu0 0.0
  %5329 = vmatpush.msra.mxu0 0.0
  %5330 = vmatpush.msra.mxu0 0.0
  %5331 = vmatpush.msra.mxu0 0.0
  %5332 = vmatpush.msra.mxu0 0.0
  %5333 = vmatpush.msra.mxu0 0.0
  %5334 = vmatpush.msra.mxu0 0.0
  %5335 = vmatpush.msra.mxu0 %v5064
  %5336 = vmatpush.msra.mxu0 %v5062
  %5337 = vmatpush.msra.mxu0 %v5060
  %5338 = vmatpush.msra.mxu0 %v5058
  %5339 = vmatmul.f32.gmra.mxu0 %v5300
  %v5340 = vpop.f32.mrf.mxu0
  %v5341 = vadd.f32 %v5235, %v5340
  %5342 = vmatmul.f32.gmra.mxu0 %v5303
  %v5343 = vpop.f32.mrf.mxu0
  %v5344 = vadd.f32 %v5238, %v5343
  %5345 = vmatmul.f32.gmra.mxu0 %v5306
  %v5346 = vpop.f32.mrf.mxu0
  %v5347 = vadd.f32 %v5241, %v5346
  %5348 = vmatmul.f32.gmra.mxu0 %v5309
  %v5349 = vpop.f32.mrf.mxu0
  %v5350 = vadd.f32 %v5244, %v5349
  %5351 = vmatmul.f32.gmra.mxu0 %v5312
  %v5352 = vpop.f32.mrf.mxu0
  %v5353 = vadd.f32 %v5247, %v5352
  %5354 = vmatmul.f32.gmra.mxu0 %v5315
  %v5355 = vpop.f32.mrf.mxu0
  %v5356 = vadd.f32 %v5250, %v5355
  %5357 = vmatmul.f32.gmra.mxu0 %v5318
  %v5358 = vpop.f32.mrf.mxu0
  %v5359 = vadd.f32 %v5253, %v5358
  %5360 = vmatmul.f32.gmra.mxu0 %v5321
  %v5361 = vpop.f32.mrf.mxu0
  %v5362 = vadd.f32 %v5256, %v5361
  %5363 = vdwg.mxu0
  %5364 = vmatpush.msra.mxu0 0.0
  %5365 = vmatpush.msra.mxu0 0.0
  %5366 = vmatpush.msra.mxu0 0.0
  %5367 = vmatpush.msra.mxu0 0.0
  %5368 = vmatpush.msra.mxu0 0.0
  %5369 = vmatpush.msra.mxu0 0.0
  %5370 = vmatpush.msra.mxu0 0.0
  %5371 = vmatpush.msra.mxu0 0.0
  %5372 = vmatpush.msra.mxu0 0.0
  %5373 = vmatpush.msra.mxu0 0.0
  %5374 = vmatpush.msra.mxu0 0.0
  %5375 = vmatpush.msra.mxu0 0.0
  %5376 = vmatpush.msra.mxu0 %v5065
  %5377 = vmatpush.msra.mxu0 %v5063
  %5378 = vmatpush.msra.mxu0 %v5061
  %5379 = vmatpush.msra.mxu0 %v5059
  %5380 = vmatmul.f32.gmra.mxu0 %v5300
  %v5381 = vpop.f32.mrf.mxu0
  %v5382 = vadd.f32 %v5276, %v5381
  %5383 = vmatmul.f32.gmra.mxu0 %v5303
  %v5384 = vpop.f32.mrf.mxu0
  %v5385 = vadd.f32 %v5279, %v5384
  %5386 = vmatmul.f32.gmra.mxu0 %v5306
  %v5387 = vpop.f32.mrf.mxu0
  %v5388 = vadd.f32 %v5282, %v5387
  %5389 = vmatmul.f32.gmra.mxu0 %v5309
  %v5390 = vpop.f32.mrf.mxu0
  %v5391 = vadd.f32 %v5285, %v5390
  %5392 = vmatmul.f32.gmra.mxu0 %v5312
  %v5393 = vpop.f32.mrf.mxu0
  %v5394 = vadd.f32 %v5288, %v5393
  %5395 = vmatmul.f32.gmra.mxu0 %v5315
  %v5396 = vpop.f32.mrf.mxu0
  %v5397 = vadd.f32 %v5291, %v5396
  %5398 = vmatmul.f32.gmra.mxu0 %v5318
  %v5399 = vpop.f32.mrf.mxu0
  %v5400 = vadd.f32 %v5294, %v5399
  %5401 = vmatmul.f32.gmra.mxu0 %v5321
  %v5402 = vpop.f32.mrf.mxu0
  %v5403 = vadd.f32 %v5297, %v5402
  %5404 = vdwg.mxu0
  %v5405 = vld [vmem:[%s7] sm:$0x3]
  %v5407 = vperm.slane %v5405, 0
  %v5408 = vperm.slane %v5405, 1
  %v5411 = vadd.f32 %v5341, %v5407
  %v5412 = vadd.f32 %v5382, %v5408
  %v5413 = vadd.f32 %v5344, %v5407
  %v5414 = vadd.f32 %v5385, %v5408
  %v5415 = vadd.f32 %v5347, %v5407
  %v5416 = vadd.f32 %v5388, %v5408
  %v5417 = vadd.f32 %v5350, %v5407
  %v5418 = vadd.f32 %v5391, %v5408
  %v5419 = vadd.f32 %v5353, %v5407
  %v5420 = vadd.f32 %v5394, %v5408
  %v5421 = vadd.f32 %v5356, %v5407
  %v5422 = vadd.f32 %v5397, %v5408
  %v5423 = vadd.f32 %v5359, %v5407
  %v5424 = vadd.f32 %v5400, %v5408
  %v5425 = vadd.f32 %v5362, %v5407
  %v5426 = vadd.f32 %v5403, %v5408
  %5427 = vst [vmem:[#allocation2] sm:$0xff] %v5411
  %5428 = vst [vmem:[#allocation2 + $0x8] sm:$0xff] %v5412
  %5429 = vst [vmem:[#allocation2 + $0x10] sm:$0xff] %v5413
  %5430 = vst [vmem:[#allocation2 + $0x18] sm:$0xff] %v5414
  %5431 = vst [vmem:[#allocation2 + $0x20] sm:$0xff] %v5415
  %5432 = vst [vmem:[#allocation2 + $0x28] sm:$0xff] %v5416
  %5433 = vst [vmem:[#allocation2 + $0x30] sm:$0xff] %v5417
  %5434 = vst [vmem:[#allocation2 + $0x38] sm:$0xff] %v5418
  %5435 = vst [vmem:[#allocation2 + $0x40] sm:$0xff] %v5419
  %5436 = vst [vmem:[#allocation2 + $0x48] sm:$0xff] %v5420
  %5437 = vst [vmem:[#allocation2 + $0x50] sm:$0xff] %v5421
  %5438 = vst [vmem:[#allocation2 + $0x58] sm:$0xff] %v5422
  %5439 = vst [vmem:[#allocation2 + $0x60] sm:$0xff] %v5423
  %5440 = vst [vmem:[#allocation2 + $0x68] sm:$0xff] %v5424
  %5441 = vst [vmem:[#allocation2 + $0x70] sm:$0xff] %v5425
  %5442 = vst [vmem:[#allocation2 + $0x78] sm:$0xff] %v5426
  %v5443 = vld [vmem:[%s2] sm:$0xff]
  %5444 = vset.pattern.permute.xlu0 0
  %5445 = vperm.xlu0 %5444, %v5443
  %v5446 = vpop.permute.xlu0 %5445
  %v5447 = vld [vmem:[%s8] sm:$0xff]
  %v5448 = vld [vmem:[%s8 + $0x8] sm:$0xff]
  %v5449 = vld [vmem:[%s8 + $0x10] sm:$0xff]
  %v5450 = vld [vmem:[%s8 + $0x18] sm:$0xff]
  %v5451 = vld [vmem:[#allocation2] sm:$0xff]
  %v5453 = vsel %vm1583, 0.0, 0
  %5455 = vmatpush.msra.mxu0 0.0
  %5456 = vmatpush.msra.mxu0 0.0
  %5457 = vmatpush.msra.mxu0 0.0
  %5458 = vmatpush.msra.mxu0 0.0
  %5459 = vmatpush.msra.mxu0 0.0
  %5460 = vmatpush.msra.mxu0 0.0
  %5461 = vmatpush.msra.mxu0 0.0
  %5462 = vmatpush.msra.mxu0 0.0
  %5463 = vmatpush.msra.mxu0 0.0
  %5464 = vmatpush.msra.mxu0 0.0
  %5465 = vmatpush.msra.mxu0 0.0
  %5466 = vmatpush.msra.mxu0 0.0
  %5467 = vmatpush.msra.mxu0 %v5450
  %5468 = vmatpush.msra.mxu0 %v5449
  %5469 = vmatpush.msra.mxu0 %v5448
  %5470 = vmatpush.msra.mxu0 %v5447
  %5471 = vmatmul.f32.gmra.mxu0 %v5453
  %v5472 = vpop.f32.mrf.mxu0
  %v5473 = vadd.f32 %v5451, %v5472
  %5474 = vdwg.mxu0
  %v5475 = vld [vmem:[%s9] sm:$0xff]
  %v5476 = vld [vmem:[%s9 + $0x8] sm:$0xff]
  %v5477 = vld [vmem:[%s9 + $0x10] sm:$0xff]
  %v5478 = vld [vmem:[%s9 + $0x18] sm:$0xff]
  %s5479 = scalar_lea.vmem [#allocation2], 112
  %v5480 = vld [vmem:[%s5479 + $0x8] sm:$0xff]
  %5481 = vmatpush.msra.mxu0 0.0
  %5482 = vmatpush.msra.mxu0 0.0
  %5483 = vmatpush.msra.mxu0 0.0
  %5484 = vmatpush.msra.mxu0 0.0
  %5485 = vmatpush.msra.mxu0 0.0
  %5486 = vmatpush.msra.mxu0 0.0
  %5487 = vmatpush.msra.mxu0 0.0
  %5488 = vmatpush.msra.mxu0 0.0
  %5489 = vmatpush.msra.mxu0 0.0
  %5490 = vmatpush.msra.mxu0 0.0
  %5491 = vmatpush.msra.mxu0 0.0
  %5492 = vmatpush.msra.mxu0 0.0
  %5493 = vmatpush.msra.mxu0 %v5478
  %5494 = vmatpush.msra.mxu0 %v5477
  %5495 = vmatpush.msra.mxu0 %v5476
  %5496 = vmatpush.msra.mxu0 %v5475
  %5497 = vmatmul.f32.gmra.mxu0 %v5453
  %v5498 = vpop.f32.mrf.mxu0
  %v5499 = vadd.f32 %v5480, %v5498
  %5500 = vdwg.mxu0
  %v5501 = vxor.u32 %v5473, 2147483648
  %v5502 = vmul.f32 %v5501, 1.442695
  %v5503 = vpow.pop %v5502
  %v5504 = vadd.f32 %v5503, 1.0
  %v5505 = vrcp.pop %v5504
  %v5506 = vmul.f32 %v5504, %v5505
  %v5507 = vsub.f32 1.0, %v5506
  %v5508 = vmul.f32 %v5505, %v5507
  %v5509 = vadd.f32 %v5505, %v5508
  %vm5510 = vweird.f32 %v5504
  %vm5511 = vweird.f32 %v5505
  %vm5512 = vmor %vm5510, %vm5511
  %v5513 = vsel %vm5512, %v5505, %v5509
  %v5514 = vand.u32 2147483647, %v5504
  %vm5515 = vcmp.eq.f32.partialorder %v5514, 8.507059e+37
  %v5516 = vand.u32 %v5504, 2147483648
  %v5517 = vor.u32 1.1754944e-38, %v5516
  %v5518 = vsel %vm5515, %v5517, %v5513
  %v5519 = vmul.f32 1.0, %v5518
  %v5520 = vtanh.pop %v5473
  %v5521 = vmul.f32 %v5519, 0.0
  %5523 = vrot.lane.b32.xlu0 %v5520, 64
  %v5524 = vpop.permute.xlu0 %5523
  %v5526 = vmul.f32 %v5519, %v5524
  %5528 = vrot.lane.b32.xlu0 %v5526, 32
  %v5529 = vpop.permute.xlu0 %5528
  %v5531 = vadd.f32 %v5521, %v5529
  %v5532 = vtanh.pop %v5531
  %5534 = vrot.lane.b32.xlu0 %v5532, 64
  %v5535 = vpop.permute.xlu0 %5534
  %v5537 = vmul.f32 %v5519, %v5535
  %v5538 = vxor.u32 %v5499, 2147483648
  %v5539 = vmul.f32 %v5538, 1.442695
  %v5540 = vpow.pop %v5539
  %v5541 = vadd.f32 %v5540, 1.0
  %v5542 = vrcp.pop %v5541
  %v5543 = vmul.f32 %v5541, %v5542
  %v5544 = vsub.f32 1.0, %v5543
  %v5545 = vmul.f32 %v5542, %v5544
  %v5546 = vadd.f32 %v5542, %v5545
  %vm5547 = vweird.f32 %v5541
  %vm5548 = vweird.f32 %v5542
  %vm5549 = vmor %vm5547, %vm5548
  %v5550 = vsel %vm5549, %v5542, %v5546
  %v5551 = vand.u32 2147483647, %v5541
  %vm5552 = vcmp.eq.f32.partialorder %v5551, 8.507059e+37
  %v5553 = vand.u32 %v5541, 2147483648
  %v5554 = vor.u32 1.1754944e-38, %v5553
  %v5555 = vsel %vm5552, %v5554, %v5550
  %v5556 = vmul.f32 1.0, %v5555
  %v5557 = vtanh.pop %v5499
  %v5558 = vmul.f32 %v5556, 0.0
  %5560 = vrot.lane.b32.xlu0 %v5557, 64
  %v5561 = vpop.permute.xlu0 %5560
  %v5563 = vmul.f32 %v5556, %v5561
  %5565 = vrot.lane.b32.xlu0 %v5563, 32
  %v5566 = vpop.permute.xlu0 %5565
  %v5568 = vadd.f32 %v5558, %v5566
  %v5569 = vtanh.pop %v5568
  %5571 = vrot.lane.b32.xlu0 %v5569, 64
  %v5572 = vpop.permute.xlu0 %5571
  %v5574 = vmul.f32 %v5556, %v5572
  %vm5575 = vcmp.gt.s32.totalorder %v5446, 0
  %vm5576 = vcmp.gt.s32.totalorder %v5446, 7
  %v5577 = vsel %vm5575, %v5537, 0.0
  %5579 = vrot.lane.b32.xlu0 %v5577, 32
  %v5580 = vpop.permute.xlu0 %5579
  %5582 = vst.msk [vmem:[#allocation3] sm:$0xff] %vm1583, %v5580
  %v5583 = vsel %vm5576, %v5574, 0.0
  %5585 = vrot.lane.b32.xlu0 %v5583, 32
  %v5586 = vpop.permute.xlu0 %5585
  %s5588 = scalar_lea.vmem [#allocation4], 56
  %5589 = vst.msk [vmem:[%s5588] sm:$0xff] %vm1583, %v5586
  %v5590 = vsel %vm5575, %v5531, 0.0
  %v5591 = vsel %vm5576, %v5568, 0.0
  %v5592 = vld [vmem:[%s8] sm:$0xff]
  %v5593 = vld [vmem:[%s8 + $0x8] sm:$0xff]
  %v5594 = vld [vmem:[%s8 + $0x10] sm:$0xff]
  %v5595 = vld [vmem:[%s8 + $0x18] sm:$0xff]
  %s5596 = scalar_lea.vmem [#allocation2], 16
  %v5597 = vld [vmem:[%s5596] sm:$0xff]
  %v5598 = vsel %vm1583, %v5580, 0
  %5600 = vmatpush.msra.mxu0 0.0
  %5601 = vmatpush.msra.mxu0 0.0
  %5602 = vmatpush.msra.mxu0 0.0
  %5603 = vmatpush.msra.mxu0 0.0
  %5604 = vmatpush.msra.mxu0 0.0
  %5605 = vmatpush.msra.mxu0 0.0
  %5606 = vmatpush.msra.mxu0 0.0
  %5607 = vmatpush.msra.mxu0 0.0
  %5608 = vmatpush.msra.mxu0 0.0
  %5609 = vmatpush.msra.mxu0 0.0
  %5610 = vmatpush.msra.mxu0 0.0
  %5611 = vmatpush.msra.mxu0 0.0
  %5612 = vmatpush.msra.mxu0 %v5595
  %5613 = vmatpush.msra.mxu0 %v5594
  %5614 = vmatpush.msra.mxu0 %v5593
  %5615 = vmatpush.msra.mxu0 %v5592
  %5616 = vmatmul.f32.gmra.mxu0 %v5598
  %v5617 = vpop.f32.mrf.mxu0
  %v5618 = vadd.f32 %v5597, %v5617
  %5619 = vdwg.mxu0
  %v5620 = vld [vmem:[%s9] sm:$0xff]
  %v5621 = vld [vmem:[%s9 + $0x8] sm:$0xff]
  %v5622 = vld [vmem:[%s9 + $0x10] sm:$0xff]
  %v5623 = vld [vmem:[%s9 + $0x18] sm:$0xff]
  %s5624 = scalar_lea.vmem [#allocation2], 96
  %v5625 = vld [vmem:[%s5624 + $0x8] sm:$0xff]
  %v5626 = vsel %vm1583, %v5586, 0
  %5628 = vmatpush.msra.mxu0 0.0
  %5629 = vmatpush.msra.mxu0 0.0
  %5630 = vmatpush.msra.mxu0 0.0
  %5631 = vmatpush.msra.mxu0 0.0
  %5632 = vmatpush.msra.mxu0 0.0
  %5633 = vmatpush.msra.mxu0 0.0
  %5634 = vmatpush.msra.mxu0 0.0
  %5635 = vmatpush.msra.mxu0 0.0
  %5636 = vmatpush.msra.mxu0 0.0
  %5637 = vmatpush.msra.mxu0 0.0
  %5638 = vmatpush.msra.mxu0 0.0
  %5639 = vmatpush.msra.mxu0 0.0
  %5640 = vmatpush.msra.mxu0 %v5623
  %5641 = vmatpush.msra.mxu0 %v5622
  %5642 = vmatpush.msra.mxu0 %v5621
  %5643 = vmatpush.msra.mxu0 %v5620
  %5644 = vmatmul.f32.gmra.mxu0 %v5626
  %v5645 = vpop.f32.mrf.mxu0
  %v5646 = vadd.f32 %v5625, %v5645
  %5647 = vdwg.mxu0
  %v5648 = vxor.u32 %v5618, 2147483648
  %v5649 = vmul.f32 %v5648, 1.442695
  %v5650 = vpow.pop %v5649
  %v5651 = vadd.f32 %v5650, 1.0
  %v5652 = vrcp.pop %v5651
  %v5653 = vmul.f32 %v5651, %v5652
  %v5654 = vsub.f32 1.0, %v5653
  %v5655 = vmul.f32 %v5652, %v5654
  %v5656 = vadd.f32 %v5652, %v5655
  %vm5657 = vweird.f32 %v5651
  %vm5658 = vweird.f32 %v5652
  %vm5659 = vmor %vm5657, %vm5658
  %v5660 = vsel %vm5659, %v5652, %v5656
  %v5661 = vand.u32 2147483647, %v5651
  %vm5662 = vcmp.eq.f32.partialorder %v5661, 8.507059e+37
  %v5663 = vand.u32 %v5651, 2147483648
  %v5664 = vor.u32 1.1754944e-38, %v5663
  %v5665 = vsel %vm5662, %v5664, %v5660
  %v5666 = vmul.f32 1.0, %v5665
  %v5667 = vtanh.pop %v5618
  %v5668 = vmul.f32 %v5666, %v5590
  %5670 = vrot.lane.b32.xlu0 %v5667, 64
  %v5671 = vpop.permute.xlu0 %5670
  %v5673 = vmul.f32 %v5666, %v5671
  %5675 = vrot.lane.b32.xlu0 %v5673, 32
  %v5676 = vpop.permute.xlu0 %5675
  %v5678 = vadd.f32 %v5668, %v5676
  %v5679 = vtanh.pop %v5678
  %5681 = vrot.lane.b32.xlu0 %v5679, 64
  %v5682 = vpop.permute.xlu0 %5681
  %v5684 = vmul.f32 %v5666, %v5682
  %v5685 = vxor.u32 %v5646, 2147483648
  %v5686 = vmul.f32 %v5685, 1.442695
  %v5687 = vpow.pop %v5686
  %v5688 = vadd.f32 %v5687, 1.0
  %v5689 = vrcp.pop %v5688
  %v5690 = vmul.f32 %v5688, %v5689
  %v5691 = vsub.f32 1.0, %v5690
  %v5692 = vmul.f32 %v5689, %v5691
  %v5693 = vadd.f32 %v5689, %v5692
  %vm5694 = vweird.f32 %v5688
  %vm5695 = vweird.f32 %v5689
  %vm5696 = vmor %vm5694, %vm5695
  %v5697 = vsel %vm5696, %v5689, %v5693
  %v5698 = vand.u32 2147483647, %v5688
  %vm5699 = vcmp.eq.f32.partialorder %v5698, 8.507059e+37
  %v5700 = vand.u32 %v5688, 2147483648
  %v5701 = vor.u32 1.1754944e-38, %v5700
  %v5702 = vsel %vm5699, %v5701, %v5697
  %v5703 = vmul.f32 1.0, %v5702
  %v5704 = vtanh.pop %v5646
  %v5705 = vmul.f32 %v5703, %v5591
  %5707 = vrot.lane.b32.xlu0 %v5704, 64
  %v5708 = vpop.permute.xlu0 %5707
  %v5710 = vmul.f32 %v5703, %v5708
  %5712 = vrot.lane.b32.xlu0 %v5710, 32
  %v5713 = vpop.permute.xlu0 %5712
  %v5715 = vadd.f32 %v5705, %v5713
  %v5716 = vtanh.pop %v5715
  %5718 = vrot.lane.b32.xlu0 %v5716, 64
  %v5719 = vpop.permute.xlu0 %5718
  %v5721 = vmul.f32 %v5703, %v5719
  %vm5722 = vcmp.gt.s32.totalorder %v5446, 1
  %vm5723 = vcmp.gt.s32.totalorder %v5446, 6
  %v5724 = vsel %vm5722, %v5684, 0.0
  %5726 = vrot.lane.b32.xlu0 %v5724, 32
  %v5727 = vpop.permute.xlu0 %5726
  %s5729 = scalar_lea.vmem [#allocation3], 8
  %5730 = vst.msk [vmem:[%s5729] sm:$0xff] %vm1583, %v5727
  %v5731 = vsel %vm5723, %v5721, 0.0
  %5733 = vrot.lane.b32.xlu0 %v5731, 32
  %v5734 = vpop.permute.xlu0 %5733
  %s5736 = scalar_lea.vmem [#allocation4], 48
  %5737 = vst.msk [vmem:[%s5736] sm:$0xff] %vm1583, %v5734
  %v5738 = vsel %vm5722, %v5684, %v5577
  %v5739 = vsel %vm5722, %v5678, %v5590
  %v5740 = vsel %vm5723, %v5721, %v5583
  %v5741 = vsel %vm5723, %v5715, %v5591
  %v5742 = vld [vmem:[%s8] sm:$0xff]
  %v5743 = vld [vmem:[%s8 + $0x8] sm:$0xff]
  %v5744 = vld [vmem:[%s8 + $0x10] sm:$0xff]
  %v5745 = vld [vmem:[%s8 + $0x18] sm:$0xff]
  %s5746 = scalar_lea.vmem [#allocation2], 32
  %v5747 = vld [vmem:[%s5746] sm:$0xff]
  %5749 = vrot.lane.b32.xlu0 %v5738, 32
  %v5750 = vpop.permute.xlu0 %5749
  %v5751 = vsel %vm1583, %v5750, 0
  %5753 = vmatpush.msra.mxu0 0.0
  %5754 = vmatpush.msra.mxu0 0.0
  %5755 = vmatpush.msra.mxu0 0.0
  %5756 = vmatpush.msra.mxu0 0.0
  %5757 = vmatpush.msra.mxu0 0.0
  %5758 = vmatpush.msra.mxu0 0.0
  %5759 = vmatpush.msra.mxu0 0.0
  %5760 = vmatpush.msra.mxu0 0.0
  %5761 = vmatpush.msra.mxu0 0.0
  %5762 = vmatpush.msra.mxu0 0.0
  %5763 = vmatpush.msra.mxu0 0.0
  %5764 = vmatpush.msra.mxu0 0.0
  %5765 = vmatpush.msra.mxu0 %v5745
  %5766 = vmatpush.msra.mxu0 %v5744
  %5767 = vmatpush.msra.mxu0 %v5743
  %5768 = vmatpush.msra.mxu0 %v5742
  %5769 = vmatmul.f32.gmra.mxu0 %v5751
  %v5770 = vpop.f32.mrf.mxu0
  %v5771 = vadd.f32 %v5747, %v5770
  %5772 = vdwg.mxu0
  %v5773 = vld [vmem:[%s9] sm:$0xff]
  %v5774 = vld [vmem:[%s9 + $0x8] sm:$0xff]
  %v5775 = vld [vmem:[%s9 + $0x10] sm:$0xff]
  %v5776 = vld [vmem:[%s9 + $0x18] sm:$0xff]
  %s5777 = scalar_lea.vmem [#allocation2], 80
  %v5778 = vld [vmem:[%s5777 + $0x8] sm:$0xff]
  %5780 = vrot.lane.b32.xlu0 %v5740, 32
  %v5781 = vpop.permute.xlu0 %5780
  %v5782 = vsel %vm1583, %v5781, 0
  %5784 = vmatpush.msra.mxu0 0.0
  %5785 = vmatpush.msra.mxu0 0.0
  %5786 = vmatpush.msra.mxu0 0.0
  %5787 = vmatpush.msra.mxu0 0.0
  %5788 = vmatpush.msra.mxu0 0.0
  %5789 = vmatpush.msra.mxu0 0.0
  %5790 = vmatpush.msra.mxu0 0.0
  %5791 = vmatpush.msra.mxu0 0.0
  %5792 = vmatpush.msra.mxu0 0.0
  %5793 = vmatpush.msra.mxu0 0.0
  %5794 = vmatpush.msra.mxu0 0.0
  %5795 = vmatpush.msra.mxu0 0.0
  %5796 = vmatpush.msra.mxu0 %v5776
  %5797 = vmatpush.msra.mxu0 %v5775
  %5798 = vmatpush.msra.mxu0 %v5774
  %5799 = vmatpush.msra.mxu0 %v5773
  %5800 = vmatmul.f32.gmra.mxu0 %v5782
  %v5801 = vpop.f32.mrf.mxu0
  %v5802 = vadd.f32 %v5778, %v5801
  %5803 = vdwg.mxu0
  %v5804 = vxor.u32 %v5771, 2147483648
  %v5805 = vmul.f32 %v5804, 1.442695
  %v5806 = vpow.pop %v5805
  %v5807 = vadd.f32 %v5806, 1.0
  %v5808 = vrcp.pop %v5807
  %v5809 = vmul.f32 %v5807, %v5808
  %v5810 = vsub.f32 1.0, %v5809
  %v5811 = vmul.f32 %v5808, %v5810
  %v5812 = vadd.f32 %v5808, %v5811
  %vm5813 = vweird.f32 %v5807
  %vm5814 = vweird.f32 %v5808
  %vm5815 = vmor %vm5813, %vm5814
  %v5816 = vsel %vm5815, %v5808, %v5812
  %v5817 = vand.u32 2147483647, %v5807
  %vm5818 = vcmp.eq.f32.partialorder %v5817, 8.507059e+37
  %v5819 = vand.u32 %v5807, 2147483648
  %v5820 = vor.u32 1.1754944e-38, %v5819
  %v5821 = vsel %vm5818, %v5820, %v5816
  %v5822 = vmul.f32 1.0, %v5821
  %v5823 = vtanh.pop %v5771
  %v5824 = vmul.f32 %v5822, %v5739
  %5826 = vrot.lane.b32.xlu0 %v5823, 64
  %v5827 = vpop.permute.xlu0 %5826
  %v5829 = vmul.f32 %v5822, %v5827
  %5831 = vrot.lane.b32.xlu0 %v5829, 32
  %v5832 = vpop.permute.xlu0 %5831
  %v5834 = vadd.f32 %v5824, %v5832
  %v5835 = vtanh.pop %v5834
  %5837 = vrot.lane.b32.xlu0 %v5835, 64
  %v5838 = vpop.permute.xlu0 %5837
  %v5840 = vmul.f32 %v5822, %v5838
  %v5841 = vxor.u32 %v5802, 2147483648
  %v5842 = vmul.f32 %v5841, 1.442695
  %v5843 = vpow.pop %v5842
  %v5844 = vadd.f32 %v5843, 1.0
  %v5845 = vrcp.pop %v5844
  %v5846 = vmul.f32 %v5844, %v5845
  %v5847 = vsub.f32 1.0, %v5846
  %v5848 = vmul.f32 %v5845, %v5847
  %v5849 = vadd.f32 %v5845, %v5848
  %vm5850 = vweird.f32 %v5844
  %vm5851 = vweird.f32 %v5845
  %vm5852 = vmor %vm5850, %vm5851
  %v5853 = vsel %vm5852, %v5845, %v5849
  %v5854 = vand.u32 2147483647, %v5844
  %vm5855 = vcmp.eq.f32.partialorder %v5854, 8.507059e+37
  %v5856 = vand.u32 %v5844, 2147483648
  %v5857 = vor.u32 1.1754944e-38, %v5856
  %v5858 = vsel %vm5855, %v5857, %v5853
  %v5859 = vmul.f32 1.0, %v5858
  %v5860 = vtanh.pop %v5802
  %v5861 = vmul.f32 %v5859, %v5741
  %5863 = vrot.lane.b32.xlu0 %v5860, 64
  %v5864 = vpop.permute.xlu0 %5863
  %v5866 = vmul.f32 %v5859, %v5864
  %5868 = vrot.lane.b32.xlu0 %v5866, 32
  %v5869 = vpop.permute.xlu0 %5868
  %v5871 = vadd.f32 %v5861, %v5869
  %v5872 = vtanh.pop %v5871
  %5874 = vrot.lane.b32.xlu0 %v5872, 64
  %v5875 = vpop.permute.xlu0 %5874
  %v5877 = vmul.f32 %v5859, %v5875
  %vm5878 = vcmp.gt.s32.totalorder %v5446, 2
  %vm5879 = vcmp.gt.s32.totalorder %v5446, 5
  %v5880 = vsel %vm5878, %v5840, 0.0
  %5882 = vrot.lane.b32.xlu0 %v5880, 32
  %v5883 = vpop.permute.xlu0 %5882
  %s5885 = scalar_lea.vmem [#allocation3], 16
  %5886 = vst.msk [vmem:[%s5885] sm:$0xff] %vm1583, %v5883
  %v5887 = vsel %vm5879, %v5877, 0.0
  %5889 = vrot.lane.b32.xlu0 %v5887, 32
  %v5890 = vpop.permute.xlu0 %5889
  %s5892 = scalar_lea.vmem [#allocation4], 40
  %5893 = vst.msk [vmem:[%s5892] sm:$0xff] %vm1583, %v5890
  %v5894 = vsel %vm5878, %v5840, %v5738
  %v5895 = vsel %vm5878, %v5834, %v5739
  %v5896 = vsel %vm5879, %v5877, %v5740
  %v5897 = vsel %vm5879, %v5871, %v5741
  %v5898 = vld [vmem:[%s8] sm:$0xff]
  %v5899 = vld [vmem:[%s8 + $0x8] sm:$0xff]
  %v5900 = vld [vmem:[%s8 + $0x10] sm:$0xff]
  %v5901 = vld [vmem:[%s8 + $0x18] sm:$0xff]
  %s5902 = scalar_lea.vmem [#allocation2], 48
  %v5903 = vld [vmem:[%s5902] sm:$0xff]
  %5905 = vrot.lane.b32.xlu0 %v5894, 32
  %v5906 = vpop.permute.xlu0 %5905
  %v5907 = vsel %vm1583, %v5906, 0
  %5909 = vmatpush.msra.mxu0 0.0
  %5910 = vmatpush.msra.mxu0 0.0
  %5911 = vmatpush.msra.mxu0 0.0
  %5912 = vmatpush.msra.mxu0 0.0
  %5913 = vmatpush.msra.mxu0 0.0
  %5914 = vmatpush.msra.mxu0 0.0
  %5915 = vmatpush.msra.mxu0 0.0
  %5916 = vmatpush.msra.mxu0 0.0
  %5917 = vmatpush.msra.mxu0 0.0
  %5918 = vmatpush.msra.mxu0 0.0
  %5919 = vmatpush.msra.mxu0 0.0
  %5920 = vmatpush.msra.mxu0 0.0
  %5921 = vmatpush.msra.mxu0 %v5901
  %5922 = vmatpush.msra.mxu0 %v5900
  %5923 = vmatpush.msra.mxu0 %v5899
  %5924 = vmatpush.msra.mxu0 %v5898
  %5925 = vmatmul.f32.gmra.mxu0 %v5907
  %v5926 = vpop.f32.mrf.mxu0
  %v5927 = vadd.f32 %v5903, %v5926
  %5928 = vdwg.mxu0
  %v5929 = vld [vmem:[%s9] sm:$0xff]
  %v5930 = vld [vmem:[%s9 + $0x8] sm:$0xff]
  %v5931 = vld [vmem:[%s9 + $0x10] sm:$0xff]
  %v5932 = vld [vmem:[%s9 + $0x18] sm:$0xff]
  %s5933 = scalar_lea.vmem [#allocation2], 64
  %v5934 = vld [vmem:[%s5933 + $0x8] sm:$0xff]
  %5936 = vrot.lane.b32.xlu0 %v5896, 32
  %v5937 = vpop.permute.xlu0 %5936
  %v5938 = vsel %vm1583, %v5937, 0
  %5940 = vmatpush.msra.mxu0 0.0
  %5941 = vmatpush.msra.mxu0 0.0
  %5942 = vmatpush.msra.mxu0 0.0
  %5943 = vmatpush.msra.mxu0 0.0
  %5944 = vmatpush.msra.mxu0 0.0
  %5945 = vmatpush.msra.mxu0 0.0
  %5946 = vmatpush.msra.mxu0 0.0
  %5947 = vmatpush.msra.mxu0 0.0
  %5948 = vmatpush.msra.mxu0 0.0
  %5949 = vmatpush.msra.mxu0 0.0
  %5950 = vmatpush.msra.mxu0 0.0
  %5951 = vmatpush.msra.mxu0 0.0
  %5952 = vmatpush.msra.mxu0 %v5932
  %5953 = vmatpush.msra.mxu0 %v5931
  %5954 = vmatpush.msra.mxu0 %v5930
  %5955 = vmatpush.msra.mxu0 %v5929
  %5956 = vmatmul.f32.gmra.mxu0 %v5938
  %v5957 = vpop.f32.mrf.mxu0
  %v5958 = vadd.f32 %v5934, %v5957
  %5959 = vdwg.mxu0
  %v5960 = vxor.u32 %v5927, 2147483648
  %v5961 = vmul.f32 %v5960, 1.442695
  %v5962 = vpow.pop %v5961
  %v5963 = vadd.f32 %v5962, 1.0
  %v5964 = vrcp.pop %v5963
  %v5965 = vmul.f32 %v5963, %v5964
  %v5966 = vsub.f32 1.0, %v5965
  %v5967 = vmul.f32 %v5964, %v5966
  %v5968 = vadd.f32 %v5964, %v5967
  %vm5969 = vweird.f32 %v5963
  %vm5970 = vweird.f32 %v5964
  %vm5971 = vmor %vm5969, %vm5970
  %v5972 = vsel %vm5971, %v5964, %v5968
  %v5973 = vand.u32 2147483647, %v5963
  %vm5974 = vcmp.eq.f32.partialorder %v5973, 8.507059e+37
  %v5975 = vand.u32 %v5963, 2147483648
  %v5976 = vor.u32 1.1754944e-38, %v5975
  %v5977 = vsel %vm5974, %v5976, %v5972
  %v5978 = vmul.f32 1.0, %v5977
  %v5979 = vtanh.pop %v5927
  %v5980 = vmul.f32 %v5978, %v5895
  %5982 = vrot.lane.b32.xlu0 %v5979, 64
  %v5983 = vpop.permute.xlu0 %5982
  %v5985 = vmul.f32 %v5978, %v5983
  %5987 = vrot.lane.b32.xlu0 %v5985, 32
  %v5988 = vpop.permute.xlu0 %5987
  %v5990 = vadd.f32 %v5980, %v5988
  %v5991 = vtanh.pop %v5990
  %5993 = vrot.lane.b32.xlu0 %v5991, 64
  %v5994 = vpop.permute.xlu0 %5993
  %v5996 = vmul.f32 %v5978, %v5994
  %v5997 = vxor.u32 %v5958, 2147483648
  %v5998 = vmul.f32 %v5997, 1.442695
  %v5999 = vpow.pop %v5998
  %v6000 = vadd.f32 %v5999, 1.0
  %v6001 = vrcp.pop %v6000
  %v6002 = vmul.f32 %v6000, %v6001
  %v6003 = vsub.f32 1.0, %v6002
  %v6004 = vmul.f32 %v6001, %v6003
  %v6005 = vadd.f32 %v6001, %v6004
  %vm6006 = vweird.f32 %v6000
  %vm6007 = vweird.f32 %v6001
  %vm6008 = vmor %vm6006, %vm6007
  %v6009 = vsel %vm6008, %v6001, %v6005
  %v6010 = vand.u32 2147483647, %v6000
  %vm6011 = vcmp.eq.f32.partialorder %v6010, 8.507059e+37
  %v6012 = vand.u32 %v6000, 2147483648
  %v6013 = vor.u32 1.1754944e-38, %v6012
  %v6014 = vsel %vm6011, %v6013, %v6009
  %v6015 = vmul.f32 1.0, %v6014
  %v6016 = vtanh.pop %v5958
  %v6017 = vmul.f32 %v6015, %v5897
  %6019 = vrot.lane.b32.xlu0 %v6016, 64
  %v6020 = vpop.permute.xlu0 %6019
  %v6022 = vmul.f32 %v6015, %v6020
  %6024 = vrot.lane.b32.xlu0 %v6022, 32
  %v6025 = vpop.permute.xlu0 %6024
  %v6027 = vadd.f32 %v6017, %v6025
  %v6028 = vtanh.pop %v6027
  %6030 = vrot.lane.b32.xlu0 %v6028, 64
  %v6031 = vpop.permute.xlu0 %6030
  %v6033 = vmul.f32 %v6015, %v6031
  %vm6034 = vcmp.gt.s32.totalorder %v5446, 3
  %vm6035 = vcmp.gt.s32.totalorder %v5446, 4
  %v6036 = vsel %vm6034, %v5996, 0.0
  %6038 = vrot.lane.b32.xlu0 %v6036, 32
  %v6039 = vpop.permute.xlu0 %6038
  %s6041 = scalar_lea.vmem [#allocation3], 24
  %6042 = vst.msk [vmem:[%s6041] sm:$0xff] %vm1583, %v6039
  %v6043 = vsel %vm6035, %v6033, 0.0
  %6045 = vrot.lane.b32.xlu0 %v6043, 32
  %v6046 = vpop.permute.xlu0 %6045
  %s6048 = scalar_lea.vmem [#allocation4], 32
  %6049 = vst.msk [vmem:[%s6048] sm:$0xff] %vm1583, %v6046
  %v6050 = vsel %vm6034, %v5996, %v5894
  %v6051 = vsel %vm6034, %v5990, %v5895
  %v6052 = vsel %vm6035, %v6033, %v5896
  %v6053 = vsel %vm6035, %v6027, %v5897
  %v6054 = vld [vmem:[%s8] sm:$0xff]
  %v6055 = vld [vmem:[%s8 + $0x8] sm:$0xff]
  %v6056 = vld [vmem:[%s8 + $0x10] sm:$0xff]
  %v6057 = vld [vmem:[%s8 + $0x18] sm:$0xff]
  %v6058 = vld [vmem:[%s5933] sm:$0xff]
  %6060 = vrot.lane.b32.xlu0 %v6050, 32
  %v6061 = vpop.permute.xlu0 %6060
  %v6062 = vsel %vm1583, %v6061, 0
  %6064 = vmatpush.msra.mxu0 0.0
  %6065 = vmatpush.msra.mxu0 0.0
  %6066 = vmatpush.msra.mxu0 0.0
  %6067 = vmatpush.msra.mxu0 0.0
  %6068 = vmatpush.msra.mxu0 0.0
  %6069 = vmatpush.msra.mxu0 0.0
  %6070 = vmatpush.msra.mxu0 0.0
  %6071 = vmatpush.msra.mxu0 0.0
  %6072 = vmatpush.msra.mxu0 0.0
  %6073 = vmatpush.msra.mxu0 0.0
  %6074 = vmatpush.msra.mxu0 0.0
  %6075 = vmatpush.msra.mxu0 0.0
  %6076 = vmatpush.msra.mxu0 %v6057
  %6077 = vmatpush.msra.mxu0 %v6056
  %6078 = vmatpush.msra.mxu0 %v6055
  %6079 = vmatpush.msra.mxu0 %v6054
  %6080 = vmatmul.f32.gmra.mxu0 %v6062
  %v6081 = vpop.f32.mrf.mxu0
  %v6082 = vadd.f32 %v6058, %v6081
  %6083 = vdwg.mxu0
  %v6084 = vld [vmem:[%s9] sm:$0xff]
  %v6085 = vld [vmem:[%s9 + $0x8] sm:$0xff]
  %v6086 = vld [vmem:[%s9 + $0x10] sm:$0xff]
  %v6087 = vld [vmem:[%s9 + $0x18] sm:$0xff]
  %v6088 = vld [vmem:[%s5902 + $0x8] sm:$0xff]
  %6090 = vrot.lane.b32.xlu0 %v6052, 32
  %v6091 = vpop.permute.xlu0 %6090
  %v6092 = vsel %vm1583, %v6091, 0
  %6094 = vmatpush.msra.mxu0 0.0
  %6095 = vmatpush.msra.mxu0 0.0
  %6096 = vmatpush.msra.mxu0 0.0
  %6097 = vmatpush.msra.mxu0 0.0
  %6098 = vmatpush.msra.mxu0 0.0
  %6099 = vmatpush.msra.mxu0 0.0
  %6100 = vmatpush.msra.mxu0 0.0
  %6101 = vmatpush.msra.mxu0 0.0
  %6102 = vmatpush.msra.mxu0 0.0
  %6103 = vmatpush.msra.mxu0 0.0
  %6104 = vmatpush.msra.mxu0 0.0
  %6105 = vmatpush.msra.mxu0 0.0
  %6106 = vmatpush.msra.mxu0 %v6087
  %6107 = vmatpush.msra.mxu0 %v6086
  %6108 = vmatpush.msra.mxu0 %v6085
  %6109 = vmatpush.msra.mxu0 %v6084
  %6110 = vmatmul.f32.gmra.mxu0 %v6092
  %v6111 = vpop.f32.mrf.mxu0
  %v6112 = vadd.f32 %v6088, %v6111
  %6113 = vdwg.mxu0
  %v6114 = vxor.u32 %v6082, 2147483648
  %v6115 = vmul.f32 %v6114, 1.442695
  %v6116 = vpow.pop %v6115
  %v6117 = vadd.f32 %v6116, 1.0
  %v6118 = vrcp.pop %v6117
  %v6119 = vmul.f32 %v6117, %v6118
  %v6120 = vsub.f32 1.0, %v6119
  %v6121 = vmul.f32 %v6118, %v6120
  %v6122 = vadd.f32 %v6118, %v6121
  %vm6123 = vweird.f32 %v6117
  %vm6124 = vweird.f32 %v6118
  %vm6125 = vmor %vm6123, %vm6124
  %v6126 = vsel %vm6125, %v6118, %v6122
  %v6127 = vand.u32 2147483647, %v6117
  %vm6128 = vcmp.eq.f32.partialorder %v6127, 8.507059e+37
  %v6129 = vand.u32 %v6117, 2147483648
  %v6130 = vor.u32 1.1754944e-38, %v6129
  %v6131 = vsel %vm6128, %v6130, %v6126
  %v6132 = vmul.f32 1.0, %v6131
  %v6133 = vtanh.pop %v6082
  %v6134 = vmul.f32 %v6132, %v6051
  %6136 = vrot.lane.b32.xlu0 %v6133, 64
  %v6137 = vpop.permute.xlu0 %6136
  %v6139 = vmul.f32 %v6132, %v6137
  %6141 = vrot.lane.b32.xlu0 %v6139, 32
  %v6142 = vpop.permute.xlu0 %6141
  %v6144 = vadd.f32 %v6134, %v6142
  %v6145 = vtanh.pop %v6144
  %6147 = vrot.lane.b32.xlu0 %v6145, 64
  %v6148 = vpop.permute.xlu0 %6147
  %v6150 = vmul.f32 %v6132, %v6148
  %v6151 = vxor.u32 %v6112, 2147483648
  %v6152 = vmul.f32 %v6151, 1.442695
  %v6153 = vpow.pop %v6152
  %v6154 = vadd.f32 %v6153, 1.0
  %v6155 = vrcp.pop %v6154
  %v6156 = vmul.f32 %v6154, %v6155
  %v6157 = vsub.f32 1.0, %v6156
  %v6158 = vmul.f32 %v6155, %v6157
  %v6159 = vadd.f32 %v6155, %v6158
  %vm6160 = vweird.f32 %v6154
  %vm6161 = vweird.f32 %v6155
  %vm6162 = vmor %vm6160, %vm6161
  %v6163 = vsel %vm6162, %v6155, %v6159
  %v6164 = vand.u32 2147483647, %v6154
  %vm6165 = vcmp.eq.f32.partialorder %v6164, 8.507059e+37
  %v6166 = vand.u32 %v6154, 2147483648
  %v6167 = vor.u32 1.1754944e-38, %v6166
  %v6168 = vsel %vm6165, %v6167, %v6163
  %v6169 = vmul.f32 1.0, %v6168
  %v6170 = vtanh.pop %v6112
  %v6171 = vmul.f32 %v6169, %v6053
  %6173 = vrot.lane.b32.xlu0 %v6170, 64
  %v6174 = vpop.permute.xlu0 %6173
  %v6176 = vmul.f32 %v6169, %v6174
  %6178 = vrot.lane.b32.xlu0 %v6176, 32
  %v6179 = vpop.permute.xlu0 %6178
  %v6181 = vadd.f32 %v6171, %v6179
  %v6182 = vtanh.pop %v6181
  %6184 = vrot.lane.b32.xlu0 %v6182, 64
  %v6185 = vpop.permute.xlu0 %6184
  %v6187 = vmul.f32 %v6169, %v6185
  %v6188 = vsel %vm6035, %v6150, 0.0
  %6190 = vrot.lane.b32.xlu0 %v6188, 32
  %v6191 = vpop.permute.xlu0 %6190
  %s6193 = scalar_lea.vmem [#allocation3], 32
  %6194 = vst.msk [vmem:[%s6193] sm:$0xff] %vm1583, %v6191
  %v6195 = vsel %vm6034, %v6187, 0.0
  %6197 = vrot.lane.b32.xlu0 %v6195, 32
  %v6198 = vpop.permute.xlu0 %6197
  %s6200 = scalar_lea.vmem [#allocation4], 24
  %6201 = vst.msk [vmem:[%s6200] sm:$0xff] %vm1583, %v6198
  %v6202 = vsel %vm6035, %v6150, %v6050
  %v6203 = vsel %vm6035, %v6144, %v6051
  %v6204 = vsel %vm6034, %v6187, %v6052
  %v6205 = vsel %vm6034, %v6181, %v6053
  %v6206 = vld [vmem:[%s8] sm:$0xff]
  %v6207 = vld [vmem:[%s8 + $0x8] sm:$0xff]
  %v6208 = vld [vmem:[%s8 + $0x10] sm:$0xff]
  %v6209 = vld [vmem:[%s8 + $0x18] sm:$0xff]
  %v6210 = vld [vmem:[%s5777] sm:$0xff]
  %6212 = vrot.lane.b32.xlu0 %v6202, 32
  %v6213 = vpop.permute.xlu0 %6212
  %v6214 = vsel %vm1583, %v6213, 0
  %6216 = vmatpush.msra.mxu0 0.0
  %6217 = vmatpush.msra.mxu0 0.0
  %6218 = vmatpush.msra.mxu0 0.0
  %6219 = vmatpush.msra.mxu0 0.0
  %6220 = vmatpush.msra.mxu0 0.0
  %6221 = vmatpush.msra.mxu0 0.0
  %6222 = vmatpush.msra.mxu0 0.0
  %6223 = vmatpush.msra.mxu0 0.0
  %6224 = vmatpush.msra.mxu0 0.0
  %6225 = vmatpush.msra.mxu0 0.0
  %6226 = vmatpush.msra.mxu0 0.0
  %6227 = vmatpush.msra.mxu0 0.0
  %6228 = vmatpush.msra.mxu0 %v6209
  %6229 = vmatpush.msra.mxu0 %v6208
  %6230 = vmatpush.msra.mxu0 %v6207
  %6231 = vmatpush.msra.mxu0 %v6206
  %6232 = vmatmul.f32.gmra.mxu0 %v6214
  %v6233 = vpop.f32.mrf.mxu0
  %v6234 = vadd.f32 %v6210, %v6233
  %6235 = vdwg.mxu0
  %v6236 = vld [vmem:[%s9] sm:$0xff]
  %v6237 = vld [vmem:[%s9 + $0x8] sm:$0xff]
  %v6238 = vld [vmem:[%s9 + $0x10] sm:$0xff]
  %v6239 = vld [vmem:[%s9 + $0x18] sm:$0xff]
  %v6240 = vld [vmem:[%s5746 + $0x8] sm:$0xff]
  %6242 = vrot.lane.b32.xlu0 %v6204, 32
  %v6243 = vpop.permute.xlu0 %6242
  %v6244 = vsel %vm1583, %v6243, 0
  %6246 = vmatpush.msra.mxu0 0.0
  %6247 = vmatpush.msra.mxu0 0.0
  %6248 = vmatpush.msra.mxu0 0.0
  %6249 = vmatpush.msra.mxu0 0.0
  %6250 = vmatpush.msra.mxu0 0.0
  %6251 = vmatpush.msra.mxu0 0.0
  %6252 = vmatpush.msra.mxu0 0.0
  %6253 = vmatpush.msra.mxu0 0.0
  %6254 = vmatpush.msra.mxu0 0.0
  %6255 = vmatpush.msra.mxu0 0.0
  %6256 = vmatpush.msra.mxu0 0.0
  %6257 = vmatpush.msra.mxu0 0.0
  %6258 = vmatpush.msra.mxu0 %v6239
  %6259 = vmatpush.msra.mxu0 %v6238
  %6260 = vmatpush.msra.mxu0 %v6237
  %6261 = vmatpush.msra.mxu0 %v6236
  %6262 = vmatmul.f32.gmra.mxu0 %v6244
  %v6263 = vpop.f32.mrf.mxu0
  %v6264 = vadd.f32 %v6240, %v6263
  %6265 = vdwg.mxu0
  %v6266 = vxor.u32 %v6234, 2147483648
  %v6267 = vmul.f32 %v6266, 1.442695
  %v6268 = vpow.pop %v6267
  %v6269 = vadd.f32 %v6268, 1.0
  %v6270 = vrcp.pop %v6269
  %v6271 = vmul.f32 %v6269, %v6270
  %v6272 = vsub.f32 1.0, %v6271
  %v6273 = vmul.f32 %v6270, %v6272
  %v6274 = vadd.f32 %v6270, %v6273
  %vm6275 = vweird.f32 %v6269
  %vm6276 = vweird.f32 %v6270
  %vm6277 = vmor %vm6275, %vm6276
  %v6278 = vsel %vm6277, %v6270, %v6274
  %v6279 = vand.u32 2147483647, %v6269
  %vm6280 = vcmp.eq.f32.partialorder %v6279, 8.507059e+37
  %v6281 = vand.u32 %v6269, 2147483648
  %v6282 = vor.u32 1.1754944e-38, %v6281
  %v6283 = vsel %vm6280, %v6282, %v6278
  %v6284 = vmul.f32 1.0, %v6283
  %v6285 = vtanh.pop %v6234
  %v6286 = vmul.f32 %v6284, %v6203
  %6288 = vrot.lane.b32.xlu0 %v6285, 64
  %v6289 = vpop.permute.xlu0 %6288
  %v6291 = vmul.f32 %v6284, %v6289
  %6293 = vrot.lane.b32.xlu0 %v6291, 32
  %v6294 = vpop.permute.xlu0 %6293
  %v6296 = vadd.f32 %v6286, %v6294
  %v6297 = vtanh.pop %v6296
  %6299 = vrot.lane.b32.xlu0 %v6297, 64
  %v6300 = vpop.permute.xlu0 %6299
  %v6302 = vmul.f32 %v6284, %v6300
  %v6303 = vxor.u32 %v6264, 2147483648
  %v6304 = vmul.f32 %v6303, 1.442695
  %v6305 = vpow.pop %v6304
  %v6306 = vadd.f32 %v6305, 1.0
  %v6307 = vrcp.pop %v6306
  %v6308 = vmul.f32 %v6306, %v6307
  %v6309 = vsub.f32 1.0, %v6308
  %v6310 = vmul.f32 %v6307, %v6309
  %v6311 = vadd.f32 %v6307, %v6310
  %vm6312 = vweird.f32 %v6306
  %vm6313 = vweird.f32 %v6307
  %vm6314 = vmor %vm6312, %vm6313
  %v6315 = vsel %vm6314, %v6307, %v6311
  %v6316 = vand.u32 2147483647, %v6306
  %vm6317 = vcmp.eq.f32.partialorder %v6316, 8.507059e+37
  %v6318 = vand.u32 %v6306, 2147483648
  %v6319 = vor.u32 1.1754944e-38, %v6318
  %v6320 = vsel %vm6317, %v6319, %v6315
  %v6321 = vmul.f32 1.0, %v6320
  %v6322 = vtanh.pop %v6264
  %v6323 = vmul.f32 %v6321, %v6205
  %6325 = vrot.lane.b32.xlu0 %v6322, 64
  %v6326 = vpop.permute.xlu0 %6325
  %v6328 = vmul.f32 %v6321, %v6326
  %6330 = vrot.lane.b32.xlu0 %v6328, 32
  %v6331 = vpop.permute.xlu0 %6330
  %v6333 = vadd.f32 %v6323, %v6331
  %v6334 = vtanh.pop %v6333
  %6336 = vrot.lane.b32.xlu0 %v6334, 64
  %v6337 = vpop.permute.xlu0 %6336
  %v6339 = vmul.f32 %v6321, %v6337
  %v6340 = vsel %vm5879, %v6302, 0.0
  %6342 = vrot.lane.b32.xlu0 %v6340, 32
  %v6343 = vpop.permute.xlu0 %6342
  %s6345 = scalar_lea.vmem [#allocation3], 40
  %6346 = vst.msk [vmem:[%s6345] sm:$0xff] %vm1583, %v6343
  %v6347 = vsel %vm5878, %v6339, 0.0
  %6349 = vrot.lane.b32.xlu0 %v6347, 32
  %v6350 = vpop.permute.xlu0 %6349
  %s6352 = scalar_lea.vmem [#allocation4], 16
  %6353 = vst.msk [vmem:[%s6352] sm:$0xff] %vm1583, %v6350
  %v6354 = vsel %vm5879, %v6302, %v6202
  %v6355 = vsel %vm5879, %v6296, %v6203
  %v6356 = vsel %vm5878, %v6339, %v6204
  %v6357 = vsel %vm5878, %v6333, %v6205
  %v6358 = vld [vmem:[%s8] sm:$0xff]
  %v6359 = vld [vmem:[%s8 + $0x8] sm:$0xff]
  %v6360 = vld [vmem:[%s8 + $0x10] sm:$0xff]
  %v6361 = vld [vmem:[%s8 + $0x18] sm:$0xff]
  %v6362 = vld [vmem:[%s5624] sm:$0xff]
  %6364 = vrot.lane.b32.xlu0 %v6354, 32
  %v6365 = vpop.permute.xlu0 %6364
  %v6366 = vsel %vm1583, %v6365, 0
  %6368 = vmatpush.msra.mxu0 0.0
  %6369 = vmatpush.msra.mxu0 0.0
  %6370 = vmatpush.msra.mxu0 0.0
  %6371 = vmatpush.msra.mxu0 0.0
  %6372 = vmatpush.msra.mxu0 0.0
  %6373 = vmatpush.msra.mxu0 0.0
  %6374 = vmatpush.msra.mxu0 0.0
  %6375 = vmatpush.msra.mxu0 0.0
  %6376 = vmatpush.msra.mxu0 0.0
  %6377 = vmatpush.msra.mxu0 0.0
  %6378 = vmatpush.msra.mxu0 0.0
  %6379 = vmatpush.msra.mxu0 0.0
  %6380 = vmatpush.msra.mxu0 %v6361
  %6381 = vmatpush.msra.mxu0 %v6360
  %6382 = vmatpush.msra.mxu0 %v6359
  %6383 = vmatpush.msra.mxu0 %v6358
  %6384 = vmatmul.f32.gmra.mxu0 %v6366
  %v6385 = vpop.f32.mrf.mxu0
  %v6386 = vadd.f32 %v6362, %v6385
  %6387 = vdwg.mxu0
  %v6388 = vld [vmem:[%s9] sm:$0xff]
  %v6389 = vld [vmem:[%s9 + $0x8] sm:$0xff]
  %v6390 = vld [vmem:[%s9 + $0x10] sm:$0xff]
  %v6391 = vld [vmem:[%s9 + $0x18] sm:$0xff]
  %v6392 = vld [vmem:[%s5596 + $0x8] sm:$0xff]
  %6394 = vrot.lane.b32.xlu0 %v6356, 32
  %v6395 = vpop.permute.xlu0 %6394
  %v6396 = vsel %vm1583, %v6395, 0
  %6398 = vmatpush.msra.mxu0 0.0
  %6399 = vmatpush.msra.mxu0 0.0
  %6400 = vmatpush.msra.mxu0 0.0
  %6401 = vmatpush.msra.mxu0 0.0
  %6402 = vmatpush.msra.mxu0 0.0
  %6403 = vmatpush.msra.mxu0 0.0
  %6404 = vmatpush.msra.mxu0 0.0
  %6405 = vmatpush.msra.mxu0 0.0
  %6406 = vmatpush.msra.mxu0 0.0
  %6407 = vmatpush.msra.mxu0 0.0
  %6408 = vmatpush.msra.mxu0 0.0
  %6409 = vmatpush.msra.mxu0 0.0
  %6410 = vmatpush.msra.mxu0 %v6391
  %6411 = vmatpush.msra.mxu0 %v6390
  %6412 = vmatpush.msra.mxu0 %v6389
  %6413 = vmatpush.msra.mxu0 %v6388
  %6414 = vmatmul.f32.gmra.mxu0 %v6396
  %v6415 = vpop.f32.mrf.mxu0
  %v6416 = vadd.f32 %v6392, %v6415
  %6417 = vdwg.mxu0
  %v6418 = vxor.u32 %v6386, 2147483648
  %v6419 = vmul.f32 %v6418, 1.442695
  %v6420 = vpow.pop %v6419
  %v6421 = vadd.f32 %v6420, 1.0
  %v6422 = vrcp.pop %v6421
  %v6423 = vmul.f32 %v6421, %v6422
  %v6424 = vsub.f32 1.0, %v6423
  %v6425 = vmul.f32 %v6422, %v6424
  %v6426 = vadd.f32 %v6422, %v6425
  %vm6427 = vweird.f32 %v6421
  %vm6428 = vweird.f32 %v6422
  %vm6429 = vmor %vm6427, %vm6428
  %v6430 = vsel %vm6429, %v6422, %v6426
  %v6431 = vand.u32 2147483647, %v6421
  %vm6432 = vcmp.eq.f32.partialorder %v6431, 8.507059e+37
  %v6433 = vand.u32 %v6421, 2147483648
  %v6434 = vor.u32 1.1754944e-38, %v6433
  %v6435 = vsel %vm6432, %v6434, %v6430
  %v6436 = vmul.f32 1.0, %v6435
  %v6437 = vtanh.pop %v6386
  %v6438 = vmul.f32 %v6436, %v6355
  %6440 = vrot.lane.b32.xlu0 %v6437, 64
  %v6441 = vpop.permute.xlu0 %6440
  %v6443 = vmul.f32 %v6436, %v6441
  %6445 = vrot.lane.b32.xlu0 %v6443, 32
  %v6446 = vpop.permute.xlu0 %6445
  %v6448 = vadd.f32 %v6438, %v6446
  %v6449 = vtanh.pop %v6448
  %6451 = vrot.lane.b32.xlu0 %v6449, 64
  %v6452 = vpop.permute.xlu0 %6451
  %v6454 = vmul.f32 %v6436, %v6452
  %v6455 = vxor.u32 %v6416, 2147483648
  %v6456 = vmul.f32 %v6455, 1.442695
  %v6457 = vpow.pop %v6456
  %v6458 = vadd.f32 %v6457, 1.0
  %v6459 = vrcp.pop %v6458
  %v6460 = vmul.f32 %v6458, %v6459
  %v6461 = vsub.f32 1.0, %v6460
  %v6462 = vmul.f32 %v6459, %v6461
  %v6463 = vadd.f32 %v6459, %v6462
  %vm6464 = vweird.f32 %v6458
  %vm6465 = vweird.f32 %v6459
  %vm6466 = vmor %vm6464, %vm6465
  %v6467 = vsel %vm6466, %v6459, %v6463
  %v6468 = vand.u32 2147483647, %v6458
  %vm6469 = vcmp.eq.f32.partialorder %v6468, 8.507059e+37
  %v6470 = vand.u32 %v6458, 2147483648
  %v6471 = vor.u32 1.1754944e-38, %v6470
  %v6472 = vsel %vm6469, %v6471, %v6467
  %v6473 = vmul.f32 1.0, %v6472
  %v6474 = vtanh.pop %v6416
  %v6475 = vmul.f32 %v6473, %v6357
  %6477 = vrot.lane.b32.xlu0 %v6474, 64
  %v6478 = vpop.permute.xlu0 %6477
  %v6480 = vmul.f32 %v6473, %v6478
  %6482 = vrot.lane.b32.xlu0 %v6480, 32
  %v6483 = vpop.permute.xlu0 %6482
  %v6485 = vadd.f32 %v6475, %v6483
  %v6486 = vtanh.pop %v6485
  %6488 = vrot.lane.b32.xlu0 %v6486, 64
  %v6489 = vpop.permute.xlu0 %6488
  %v6491 = vmul.f32 %v6473, %v6489
  %v6492 = vsel %vm5723, %v6454, 0.0
  %6494 = vrot.lane.b32.xlu0 %v6492, 32
  %v6495 = vpop.permute.xlu0 %6494
  %s6497 = scalar_lea.vmem [#allocation3], 48
  %6498 = vst.msk [vmem:[%s6497] sm:$0xff] %vm1583, %v6495
  %v6499 = vsel %vm5722, %v6491, 0.0
  %6501 = vrot.lane.b32.xlu0 %v6499, 32
  %v6502 = vpop.permute.xlu0 %6501
  %s6504 = scalar_lea.vmem [#allocation4], 8
  %6505 = vst.msk [vmem:[%s6504] sm:$0xff] %vm1583, %v6502
  %v6506 = vsel %vm5723, %v6454, %v6354
  %v6507 = vsel %vm5723, %v6448, %v6355
  %v6508 = vsel %vm5722, %v6491, %v6356
  %v6509 = vsel %vm5722, %v6485, %v6357
  %v6510 = vld [vmem:[%s8] sm:$0xff]
  %v6511 = vld [vmem:[%s8 + $0x8] sm:$0xff]
  %v6512 = vld [vmem:[%s8 + $0x10] sm:$0xff]
  %v6513 = vld [vmem:[%s8 + $0x18] sm:$0xff]
  %v6514 = vld [vmem:[%s5479] sm:$0xff]
  %6516 = vrot.lane.b32.xlu0 %v6506, 32
  %v6517 = vpop.permute.xlu0 %6516
  %v6518 = vsel %vm1583, %v6517, 0
  %6520 = vmatpush.msra.mxu0 0.0
  %6521 = vmatpush.msra.mxu0 0.0
  %6522 = vmatpush.msra.mxu0 0.0
  %6523 = vmatpush.msra.mxu0 0.0
  %6524 = vmatpush.msra.mxu0 0.0
  %6525 = vmatpush.msra.mxu0 0.0
  %6526 = vmatpush.msra.mxu0 0.0
  %6527 = vmatpush.msra.mxu0 0.0
  %6528 = vmatpush.msra.mxu0 0.0
  %6529 = vmatpush.msra.mxu0 0.0
  %6530 = vmatpush.msra.mxu0 0.0
  %6531 = vmatpush.msra.mxu0 0.0
  %6532 = vmatpush.msra.mxu0 %v6513
  %6533 = vmatpush.msra.mxu0 %v6512
  %6534 = vmatpush.msra.mxu0 %v6511
  %6535 = vmatpush.msra.mxu0 %v6510
  %6536 = vmatmul.f32.gmra.mxu0 %v6518
  %v6537 = vpop.f32.mrf.mxu0
  %v6538 = vadd.f32 %v6514, %v6537
  %6539 = vdwg.mxu0
  %v6540 = vld [vmem:[%s9] sm:$0xff]
  %v6541 = vld [vmem:[%s9 + $0x8] sm:$0xff]
  %v6542 = vld [vmem:[%s9 + $0x10] sm:$0xff]
  %v6543 = vld [vmem:[%s9 + $0x18] sm:$0xff]
  %v6544 = vld [vmem:[#allocation2 + $0x8] sm:$0xff]
  %6546 = vrot.lane.b32.xlu0 %v6508, 32
  %v6547 = vpop.permute.xlu0 %6546
  %v6548 = vsel %vm1583, %v6547, 0
  %6550 = vmatpush.msra.mxu0 0.0
  %6551 = vmatpush.msra.mxu0 0.0
  %6552 = vmatpush.msra.mxu0 0.0
  %6553 = vmatpush.msra.mxu0 0.0
  %6554 = vmatpush.msra.mxu0 0.0
  %6555 = vmatpush.msra.mxu0 0.0
  %6556 = vmatpush.msra.mxu0 0.0
  %6557 = vmatpush.msra.mxu0 0.0
  %6558 = vmatpush.msra.mxu0 0.0
  %6559 = vmatpush.msra.mxu0 0.0
  %6560 = vmatpush.msra.mxu0 0.0
  %6561 = vmatpush.msra.mxu0 0.0
  %6562 = vmatpush.msra.mxu0 %v6543
  %6563 = vmatpush.msra.mxu0 %v6542
  %6564 = vmatpush.msra.mxu0 %v6541
  %6565 = vmatpush.msra.mxu0 %v6540
  %6566 = vmatmul.f32.gmra.mxu0 %v6548
  %v6567 = vpop.f32.mrf.mxu0
  %v6568 = vadd.f32 %v6544, %v6567
  %6569 = vdwg.mxu0
  %v6570 = vxor.u32 %v6538, 2147483648
  %v6571 = vmul.f32 %v6570, 1.442695
  %v6572 = vpow.pop %v6571
  %v6573 = vadd.f32 %v6572, 1.0
  %v6574 = vrcp.pop %v6573
  %v6575 = vmul.f32 %v6573, %v6574
  %v6576 = vsub.f32 1.0, %v6575
  %v6577 = vmul.f32 %v6574, %v6576
  %v6578 = vadd.f32 %v6574, %v6577
  %vm6579 = vweird.f32 %v6573
  %vm6580 = vweird.f32 %v6574
  %vm6581 = vmor %vm6579, %vm6580
  %v6582 = vsel %vm6581, %v6574, %v6578
  %v6583 = vand.u32 2147483647, %v6573
  %vm6584 = vcmp.eq.f32.partialorder %v6583, 8.507059e+37
  %v6585 = vand.u32 %v6573, 2147483648
  %v6586 = vor.u32 1.1754944e-38, %v6585
  %v6587 = vsel %vm6584, %v6586, %v6582
  %v6588 = vmul.f32 1.0, %v6587
  %v6589 = vtanh.pop %v6538
  %v6590 = vmul.f32 %v6588, %v6507
  %6592 = vrot.lane.b32.xlu0 %v6589, 64
  %v6593 = vpop.permute.xlu0 %6592
  %v6595 = vmul.f32 %v6588, %v6593
  %6597 = vrot.lane.b32.xlu0 %v6595, 32
  %v6598 = vpop.permute.xlu0 %6597
  %v6600 = vadd.f32 %v6590, %v6598
  %v6601 = vtanh.pop %v6600
  %6603 = vrot.lane.b32.xlu0 %v6601, 64
  %v6604 = vpop.permute.xlu0 %6603
  %v6606 = vmul.f32 %v6588, %v6604
  %v6607 = vxor.u32 %v6568, 2147483648
  %v6608 = vmul.f32 %v6607, 1.442695
  %v6609 = vpow.pop %v6608
  %v6610 = vadd.f32 %v6609, 1.0
  %v6611 = vrcp.pop %v6610
  %v6612 = vmul.f32 %v6610, %v6611
  %v6613 = vsub.f32 1.0, %v6612
  %v6614 = vmul.f32 %v6611, %v6613
  %v6615 = vadd.f32 %v6611, %v6614
  %vm6616 = vweird.f32 %v6610
  %vm6617 = vweird.f32 %v6611
  %vm6618 = vmor %vm6616, %vm6617
  %v6619 = vsel %vm6618, %v6611, %v6615
  %v6620 = vand.u32 2147483647, %v6610
  %vm6621 = vcmp.eq.f32.partialorder %v6620, 8.507059e+37
  %v6622 = vand.u32 %v6610, 2147483648
  %v6623 = vor.u32 1.1754944e-38, %v6622
  %v6624 = vsel %vm6621, %v6623, %v6619
  %v6625 = vmul.f32 1.0, %v6624
  %v6626 = vtanh.pop %v6568
  %v6627 = vmul.f32 %v6625, %v6509
  %6629 = vrot.lane.b32.xlu0 %v6626, 64
  %v6630 = vpop.permute.xlu0 %6629
  %v6632 = vmul.f32 %v6625, %v6630
  %6634 = vrot.lane.b32.xlu0 %v6632, 32
  %v6635 = vpop.permute.xlu0 %6634
  %v6637 = vadd.f32 %v6627, %v6635
  %v6638 = vtanh.pop %v6637
  %6640 = vrot.lane.b32.xlu0 %v6638, 64
  %v6641 = vpop.permute.xlu0 %6640
  %v6643 = vmul.f32 %v6625, %v6641
  %v6644 = vsel %vm5576, %v6606, 0.0
  %6646 = vrot.lane.b32.xlu0 %v6644, 32
  %v6647 = vpop.permute.xlu0 %6646
  %s6649 = scalar_lea.vmem [#allocation3], 56
  %6650 = vst.msk [vmem:[%s6649] sm:$0xff] %vm1583, %v6647
  %v6651 = vsel %vm5575, %v6643, 0.0
  %6653 = vrot.lane.b32.xlu0 %v6651, 32
  %v6654 = vpop.permute.xlu0 %6653
  %6656 = vst.msk [vmem:[#allocation4] sm:$0xff] %vm1583, %v6654
  %v6657 = vld [vmem:[#allocation3] sm:$0xff]
  %v6658 = vld [vmem:[#allocation3 + $0x8] sm:$0xff]
  %v6659 = vld [vmem:[#allocation3 + $0x10] sm:$0xff]
  %v6660 = vld [vmem:[#allocation3 + $0x18] sm:$0xff]
  %v6661 = vld [vmem:[#allocation3 + $0x20] sm:$0xff]
  %v6662 = vld [vmem:[#allocation3 + $0x28] sm:$0xff]
  %v6663 = vld [vmem:[#allocation3 + $0x30] sm:$0xff]
  %v6664 = vld [vmem:[#allocation3 + $0x38] sm:$0xff]
  %v6665 = vld [vmem:[%s10] sm:$0xff]
  %v6666 = vld [vmem:[%s10 + $0x8] sm:$0xff]
  %v6667 = vld [vmem:[%s10 + $0x10] sm:$0xff]
  %v6668 = vld [vmem:[%s10 + $0x18] sm:$0xff]
  %v6669 = vld [vmem:[#allocation4] sm:$0xff]
  %v6670 = vld [vmem:[#allocation4 + $0x8] sm:$0xff]
  %v6671 = vld [vmem:[#allocation4 + $0x10] sm:$0xff]
  %v6672 = vld [vmem:[#allocation4 + $0x18] sm:$0xff]
  %v6673 = vld [vmem:[#allocation4 + $0x20] sm:$0xff]
  %v6674 = vld [vmem:[#allocation4 + $0x28] sm:$0xff]
  %v6675 = vld [vmem:[#allocation4 + $0x30] sm:$0xff]
  %v6676 = vld [vmem:[#allocation4 + $0x38] sm:$0xff]
  %v6677 = vld [vmem:[%s11] sm:$0xff]
  %v6678 = vld [vmem:[%s11 + $0x8] sm:$0xff]
  %v6679 = vld [vmem:[%s11 + $0x10] sm:$0xff]
  %v6680 = vld [vmem:[%s11 + $0x18] sm:$0xff]
  %v6682 = vsel %vm1583, %v6669, 0
  %v6685 = vsel %vm1583, %v6670, 0
  %v6688 = vsel %vm1583, %v6671, 0
  %v6691 = vsel %vm1583, %v6672, 0
  %v6694 = vsel %vm1583, %v6673, 0
  %v6697 = vsel %vm1583, %v6674, 0
  %v6700 = vsel %vm1583, %v6675, 0
  %v6703 = vsel %vm1583, %v6676, 0
  %6705 = vmatpush.msra.mxu0 0.0
  %6706 = vmatpush.msra.mxu0 0.0
  %6707 = vmatpush.msra.mxu0 0.0
  %6708 = vmatpush.msra.mxu0 0.0
  %6709 = vmatpush.msra.mxu0 0.0
  %6710 = vmatpush.msra.mxu0 0.0
  %6711 = vmatpush.msra.mxu0 0.0
  %6712 = vmatpush.msra.mxu0 0.0
  %6713 = vmatpush.msra.mxu0 0.0
  %6714 = vmatpush.msra.mxu0 0.0
  %6715 = vmatpush.msra.mxu0 0.0
  %6716 = vmatpush.msra.mxu0 0.0
  %6717 = vmatpush.msra.mxu0 %v6680
  %6718 = vmatpush.msra.mxu0 %v6679
  %6719 = vmatpush.msra.mxu0 %v6678
  %6720 = vmatpush.msra.mxu0 %v6677
  %6721 = vmatmul.f32.gmra.mxu0 %v6682
  %v6722 = vpop.f32.mrf.mxu0
  %v6723 = vadd.f32 0.0, %v6722
  %6724 = vmatmul.f32.gmra.mxu0 %v6685
  %v6725 = vpop.f32.mrf.mxu0
  %v6726 = vadd.f32 0.0, %v6725
  %6727 = vmatmul.f32.gmra.mxu0 %v6688
  %v6728 = vpop.f32.mrf.mxu0
  %v6729 = vadd.f32 0.0, %v6728
  %6730 = vmatmul.f32.gmra.mxu0 %v6691
  %v6731 = vpop.f32.mrf.mxu0
  %v6732 = vadd.f32 0.0, %v6731
  %6733 = vmatmul.f32.gmra.mxu0 %v6694
  %v6734 = vpop.f32.mrf.mxu0
  %v6735 = vadd.f32 0.0, %v6734
  %6736 = vmatmul.f32.gmra.mxu0 %v6697
  %v6737 = vpop.f32.mrf.mxu0
  %v6738 = vadd.f32 0.0, %v6737
  %6739 = vmatmul.f32.gmra.mxu0 %v6700
  %v6740 = vpop.f32.mrf.mxu0
  %v6741 = vadd.f32 0.0, %v6740
  %6742 = vmatmul.f32.gmra.mxu0 %v6703
  %v6743 = vpop.f32.mrf.mxu0
  %v6744 = vadd.f32 0.0, %v6743
  %6745 = vdwg.mxu0
  %v6747 = vsel %vm1583, %v6657, 0
  %v6750 = vsel %vm1583, %v6658, 0
  %v6753 = vsel %vm1583, %v6659, 0
  %v6756 = vsel %vm1583, %v6660, 0
  %v6759 = vsel %vm1583, %v6661, 0
  %v6762 = vsel %vm1583, %v6662, 0
  %v6765 = vsel %vm1583, %v6663, 0
  %v6768 = vsel %vm1583, %v6664, 0
  %6770 = vmatpush.msra.mxu0 0.0
  %6771 = vmatpush.msra.mxu0 0.0
  %6772 = vmatpush.msra.mxu0 0.0
  %6773 = vmatpush.msra.mxu0 0.0
  %6774 = vmatpush.msra.mxu0 0.0
  %6775 = vmatpush.msra.mxu0 0.0
  %6776 = vmatpush.msra.mxu0 0.0
  %6777 = vmatpush.msra.mxu0 0.0
  %6778 = vmatpush.msra.mxu0 0.0
  %6779 = vmatpush.msra.mxu0 0.0
  %6780 = vmatpush.msra.mxu0 0.0
  %6781 = vmatpush.msra.mxu0 0.0
  %6782 = vmatpush.msra.mxu0 %v6668
  %6783 = vmatpush.msra.mxu0 %v6667
  %6784 = vmatpush.msra.mxu0 %v6666
  %6785 = vmatpush.msra.mxu0 %v6665
  %6786 = vmatmul.f32.gmra.mxu0 %v6747
  %v6787 = vpop.f32.mrf.mxu0
  %v6788 = vadd.f32 %v6723, %v6787
  %6789 = vmatmul.f32.gmra.mxu0 %v6750
  %v6790 = vpop.f32.mrf.mxu0
  %v6791 = vadd.f32 %v6726, %v6790
  %6792 = vmatmul.f32.gmra.mxu0 %v6753
  %v6793 = vpop.f32.mrf.mxu0
  %v6794 = vadd.f32 %v6729, %v6793
  %6795 = vmatmul.f32.gmra.mxu0 %v6756
  %v6796 = vpop.f32.mrf.mxu0
  %v6797 = vadd.f32 %v6732, %v6796
  %6798 = vmatmul.f32.gmra.mxu0 %v6759
  %v6799 = vpop.f32.mrf.mxu0
  %v6800 = vadd.f32 %v6735, %v6799
  %6801 = vmatmul.f32.gmra.mxu0 %v6762
  %v6802 = vpop.f32.mrf.mxu0
  %v6803 = vadd.f32 %v6738, %v6802
  %6804 = vmatmul.f32.gmra.mxu0 %v6765
  %v6805 = vpop.f32.mrf.mxu0
  %v6806 = vadd.f32 %v6741, %v6805
  %6807 = vmatmul.f32.gmra.mxu0 %v6768
  %v6808 = vpop.f32.mrf.mxu0
  %v6809 = vadd.f32 %v6744, %v6808
  %6810 = vdwg.mxu0
  %v6811 = vld [vmem:[%s12] sm:$0x1]
  %v6813 = vperm.slane %v6811, 0
  %v6815 = vadd.f32 %v6788, %v6813
  %v6816 = vadd.f32 %v6791, %v6813
  %v6817 = vadd.f32 %v6794, %v6813
  %v6818 = vadd.f32 %v6797, %v6813
  %v6819 = vadd.f32 %v6800, %v6813
  %v6820 = vadd.f32 %v6803, %v6813
  %v6821 = vadd.f32 %v6806, %v6813
  %v6822 = vadd.f32 %v6809, %v6813
  %6823 = vst [vmem:[%s13] sm:$0xff] %v6815
  %6824 = vst [vmem:[%s13 + $0x8] sm:$0xff] %v6816
  %6825 = vst [vmem:[%s13 + $0x10] sm:$0xff] %v6817
  %6826 = vst [vmem:[%s13 + $0x18] sm:$0xff] %v6818
  %6827 = vst [vmem:[%s13 + $0x20] sm:$0xff] %v6819
  %6828 = vst [vmem:[%s13 + $0x28] sm:$0xff] %v6820
  %6829 = vst [vmem:[%s13 + $0x30] sm:$0xff] %v6821
  %6830 = vst [vmem:[%s13 + $0x38] sm:$0xff] %v6822
  // Predicated region
  $region54: #{bilstm_crf_forward.1} parent=0 // pred_check
    _
  $region55: #{bilstm_crf_forward.1} parent=0 // pred_check_branch
    %6832 = sbr.rel (0) target = $region57
  $region56: #{bilstm_crf_forward.1} parent=0 // pred_region
    _
  $region57: #{bilstm_crf_forward.1} parent=0 // pred_fallthru
    _
  // Predicated region
  $region58: #{bilstm_crf_forward.1} parent=0 // pred_check
    _
  $region59: #{bilstm_crf_forward.1} parent=0 // pred_check_branch
    %6834 = sbr.rel (0) target = $region61
  $region60: #{bilstm_crf_forward.1} parent=0 // pred_region
    _
  $region61: #{bilstm_crf_forward.1} parent=0 // pred_fallthru
    _

</llo_original>
